<compile_context>
chip_gen: v6e
topology: v6e:2x2x1
jax: 0.10.0
libtpu: 0.0.40
codegen_flags: <defaults>
</compile_context>

<pallas_src>
import math
import numpy as np
import jax
import jax.numpy as jnp
from jax import lax
from jax.experimental import pallas as pl
from jax.experimental.pallas import tpu as pltpu

# --- configuration -----------------------------------------------------------
B = 2            # batch size
DIM_X = 64       # input_size = [64]  -> dim_x = 64
HID = 32         # dims_x2h = dims_z2h = [32]  -> q_nn_output_dim = 32
DZ = 8           # dim_z
NF = 2           # num_flows
NH = 8           # num_householder
# The torch flow adds b (width num_householder) to a dim_z-wide row vector; that
# broadcast only works when NH == DZ, so make the assumption explicit.
assert NH == DZ, "Householder-Sylvester mlp arch requires num_householder == dim_z"

# fused amortization-head column layout (weights pre-permuted in init_params so the
# kernel only ever takes contiguous static lane slices -- no in-kernel reshapes):
#   [ q_mean | q_var | D (k,i,j) | D^T (k,j,i) | diag1 (k,i) | diag2 (k,i) | q | b (k,j) ]
O_MU = 0
O_VAR = O_MU + DZ
O_D = O_VAR + DZ                 # full_d, row-major (flow, row, col)
O_DT = O_D + NF * DZ * DZ        # full_d transposed per flow (flow, col, row)
O_D1 = O_DT + NF * DZ * DZ
O_D2 = O_D1 + NF * DZ
O_Q = O_D2 + NF * DZ             # amor_q, original torch column order
O_B = O_Q + NF * DZ * NH         # amor_b, (flow, householder) order
N_HEADS = O_B + NF * NH          # = 448

_VMEM = pl.BlockSpec(memory_space=pltpu.MemorySpace.VMEM)


# -----------------------------------------------------------------------------
# single fused kernel
# -----------------------------------------------------------------------------
def _hsvae_kernel(x_ref, eps_ref, w1_ref, b1_ref, wh_ref, bh_ref,
                  wp1_ref, bp1_ref, wpm_ref, bpm_ref,
                  xm_ref, zmu_ref, zvar_ref, ld_ref, z0_ref, zk_ref):
    f32 = jnp.float32

    # ---- encoder: q_nn (Linear + Tanh) and ALL amortization heads in one matmul ----
    # TODO(synk): the MLP class is not given in the spec; Linear+Tanh per layer assumed.
    h = jnp.tanh(jnp.dot(x_ref[...], w1_ref[...], preferred_element_type=f32)
                 + b1_ref[...])
    heads = jnp.dot(h, wh_ref[...], preferred_element_type=f32) + bh_ref[...]  # (B, 448)

    z_mu = heads[:, O_MU:O_MU + DZ]
    pre_var = heads[:, O_VAR:O_VAR + DZ]
    # q_var = Linear + Softplus  (numerically stable softplus, plain VPU/EUP ops)
    z_var = jnp.maximum(pre_var, 0.0) + jnp.log(1.0 + jnp.exp(-jnp.abs(pre_var)))
    zmu_ref[...] = z_mu
    zvar_ref[...] = z_var

    # ---- reparameterize: z0 = mu + sqrt(var) * eps ----
    z0 = z_mu + jnp.sqrt(z_var) * eps_ref[...]
    z0_ref[...] = z0

    # ---- iota-built constants (no scatters, no eye() reshapes) ----
    row_i = lax.broadcasted_iota(jnp.int32, (DZ, DZ), 0)
    col_i = lax.broadcasted_iota(jnp.int32, (DZ, DZ), 1)
    eye = (row_i == col_i).astype(f32)            # (DZ, DZ)
    lowmask = (col_i < row_i).astype(f32)         # strictly-lower-triangular mask
    ecol = [eye[:, p:p + 1] for p in range(DZ)]   # unit columns (DZ, 1)
    brow = lax.broadcasted_iota(jnp.int32, (B, 1), 0)
    bsel = [(brow == b).astype(f32) for b in range(B)]  # (B,1) batch selectors

    def rows_to_mat(rows):
        # stack DZ row-vectors (1,DZ) into a (DZ,DZ) matrix with broadcast ops only
        m = ecol[0] * rows[0]
        for p in range(1, DZ):
            m = m + ecol[p] * rows[p]
        return m

    def householder(v_row):
        # A = I - 2 q q^T / ||q||^2   (eps guards a zero amortized q row)
        nsq = jnp.sum(v_row * v_row, axis=1, keepdims=True) + 1e-12
        v_col = jnp.sum(eye * v_row, axis=1, keepdims=True)           # (DZ, 1)
        return eye - (2.0 / nsq) * (v_col * v_row)

    # ---- Householder-Sylvester flows (fully unrolled: B=2, NF=2, NH=8) ----
    zk_acc = jnp.zeros((B, DZ), f32)
    ld_acc = jnp.zeros((B, 1), f32)

    for b in range(B):
        z_b = z0[b:b + 1, :]                      # (1, DZ) row vector
        ld_b = jnp.zeros((1, 1), f32)
        for k in range(NF):
            # batch_construct_orthogonal: the torch code flattens amor_q's
            # (B, NF*DZ*NH) output into rows of length DZ and reinterprets the
            # row index as (householder, flow, batch).  Reproduce that flat
            # mapping exactly with static slices.
            A = []
            for hh in range(NH):
                r = hh * (NF * B) + k * B + b
                b_src, s = divmod(r, NF * NH)
                c0 = O_Q + s * DZ
                A.append(householder(heads[b_src:b_src + 1, c0:c0 + DZ]))
            Qk = A[0]                             # Q  = A0 @ A1 @ ... @ A7
            for hh in range(1, NH):
                Qk = jnp.dot(Qk, A[hh], preferred_element_type=f32)
            QTk = A[NH - 1]                       # Q^T = A7 @ ... @ A0 (A_h symmetric)
            for hh in range(NH - 2, -1, -1):
                QTk = jnp.dot(QTk, A[hh], preferred_element_type=f32)

            # full_d for this (flow, batch) in both orientations (weights were
            # pre-permuted so these are contiguous lane slices).
            base_d = O_D + k * DZ * DZ
            base_dt = O_DT + k * DZ * DZ
            D = rows_to_mat([heads[b:b + 1, base_d + p * DZ: base_d + (p + 1) * DZ]
                             for p in range(DZ)])
            DT = rows_to_mat([heads[b:b + 1, base_dt + p * DZ: base_dt + (p + 1) * DZ]
                              for p in range(DZ)])
            d1 = jnp.tanh(heads[b:b + 1, O_D1 + k * DZ: O_D1 + (k + 1) * DZ])
            d2 = jnp.tanh(heads[b:b + 1, O_D2 + k * DZ: O_D2 + (k + 1) * DZ])
            bk = heads[b:b + 1, O_B + k * NH: O_B + (k + 1) * NH]

            # r1 = triu(D,1) + diag(d1); r2 = triu(D^T,1) + diag(d2).
            # The flow only needs r2^T and r1^T, which are lower-triangular
            # assemblies of D / D^T -- no in-kernel transpose required.
            r2_t = lowmask * D + eye * d2         # (r2)^T
            r1_t = lowmask * DT + eye * d1        # (r1)^T

            # z <- tanh(z Q r2^T + b) r1^T Q^T + z
            zq = jnp.dot(z_b, Qk, preferred_element_type=f32)
            r2qzb = jnp.dot(zq, r2_t, preferred_element_type=f32) + bk
            hact = jnp.tanh(r2qzb)
            u = jnp.dot(hact, r1_t, preferred_element_type=f32)
            z_b = jnp.dot(u, QTk, preferred_element_type=f32) + z_b

            # log|det J| = sum log((1 - h^2) * diag(r1) * diag(r2) + 1); the argument
            # is strictly positive (|d1*d2| < 1), so the torch abs() is a no-op.
            diag_j = (1.0 - hact * hact) * (d1 * d2) + 1.0
            ld_b = ld_b + jnp.sum(jnp.log(diag_j), axis=1, keepdims=True)

        zk_acc = zk_acc + bsel[b] * z_b
        ld_acc = ld_acc + bsel[b] * ld_b

    zk_ref[...] = zk_acc
    ld_ref[...] = ld_acc

    # ---- decoder: p_nn (Linear + Tanh) + p_mean (Linear) ----
    hd = jnp.tanh(jnp.dot(zk_acc, wp1_ref[...], preferred_element_type=f32)
                  + bp1_ref[...])
    xm_ref[...] = jnp.dot(hd, wpm_ref[...], preferred_element_type=f32) + bpm_ref[...]


# -----------------------------------------------------------------------------
# wrapper: one pallas_call, everything in VMEM, no grid
# -----------------------------------------------------------------------------
@jax.jit
def hs_vae_forward(x, eps, params):
    x_mean, z_mu, z_var, ld, z0, zk = pl.pallas_call(
        _hsvae_kernel,
        out_shape=(
            jax.ShapeDtypeStruct((B, DIM_X), jnp.float32),  # x_mean
            jax.ShapeDtypeStruct((B, DZ), jnp.float32),     # z_mu
            jax.ShapeDtypeStruct((B, DZ), jnp.float32),     # z_var
            jax.ShapeDtypeStruct((B, 1), jnp.float32),      # log_det_j
            jax.ShapeDtypeStruct((B, DZ), jnp.float32),     # z0
            jax.ShapeDtypeStruct((B, DZ), jnp.float32),     # z_k
        ),
        in_specs=[_VMEM] * 10,
        out_specs=(_VMEM,) * 6,
    )(x, eps,
      params["w_q1"], params["b_q1"], params["w_heads"], params["b_heads"],
      params["w_p1"], params["b_p1"], params["w_pm"], params["b_pm"])
    return x_mean, z_mu, z_var, ld[:, 0], z0, zk


# -----------------------------------------------------------------------------
# parameter init (PyTorch-Linear-style uniform) + one-time head-weight permutation
# -----------------------------------------------------------------------------
def _linear(key, fan_in, fan_out):
    kw, kb = jax.random.split(key)
    bound = 1.0 / math.sqrt(fan_in)
    w = jax.random.uniform(kw, (fan_in, fan_out), jnp.float32, -bound, bound)
    b = jax.random.uniform(kb, (1, fan_out), jnp.float32, -bound, bound)
    return w, b


def init_params(key):
    ks = jax.random.split(key, 10)
    w_q1, b_q1 = _linear(ks[0], DIM_X, HID)              # q_nn : Linear(dim_x, 32)+Tanh
    w_mean, b_mean = _linear(ks[1], HID, DZ)             # q_mean
    w_var, b_var = _linear(ks[2], HID, DZ)               # q_var (pre-softplus)
    w_d, b_d = _linear(ks[3], HID, NF * DZ * DZ)         # amor_d
    w_dg1, b_dg1 = _linear(ks[4], HID, NF * DZ)          # amor_diag1 (pre-tanh)
    w_dg2, b_dg2 = _linear(ks[5], HID, NF * DZ)          # amor_diag2 (pre-tanh)
    w_q, b_q = _linear(ks[6], HID, NF * DZ * NH)         # amor_q
    w_b, b_b = _linear(ks[7], HID, NF * NH)              # amor_b (mlp: num_householder)
    w_p1, b_p1 = _linear(ks[8], DZ, HID)                 # p_nn : Linear(dim_z, 32)+Tanh
    w_pm, b_pm = _linear(ks[9], HID, DIM_X)              # p_mean : Linear(32, dim_x)

    # one-time column permutations so the kernel only takes contiguous lane slices.
    # torch layouts: full_d.view(B,dz,dz,NF) -> col (i*dz+j)*NF+k ; diag.view(B,dz,NF)
    # -> col i*NF+k ; b.view(B,1,NH,NF) -> col j*NF+k .
    perm_d = np.empty(NF * DZ * DZ, np.int32)
    perm_dT = np.empty(NF * DZ * DZ, np.int32)
    for k in range(NF):
        for p in range(DZ):
            for q in range(DZ):
                perm_d[k * DZ * DZ + p * DZ + q] = (p * DZ + q) * NF + k   # D[p, q]
                perm_dT[k * DZ * DZ + p * DZ + q] = (q * DZ + p) * NF + k  # D[q, p]
    perm_dg = np.array([i * NF + k for k in range(NF) for i in range(DZ)], np.int32)
    perm_b = np.array([j * NF + k for k in range(NF) for j in range(NH)], np.int32)

    w_heads = jnp.concatenate(
        [w_mean, w_var, w_d[:, perm_d], w_d[:, perm_dT],
         w_dg1[:, perm_dg], w_dg2[:, perm_dg], w_q, w_b[:, perm_b]], axis=1)
    b_heads = jnp.concatenate(
        [b_mean, b_var, b_d[:, perm_d], b_d[:, perm_dT],
         b_dg1[:, perm_dg], b_dg2[:, perm_dg], b_q, b_b[:, perm_b]], axis=1)
    assert w_heads.shape == (HID, N_HEADS)

    return dict(w_q1=w_q1, b_q1=b_q1, w_heads=w_heads, b_heads=b_heads,
                w_p1=w_p1, b_p1=b_p1, w_pm=w_pm, b_pm=b_pm)


if __name__ == "__main__":
    key = jax.random.PRNGKey(0)
    k_params, k_x, k_eps = jax.random.split(key, 3)
    params = init_params(k_params)
    x = jax.random.normal(k_x, (B, DIM_X), jnp.float32)
    # TODO(synk): torch's reparameterize draws eps internally; here a deterministic
    # standard-normal eps is drawn in JAX and passed into the fused kernel.
    eps = jax.random.normal(k_eps, (B, DZ), jnp.float32)

    outs = hs_vae_forward(x, eps, params)
    jax.block_until_ready(outs)

    x_mean, z_mu, z_var, log_det_j, z0, zk = outs
    assert x_mean.shape == (B, DIM_X)
    assert z_mu.shape == (B, DZ) and z_var.shape == (B, DZ)
    assert log_det_j.shape == (B,)
    assert z0.shape == (B, DZ) and zk.shape == (B, DZ)
    for o in outs:
        assert bool(jnp.all(jnp.isfinite(o)))
    print("KERNEL_OK")
</pallas_src>

<mosaic_0001>
module attributes {stable_mosaic.version = 11 : i64} {
  func.func @_hsvae_kernel(%arg0: memref<2x64xf32, #tpu.memory_space<vmem>>, %arg1: memref<2x8xf32, #tpu.memory_space<vmem>>, %arg2: memref<64x32xf32, #tpu.memory_space<vmem>>, %arg3: memref<1x32xf32, #tpu.memory_space<vmem>>, %arg4: memref<32x448xf32, #tpu.memory_space<vmem>>, %arg5: memref<1x448xf32, #tpu.memory_space<vmem>>, %arg6: memref<8x32xf32, #tpu.memory_space<vmem>>, %arg7: memref<1x32xf32, #tpu.memory_space<vmem>>, %arg8: memref<32x64xf32, #tpu.memory_space<vmem>>, %arg9: memref<1x64xf32, #tpu.memory_space<vmem>>, %arg10: memref<2x64xf32, #tpu.memory_space<vmem>>, %arg11: memref<2x8xf32, #tpu.memory_space<vmem>>, %arg12: memref<2x8xf32, #tpu.memory_space<vmem>>, %arg13: memref<2x1xf32, #tpu.memory_space<vmem>>, %arg14: memref<2x8xf32, #tpu.memory_space<vmem>>, %arg15: memref<2x8xf32, #tpu.memory_space<vmem>>) attributes {dimension_semantics = [], scalar_prefetch = 0 : i64, scratch_operands = 0 : i64, tpu.core_type = #tpu.core_type<tc>} {
    %c0 = arith.constant 0 : index
    %c0_0 = arith.constant 0 : index
    %0 = vector.load %arg0[%c0, %c0_0] : memref<2x64xf32, #tpu.memory_space<vmem>>, vector<2x64xf32>
    %c0_1 = arith.constant 0 : index
    %c0_2 = arith.constant 0 : index
    %1 = vector.load %arg2[%c0_1, %c0_2] : memref<64x32xf32, #tpu.memory_space<vmem>>, vector<64x32xf32>
    %cst = arith.constant dense<0.000000e+00> : vector<2x32xf32>
    %2 = tpu.matmul %0, %1, %cst {dimension_numbers = #tpu.dot_dimension_numbers<[1], [0], [0], [1], [0, 0, 1, 1], [], []>} : vector<2x64xf32>, vector<64x32xf32>, vector<2x32xf32> -> vector<2x32xf32>
    %c0_3 = arith.constant 0 : index
    %c0_4 = arith.constant 0 : index
    %3 = vector.load %arg3[%c0_3, %c0_4] : memref<1x32xf32, #tpu.memory_space<vmem>>, vector<1x32xf32>
    %4 = vector.broadcast %3 : vector<1x32xf32> to vector<2x32xf32>
    %5 = arith.addf %2, %4 : vector<2x32xf32>
    %6 = math.tanh %5 : vector<2x32xf32>
    %c0_5 = arith.constant 0 : index
    %c0_6 = arith.constant 0 : index
    %7 = vector.load %arg4[%c0_5, %c0_6] : memref<32x448xf32, #tpu.memory_space<vmem>>, vector<32x448xf32>
    %cst_7 = arith.constant dense<0.000000e+00> : vector<2x448xf32>
    %8 = tpu.matmul %6, %7, %cst_7 {dimension_numbers = #tpu.dot_dimension_numbers<[1], [0], [0], [1], [0, 0, 1, 1], [], []>} : vector<2x32xf32>, vector<32x448xf32>, vector<2x448xf32> -> vector<2x448xf32>
    %c0_8 = arith.constant 0 : index
    %c0_9 = arith.constant 0 : index
    %9 = vector.load %arg5[%c0_8, %c0_9] : memref<1x448xf32, #tpu.memory_space<vmem>>, vector<1x448xf32>
    %10 = vector.broadcast %9 : vector<1x448xf32> to vector<2x448xf32>
    %11 = arith.addf %8, %10 : vector<2x448xf32>
    %12 = vector.extract_strided_slice %11 {offsets = [0, 0], sizes = [2, 8], strides = [1, 1]} : vector<2x448xf32> to vector<2x8xf32>
    %13 = vector.extract_strided_slice %11 {offsets = [0, 8], sizes = [2, 8], strides = [1, 1]} : vector<2x448xf32> to vector<2x8xf32>
    %cst_10 = arith.constant 0.000000e+00 : f32
    %14 = vector.broadcast %cst_10 : f32 to vector<2x8xf32>
    %15 = arith.maximumf %13, %14 : vector<2x8xf32>
    %16 = math.absf %13 : vector<2x8xf32>
    %cst_11 = arith.constant 0.000000e+00 : f32
    %17 = vector.broadcast %cst_11 : f32 to vector<2x8xf32>
    %18 = arith.subf %17, %16 : vector<2x8xf32>
    %19 = math.exp %18 : vector<2x8xf32>
    %cst_12 = arith.constant 1.000000e+00 : f32
    %20 = vector.broadcast %cst_12 : f32 to vector<2x8xf32>
    %21 = arith.addf %20, %19 : vector<2x8xf32>
    %22 = math.log %21 : vector<2x8xf32>
    %23 = arith.addf %15, %22 : vector<2x8xf32>
    %c0_13 = arith.constant 0 : index
    %c0_14 = arith.constant 0 : index
    %24 = vector.load %arg11[%c0_13, %c0_14] : memref<2x8xf32, #tpu.memory_space<vmem>>, vector<2x8xf32>
    tpu.vector_store %arg11[%c0_13, %c0_14], %12 {strides = array<i32>} : memref<2x8xf32, #tpu.memory_space<vmem>>, vector<2x8xf32>,
    %c0_15 = arith.constant 0 : index
    %c0_16 = arith.constant 0 : index
    %25 = vector.load %arg12[%c0_15, %c0_16] : memref<2x8xf32, #tpu.memory_space<vmem>>, vector<2x8xf32>
    tpu.vector_store %arg12[%c0_15, %c0_16], %23 {strides = array<i32>} : memref<2x8xf32, #tpu.memory_space<vmem>>, vector<2x8xf32>,
    %26 = math.sqrt %23 : vector<2x8xf32>
    %c0_17 = arith.constant 0 : index
    %c0_18 = arith.constant 0 : index
    %27 = vector.load %arg1[%c0_17, %c0_18] : memref<2x8xf32, #tpu.memory_space<vmem>>, vector<2x8xf32>
    %28 = arith.mulf %26, %27 : vector<2x8xf32>
    %29 = arith.addf %12, %28 : vector<2x8xf32>
    %c0_19 = arith.constant 0 : index
    %c0_20 = arith.constant 0 : index
    %30 = vector.load %arg14[%c0_19, %c0_20] : memref<2x8xf32, #tpu.memory_space<vmem>>, vector<2x8xf32>
    tpu.vector_store %arg14[%c0_19, %c0_20], %29 {strides = array<i32>} : memref<2x8xf32, #tpu.memory_space<vmem>>, vector<2x8xf32>,
    %31 = tpu.iota {dimensions = array<i32: 0>} : vector<8x8xi32>
    %32 = tpu.iota {dimensions = array<i32: 1>} : vector<8x8xi32>
    %33 = arith.cmpi eq, %31, %32 : vector<8x8xi32>
    %34 = arith.extui %33 : vector<8x8xi1> to vector<8x8xi32>
    %35 = arith.sitofp %34 : vector<8x8xi32> to vector<8x8xf32>
    %36 = arith.cmpi slt, %32, %31 : vector<8x8xi32>
    %37 = arith.extui %36 : vector<8x8xi1> to vector<8x8xi32>
    %38 = arith.sitofp %37 : vector<8x8xi32> to vector<8x8xf32>
    %39 = vector.extract_strided_slice %35 {offsets = [0, 0], sizes = [8, 1], strides = [1, 1]} : vector<8x8xf32> to vector<8x1xf32>
    %40 = vector.extract_strided_slice %35 {offsets = [0, 1], sizes = [8, 1], strides = [1, 1]} : vector<8x8xf32> to vector<8x1xf32>
    %41 = vector.extract_strided_slice %35 {offsets = [0, 2], sizes = [8, 1], strides = [1, 1]} : vector<8x8xf32> to vector<8x1xf32>
    %42 = vector.extract_strided_slice %35 {offsets = [0, 3], sizes = [8, 1], strides = [1, 1]} : vector<8x8xf32> to vector<8x1xf32>
    %43 = vector.extract_strided_slice %35 {offsets = [0, 4], sizes = [8, 1], strides = [1, 1]} : vector<8x8xf32> to vector<8x1xf32>
    %44 = vector.extract_strided_slice %35 {offsets = [0, 5], sizes = [8, 1], strides = [1, 1]} : vector<8x8xf32> to vector<8x1xf32>
    %45 = vector.extract_strided_slice %35 {offsets = [0, 6], sizes = [8, 1], strides = [1, 1]} : vector<8x8xf32> to vector<8x1xf32>
    %46 = vector.extract_strided_slice %35 {offsets = [0, 7], sizes = [8, 1], strides = [1, 1]} : vector<8x8xf32> to vector<8x1xf32>
    %47 = tpu.iota {dimensions = array<i32: 0>} : vector<2x1xi32>
    %c0_i32 = arith.constant 0 : i32
    %48 = vector.broadcast %c0_i32 : i32 to vector<2x1xi32>
    %49 = arith.cmpi eq, %47, %48 : vector<2x1xi32>
    %50 = arith.extui %49 : vector<2x1xi1> to vector<2x1xi32>
    %51 = arith.sitofp %50 : vector<2x1xi32> to vector<2x1xf32>
    %c1_i32 = arith.constant 1 : i32
    %52 = vector.broadcast %c1_i32 : i32 to vector<2x1xi32>
    %53 = arith.cmpi eq, %47, %52 : vector<2x1xi32>
    %54 = arith.extui %53 : vector<2x1xi1> to vector<2x1xi32>
    %55 = arith.sitofp %54 : vector<2x1xi32> to vector<2x1xf32>
    %cst_21 = arith.constant 0.000000e+00 : f32
    %56 = vector.broadcast %cst_21 : f32 to vector<2x8xf32>
    %cst_22 = arith.constant 0.000000e+00 : f32
    %57 = vector.broadcast %cst_22 : f32 to vector<2x1xf32>
    %58 = vector.extract_strided_slice %29 {offsets = [0, 0], sizes = [1, 8], strides = [1, 1]} : vector<2x8xf32> to vector<1x8xf32>
    %cst_23 = arith.constant 0.000000e+00 : f32
    %59 = vector.broadcast %cst_23 : f32 to vector<1x1xf32>
    %60 = vector.extract_strided_slice %11 {offsets = [0, 304], sizes = [1, 8], strides = [1, 1]} : vector<2x448xf32> to vector<1x8xf32>
    %61 = arith.mulf %60, %60 : vector<1x8xf32>
    %cst_24 = arith.constant dense<0.000000e+00> : vector<1xf32>
    %62 = vector.multi_reduction <add>, %61, %cst_24 [1] : vector<1x8xf32> to vector<1xf32>
    %63 = vector.shape_cast %62 : vector<1xf32> to vector<1x1xf32>
    %cst_25 = arith.constant 9.99999996E-13 : f32
    %64 = vector.broadcast %cst_25 : f32 to vector<1x1xf32>
    %65 = arith.addf %63, %64 : vector<1x1xf32>
    %66 = vector.broadcast %60 : vector<1x8xf32> to vector<8x8xf32>
    %67 = arith.mulf %35, %66 : vector<8x8xf32>
    %cst_26 = arith.constant dense<0.000000e+00> : vector<8xf32>
    %68 = vector.multi_reduction <add>, %67, %cst_26 [1] : vector<8x8xf32> to vector<8xf32>
    %69 = vector.shape_cast %68 : vector<8xf32> to vector<8x1xf32>
    %cst_27 = arith.constant 2.000000e+00 : f32
    %70 = vector.broadcast %cst_27 : f32 to vector<1x1xf32>
    %71 = arith.divf %70, %65 : vector<1x1xf32>
    %72 = vector.broadcast %69 : vector<8x1xf32> to vector<8x8xf32>
    %73 = vector.broadcast %60 : vector<1x8xf32> to vector<8x8xf32>
    %74 = arith.mulf %72, %73 : vector<8x8xf32>
    %75 = vector.broadcast %71 : vector<1x1xf32> to vector<8x8xf32>
    %76 = arith.mulf %75, %74 : vector<8x8xf32>
    %77 = arith.subf %35, %76 : vector<8x8xf32>
    %78 = vector.extract_strided_slice %11 {offsets = [0, 336], sizes = [1, 8], strides = [1, 1]} : vector<2x448xf32> to vector<1x8xf32>
    %79 = arith.mulf %78, %78 : vector<1x8xf32>
    %cst_28 = arith.constant dense<0.000000e+00> : vector<1xf32>
    %80 = vector.multi_reduction <add>, %79, %cst_28 [1] : vector<1x8xf32> to vector<1xf32>
    %81 = vector.shape_cast %80 : vector<1xf32> to vector<1x1xf32>
    %cst_29 = arith.constant 9.99999996E-13 : f32
    %82 = vector.broadcast %cst_29 : f32 to vector<1x1xf32>
    %83 = arith.addf %81, %82 : vector<1x1xf32>
    %84 = vector.broadcast %78 : vector<1x8xf32> to vector<8x8xf32>
    %85 = arith.mulf %35, %84 : vector<8x8xf32>
    %cst_30 = arith.constant dense<0.000000e+00> : vector<8xf32>
    %86 = vector.multi_reduction <add>, %85, %cst_30 [1] : vector<8x8xf32> to vector<8xf32>
    %87 = vector.shape_cast %86 : vector<8xf32> to vector<8x1xf32>
    %cst_31 = arith.constant 2.000000e+00 : f32
    %88 = vector.broadcast %cst_31 : f32 to vector<1x1xf32>
    %89 = arith.divf %88, %83 : vector<1x1xf32>
    %90 = vector.broadcast %87 : vector<8x1xf32> to vector<8x8xf32>
    %91 = vector.broadcast %78 : vector<1x8xf32> to vector<8x8xf32>
    %92 = arith.mulf %90, %91 : vector<8x8xf32>
    %93 = vector.broadcast %89 : vector<1x1xf32> to vector<8x8xf32>
    %94 = arith.mulf %93, %92 : vector<8x8xf32>
    %95 = arith.subf %35, %94 : vector<8x8xf32>
    %96 = vector.extract_strided_slice %11 {offsets = [0, 368], sizes = [1, 8], strides = [1, 1]} : vector<2x448xf32> to vector<1x8xf32>
    %97 = arith.mulf %96, %96 : vector<1x8xf32>
    %cst_32 = arith.constant dense<0.000000e+00> : vector<1xf32>
    %98 = vector.multi_reduction <add>, %97, %cst_32 [1] : vector<1x8xf32> to vector<1xf32>
    %99 = vector.shape_cast %98 : vector<1xf32> to vector<1x1xf32>
    %cst_33 = arith.constant 9.99999996E-13 : f32
    %100 = vector.broadcast %cst_33 : f32 to vector<1x1xf32>
    %101 = arith.addf %99, %100 : vector<1x1xf32>
    %102 = vector.broadcast %96 : vector<1x8xf32> to vector<8x8xf32>
    %103 = arith.mulf %35, %102 : vector<8x8xf32>
    %cst_34 = arith.constant dense<0.000000e+00> : vector<8xf32>
    %104 = vector.multi_reduction <add>, %103, %cst_34 [1] : vector<8x8xf32> to vector<8xf32>
    %105 = vector.shape_cast %104 : vector<8xf32> to vector<8x1xf32>
    %cst_35 = arith.constant 2.000000e+00 : f32
    %106 = vector.broadcast %cst_35 : f32 to vector<1x1xf32>
    %107 = arith.divf %106, %101 : vector<1x1xf32>
    %108 = vector.broadcast %105 : vector<8x1xf32> to vector<8x8xf32>
    %109 = vector.broadcast %96 : vector<1x8xf32> to vector<8x8xf32>
    %110 = arith.mulf %108, %109 : vector<8x8xf32>
    %111 = vector.broadcast %107 : vector<1x1xf32> to vector<8x8xf32>
    %112 = arith.mulf %111, %110 : vector<8x8xf32>
    %113 = arith.subf %35, %112 : vector<8x8xf32>
    %114 = vector.extract_strided_slice %11 {offsets = [0, 400], sizes = [1, 8], strides = [1, 1]} : vector<2x448xf32> to vector<1x8xf32>
    %115 = arith.mulf %114, %114 : vector<1x8xf32>
    %cst_36 = arith.constant dense<0.000000e+00> : vector<1xf32>
    %116 = vector.multi_reduction <add>, %115, %cst_36 [1] : vector<1x8xf32> to vector<1xf32>
    %117 = vector.shape_cast %116 : vector<1xf32> to vector<1x1xf32>
    %cst_37 = arith.constant 9.99999996E-13 : f32
    %118 = vector.broadcast %cst_37 : f32 to vector<1x1xf32>
    %119 = arith.addf %117, %118 : vector<1x1xf32>
    %120 = vector.broadcast %114 : vector<1x8xf32> to vector<8x8xf32>
    %121 = arith.mulf %35, %120 : vector<8x8xf32>
    %cst_38 = arith.constant dense<0.000000e+00> : vector<8xf32>
    %122 = vector.multi_reduction <add>, %121, %cst_38 [1] : vector<8x8xf32> to vector<8xf32>
    %123 = vector.shape_cast %122 : vector<8xf32> to vector<8x1xf32>
    %cst_39 = arith.constant 2.000000e+00 : f32
    %124 = vector.broadcast %cst_39 : f32 to vector<1x1xf32>
    %125 = arith.divf %124, %119 : vector<1x1xf32>
    %126 = vector.broadcast %123 : vector<8x1xf32> to vector<8x8xf32>
    %127 = vector.broadcast %114 : vector<1x8xf32> to vector<8x8xf32>
    %128 = arith.mulf %126, %127 : vector<8x8xf32>
    %129 = vector.broadcast %125 : vector<1x1xf32> to vector<8x8xf32>
    %130 = arith.mulf %129, %128 : vector<8x8xf32>
    %131 = arith.subf %35, %130 : vector<8x8xf32>
    %132 = vector.extract_strided_slice %11 {offsets = [1, 304], sizes = [1, 8], strides = [1, 1]} : vector<2x448xf32> to vector<1x8xf32>
    %133 = arith.mulf %132, %132 : vector<1x8xf32>
    %cst_40 = arith.constant dense<0.000000e+00> : vector<1xf32>
    %134 = vector.multi_reduction <add>, %133, %cst_40 [1] : vector<1x8xf32> to vector<1xf32>
    %135 = vector.shape_cast %134 : vector<1xf32> to vector<1x1xf32>
    %cst_41 = arith.constant 9.99999996E-13 : f32
    %136 = vector.broadcast %cst_41 : f32 to vector<1x1xf32>
    %137 = arith.addf %135, %136 : vector<1x1xf32>
    %138 = vector.broadcast %132 : vector<1x8xf32> to vector<8x8xf32>
    %139 = arith.mulf %35, %138 : vector<8x8xf32>
    %cst_42 = arith.constant dense<0.000000e+00> : vector<8xf32>
    %140 = vector.multi_reduction <add>, %139, %cst_42 [1] : vector<8x8xf32> to vector<8xf32>
    %141 = vector.shape_cast %140 : vector<8xf32> to vector<8x1xf32>
    %cst_43 = arith.constant 2.000000e+00 : f32
    %142 = vector.broadcast %cst_43 : f32 to vector<1x1xf32>
    %143 = arith.divf %142, %137 : vector<1x1xf32>
    %144 = vector.broadcast %141 : vector<8x1xf32> to vector<8x8xf32>
    %145 = vector.broadcast %132 : vector<1x8xf32> to vector<8x8xf32>
    %146 = arith.mulf %144, %145 : vector<8x8xf32>
    %147 = vector.broadcast %143 : vector<1x1xf32> to vector<8x8xf32>
    %148 = arith.mulf %147, %146 : vector<8x8xf32>
    %149 = arith.subf %35, %148 : vector<8x8xf32>
    %150 = vector.extract_strided_slice %11 {offsets = [1, 336], sizes = [1, 8], strides = [1, 1]} : vector<2x448xf32> to vector<1x8xf32>
    %151 = arith.mulf %150, %150 : vector<1x8xf32>
    %cst_44 = arith.constant dense<0.000000e+00> : vector<1xf32>
    %152 = vector.multi_reduction <add>, %151, %cst_44 [1] : vector<1x8xf32> to vector<1xf32>
    %153 = vector.shape_cast %152 : vector<1xf32> to vector<1x1xf32>
    %cst_45 = arith.constant 9.99999996E-13 : f32
    %154 = vector.broadcast %cst_45 : f32 to vector<1x1xf32>
    %155 = arith.addf %153, %154 : vector<1x1xf32>
    %156 = vector.broadcast %150 : vector<1x8xf32> to vector<8x8xf32>
    %157 = arith.mulf %35, %156 : vector<8x8xf32>
    %cst_46 = arith.constant dense<0.000000e+00> : vector<8xf32>
    %158 = vector.multi_reduction <add>, %157, %cst_46 [1] : vector<8x8xf32> to vector<8xf32>
    %159 = vector.shape_cast %158 : vector<8xf32> to vector<8x1xf32>
    %cst_47 = arith.constant 2.000000e+00 : f32
    %160 = vector.broadcast %cst_47 : f32 to vector<1x1xf32>
    %161 = arith.divf %160, %155 : vector<1x1xf32>
    %162 = vector.broadcast %159 : vector<8x1xf32> to vector<8x8xf32>
    %163 = vector.broadcast %150 : vector<1x8xf32> to vector<8x8xf32>
    %164 = arith.mulf %162, %163 : vector<8x8xf32>
    %165 = vector.broadcast %161 : vector<1x1xf32> to vector<8x8xf32>
    %166 = arith.mulf %165, %164 : vector<8x8xf32>
    %167 = arith.subf %35, %166 : vector<8x8xf32>
    %168 = vector.extract_strided_slice %11 {offsets = [1, 368], sizes = [1, 8], strides = [1, 1]} : vector<2x448xf32> to vector<1x8xf32>
    %169 = arith.mulf %168, %168 : vector<1x8xf32>
    %cst_48 = arith.constant dense<0.000000e+00> : vector<1xf32>
    %170 = vector.multi_reduction <add>, %169, %cst_48 [1] : vector<1x8xf32> to vector<1xf32>
    %171 = vector.shape_cast %170 : vector<1xf32> to vector<1x1xf32>
    %cst_49 = arith.constant 9.99999996E-13 : f32
    %172 = vector.broadcast %cst_49 : f32 to vector<1x1xf32>
    %173 = arith.addf %171, %172 : vector<1x1xf32>
    %174 = vector.broadcast %168 : vector<1x8xf32> to vector<8x8xf32>
    %175 = arith.mulf %35, %174 : vector<8x8xf32>
    %cst_50 = arith.constant dense<0.000000e+00> : vector<8xf32>
    %176 = vector.multi_reduction <add>, %175, %cst_50 [1] : vector<8x8xf32> to vector<8xf32>
    %177 = vector.shape_cast %176 : vector<8xf32> to vector<8x1xf32>
    %cst_51 = arith.constant 2.000000e+00 : f32
    %178 = vector.broadcast %cst_51 : f32 to vector<1x1xf32>
    %179 = arith.divf %178, %173 : vector<1x1xf32>
    %180 = vector.broadcast %177 : vector<8x1xf32> to vector<8x8xf32>
    %181 = vector.broadcast %168 : vector<1x8xf32> to vector<8x8xf32>
    %182 = arith.mulf %180, %181 : vector<8x8xf32>
    %183 = vector.broadcast %179 : vector<1x1xf32> to vector<8x8xf32>
    %184 = arith.mulf %183, %182 : vector<8x8xf32>
    %185 = arith.subf %35, %184 : vector<8x8xf32>
    %186 = vector.extract_strided_slice %11 {offsets = [1, 400], sizes = [1, 8], strides = [1, 1]} : vector<2x448xf32> to vector<1x8xf32>
    %187 = arith.mulf %186, %186 : vector<1x8xf32>
    %cst_52 = arith.constant dense<0.000000e+00> : vector<1xf32>
    %188 = vector.multi_reduction <add>, %187, %cst_52 [1] : vector<1x8xf32> to vector<1xf32>
    %189 = vector.shape_cast %188 : vector<1xf32> to vector<1x1xf32>
    %cst_53 = arith.constant 9.99999996E-13 : f32
    %190 = vector.broadcast %cst_53 : f32 to vector<1x1xf32>
    %191 = arith.addf %189, %190 : vector<1x1xf32>
    %192 = vector.broadcast %186 : vector<1x8xf32> to vector<8x8xf32>
    %193 = arith.mulf %35, %192 : vector<8x8xf32>
    %cst_54 = arith.constant dense<0.000000e+00> : vector<8xf32>
    %194 = vector.multi_reduction <add>, %193, %cst_54 [1] : vector<8x8xf32> to vector<8xf32>
    %195 = vector.shape_cast %194 : vector<8xf32> to vector<8x1xf32>
    %cst_55 = arith.constant 2.000000e+00 : f32
    %196 = vector.broadcast %cst_55 : f32 to vector<1x1xf32>
    %197 = arith.divf %196, %191 : vector<1x1xf32>
    %198 = vector.broadcast %195 : vector<8x1xf32> to vector<8x8xf32>
    %199 = vector.broadcast %186 : vector<1x8xf32> to vector<8x8xf32>
    %200 = arith.mulf %198, %199 : vector<8x8xf32>
    %201 = vector.broadcast %197 : vector<1x1xf32> to vector<8x8xf32>
    %202 = arith.mulf %201, %200 : vector<8x8xf32>
    %203 = arith.subf %35, %202 : vector<8x8xf32>
    %cst_56 = arith.constant dense<0.000000e+00> : vector<8x8xf32>
    %204 = tpu.matmul %77, %95, %cst_56 {dimension_numbers = #tpu.dot_dimension_numbers<[1], [0], [0], [1], [0, 0, 1, 1], [], []>} : vector<8x8xf32>, vector<8x8xf32>, vector<8x8xf32> -> vector<8x8xf32>
    %cst_57 = arith.constant dense<0.000000e+00> : vector<8x8xf32>
    %205 = tpu.matmul %204, %113, %cst_57 {dimension_numbers = #tpu.dot_dimension_numbers<[1], [0], [0], [1], [0, 0, 1, 1], [], []>} : vector<8x8xf32>, vector<8x8xf32>, vector<8x8xf32> -> vector<8x8xf32>
    %cst_58 = arith.constant dense<0.000000e+00> : vector<8x8xf32>
    %206 = tpu.matmul %205, %131, %cst_58 {dimension_numbers = #tpu.dot_dimension_numbers<[1], [0], [0], [1], [0, 0, 1, 1], [], []>} : vector<8x8xf32>, vector<8x8xf32>, vector<8x8xf32> -> vector<8x8xf32>
    %cst_59 = arith.constant dense<0.000000e+00> : vector<8x8xf32>
    %207 = tpu.matmul %206, %149, %cst_59 {dimension_numbers = #tpu.dot_dimension_numbers<[1], [0], [0], [1], [0, 0, 1, 1], [], []>} : vector<8x8xf32>, vector<8x8xf32>, vector<8x8xf32> -> vector<8x8xf32>
    %cst_60 = arith.constant dense<0.000000e+00> : vector<8x8xf32>
    %208 = tpu.matmul %207, %167, %cst_60 {dimension_numbers = #tpu.dot_dimension_numbers<[1], [0], [0], [1], [0, 0, 1, 1], [], []>} : vector<8x8xf32>, vector<8x8xf32>, vector<8x8xf32> -> vector<8x8xf32>
    %cst_61 = arith.constant dense<0.000000e+00> : vector<8x8xf32>
    %209 = tpu.matmul %208, %185, %cst_61 {dimension_numbers = #tpu.dot_dimension_numbers<[1], [0], [0], [1], [0, 0, 1, 1], [], []>} : vector<8x8xf32>, vector<8x8xf32>, vector<8x8xf32> -> vector<8x8xf32>
    %cst_62 = arith.constant dense<0.000000e+00> : vector<8x8xf32>
    %210 = tpu.matmul %209, %203, %cst_62 {dimension_numbers = #tpu.dot_dimension_numbers<[1], [0], [0], [1], [0, 0, 1, 1], [], []>} : vector<8x8xf32>, vector<8x8xf32>, vector<8x8xf32> -> vector<8x8xf32>
    %cst_63 = arith.constant dense<0.000000e+00> : vector<8x8xf32>
    %211 = tpu.matmul %203, %185, %cst_63 {dimension_numbers = #tpu.dot_dimension_numbers<[1], [0], [0], [1], [0, 0, 1, 1], [], []>} : vector<8x8xf32>, vector<8x8xf32>, vector<8x8xf32> -> vector<8x8xf32>
    %cst_64 = arith.constant dense<0.000000e+00> : vector<8x8xf32>
    %212 = tpu.matmul %211, %167, %cst_64 {dimension_numbers = #tpu.dot_dimension_numbers<[1], [0], [0], [1], [0, 0, 1, 1], [], []>} : vector<8x8xf32>, vector<8x8xf32>, vector<8x8xf32> -> vector<8x8xf32>
    %cst_65 = arith.constant dense<0.000000e+00> : vector<8x8xf32>
    %213 = tpu.matmul %212, %149, %cst_65 {dimension_numbers = #tpu.dot_dimension_numbers<[1], [0], [0], [1], [0, 0, 1, 1], [], []>} : vector<8x8xf32>, vector<8x8xf32>, vector<8x8xf32> -> vector<8x8xf32>
    %cst_66 = arith.constant dense<0.000000e+00> : vector<8x8xf32>
    %214 = tpu.matmul %213, %131, %cst_66 {dimension_numbers = #tpu.dot_dimension_numbers<[1], [0], [0], [1], [0, 0, 1, 1], [], []>} : vector<8x8xf32>, vector<8x8xf32>, vector<8x8xf32> -> vector<8x8xf32>
    %cst_67 = arith.constant dense<0.000000e+00> : vector<8x8xf32>
    %215 = tpu.matmul %214, %113, %cst_67 {dimension_numbers = #tpu.dot_dimension_numbers<[1], [0], [0], [1], [0, 0, 1, 1], [], []>} : vector<8x8xf32>, vector<8x8xf32>, vector<8x8xf32> -> vector<8x8xf32>
    %cst_68 = arith.constant dense<0.000000e+00> : vector<8x8xf32>
    %216 = tpu.matmul %215, %95, %cst_68 {dimension_numbers = #tpu.dot_dimension_numbers<[1], [0], [0], [1], [0, 0, 1, 1], [], []>} : vector<8x8xf32>, vector<8x8xf32>, vector<8x8xf32> -> vector<8x8xf32>
    %cst_69 = arith.constant dense<0.000000e+00> : vector<8x8xf32>
    %217 = tpu.matmul %216, %77, %cst_69 {dimension_numbers = #tpu.dot_dimension_numbers<[1], [0], [0], [1], [0, 0, 1, 1], [], []>} : vector<8x8xf32>, vector<8x8xf32>, vector<8x8xf32> -> vector<8x8xf32>
    %218 = vector.extract_strided_slice %11 {offsets = [0, 16], sizes = [1, 8], strides = [1, 1]} : vector<2x448xf32> to vector<1x8xf32>
    %219 = vector.extract_strided_slice %11 {offsets = [0, 24], sizes = [1, 8], strides = [1, 1]} : vector<2x448xf32> to vector<1x8xf32>
    %220 = vector.extract_strided_slice %11 {offsets = [0, 32], sizes = [1, 8], strides = [1, 1]} : vector<2x448xf32> to vector<1x8xf32>
    %221 = vector.extract_strided_slice %11 {offsets = [0, 40], sizes = [1, 8], strides = [1, 1]} : vector<2x448xf32> to vector<1x8xf32>
    %222 = vector.extract_strided_slice %11 {offsets = [0, 48], sizes = [1, 8], strides = [1, 1]} : vector<2x448xf32> to vector<1x8xf32>
    %223 = vector.extract_strided_slice %11 {offsets = [0, 56], sizes = [1, 8], strides = [1, 1]} : vector<2x448xf32> to vector<1x8xf32>
    %224 = vector.extract_strided_slice %11 {offsets = [0, 64], sizes = [1, 8], strides = [1, 1]} : vector<2x448xf32> to vector<1x8xf32>
    %225 = vector.extract_strided_slice %11 {offsets = [0, 72], sizes = [1, 8], strides = [1, 1]} : vector<2x448xf32> to vector<1x8xf32>
    %226 = vector.broadcast %39 : vector<8x1xf32> to vector<8x8xf32>
    %227 = vector.broadcast %218 : vector<1x8xf32> to vector<8x8xf32>
    %228 = arith.mulf %226, %227 : vector<8x8xf32>
    %229 = vector.broadcast %40 : vector<8x1xf32> to vector<8x8xf32>
    %230 = vector.broadcast %219 : vector<1x8xf32> to vector<8x8xf32>
    %231 = arith.mulf %229, %230 : vector<8x8xf32>
    %232 = arith.addf %228, %231 : vector<8x8xf32>
    %233 = vector.broadcast %41 : vector<8x1xf32> to vector<8x8xf32>
    %234 = vector.broadcast %220 : vector<1x8xf32> to vector<8x8xf32>
    %235 = arith.mulf %233, %234 : vector<8x8xf32>
    %236 = arith.addf %232, %235 : vector<8x8xf32>
    %237 = vector.broadcast %42 : vector<8x1xf32> to vector<8x8xf32>
    %238 = vector.broadcast %221 : vector<1x8xf32> to vector<8x8xf32>
    %239 = arith.mulf %237, %238 : vector<8x8xf32>
    %240 = arith.addf %236, %239 : vector<8x8xf32>
    %241 = vector.broadcast %43 : vector<8x1xf32> to vector<8x8xf32>
    %242 = vector.broadcast %222 : vector<1x8xf32> to vector<8x8xf32>
    %243 = arith.mulf %241, %242 : vector<8x8xf32>
    %244 = arith.addf %240, %243 : vector<8x8xf32>
    %245 = vector.broadcast %44 : vector<8x1xf32> to vector<8x8xf32>
    %246 = vector.broadcast %223 : vector<1x8xf32> to vector<8x8xf32>
    %247 = arith.mulf %245, %246 : vector<8x8xf32>
    %248 = arith.addf %244, %247 : vector<8x8xf32>
    %249 = vector.broadcast %45 : vector<8x1xf32> to vector<8x8xf32>
    %250 = vector.broadcast %224 : vector<1x8xf32> to vector<8x8xf32>
    %251 = arith.mulf %249, %250 : vector<8x8xf32>
    %252 = arith.addf %248, %251 : vector<8x8xf32>
    %253 = vector.broadcast %46 : vector<8x1xf32> to vector<8x8xf32>
    %254 = vector.broadcast %225 : vector<1x8xf32> to vector<8x8xf32>
    %255 = arith.mulf %253, %254 : vector<8x8xf32>
    %256 = arith.addf %252, %255 : vector<8x8xf32>
    %257 = vector.extract_strided_slice %11 {offsets = [0, 144], sizes = [1, 8], strides = [1, 1]} : vector<2x448xf32> to vector<1x8xf32>
    %258 = vector.extract_strided_slice %11 {offsets = [0, 152], sizes = [1, 8], strides = [1, 1]} : vector<2x448xf32> to vector<1x8xf32>
    %259 = vector.extract_strided_slice %11 {offsets = [0, 160], sizes = [1, 8], strides = [1, 1]} : vector<2x448xf32> to vector<1x8xf32>
    %260 = vector.extract_strided_slice %11 {offsets = [0, 168], sizes = [1, 8], strides = [1, 1]} : vector<2x448xf32> to vector<1x8xf32>
    %261 = vector.extract_strided_slice %11 {offsets = [0, 176], sizes = [1, 8], strides = [1, 1]} : vector<2x448xf32> to vector<1x8xf32>
    %262 = vector.extract_strided_slice %11 {offsets = [0, 184], sizes = [1, 8], strides = [1, 1]} : vector<2x448xf32> to vector<1x8xf32>
    %263 = vector.extract_strided_slice %11 {offsets = [0, 192], sizes = [1, 8], strides = [1, 1]} : vector<2x448xf32> to vector<1x8xf32>
    %264 = vector.extract_strided_slice %11 {offsets = [0, 200], sizes = [1, 8], strides = [1, 1]} : vector<2x448xf32> to vector<1x8xf32>
    %265 = vector.broadcast %39 : vector<8x1xf32> to vector<8x8xf32>
    %266 = vector.broadcast %257 : vector<1x8xf32> to vector<8x8xf32>
    %267 = arith.mulf %265, %266 : vector<8x8xf32>
    %268 = vector.broadcast %40 : vector<8x1xf32> to vector<8x8xf32>
    %269 = vector.broadcast %258 : vector<1x8xf32> to vector<8x8xf32>
    %270 = arith.mulf %268, %269 : vector<8x8xf32>
    %271 = arith.addf %267, %270 : vector<8x8xf32>
    %272 = vector.broadcast %41 : vector<8x1xf32> to vector<8x8xf32>
    %273 = vector.broadcast %259 : vector<1x8xf32> to vector<8x8xf32>
    %274 = arith.mulf %272, %273 : vector<8x8xf32>
    %275 = arith.addf %271, %274 : vector<8x8xf32>
    %276 = vector.broadcast %42 : vector<8x1xf32> to vector<8x8xf32>
    %277 = vector.broadcast %260 : vector<1x8xf32> to vector<8x8xf32>
    %278 = arith.mulf %276, %277 : vector<8x8xf32>
    %279 = arith.addf %275, %278 : vector<8x8xf32>
    %280 = vector.broadcast %43 : vector<8x1xf32> to vector<8x8xf32>
    %281 = vector.broadcast %261 : vector<1x8xf32> to vector<8x8xf32>
    %282 = arith.mulf %280, %281 : vector<8x8xf32>
    %283 = arith.addf %279, %282 : vector<8x8xf32>
    %284 = vector.broadcast %44 : vector<8x1xf32> to vector<8x8xf32>
    %285 = vector.broadcast %262 : vector<1x8xf32> to vector<8x8xf32>
    %286 = arith.mulf %284, %285 : vector<8x8xf32>
    %287 = arith.addf %283, %286 : vector<8x8xf32>
    %288 = vector.broadcast %45 : vector<8x1xf32> to vector<8x8xf32>
    %289 = vector.broadcast %263 : vector<1x8xf32> to vector<8x8xf32>
    %290 = arith.mulf %288, %289 : vector<8x8xf32>
    %291 = arith.addf %287, %290 : vector<8x8xf32>
    %292 = vector.broadcast %46 : vector<8x1xf32> to vector<8x8xf32>
    %293 = vector.broadcast %264 : vector<1x8xf32> to vector<8x8xf32>
    %294 = arith.mulf %292, %293 : vector<8x8xf32>
    %295 = arith.addf %291, %294 : vector<8x8xf32>
    %296 = vector.extract_strided_slice %11 {offsets = [0, 272], sizes = [1, 8], strides = [1, 1]} : vector<2x448xf32> to vector<1x8xf32>
    %297 = math.tanh %296 : vector<1x8xf32>
    %298 = vector.extract_strided_slice %11 {offsets = [0, 288], sizes = [1, 8], strides = [1, 1]} : vector<2x448xf32> to vector<1x8xf32>
    %299 = math.tanh %298 : vector<1x8xf32>
    %300 = vector.extract_strided_slice %11 {offsets = [0, 432], sizes = [1, 8], strides = [1, 1]} : vector<2x448xf32> to vector<1x8xf32>
    %301 = arith.mulf %38, %256 : vector<8x8xf32>
    %302 = vector.broadcast %299 : vector<1x8xf32> to vector<8x8xf32>
    %303 = arith.mulf %35, %302 : vector<8x8xf32>
    %304 = arith.addf %301, %303 : vector<8x8xf32>
    %305 = arith.mulf %38, %295 : vector<8x8xf32>
    %306 = vector.broadcast %297 : vector<1x8xf32> to vector<8x8xf32>
    %307 = arith.mulf %35, %306 : vector<8x8xf32>
    %308 = arith.addf %305, %307 : vector<8x8xf32>
    %cst_70 = arith.constant dense<0.000000e+00> : vector<1x8xf32>
    %309 = tpu.matmul %58, %210, %cst_70 {dimension_numbers = #tpu.dot_dimension_numbers<[1], [0], [0], [1], [0, 0, 1, 1], [], []>} : vector<1x8xf32>, vector<8x8xf32>, vector<1x8xf32> -> vector<1x8xf32>
    %cst_71 = arith.constant dense<0.000000e+00> : vector<1x8xf32>
    %310 = tpu.matmul %309, %304, %cst_71 {dimension_numbers = #tpu.dot_dimension_numbers<[1], [0], [0], [1], [0, 0, 1, 1], [], []>} : vector<1x8xf32>, vector<8x8xf32>, vector<1x8xf32> -> vector<1x8xf32>
    %311 = arith.addf %310, %300 : vector<1x8xf32>
    %312 = math.tanh %311 : vector<1x8xf32>
    %cst_72 = arith.constant dense<0.000000e+00> : vector<1x8xf32>
    %313 = tpu.matmul %312, %308, %cst_72 {dimension_numbers = #tpu.dot_dimension_numbers<[1], [0], [0], [1], [0, 0, 1, 1], [], []>} : vector<1x8xf32>, vector<8x8xf32>, vector<1x8xf32> -> vector<1x8xf32>
    %cst_73 = arith.constant dense<0.000000e+00> : vector<1x8xf32>
    %314 = tpu.matmul %313, %217, %cst_73 {dimension_numbers = #tpu.dot_dimension_numbers<[1], [0], [0], [1], [0, 0, 1, 1], [], []>} : vector<1x8xf32>, vector<8x8xf32>, vector<1x8xf32> -> vector<1x8xf32>
    %315 = arith.addf %314, %58 : vector<1x8xf32>
    %316 = arith.mulf %312, %312 : vector<1x8xf32>
    %cst_74 = arith.constant 1.000000e+00 : f32
    %317 = vector.broadcast %cst_74 : f32 to vector<1x8xf32>
    %318 = arith.subf %317, %316 : vector<1x8xf32>
    %319 = arith.mulf %297, %299 : vector<1x8xf32>
    %320 = arith.mulf %318, %319 : vector<1x8xf32>
    %cst_75 = arith.constant 1.000000e+00 : f32
    %321 = vector.broadcast %cst_75 : f32 to vector<1x8xf32>
    %322 = arith.addf %320, %321 : vector<1x8xf32>
    %323 = math.log %322 : vector<1x8xf32>
    %cst_76 = arith.constant dense<0.000000e+00> : vector<1xf32>
    %324 = vector.multi_reduction <add>, %323, %cst_76 [1] : vector<1x8xf32> to vector<1xf32>
    %325 = vector.shape_cast %324 : vector<1xf32> to vector<1x1xf32>
    %326 = arith.addf %59, %325 : vector<1x1xf32>
    %327 = vector.extract_strided_slice %11 {offsets = [0, 320], sizes = [1, 8], strides = [1, 1]} : vector<2x448xf32> to vector<1x8xf32>
    %328 = arith.mulf %327, %327 : vector<1x8xf32>
    %cst_77 = arith.constant dense<0.000000e+00> : vector<1xf32>
    %329 = vector.multi_reduction <add>, %328, %cst_77 [1] : vector<1x8xf32> to vector<1xf32>
    %330 = vector.shape_cast %329 : vector<1xf32> to vector<1x1xf32>
    %cst_78 = arith.constant 9.99999996E-13 : f32
    %331 = vector.broadcast %cst_78 : f32 to vector<1x1xf32>
    %332 = arith.addf %330, %331 : vector<1x1xf32>
    %333 = vector.broadcast %327 : vector<1x8xf32> to vector<8x8xf32>
    %334 = arith.mulf %35, %333 : vector<8x8xf32>
    %cst_79 = arith.constant dense<0.000000e+00> : vector<8xf32>
    %335 = vector.multi_reduction <add>, %334, %cst_79 [1] : vector<8x8xf32> to vector<8xf32>
    %336 = vector.shape_cast %335 : vector<8xf32> to vector<8x1xf32>
    %cst_80 = arith.constant 2.000000e+00 : f32
    %337 = vector.broadcast %cst_80 : f32 to vector<1x1xf32>
    %338 = arith.divf %337, %332 : vector<1x1xf32>
    %339 = vector.broadcast %336 : vector<8x1xf32> to vector<8x8xf32>
    %340 = vector.broadcast %327 : vector<1x8xf32> to vector<8x8xf32>
    %341 = arith.mulf %339, %340 : vector<8x8xf32>
    %342 = vector.broadcast %338 : vector<1x1xf32> to vector<8x8xf32>
    %343 = arith.mulf %342, %341 : vector<8x8xf32>
    %344 = arith.subf %35, %343 : vector<8x8xf32>
    %345 = vector.extract_strided_slice %11 {offsets = [0, 352], sizes = [1, 8], strides = [1, 1]} : vector<2x448xf32> to vector<1x8xf32>
    %346 = arith.mulf %345, %345 : vector<1x8xf32>
    %cst_81 = arith.constant dense<0.000000e+00> : vector<1xf32>
    %347 = vector.multi_reduction <add>, %346, %cst_81 [1] : vector<1x8xf32> to vector<1xf32>
    %348 = vector.shape_cast %347 : vector<1xf32> to vector<1x1xf32>
    %cst_82 = arith.constant 9.99999996E-13 : f32
    %349 = vector.broadcast %cst_82 : f32 to vector<1x1xf32>
    %350 = arith.addf %348, %349 : vector<1x1xf32>
    %351 = vector.broadcast %345 : vector<1x8xf32> to vector<8x8xf32>
    %352 = arith.mulf %35, %351 : vector<8x8xf32>
    %cst_83 = arith.constant dense<0.000000e+00> : vector<8xf32>
    %353 = vector.multi_reduction <add>, %352, %cst_83 [1] : vector<8x8xf32> to vector<8xf32>
    %354 = vector.shape_cast %353 : vector<8xf32> to vector<8x1xf32>
    %cst_84 = arith.constant 2.000000e+00 : f32
    %355 = vector.broadcast %cst_84 : f32 to vector<1x1xf32>
    %356 = arith.divf %355, %350 : vector<1x1xf32>
    %357 = vector.broadcast %354 : vector<8x1xf32> to vector<8x8xf32>
    %358 = vector.broadcast %345 : vector<1x8xf32> to vector<8x8xf32>
    %359 = arith.mulf %357, %358 : vector<8x8xf32>
    %360 = vector.broadcast %356 : vector<1x1xf32> to vector<8x8xf32>
    %361 = arith.mulf %360, %359 : vector<8x8xf32>
    %362 = arith.subf %35, %361 : vector<8x8xf32>
    %363 = vector.extract_strided_slice %11 {offsets = [0, 384], sizes = [1, 8], strides = [1, 1]} : vector<2x448xf32> to vector<1x8xf32>
    %364 = arith.mulf %363, %363 : vector<1x8xf32>
    %cst_85 = arith.constant dense<0.000000e+00> : vector<1xf32>
    %365 = vector.multi_reduction <add>, %364, %cst_85 [1] : vector<1x8xf32> to vector<1xf32>
    %366 = vector.shape_cast %365 : vector<1xf32> to vector<1x1xf32>
    %cst_86 = arith.constant 9.99999996E-13 : f32
    %367 = vector.broadcast %cst_86 : f32 to vector<1x1xf32>
    %368 = arith.addf %366, %367 : vector<1x1xf32>
    %369 = vector.broadcast %363 : vector<1x8xf32> to vector<8x8xf32>
    %370 = arith.mulf %35, %369 : vector<8x8xf32>
    %cst_87 = arith.constant dense<0.000000e+00> : vector<8xf32>
    %371 = vector.multi_reduction <add>, %370, %cst_87 [1] : vector<8x8xf32> to vector<8xf32>
    %372 = vector.shape_cast %371 : vector<8xf32> to vector<8x1xf32>
    %cst_88 = arith.constant 2.000000e+00 : f32
    %373 = vector.broadcast %cst_88 : f32 to vector<1x1xf32>
    %374 = arith.divf %373, %368 : vector<1x1xf32>
    %375 = vector.broadcast %372 : vector<8x1xf32> to vector<8x8xf32>
    %376 = vector.broadcast %363 : vector<1x8xf32> to vector<8x8xf32>
    %377 = arith.mulf %375, %376 : vector<8x8xf32>
    %378 = vector.broadcast %374 : vector<1x1xf32> to vector<8x8xf32>
    %379 = arith.mulf %378, %377 : vector<8x8xf32>
    %380 = arith.subf %35, %379 : vector<8x8xf32>
    %381 = vector.extract_strided_slice %11 {offsets = [0, 416], sizes = [1, 8], strides = [1, 1]} : vector<2x448xf32> to vector<1x8xf32>
    %382 = arith.mulf %381, %381 : vector<1x8xf32>
    %cst_89 = arith.constant dense<0.000000e+00> : vector<1xf32>
    %383 = vector.multi_reduction <add>, %382, %cst_89 [1] : vector<1x8xf32> to vector<1xf32>
    %384 = vector.shape_cast %383 : vector<1xf32> to vector<1x1xf32>
    %cst_90 = arith.constant 9.99999996E-13 : f32
    %385 = vector.broadcast %cst_90 : f32 to vector<1x1xf32>
    %386 = arith.addf %384, %385 : vector<1x1xf32>
    %387 = vector.broadcast %381 : vector<1x8xf32> to vector<8x8xf32>
    %388 = arith.mulf %35, %387 : vector<8x8xf32>
    %cst_91 = arith.constant dense<0.000000e+00> : vector<8xf32>
    %389 = vector.multi_reduction <add>, %388, %cst_91 [1] : vector<8x8xf32> to vector<8xf32>
    %390 = vector.shape_cast %389 : vector<8xf32> to vector<8x1xf32>
    %cst_92 = arith.constant 2.000000e+00 : f32
    %391 = vector.broadcast %cst_92 : f32 to vector<1x1xf32>
    %392 = arith.divf %391, %386 : vector<1x1xf32>
    %393 = vector.broadcast %390 : vector<8x1xf32> to vector<8x8xf32>
    %394 = vector.broadcast %381 : vector<1x8xf32> to vector<8x8xf32>
    %395 = arith.mulf %393, %394 : vector<8x8xf32>
    %396 = vector.broadcast %392 : vector<1x1xf32> to vector<8x8xf32>
    %397 = arith.mulf %396, %395 : vector<8x8xf32>
    %398 = arith.subf %35, %397 : vector<8x8xf32>
    %399 = vector.extract_strided_slice %11 {offsets = [1, 320], sizes = [1, 8], strides = [1, 1]} : vector<2x448xf32> to vector<1x8xf32>
    %400 = arith.mulf %399, %399 : vector<1x8xf32>
    %cst_93 = arith.constant dense<0.000000e+00> : vector<1xf32>
    %401 = vector.multi_reduction <add>, %400, %cst_93 [1] : vector<1x8xf32> to vector<1xf32>
    %402 = vector.shape_cast %401 : vector<1xf32> to vector<1x1xf32>
    %cst_94 = arith.constant 9.99999996E-13 : f32
    %403 = vector.broadcast %cst_94 : f32 to vector<1x1xf32>
    %404 = arith.addf %402, %403 : vector<1x1xf32>
    %405 = vector.broadcast %399 : vector<1x8xf32> to vector<8x8xf32>
    %406 = arith.mulf %35, %405 : vector<8x8xf32>
    %cst_95 = arith.constant dense<0.000000e+00> : vector<8xf32>
    %407 = vector.multi_reduction <add>, %406, %cst_95 [1] : vector<8x8xf32> to vector<8xf32>
    %408 = vector.shape_cast %407 : vector<8xf32> to vector<8x1xf32>
    %cst_96 = arith.constant 2.000000e+00 : f32
    %409 = vector.broadcast %cst_96 : f32 to vector<1x1xf32>
    %410 = arith.divf %409, %404 : vector<1x1xf32>
    %411 = vector.broadcast %408 : vector<8x1xf32> to vector<8x8xf32>
    %412 = vector.broadcast %399 : vector<1x8xf32> to vector<8x8xf32>
    %413 = arith.mulf %411, %412 : vector<8x8xf32>
    %414 = vector.broadcast %410 : vector<1x1xf32> to vector<8x8xf32>
    %415 = arith.mulf %414, %413 : vector<8x8xf32>
    %416 = arith.subf %35, %415 : vector<8x8xf32>
    %417 = vector.extract_strided_slice %11 {offsets = [1, 352], sizes = [1, 8], strides = [1, 1]} : vector<2x448xf32> to vector<1x8xf32>
    %418 = arith.mulf %417, %417 : vector<1x8xf32>
    %cst_97 = arith.constant dense<0.000000e+00> : vector<1xf32>
    %419 = vector.multi_reduction <add>, %418, %cst_97 [1] : vector<1x8xf32> to vector<1xf32>
    %420 = vector.shape_cast %419 : vector<1xf32> to vector<1x1xf32>
    %cst_98 = arith.constant 9.99999996E-13 : f32
    %421 = vector.broadcast %cst_98 : f32 to vector<1x1xf32>
    %422 = arith.addf %420, %421 : vector<1x1xf32>
    %423 = vector.broadcast %417 : vector<1x8xf32> to vector<8x8xf32>
    %424 = arith.mulf %35, %423 : vector<8x8xf32>
    %cst_99 = arith.constant dense<0.000000e+00> : vector<8xf32>
    %425 = vector.multi_reduction <add>, %424, %cst_99 [1] : vector<8x8xf32> to vector<8xf32>
    %426 = vector.shape_cast %425 : vector<8xf32> to vector<8x1xf32>
    %cst_100 = arith.constant 2.000000e+00 : f32
    %427 = vector.broadcast %cst_100 : f32 to vector<1x1xf32>
    %428 = arith.divf %427, %422 : vector<1x1xf32>
    %429 = vector.broadcast %426 : vector<8x1xf32> to vector<8x8xf32>
    %430 = vector.broadcast %417 : vector<1x8xf32> to vector<8x8xf32>
    %431 = arith.mulf %429, %430 : vector<8x8xf32>
    %432 = vector.broadcast %428 : vector<1x1xf32> to vector<8x8xf32>
    %433 = arith.mulf %432, %431 : vector<8x8xf32>
    %434 = arith.subf %35, %433 : vector<8x8xf32>
    %435 = vector.extract_strided_slice %11 {offsets = [1, 384], sizes = [1, 8], strides = [1, 1]} : vector<2x448xf32> to vector<1x8xf32>
    %436 = arith.mulf %435, %435 : vector<1x8xf32>
    %cst_101 = arith.constant dense<0.000000e+00> : vector<1xf32>
    %437 = vector.multi_reduction <add>, %436, %cst_101 [1] : vector<1x8xf32> to vector<1xf32>
    %438 = vector.shape_cast %437 : vector<1xf32> to vector<1x1xf32>
    %cst_102 = arith.constant 9.99999996E-13 : f32
    %439 = vector.broadcast %cst_102 : f32 to vector<1x1xf32>
    %440 = arith.addf %438, %439 : vector<1x1xf32>
    %441 = vector.broadcast %435 : vector<1x8xf32> to vector<8x8xf32>
    %442 = arith.mulf %35, %441 : vector<8x8xf32>
    %cst_103 = arith.constant dense<0.000000e+00> : vector<8xf32>
    %443 = vector.multi_reduction <add>, %442, %cst_103 [1] : vector<8x8xf32> to vector<8xf32>
    %444 = vector.shape_cast %443 : vector<8xf32> to vector<8x1xf32>
    %cst_104 = arith.constant 2.000000e+00 : f32
    %445 = vector.broadcast %cst_104 : f32 to vector<1x1xf32>
    %446 = arith.divf %445, %440 : vector<1x1xf32>
    %447 = vector.broadcast %444 : vector<8x1xf32> to vector<8x8xf32>
    %448 = vector.broadcast %435 : vector<1x8xf32> to vector<8x8xf32>
    %449 = arith.mulf %447, %448 : vector<8x8xf32>
    %450 = vector.broadcast %446 : vector<1x1xf32> to vector<8x8xf32>
    %451 = arith.mulf %450, %449 : vector<8x8xf32>
    %452 = arith.subf %35, %451 : vector<8x8xf32>
    %453 = vector.extract_strided_slice %11 {offsets = [1, 416], sizes = [1, 8], strides = [1, 1]} : vector<2x448xf32> to vector<1x8xf32>
    %454 = arith.mulf %453, %453 : vector<1x8xf32>
    %cst_105 = arith.constant dense<0.000000e+00> : vector<1xf32>
    %455 = vector.multi_reduction <add>, %454, %cst_105 [1] : vector<1x8xf32> to vector<1xf32>
    %456 = vector.shape_cast %455 : vector<1xf32> to vector<1x1xf32>
    %cst_106 = arith.constant 9.99999996E-13 : f32
    %457 = vector.broadcast %cst_106 : f32 to vector<1x1xf32>
    %458 = arith.addf %456, %457 : vector<1x1xf32>
    %459 = vector.broadcast %453 : vector<1x8xf32> to vector<8x8xf32>
    %460 = arith.mulf %35, %459 : vector<8x8xf32>
    %cst_107 = arith.constant dense<0.000000e+00> : vector<8xf32>
    %461 = vector.multi_reduction <add>, %460, %cst_107 [1] : vector<8x8xf32> to vector<8xf32>
    %462 = vector.shape_cast %461 : vector<8xf32> to vector<8x1xf32>
    %cst_108 = arith.constant 2.000000e+00 : f32
    %463 = vector.broadcast %cst_108 : f32 to vector<1x1xf32>
    %464 = arith.divf %463, %458 : vector<1x1xf32>
    %465 = vector.broadcast %462 : vector<8x1xf32> to vector<8x8xf32>
    %466 = vector.broadcast %453 : vector<1x8xf32> to vector<8x8xf32>
    %467 = arith.mulf %465, %466 : vector<8x8xf32>
    %468 = vector.broadcast %464 : vector<1x1xf32> to vector<8x8xf32>
    %469 = arith.mulf %468, %467 : vector<8x8xf32>
    %470 = arith.subf %35, %469 : vector<8x8xf32>
    %cst_109 = arith.constant dense<0.000000e+00> : vector<8x8xf32>
    %471 = tpu.matmul %344, %362, %cst_109 {dimension_numbers = #tpu.dot_dimension_numbers<[1], [0], [0], [1], [0, 0, 1, 1], [], []>} : vector<8x8xf32>, vector<8x8xf32>, vector<8x8xf32> -> vector<8x8xf32>
    %cst_110 = arith.constant dense<0.000000e+00> : vector<8x8xf32>
    %472 = tpu.matmul %471, %380, %cst_110 {dimension_numbers = #tpu.dot_dimension_numbers<[1], [0], [0], [1], [0, 0, 1, 1], [], []>} : vector<8x8xf32>, vector<8x8xf32>, vector<8x8xf32> -> vector<8x8xf32>
    %cst_111 = arith.constant dense<0.000000e+00> : vector<8x8xf32>
    %473 = tpu.matmul %472, %398, %cst_111 {dimension_numbers = #tpu.dot_dimension_numbers<[1], [0], [0], [1], [0, 0, 1, 1], [], []>} : vector<8x8xf32>, vector<8x8xf32>, vector<8x8xf32> -> vector<8x8xf32>
    %cst_112 = arith.constant dense<0.000000e+00> : vector<8x8xf32>
    %474 = tpu.matmul %473, %416, %cst_112 {dimension_numbers = #tpu.dot_dimension_numbers<[1], [0], [0], [1], [0, 0, 1, 1], [], []>} : vector<8x8xf32>, vector<8x8xf32>, vector<8x8xf32> -> vector<8x8xf32>
    %cst_113 = arith.constant dense<0.000000e+00> : vector<8x8xf32>
    %475 = tpu.matmul %474, %434, %cst_113 {dimension_numbers = #tpu.dot_dimension_numbers<[1], [0], [0], [1], [0, 0, 1, 1], [], []>} : vector<8x8xf32>, vector<8x8xf32>, vector<8x8xf32> -> vector<8x8xf32>
    %cst_114 = arith.constant dense<0.000000e+00> : vector<8x8xf32>
    %476 = tpu.matmul %475, %452, %cst_114 {dimension_numbers = #tpu.dot_dimension_numbers<[1], [0], [0], [1], [0, 0, 1, 1], [], []>} : vector<8x8xf32>, vector<8x8xf32>, vector<8x8xf32> -> vector<8x8xf32>
    %cst_115 = arith.constant dense<0.000000e+00> : vector<8x8xf32>
    %477 = tpu.matmul %476, %470, %cst_115 {dimension_numbers = #tpu.dot_dimension_numbers<[1], [0], [0], [1], [0, 0, 1, 1], [], []>} : vector<8x8xf32>, vector<8x8xf32>, vector<8x8xf32> -> vector<8x8xf32>
    %cst_116 = arith.constant dense<0.000000e+00> : vector<8x8xf32>
    %478 = tpu.matmul %470, %452, %cst_116 {dimension_numbers = #tpu.dot_dimension_numbers<[1], [0], [0], [1], [0, 0, 1, 1], [], []>} : vector<8x8xf32>, vector<8x8xf32>, vector<8x8xf32> -> vector<8x8xf32>
    %cst_117 = arith.constant dense<0.000000e+00> : vector<8x8xf32>
    %479 = tpu.matmul %478, %434, %cst_117 {dimension_numbers = #tpu.dot_dimension_numbers<[1], [0], [0], [1], [0, 0, 1, 1], [], []>} : vector<8x8xf32>, vector<8x8xf32>, vector<8x8xf32> -> vector<8x8xf32>
    %cst_118 = arith.constant dense<0.000000e+00> : vector<8x8xf32>
    %480 = tpu.matmul %479, %416, %cst_118 {dimension_numbers = #tpu.dot_dimension_numbers<[1], [0], [0], [1], [0, 0, 1, 1], [], []>} : vector<8x8xf32>, vector<8x8xf32>, vector<8x8xf32> -> vector<8x8xf32>
    %cst_119 = arith.constant dense<0.000000e+00> : vector<8x8xf32>
    %481 = tpu.matmul %480, %398, %cst_119 {dimension_numbers = #tpu.dot_dimension_numbers<[1], [0], [0], [1], [0, 0, 1, 1], [], []>} : vector<8x8xf32>, vector<8x8xf32>, vector<8x8xf32> -> vector<8x8xf32>
    %cst_120 = arith.constant dense<0.000000e+00> : vector<8x8xf32>
    %482 = tpu.matmul %481, %380, %cst_120 {dimension_numbers = #tpu.dot_dimension_numbers<[1], [0], [0], [1], [0, 0, 1, 1], [], []>} : vector<8x8xf32>, vector<8x8xf32>, vector<8x8xf32> -> vector<8x8xf32>
    %cst_121 = arith.constant dense<0.000000e+00> : vector<8x8xf32>
    %483 = tpu.matmul %482, %362, %cst_121 {dimension_numbers = #tpu.dot_dimension_numbers<[1], [0], [0], [1], [0, 0, 1, 1], [], []>} : vector<8x8xf32>, vector<8x8xf32>, vector<8x8xf32> -> vector<8x8xf32>
    %cst_122 = arith.constant dense<0.000000e+00> : vector<8x8xf32>
    %484 = tpu.matmul %483, %344, %cst_122 {dimension_numbers = #tpu.dot_dimension_numbers<[1], [0], [0], [1], [0, 0, 1, 1], [], []>} : vector<8x8xf32>, vector<8x8xf32>, vector<8x8xf32> -> vector<8x8xf32>
    %485 = vector.extract_strided_slice %11 {offsets = [0, 80], sizes = [1, 8], strides = [1, 1]} : vector<2x448xf32> to vector<1x8xf32>
    %486 = vector.extract_strided_slice %11 {offsets = [0, 88], sizes = [1, 8], strides = [1, 1]} : vector<2x448xf32> to vector<1x8xf32>
    %487 = vector.extract_strided_slice %11 {offsets = [0, 96], sizes = [1, 8], strides = [1, 1]} : vector<2x448xf32> to vector<1x8xf32>
    %488 = vector.extract_strided_slice %11 {offsets = [0, 104], sizes = [1, 8], strides = [1, 1]} : vector<2x448xf32> to vector<1x8xf32>
    %489 = vector.extract_strided_slice %11 {offsets = [0, 112], sizes = [1, 8], strides = [1, 1]} : vector<2x448xf32> to vector<1x8xf32>
    %490 = vector.extract_strided_slice %11 {offsets = [0, 120], sizes = [1, 8], strides = [1, 1]} : vector<2x448xf32> to vector<1x8xf32>
    %491 = vector.extract_strided_slice %11 {offsets = [0, 128], sizes = [1, 8], strides = [1, 1]} : vector<2x448xf32> to vector<1x8xf32>
    %492 = vector.extract_strided_slice %11 {offsets = [0, 136], sizes = [1, 8], strides = [1, 1]} : vector<2x448xf32> to vector<1x8xf32>
    %493 = vector.broadcast %39 : vector<8x1xf32> to vector<8x8xf32>
    %494 = vector.broadcast %485 : vector<1x8xf32> to vector<8x8xf32>
    %495 = arith.mulf %493, %494 : vector<8x8xf32>
    %496 = vector.broadcast %40 : vector<8x1xf32> to vector<8x8xf32>
    %497 = vector.broadcast %486 : vector<1x8xf32> to vector<8x8xf32>
    %498 = arith.mulf %496, %497 : vector<8x8xf32>
    %499 = arith.addf %495, %498 : vector<8x8xf32>
    %500 = vector.broadcast %41 : vector<8x1xf32> to vector<8x8xf32>
    %501 = vector.broadcast %487 : vector<1x8xf32> to vector<8x8xf32>
    %502 = arith.mulf %500, %501 : vector<8x8xf32>
    %503 = arith.addf %499, %502 : vector<8x8xf32>
    %504 = vector.broadcast %42 : vector<8x1xf32> to vector<8x8xf32>
    %505 = vector.broadcast %488 : vector<1x8xf32> to vector<8x8xf32>
    %506 = arith.mulf %504, %505 : vector<8x8xf32>
    %507 = arith.addf %503, %506 : vector<8x8xf32>
    %508 = vector.broadcast %43 : vector<8x1xf32> to vector<8x8xf32>
    %509 = vector.broadcast %489 : vector<1x8xf32> to vector<8x8xf32>
    %510 = arith.mulf %508, %509 : vector<8x8xf32>
    %511 = arith.addf %507, %510 : vector<8x8xf32>
    %512 = vector.broadcast %44 : vector<8x1xf32> to vector<8x8xf32>
    %513 = vector.broadcast %490 : vector<1x8xf32> to vector<8x8xf32>
    %514 = arith.mulf %512, %513 : vector<8x8xf32>
    %515 = arith.addf %511, %514 : vector<8x8xf32>
    %516 = vector.broadcast %45 : vector<8x1xf32> to vector<8x8xf32>
    %517 = vector.broadcast %491 : vector<1x8xf32> to vector<8x8xf32>
    %518 = arith.mulf %516, %517 : vector<8x8xf32>
    %519 = arith.addf %515, %518 : vector<8x8xf32>
    %520 = vector.broadcast %46 : vector<8x1xf32> to vector<8x8xf32>
    %521 = vector.broadcast %492 : vector<1x8xf32> to vector<8x8xf32>
    %522 = arith.mulf %520, %521 : vector<8x8xf32>
    %523 = arith.addf %519, %522 : vector<8x8xf32>
    %524 = vector.extract_strided_slice %11 {offsets = [0, 208], sizes = [1, 8], strides = [1, 1]} : vector<2x448xf32> to vector<1x8xf32>
    %525 = vector.extract_strided_slice %11 {offsets = [0, 216], sizes = [1, 8], strides = [1, 1]} : vector<2x448xf32> to vector<1x8xf32>
    %526 = vector.extract_strided_slice %11 {offsets = [0, 224], sizes = [1, 8], strides = [1, 1]} : vector<2x448xf32> to vector<1x8xf32>
    %527 = vector.extract_strided_slice %11 {offsets = [0, 232], sizes = [1, 8], strides = [1, 1]} : vector<2x448xf32> to vector<1x8xf32>
    %528 = vector.extract_strided_slice %11 {offsets = [0, 240], sizes = [1, 8], strides = [1, 1]} : vector<2x448xf32> to vector<1x8xf32>
    %529 = vector.extract_strided_slice %11 {offsets = [0, 248], sizes = [1, 8], strides = [1, 1]} : vector<2x448xf32> to vector<1x8xf32>
    %530 = vector.extract_strided_slice %11 {offsets = [0, 256], sizes = [1, 8], strides = [1, 1]} : vector<2x448xf32> to vector<1x8xf32>
    %531 = vector.extract_strided_slice %11 {offsets = [0, 264], sizes = [1, 8], strides = [1, 1]} : vector<2x448xf32> to vector<1x8xf32>
    %532 = vector.broadcast %39 : vector<8x1xf32> to vector<8x8xf32>
    %533 = vector.broadcast %524 : vector<1x8xf32> to vector<8x8xf32>
    %534 = arith.mulf %532, %533 : vector<8x8xf32>
    %535 = vector.broadcast %40 : vector<8x1xf32> to vector<8x8xf32>
    %536 = vector.broadcast %525 : vector<1x8xf32> to vector<8x8xf32>
    %537 = arith.mulf %535, %536 : vector<8x8xf32>
    %538 = arith.addf %534, %537 : vector<8x8xf32>
    %539 = vector.broadcast %41 : vector<8x1xf32> to vector<8x8xf32>
    %540 = vector.broadcast %526 : vector<1x8xf32> to vector<8x8xf32>
    %541 = arith.mulf %539, %540 : vector<8x8xf32>
    %542 = arith.addf %538, %541 : vector<8x8xf32>
    %543 = vector.broadcast %42 : vector<8x1xf32> to vector<8x8xf32>
    %544 = vector.broadcast %527 : vector<1x8xf32> to vector<8x8xf32>
    %545 = arith.mulf %543, %544 : vector<8x8xf32>
    %546 = arith.addf %542, %545 : vector<8x8xf32>
    %547 = vector.broadcast %43 : vector<8x1xf32> to vector<8x8xf32>
    %548 = vector.broadcast %528 : vector<1x8xf32> to vector<8x8xf32>
    %549 = arith.mulf %547, %548 : vector<8x8xf32>
    %550 = arith.addf %546, %549 : vector<8x8xf32>
    %551 = vector.broadcast %44 : vector<8x1xf32> to vector<8x8xf32>
    %552 = vector.broadcast %529 : vector<1x8xf32> to vector<8x8xf32>
    %553 = arith.mulf %551, %552 : vector<8x8xf32>
    %554 = arith.addf %550, %553 : vector<8x8xf32>
    %555 = vector.broadcast %45 : vector<8x1xf32> to vector<8x8xf32>
    %556 = vector.broadcast %530 : vector<1x8xf32> to vector<8x8xf32>
    %557 = arith.mulf %555, %556 : vector<8x8xf32>
    %558 = arith.addf %554, %557 : vector<8x8xf32>
    %559 = vector.broadcast %46 : vector<8x1xf32> to vector<8x8xf32>
    %560 = vector.broadcast %531 : vector<1x8xf32> to vector<8x8xf32>
    %561 = arith.mulf %559, %560 : vector<8x8xf32>
    %562 = arith.addf %558, %561 : vector<8x8xf32>
    %563 = vector.extract_strided_slice %11 {offsets = [0, 280], sizes = [1, 8], strides = [1, 1]} : vector<2x448xf32> to vector<1x8xf32>
    %564 = math.tanh %563 : vector<1x8xf32>
    %565 = vector.extract_strided_slice %11 {offsets = [0, 296], sizes = [1, 8], strides = [1, 1]} : vector<2x448xf32> to vector<1x8xf32>
    %566 = math.tanh %565 : vector<1x8xf32>
    %567 = vector.extract_strided_slice %11 {offsets = [0, 440], sizes = [1, 8], strides = [1, 1]} : vector<2x448xf32> to vector<1x8xf32>
    %568 = arith.mulf %38, %523 : vector<8x8xf32>
    %569 = vector.broadcast %566 : vector<1x8xf32> to vector<8x8xf32>
    %570 = arith.mulf %35, %569 : vector<8x8xf32>
    %571 = arith.addf %568, %570 : vector<8x8xf32>
    %572 = arith.mulf %38, %562 : vector<8x8xf32>
    %573 = vector.broadcast %564 : vector<1x8xf32> to vector<8x8xf32>
    %574 = arith.mulf %35, %573 : vector<8x8xf32>
    %575 = arith.addf %572, %574 : vector<8x8xf32>
    %cst_123 = arith.constant dense<0.000000e+00> : vector<1x8xf32>
    %576 = tpu.matmul %315, %477, %cst_123 {dimension_numbers = #tpu.dot_dimension_numbers<[1], [0], [0], [1], [0, 0, 1, 1], [], []>} : vector<1x8xf32>, vector<8x8xf32>, vector<1x8xf32> -> vector<1x8xf32>
    %cst_124 = arith.constant dense<0.000000e+00> : vector<1x8xf32>
    %577 = tpu.matmul %576, %571, %cst_124 {dimension_numbers = #tpu.dot_dimension_numbers<[1], [0], [0], [1], [0, 0, 1, 1], [], []>} : vector<1x8xf32>, vector<8x8xf32>, vector<1x8xf32> -> vector<1x8xf32>
    %578 = arith.addf %577, %567 : vector<1x8xf32>
    %579 = math.tanh %578 : vector<1x8xf32>
    %cst_125 = arith.constant dense<0.000000e+00> : vector<1x8xf32>
    %580 = tpu.matmul %579, %575, %cst_125 {dimension_numbers = #tpu.dot_dimension_numbers<[1], [0], [0], [1], [0, 0, 1, 1], [], []>} : vector<1x8xf32>, vector<8x8xf32>, vector<1x8xf32> -> vector<1x8xf32>
    %cst_126 = arith.constant dense<0.000000e+00> : vector<1x8xf32>
    %581 = tpu.matmul %580, %484, %cst_126 {dimension_numbers = #tpu.dot_dimension_numbers<[1], [0], [0], [1], [0, 0, 1, 1], [], []>} : vector<1x8xf32>, vector<8x8xf32>, vector<1x8xf32> -> vector<1x8xf32>
    %582 = arith.addf %581, %315 : vector<1x8xf32>
    %583 = arith.mulf %579, %579 : vector<1x8xf32>
    %cst_127 = arith.constant 1.000000e+00 : f32
    %584 = vector.broadcast %cst_127 : f32 to vector<1x8xf32>
    %585 = arith.subf %584, %583 : vector<1x8xf32>
    %586 = arith.mulf %564, %566 : vector<1x8xf32>
    %587 = arith.mulf %585, %586 : vector<1x8xf32>
    %cst_128 = arith.constant 1.000000e+00 : f32
    %588 = vector.broadcast %cst_128 : f32 to vector<1x8xf32>
    %589 = arith.addf %587, %588 : vector<1x8xf32>
    %590 = math.log %589 : vector<1x8xf32>
    %cst_129 = arith.constant dense<0.000000e+00> : vector<1xf32>
    %591 = vector.multi_reduction <add>, %590, %cst_129 [1] : vector<1x8xf32> to vector<1xf32>
    %592 = vector.shape_cast %591 : vector<1xf32> to vector<1x1xf32>
    %593 = arith.addf %326, %592 : vector<1x1xf32>
    %594 = vector.broadcast %51 : vector<2x1xf32> to vector<2x8xf32>
    %595 = vector.broadcast %582 : vector<1x8xf32> to vector<2x8xf32>
    %596 = arith.mulf %594, %595 : vector<2x8xf32>
    %597 = arith.addf %56, %596 : vector<2x8xf32>
    %598 = vector.broadcast %593 : vector<1x1xf32> to vector<2x1xf32>
    %599 = arith.mulf %51, %598 : vector<2x1xf32>
    %600 = arith.addf %57, %599 : vector<2x1xf32>
    %601 = vector.extract_strided_slice %29 {offsets = [1, 0], sizes = [1, 8], strides = [1, 1]} : vector<2x8xf32> to vector<1x8xf32>
    %cst_130 = arith.constant 0.000000e+00 : f32
    %602 = vector.broadcast %cst_130 : f32 to vector<1x1xf32>
    %603 = vector.extract_strided_slice %11 {offsets = [0, 312], sizes = [1, 8], strides = [1, 1]} : vector<2x448xf32> to vector<1x8xf32>
    %604 = arith.mulf %603, %603 : vector<1x8xf32>
    %cst_131 = arith.constant dense<0.000000e+00> : vector<1xf32>
    %605 = vector.multi_reduction <add>, %604, %cst_131 [1] : vector<1x8xf32> to vector<1xf32>
    %606 = vector.shape_cast %605 : vector<1xf32> to vector<1x1xf32>
    %cst_132 = arith.constant 9.99999996E-13 : f32
    %607 = vector.broadcast %cst_132 : f32 to vector<1x1xf32>
    %608 = arith.addf %606, %607 : vector<1x1xf32>
    %609 = vector.broadcast %603 : vector<1x8xf32> to vector<8x8xf32>
    %610 = arith.mulf %35, %609 : vector<8x8xf32>
    %cst_133 = arith.constant dense<0.000000e+00> : vector<8xf32>
    %611 = vector.multi_reduction <add>, %610, %cst_133 [1] : vector<8x8xf32> to vector<8xf32>
    %612 = vector.shape_cast %611 : vector<8xf32> to vector<8x1xf32>
    %cst_134 = arith.constant 2.000000e+00 : f32
    %613 = vector.broadcast %cst_134 : f32 to vector<1x1xf32>
    %614 = arith.divf %613, %608 : vector<1x1xf32>
    %615 = vector.broadcast %612 : vector<8x1xf32> to vector<8x8xf32>
    %616 = vector.broadcast %603 : vector<1x8xf32> to vector<8x8xf32>
    %617 = arith.mulf %615, %616 : vector<8x8xf32>
    %618 = vector.broadcast %614 : vector<1x1xf32> to vector<8x8xf32>
    %619 = arith.mulf %618, %617 : vector<8x8xf32>
    %620 = arith.subf %35, %619 : vector<8x8xf32>
    %621 = vector.extract_strided_slice %11 {offsets = [0, 344], sizes = [1, 8], strides = [1, 1]} : vector<2x448xf32> to vector<1x8xf32>
    %622 = arith.mulf %621, %621 : vector<1x8xf32>
    %cst_135 = arith.constant dense<0.000000e+00> : vector<1xf32>
    %623 = vector.multi_reduction <add>, %622, %cst_135 [1] : vector<1x8xf32> to vector<1xf32>
    %624 = vector.shape_cast %623 : vector<1xf32> to vector<1x1xf32>
    %cst_136 = arith.constant 9.99999996E-13 : f32
    %625 = vector.broadcast %cst_136 : f32 to vector<1x1xf32>
    %626 = arith.addf %624, %625 : vector<1x1xf32>
    %627 = vector.broadcast %621 : vector<1x8xf32> to vector<8x8xf32>
    %628 = arith.mulf %35, %627 : vector<8x8xf32>
    %cst_137 = arith.constant dense<0.000000e+00> : vector<8xf32>
    %629 = vector.multi_reduction <add>, %628, %cst_137 [1] : vector<8x8xf32> to vector<8xf32>
    %630 = vector.shape_cast %629 : vector<8xf32> to vector<8x1xf32>
    %cst_138 = arith.constant 2.000000e+00 : f32
    %631 = vector.broadcast %cst_138 : f32 to vector<1x1xf32>
    %632 = arith.divf %631, %626 : vector<1x1xf32>
    %633 = vector.broadcast %630 : vector<8x1xf32> to vector<8x8xf32>
    %634 = vector.broadcast %621 : vector<1x8xf32> to vector<8x8xf32>
    %635 = arith.mulf %633, %634 : vector<8x8xf32>
    %636 = vector.broadcast %632 : vector<1x1xf32> to vector<8x8xf32>
    %637 = arith.mulf %636, %635 : vector<8x8xf32>
    %638 = arith.subf %35, %637 : vector<8x8xf32>
    %639 = vector.extract_strided_slice %11 {offsets = [0, 376], sizes = [1, 8], strides = [1, 1]} : vector<2x448xf32> to vector<1x8xf32>
    %640 = arith.mulf %639, %639 : vector<1x8xf32>
    %cst_139 = arith.constant dense<0.000000e+00> : vector<1xf32>
    %641 = vector.multi_reduction <add>, %640, %cst_139 [1] : vector<1x8xf32> to vector<1xf32>
    %642 = vector.shape_cast %641 : vector<1xf32> to vector<1x1xf32>
    %cst_140 = arith.constant 9.99999996E-13 : f32
    %643 = vector.broadcast %cst_140 : f32 to vector<1x1xf32>
    %644 = arith.addf %642, %643 : vector<1x1xf32>
    %645 = vector.broadcast %639 : vector<1x8xf32> to vector<8x8xf32>
    %646 = arith.mulf %35, %645 : vector<8x8xf32>
    %cst_141 = arith.constant dense<0.000000e+00> : vector<8xf32>
    %647 = vector.multi_reduction <add>, %646, %cst_141 [1] : vector<8x8xf32> to vector<8xf32>
    %648 = vector.shape_cast %647 : vector<8xf32> to vector<8x1xf32>
    %cst_142 = arith.constant 2.000000e+00 : f32
    %649 = vector.broadcast %cst_142 : f32 to vector<1x1xf32>
    %650 = arith.divf %649, %644 : vector<1x1xf32>
    %651 = vector.broadcast %648 : vector<8x1xf32> to vector<8x8xf32>
    %652 = vector.broadcast %639 : vector<1x8xf32> to vector<8x8xf32>
    %653 = arith.mulf %651, %652 : vector<8x8xf32>
    %654 = vector.broadcast %650 : vector<1x1xf32> to vector<8x8xf32>
    %655 = arith.mulf %654, %653 : vector<8x8xf32>
    %656 = arith.subf %35, %655 : vector<8x8xf32>
    %657 = vector.extract_strided_slice %11 {offsets = [0, 408], sizes = [1, 8], strides = [1, 1]} : vector<2x448xf32> to vector<1x8xf32>
    %658 = arith.mulf %657, %657 : vector<1x8xf32>
    %cst_143 = arith.constant dense<0.000000e+00> : vector<1xf32>
    %659 = vector.multi_reduction <add>, %658, %cst_143 [1] : vector<1x8xf32> to vector<1xf32>
    %660 = vector.shape_cast %659 : vector<1xf32> to vector<1x1xf32>
    %cst_144 = arith.constant 9.99999996E-13 : f32
    %661 = vector.broadcast %cst_144 : f32 to vector<1x1xf32>
    %662 = arith.addf %660, %661 : vector<1x1xf32>
    %663 = vector.broadcast %657 : vector<1x8xf32> to vector<8x8xf32>
    %664 = arith.mulf %35, %663 : vector<8x8xf32>
    %cst_145 = arith.constant dense<0.000000e+00> : vector<8xf32>
    %665 = vector.multi_reduction <add>, %664, %cst_145 [1] : vector<8x8xf32> to vector<8xf32>
    %666 = vector.shape_cast %665 : vector<8xf32> to vector<8x1xf32>
    %cst_146 = arith.constant 2.000000e+00 : f32
    %667 = vector.broadcast %cst_146 : f32 to vector<1x1xf32>
    %668 = arith.divf %667, %662 : vector<1x1xf32>
    %669 = vector.broadcast %666 : vector<8x1xf32> to vector<8x8xf32>
    %670 = vector.broadcast %657 : vector<1x8xf32> to vector<8x8xf32>
    %671 = arith.mulf %669, %670 : vector<8x8xf32>
    %672 = vector.broadcast %668 : vector<1x1xf32> to vector<8x8xf32>
    %673 = arith.mulf %672, %671 : vector<8x8xf32>
    %674 = arith.subf %35, %673 : vector<8x8xf32>
    %675 = vector.extract_strided_slice %11 {offsets = [1, 312], sizes = [1, 8], strides = [1, 1]} : vector<2x448xf32> to vector<1x8xf32>
    %676 = arith.mulf %675, %675 : vector<1x8xf32>
    %cst_147 = arith.constant dense<0.000000e+00> : vector<1xf32>
    %677 = vector.multi_reduction <add>, %676, %cst_147 [1] : vector<1x8xf32> to vector<1xf32>
    %678 = vector.shape_cast %677 : vector<1xf32> to vector<1x1xf32>
    %cst_148 = arith.constant 9.99999996E-13 : f32
    %679 = vector.broadcast %cst_148 : f32 to vector<1x1xf32>
    %680 = arith.addf %678, %679 : vector<1x1xf32>
    %681 = vector.broadcast %675 : vector<1x8xf32> to vector<8x8xf32>
    %682 = arith.mulf %35, %681 : vector<8x8xf32>
    %cst_149 = arith.constant dense<0.000000e+00> : vector<8xf32>
    %683 = vector.multi_reduction <add>, %682, %cst_149 [1] : vector<8x8xf32> to vector<8xf32>
    %684 = vector.shape_cast %683 : vector<8xf32> to vector<8x1xf32>
    %cst_150 = arith.constant 2.000000e+00 : f32
    %685 = vector.broadcast %cst_150 : f32 to vector<1x1xf32>
    %686 = arith.divf %685, %680 : vector<1x1xf32>
    %687 = vector.broadcast %684 : vector<8x1xf32> to vector<8x8xf32>
    %688 = vector.broadcast %675 : vector<1x8xf32> to vector<8x8xf32>
    %689 = arith.mulf %687, %688 : vector<8x8xf32>
    %690 = vector.broadcast %686 : vector<1x1xf32> to vector<8x8xf32>
    %691 = arith.mulf %690, %689 : vector<8x8xf32>
    %692 = arith.subf %35, %691 : vector<8x8xf32>
    %693 = vector.extract_strided_slice %11 {offsets = [1, 344], sizes = [1, 8], strides = [1, 1]} : vector<2x448xf32> to vector<1x8xf32>
    %694 = arith.mulf %693, %693 : vector<1x8xf32>
    %cst_151 = arith.constant dense<0.000000e+00> : vector<1xf32>
    %695 = vector.multi_reduction <add>, %694, %cst_151 [1] : vector<1x8xf32> to vector<1xf32>
    %696 = vector.shape_cast %695 : vector<1xf32> to vector<1x1xf32>
    %cst_152 = arith.constant 9.99999996E-13 : f32
    %697 = vector.broadcast %cst_152 : f32 to vector<1x1xf32>
    %698 = arith.addf %696, %697 : vector<1x1xf32>
    %699 = vector.broadcast %693 : vector<1x8xf32> to vector<8x8xf32>
    %700 = arith.mulf %35, %699 : vector<8x8xf32>
    %cst_153 = arith.constant dense<0.000000e+00> : vector<8xf32>
    %701 = vector.multi_reduction <add>, %700, %cst_153 [1] : vector<8x8xf32> to vector<8xf32>
    %702 = vector.shape_cast %701 : vector<8xf32> to vector<8x1xf32>
    %cst_154 = arith.constant 2.000000e+00 : f32
    %703 = vector.broadcast %cst_154 : f32 to vector<1x1xf32>
    %704 = arith.divf %703, %698 : vector<1x1xf32>
    %705 = vector.broadcast %702 : vector<8x1xf32> to vector<8x8xf32>
    %706 = vector.broadcast %693 : vector<1x8xf32> to vector<8x8xf32>
    %707 = arith.mulf %705, %706 : vector<8x8xf32>
    %708 = vector.broadcast %704 : vector<1x1xf32> to vector<8x8xf32>
    %709 = arith.mulf %708, %707 : vector<8x8xf32>
    %710 = arith.subf %35, %709 : vector<8x8xf32>
    %711 = vector.extract_strided_slice %11 {offsets = [1, 376], sizes = [1, 8], strides = [1, 1]} : vector<2x448xf32> to vector<1x8xf32>
    %712 = arith.mulf %711, %711 : vector<1x8xf32>
    %cst_155 = arith.constant dense<0.000000e+00> : vector<1xf32>
    %713 = vector.multi_reduction <add>, %712, %cst_155 [1] : vector<1x8xf32> to vector<1xf32>
    %714 = vector.shape_cast %713 : vector<1xf32> to vector<1x1xf32>
    %cst_156 = arith.constant 9.99999996E-13 : f32
    %715 = vector.broadcast %cst_156 : f32 to vector<1x1xf32>
    %716 = arith.addf %714, %715 : vector<1x1xf32>
    %717 = vector.broadcast %711 : vector<1x8xf32> to vector<8x8xf32>
    %718 = arith.mulf %35, %717 : vector<8x8xf32>
    %cst_157 = arith.constant dense<0.000000e+00> : vector<8xf32>
    %719 = vector.multi_reduction <add>, %718, %cst_157 [1] : vector<8x8xf32> to vector<8xf32>
    %720 = vector.shape_cast %719 : vector<8xf32> to vector<8x1xf32>
    %cst_158 = arith.constant 2.000000e+00 : f32
    %721 = vector.broadcast %cst_158 : f32 to vector<1x1xf32>
    %722 = arith.divf %721, %716 : vector<1x1xf32>
    %723 = vector.broadcast %720 : vector<8x1xf32> to vector<8x8xf32>
    %724 = vector.broadcast %711 : vector<1x8xf32> to vector<8x8xf32>
    %725 = arith.mulf %723, %724 : vector<8x8xf32>
    %726 = vector.broadcast %722 : vector<1x1xf32> to vector<8x8xf32>
    %727 = arith.mulf %726, %725 : vector<8x8xf32>
    %728 = arith.subf %35, %727 : vector<8x8xf32>
    %729 = vector.extract_strided_slice %11 {offsets = [1, 408], sizes = [1, 8], strides = [1, 1]} : vector<2x448xf32> to vector<1x8xf32>
    %730 = arith.mulf %729, %729 : vector<1x8xf32>
    %cst_159 = arith.constant dense<0.000000e+00> : vector<1xf32>
    %731 = vector.multi_reduction <add>, %730, %cst_159 [1] : vector<1x8xf32> to vector<1xf32>
    %732 = vector.shape_cast %731 : vector<1xf32> to vector<1x1xf32>
    %cst_160 = arith.constant 9.99999996E-13 : f32
    %733 = vector.broadcast %cst_160 : f32 to vector<1x1xf32>
    %734 = arith.addf %732, %733 : vector<1x1xf32>
    %735 = vector.broadcast %729 : vector<1x8xf32> to vector<8x8xf32>
    %736 = arith.mulf %35, %735 : vector<8x8xf32>
    %cst_161 = arith.constant dense<0.000000e+00> : vector<8xf32>
    %737 = vector.multi_reduction <add>, %736, %cst_161 [1] : vector<8x8xf32> to vector<8xf32>
    %738 = vector.shape_cast %737 : vector<8xf32> to vector<8x1xf32>
    %cst_162 = arith.constant 2.000000e+00 : f32
    %739 = vector.broadcast %cst_162 : f32 to vector<1x1xf32>
    %740 = arith.divf %739, %734 : vector<1x1xf32>
    %741 = vector.broadcast %738 : vector<8x1xf32> to vector<8x8xf32>
    %742 = vector.broadcast %729 : vector<1x8xf32> to vector<8x8xf32>
    %743 = arith.mulf %741, %742 : vector<8x8xf32>
    %744 = vector.broadcast %740 : vector<1x1xf32> to vector<8x8xf32>
    %745 = arith.mulf %744, %743 : vector<8x8xf32>
    %746 = arith.subf %35, %745 : vector<8x8xf32>
    %cst_163 = arith.constant dense<0.000000e+00> : vector<8x8xf32>
    %747 = tpu.matmul %620, %638, %cst_163 {dimension_numbers = #tpu.dot_dimension_numbers<[1], [0], [0], [1], [0, 0, 1, 1], [], []>} : vector<8x8xf32>, vector<8x8xf32>, vector<8x8xf32> -> vector<8x8xf32>
    %cst_164 = arith.constant dense<0.000000e+00> : vector<8x8xf32>
    %748 = tpu.matmul %747, %656, %cst_164 {dimension_numbers = #tpu.dot_dimension_numbers<[1], [0], [0], [1], [0, 0, 1, 1], [], []>} : vector<8x8xf32>, vector<8x8xf32>, vector<8x8xf32> -> vector<8x8xf32>
    %cst_165 = arith.constant dense<0.000000e+00> : vector<8x8xf32>
    %749 = tpu.matmul %748, %674, %cst_165 {dimension_numbers = #tpu.dot_dimension_numbers<[1], [0], [0], [1], [0, 0, 1, 1], [], []>} : vector<8x8xf32>, vector<8x8xf32>, vector<8x8xf32> -> vector<8x8xf32>
    %cst_166 = arith.constant dense<0.000000e+00> : vector<8x8xf32>
    %750 = tpu.matmul %749, %692, %cst_166 {dimension_numbers = #tpu.dot_dimension_numbers<[1], [0], [0], [1], [0, 0, 1, 1], [], []>} : vector<8x8xf32>, vector<8x8xf32>, vector<8x8xf32> -> vector<8x8xf32>
    %cst_167 = arith.constant dense<0.000000e+00> : vector<8x8xf32>
    %751 = tpu.matmul %750, %710, %cst_167 {dimension_numbers = #tpu.dot_dimension_numbers<[1], [0], [0], [1], [0, 0, 1, 1], [], []>} : vector<8x8xf32>, vector<8x8xf32>, vector<8x8xf32> -> vector<8x8xf32>
    %cst_168 = arith.constant dense<0.000000e+00> : vector<8x8xf32>
    %752 = tpu.matmul %751, %728, %cst_168 {dimension_numbers = #tpu.dot_dimension_numbers<[1], [0], [0], [1], [0, 0, 1, 1], [], []>} : vector<8x8xf32>, vector<8x8xf32>, vector<8x8xf32> -> vector<8x8xf32>
    %cst_169 = arith.constant dense<0.000000e+00> : vector<8x8xf32>
    %753 = tpu.matmul %752, %746, %cst_169 {dimension_numbers = #tpu.dot_dimension_numbers<[1], [0], [0], [1], [0, 0, 1, 1], [], []>} : vector<8x8xf32>, vector<8x8xf32>, vector<8x8xf32> -> vector<8x8xf32>
    %cst_170 = arith.constant dense<0.000000e+00> : vector<8x8xf32>
    %754 = tpu.matmul %746, %728, %cst_170 {dimension_numbers = #tpu.dot_dimension_numbers<[1], [0], [0], [1], [0, 0, 1, 1], [], []>} : vector<8x8xf32>, vector<8x8xf32>, vector<8x8xf32> -> vector<8x8xf32>
    %cst_171 = arith.constant dense<0.000000e+00> : vector<8x8xf32>
    %755 = tpu.matmul %754, %710, %cst_171 {dimension_numbers = #tpu.dot_dimension_numbers<[1], [0], [0], [1], [0, 0, 1, 1], [], []>} : vector<8x8xf32>, vector<8x8xf32>, vector<8x8xf32> -> vector<8x8xf32>
    %cst_172 = arith.constant dense<0.000000e+00> : vector<8x8xf32>
    %756 = tpu.matmul %755, %692, %cst_172 {dimension_numbers = #tpu.dot_dimension_numbers<[1], [0], [0], [1], [0, 0, 1, 1], [], []>} : vector<8x8xf32>, vector<8x8xf32>, vector<8x8xf32> -> vector<8x8xf32>
    %cst_173 = arith.constant dense<0.000000e+00> : vector<8x8xf32>
    %757 = tpu.matmul %756, %674, %cst_173 {dimension_numbers = #tpu.dot_dimension_numbers<[1], [0], [0], [1], [0, 0, 1, 1], [], []>} : vector<8x8xf32>, vector<8x8xf32>, vector<8x8xf32> -> vector<8x8xf32>
    %cst_174 = arith.constant dense<0.000000e+00> : vector<8x8xf32>
    %758 = tpu.matmul %757, %656, %cst_174 {dimension_numbers = #tpu.dot_dimension_numbers<[1], [0], [0], [1], [0, 0, 1, 1], [], []>} : vector<8x8xf32>, vector<8x8xf32>, vector<8x8xf32> -> vector<8x8xf32>
    %cst_175 = arith.constant dense<0.000000e+00> : vector<8x8xf32>
    %759 = tpu.matmul %758, %638, %cst_175 {dimension_numbers = #tpu.dot_dimension_numbers<[1], [0], [0], [1], [0, 0, 1, 1], [], []>} : vector<8x8xf32>, vector<8x8xf32>, vector<8x8xf32> -> vector<8x8xf32>
    %cst_176 = arith.constant dense<0.000000e+00> : vector<8x8xf32>
    %760 = tpu.matmul %759, %620, %cst_176 {dimension_numbers = #tpu.dot_dimension_numbers<[1], [0], [0], [1], [0, 0, 1, 1], [], []>} : vector<8x8xf32>, vector<8x8xf32>, vector<8x8xf32> -> vector<8x8xf32>
    %761 = vector.extract_strided_slice %11 {offsets = [1, 16], sizes = [1, 8], strides = [1, 1]} : vector<2x448xf32> to vector<1x8xf32>
    %762 = vector.extract_strided_slice %11 {offsets = [1, 24], sizes = [1, 8], strides = [1, 1]} : vector<2x448xf32> to vector<1x8xf32>
    %763 = vector.extract_strided_slice %11 {offsets = [1, 32], sizes = [1, 8], strides = [1, 1]} : vector<2x448xf32> to vector<1x8xf32>
    %764 = vector.extract_strided_slice %11 {offsets = [1, 40], sizes = [1, 8], strides = [1, 1]} : vector<2x448xf32> to vector<1x8xf32>
    %765 = vector.extract_strided_slice %11 {offsets = [1, 48], sizes = [1, 8], strides = [1, 1]} : vector<2x448xf32> to vector<1x8xf32>
    %766 = vector.extract_strided_slice %11 {offsets = [1, 56], sizes = [1, 8], strides = [1, 1]} : vector<2x448xf32> to vector<1x8xf32>
    %767 = vector.extract_strided_slice %11 {offsets = [1, 64], sizes = [1, 8], strides = [1, 1]} : vector<2x448xf32> to vector<1x8xf32>
    %768 = vector.extract_strided_slice %11 {offsets = [1, 72], sizes = [1, 8], strides = [1, 1]} : vector<2x448xf32> to vector<1x8xf32>
    %769 = vector.broadcast %39 : vector<8x1xf32> to vector<8x8xf32>
    %770 = vector.broadcast %761 : vector<1x8xf32> to vector<8x8xf32>
    %771 = arith.mulf %769, %770 : vector<8x8xf32>
    %772 = vector.broadcast %40 : vector<8x1xf32> to vector<8x8xf32>
    %773 = vector.broadcast %762 : vector<1x8xf32> to vector<8x8xf32>
    %774 = arith.mulf %772, %773 : vector<8x8xf32>
    %775 = arith.addf %771, %774 : vector<8x8xf32>
    %776 = vector.broadcast %41 : vector<8x1xf32> to vector<8x8xf32>
    %777 = vector.broadcast %763 : vector<1x8xf32> to vector<8x8xf32>
    %778 = arith.mulf %776, %777 : vector<8x8xf32>
    %779 = arith.addf %775, %778 : vector<8x8xf32>
    %780 = vector.broadcast %42 : vector<8x1xf32> to vector<8x8xf32>
    %781 = vector.broadcast %764 : vector<1x8xf32> to vector<8x8xf32>
    %782 = arith.mulf %780, %781 : vector<8x8xf32>
    %783 = arith.addf %779, %782 : vector<8x8xf32>
    %784 = vector.broadcast %43 : vector<8x1xf32> to vector<8x8xf32>
    %785 = vector.broadcast %765 : vector<1x8xf32> to vector<8x8xf32>
    %786 = arith.mulf %784, %785 : vector<8x8xf32>
    %787 = arith.addf %783, %786 : vector<8x8xf32>
    %788 = vector.broadcast %44 : vector<8x1xf32> to vector<8x8xf32>
    %789 = vector.broadcast %766 : vector<1x8xf32> to vector<8x8xf32>
    %790 = arith.mulf %788, %789 : vector<8x8xf32>
    %791 = arith.addf %787, %790 : vector<8x8xf32>
    %792 = vector.broadcast %45 : vector<8x1xf32> to vector<8x8xf32>
    %793 = vector.broadcast %767 : vector<1x8xf32> to vector<8x8xf32>
    %794 = arith.mulf %792, %793 : vector<8x8xf32>
    %795 = arith.addf %791, %794 : vector<8x8xf32>
    %796 = vector.broadcast %46 : vector<8x1xf32> to vector<8x8xf32>
    %797 = vector.broadcast %768 : vector<1x8xf32> to vector<8x8xf32>
    %798 = arith.mulf %796, %797 : vector<8x8xf32>
    %799 = arith.addf %795, %798 : vector<8x8xf32>
    %800 = vector.extract_strided_slice %11 {offsets = [1, 144], sizes = [1, 8], strides = [1, 1]} : vector<2x448xf32> to vector<1x8xf32>
    %801 = vector.extract_strided_slice %11 {offsets = [1, 152], sizes = [1, 8], strides = [1, 1]} : vector<2x448xf32> to vector<1x8xf32>
    %802 = vector.extract_strided_slice %11 {offsets = [1, 160], sizes = [1, 8], strides = [1, 1]} : vector<2x448xf32> to vector<1x8xf32>
    %803 = vector.extract_strided_slice %11 {offsets = [1, 168], sizes = [1, 8], strides = [1, 1]} : vector<2x448xf32> to vector<1x8xf32>
    %804 = vector.extract_strided_slice %11 {offsets = [1, 176], sizes = [1, 8], strides = [1, 1]} : vector<2x448xf32> to vector<1x8xf32>
    %805 = vector.extract_strided_slice %11 {offsets = [1, 184], sizes = [1, 8], strides = [1, 1]} : vector<2x448xf32> to vector<1x8xf32>
    %806 = vector.extract_strided_slice %11 {offsets = [1, 192], sizes = [1, 8], strides = [1, 1]} : vector<2x448xf32> to vector<1x8xf32>
    %807 = vector.extract_strided_slice %11 {offsets = [1, 200], sizes = [1, 8], strides = [1, 1]} : vector<2x448xf32> to vector<1x8xf32>
    %808 = vector.broadcast %39 : vector<8x1xf32> to vector<8x8xf32>
    %809 = vector.broadcast %800 : vector<1x8xf32> to vector<8x8xf32>
    %810 = arith.mulf %808, %809 : vector<8x8xf32>
    %811 = vector.broadcast %40 : vector<8x1xf32> to vector<8x8xf32>
    %812 = vector.broadcast %801 : vector<1x8xf32> to vector<8x8xf32>
    %813 = arith.mulf %811, %812 : vector<8x8xf32>
    %814 = arith.addf %810, %813 : vector<8x8xf32>
    %815 = vector.broadcast %41 : vector<8x1xf32> to vector<8x8xf32>
    %816 = vector.broadcast %802 : vector<1x8xf32> to vector<8x8xf32>
    %817 = arith.mulf %815, %816 : vector<8x8xf32>
    %818 = arith.addf %814, %817 : vector<8x8xf32>
    %819 = vector.broadcast %42 : vector<8x1xf32> to vector<8x8xf32>
    %820 = vector.broadcast %803 : vector<1x8xf32> to vector<8x8xf32>
    %821 = arith.mulf %819, %820 : vector<8x8xf32>
    %822 = arith.addf %818, %821 : vector<8x8xf32>
    %823 = vector.broadcast %43 : vector<8x1xf32> to vector<8x8xf32>
    %824 = vector.broadcast %804 : vector<1x8xf32> to vector<8x8xf32>
    %825 = arith.mulf %823, %824 : vector<8x8xf32>
    %826 = arith.addf %822, %825 : vector<8x8xf32>
    %827 = vector.broadcast %44 : vector<8x1xf32> to vector<8x8xf32>
    %828 = vector.broadcast %805 : vector<1x8xf32> to vector<8x8xf32>
    %829 = arith.mulf %827, %828 : vector<8x8xf32>
    %830 = arith.addf %826, %829 : vector<8x8xf32>
    %831 = vector.broadcast %45 : vector<8x1xf32> to vector<8x8xf32>
    %832 = vector.broadcast %806 : vector<1x8xf32> to vector<8x8xf32>
    %833 = arith.mulf %831, %832 : vector<8x8xf32>
    %834 = arith.addf %830, %833 : vector<8x8xf32>
    %835 = vector.broadcast %46 : vector<8x1xf32> to vector<8x8xf32>
    %836 = vector.broadcast %807 : vector<1x8xf32> to vector<8x8xf32>
    %837 = arith.mulf %835, %836 : vector<8x8xf32>
    %838 = arith.addf %834, %837 : vector<8x8xf32>
    %839 = vector.extract_strided_slice %11 {offsets = [1, 272], sizes = [1, 8], strides = [1, 1]} : vector<2x448xf32> to vector<1x8xf32>
    %840 = math.tanh %839 : vector<1x8xf32>
    %841 = vector.extract_strided_slice %11 {offsets = [1, 288], sizes = [1, 8], strides = [1, 1]} : vector<2x448xf32> to vector<1x8xf32>
    %842 = math.tanh %841 : vector<1x8xf32>
    %843 = vector.extract_strided_slice %11 {offsets = [1, 432], sizes = [1, 8], strides = [1, 1]} : vector<2x448xf32> to vector<1x8xf32>
    %844 = arith.mulf %38, %799 : vector<8x8xf32>
    %845 = vector.broadcast %842 : vector<1x8xf32> to vector<8x8xf32>
    %846 = arith.mulf %35, %845 : vector<8x8xf32>
    %847 = arith.addf %844, %846 : vector<8x8xf32>
    %848 = arith.mulf %38, %838 : vector<8x8xf32>
    %849 = vector.broadcast %840 : vector<1x8xf32> to vector<8x8xf32>
    %850 = arith.mulf %35, %849 : vector<8x8xf32>
    %851 = arith.addf %848, %850 : vector<8x8xf32>
    %cst_177 = arith.constant dense<0.000000e+00> : vector<1x8xf32>
    %852 = tpu.matmul %601, %753, %cst_177 {dimension_numbers = #tpu.dot_dimension_numbers<[1], [0], [0], [1], [0, 0, 1, 1], [], []>} : vector<1x8xf32>, vector<8x8xf32>, vector<1x8xf32> -> vector<1x8xf32>
    %cst_178 = arith.constant dense<0.000000e+00> : vector<1x8xf32>
    %853 = tpu.matmul %852, %847, %cst_178 {dimension_numbers = #tpu.dot_dimension_numbers<[1], [0], [0], [1], [0, 0, 1, 1], [], []>} : vector<1x8xf32>, vector<8x8xf32>, vector<1x8xf32> -> vector<1x8xf32>
    %854 = arith.addf %853, %843 : vector<1x8xf32>
    %855 = math.tanh %854 : vector<1x8xf32>
    %cst_179 = arith.constant dense<0.000000e+00> : vector<1x8xf32>
    %856 = tpu.matmul %855, %851, %cst_179 {dimension_numbers = #tpu.dot_dimension_numbers<[1], [0], [0], [1], [0, 0, 1, 1], [], []>} : vector<1x8xf32>, vector<8x8xf32>, vector<1x8xf32> -> vector<1x8xf32>
    %cst_180 = arith.constant dense<0.000000e+00> : vector<1x8xf32>
    %857 = tpu.matmul %856, %760, %cst_180 {dimension_numbers = #tpu.dot_dimension_numbers<[1], [0], [0], [1], [0, 0, 1, 1], [], []>} : vector<1x8xf32>, vector<8x8xf32>, vector<1x8xf32> -> vector<1x8xf32>
    %858 = arith.addf %857, %601 : vector<1x8xf32>
    %859 = arith.mulf %855, %855 : vector<1x8xf32>
    %cst_181 = arith.constant 1.000000e+00 : f32
    %860 = vector.broadcast %cst_181 : f32 to vector<1x8xf32>
    %861 = arith.subf %860, %859 : vector<1x8xf32>
    %862 = arith.mulf %840, %842 : vector<1x8xf32>
    %863 = arith.mulf %861, %862 : vector<1x8xf32>
    %cst_182 = arith.constant 1.000000e+00 : f32
    %864 = vector.broadcast %cst_182 : f32 to vector<1x8xf32>
    %865 = arith.addf %863, %864 : vector<1x8xf32>
    %866 = math.log %865 : vector<1x8xf32>
    %cst_183 = arith.constant dense<0.000000e+00> : vector<1xf32>
    %867 = vector.multi_reduction <add>, %866, %cst_183 [1] : vector<1x8xf32> to vector<1xf32>
    %868 = vector.shape_cast %867 : vector<1xf32> to vector<1x1xf32>
    %869 = arith.addf %602, %868 : vector<1x1xf32>
    %870 = vector.extract_strided_slice %11 {offsets = [0, 328], sizes = [1, 8], strides = [1, 1]} : vector<2x448xf32> to vector<1x8xf32>
    %871 = arith.mulf %870, %870 : vector<1x8xf32>
    %cst_184 = arith.constant dense<0.000000e+00> : vector<1xf32>
    %872 = vector.multi_reduction <add>, %871, %cst_184 [1] : vector<1x8xf32> to vector<1xf32>
    %873 = vector.shape_cast %872 : vector<1xf32> to vector<1x1xf32>
    %cst_185 = arith.constant 9.99999996E-13 : f32
    %874 = vector.broadcast %cst_185 : f32 to vector<1x1xf32>
    %875 = arith.addf %873, %874 : vector<1x1xf32>
    %876 = vector.broadcast %870 : vector<1x8xf32> to vector<8x8xf32>
    %877 = arith.mulf %35, %876 : vector<8x8xf32>
    %cst_186 = arith.constant dense<0.000000e+00> : vector<8xf32>
    %878 = vector.multi_reduction <add>, %877, %cst_186 [1] : vector<8x8xf32> to vector<8xf32>
    %879 = vector.shape_cast %878 : vector<8xf32> to vector<8x1xf32>
    %cst_187 = arith.constant 2.000000e+00 : f32
    %880 = vector.broadcast %cst_187 : f32 to vector<1x1xf32>
    %881 = arith.divf %880, %875 : vector<1x1xf32>
    %882 = vector.broadcast %879 : vector<8x1xf32> to vector<8x8xf32>
    %883 = vector.broadcast %870 : vector<1x8xf32> to vector<8x8xf32>
    %884 = arith.mulf %882, %883 : vector<8x8xf32>
    %885 = vector.broadcast %881 : vector<1x1xf32> to vector<8x8xf32>
    %886 = arith.mulf %885, %884 : vector<8x8xf32>
    %887 = arith.subf %35, %886 : vector<8x8xf32>
    %888 = vector.extract_strided_slice %11 {offsets = [0, 360], sizes = [1, 8], strides = [1, 1]} : vector<2x448xf32> to vector<1x8xf32>
    %889 = arith.mulf %888, %888 : vector<1x8xf32>
    %cst_188 = arith.constant dense<0.000000e+00> : vector<1xf32>
    %890 = vector.multi_reduction <add>, %889, %cst_188 [1] : vector<1x8xf32> to vector<1xf32>
    %891 = vector.shape_cast %890 : vector<1xf32> to vector<1x1xf32>
    %cst_189 = arith.constant 9.99999996E-13 : f32
    %892 = vector.broadcast %cst_189 : f32 to vector<1x1xf32>
    %893 = arith.addf %891, %892 : vector<1x1xf32>
    %894 = vector.broadcast %888 : vector<1x8xf32> to vector<8x8xf32>
    %895 = arith.mulf %35, %894 : vector<8x8xf32>
    %cst_190 = arith.constant dense<0.000000e+00> : vector<8xf32>
    %896 = vector.multi_reduction <add>, %895, %cst_190 [1] : vector<8x8xf32> to vector<8xf32>
    %897 = vector.shape_cast %896 : vector<8xf32> to vector<8x1xf32>
    %cst_191 = arith.constant 2.000000e+00 : f32
    %898 = vector.broadcast %cst_191 : f32 to vector<1x1xf32>
    %899 = arith.divf %898, %893 : vector<1x1xf32>
    %900 = vector.broadcast %897 : vector<8x1xf32> to vector<8x8xf32>
    %901 = vector.broadcast %888 : vector<1x8xf32> to vector<8x8xf32>
    %902 = arith.mulf %900, %901 : vector<8x8xf32>
    %903 = vector.broadcast %899 : vector<1x1xf32> to vector<8x8xf32>
    %904 = arith.mulf %903, %902 : vector<8x8xf32>
    %905 = arith.subf %35, %904 : vector<8x8xf32>
    %906 = vector.extract_strided_slice %11 {offsets = [0, 392], sizes = [1, 8], strides = [1, 1]} : vector<2x448xf32> to vector<1x8xf32>
    %907 = arith.mulf %906, %906 : vector<1x8xf32>
    %cst_192 = arith.constant dense<0.000000e+00> : vector<1xf32>
    %908 = vector.multi_reduction <add>, %907, %cst_192 [1] : vector<1x8xf32> to vector<1xf32>
    %909 = vector.shape_cast %908 : vector<1xf32> to vector<1x1xf32>
    %cst_193 = arith.constant 9.99999996E-13 : f32
    %910 = vector.broadcast %cst_193 : f32 to vector<1x1xf32>
    %911 = arith.addf %909, %910 : vector<1x1xf32>
    %912 = vector.broadcast %906 : vector<1x8xf32> to vector<8x8xf32>
    %913 = arith.mulf %35, %912 : vector<8x8xf32>
    %cst_194 = arith.constant dense<0.000000e+00> : vector<8xf32>
    %914 = vector.multi_reduction <add>, %913, %cst_194 [1] : vector<8x8xf32> to vector<8xf32>
    %915 = vector.shape_cast %914 : vector<8xf32> to vector<8x1xf32>
    %cst_195 = arith.constant 2.000000e+00 : f32
    %916 = vector.broadcast %cst_195 : f32 to vector<1x1xf32>
    %917 = arith.divf %916, %911 : vector<1x1xf32>
    %918 = vector.broadcast %915 : vector<8x1xf32> to vector<8x8xf32>
    %919 = vector.broadcast %906 : vector<1x8xf32> to vector<8x8xf32>
    %920 = arith.mulf %918, %919 : vector<8x8xf32>
    %921 = vector.broadcast %917 : vector<1x1xf32> to vector<8x8xf32>
    %922 = arith.mulf %921, %920 : vector<8x8xf32>
    %923 = arith.subf %35, %922 : vector<8x8xf32>
    %924 = vector.extract_strided_slice %11 {offsets = [0, 424], sizes = [1, 8], strides = [1, 1]} : vector<2x448xf32> to vector<1x8xf32>
    %925 = arith.mulf %924, %924 : vector<1x8xf32>
    %cst_196 = arith.constant dense<0.000000e+00> : vector<1xf32>
    %926 = vector.multi_reduction <add>, %925, %cst_196 [1] : vector<1x8xf32> to vector<1xf32>
    %927 = vector.shape_cast %926 : vector<1xf32> to vector<1x1xf32>
    %cst_197 = arith.constant 9.99999996E-13 : f32
    %928 = vector.broadcast %cst_197 : f32 to vector<1x1xf32>
    %929 = arith.addf %927, %928 : vector<1x1xf32>
    %930 = vector.broadcast %924 : vector<1x8xf32> to vector<8x8xf32>
    %931 = arith.mulf %35, %930 : vector<8x8xf32>
    %cst_198 = arith.constant dense<0.000000e+00> : vector<8xf32>
    %932 = vector.multi_reduction <add>, %931, %cst_198 [1] : vector<8x8xf32> to vector<8xf32>
    %933 = vector.shape_cast %932 : vector<8xf32> to vector<8x1xf32>
    %cst_199 = arith.constant 2.000000e+00 : f32
    %934 = vector.broadcast %cst_199 : f32 to vector<1x1xf32>
    %935 = arith.divf %934, %929 : vector<1x1xf32>
    %936 = vector.broadcast %933 : vector<8x1xf32> to vector<8x8xf32>
    %937 = vector.broadcast %924 : vector<1x8xf32> to vector<8x8xf32>
    %938 = arith.mulf %936, %937 : vector<8x8xf32>
    %939 = vector.broadcast %935 : vector<1x1xf32> to vector<8x8xf32>
    %940 = arith.mulf %939, %938 : vector<8x8xf32>
    %941 = arith.subf %35, %940 : vector<8x8xf32>
    %942 = vector.extract_strided_slice %11 {offsets = [1, 328], sizes = [1, 8], strides = [1, 1]} : vector<2x448xf32> to vector<1x8xf32>
    %943 = arith.mulf %942, %942 : vector<1x8xf32>
    %cst_200 = arith.constant dense<0.000000e+00> : vector<1xf32>
    %944 = vector.multi_reduction <add>, %943, %cst_200 [1] : vector<1x8xf32> to vector<1xf32>
    %945 = vector.shape_cast %944 : vector<1xf32> to vector<1x1xf32>
    %cst_201 = arith.constant 9.99999996E-13 : f32
    %946 = vector.broadcast %cst_201 : f32 to vector<1x1xf32>
    %947 = arith.addf %945, %946 : vector<1x1xf32>
    %948 = vector.broadcast %942 : vector<1x8xf32> to vector<8x8xf32>
    %949 = arith.mulf %35, %948 : vector<8x8xf32>
    %cst_202 = arith.constant dense<0.000000e+00> : vector<8xf32>
    %950 = vector.multi_reduction <add>, %949, %cst_202 [1] : vector<8x8xf32> to vector<8xf32>
    %951 = vector.shape_cast %950 : vector<8xf32> to vector<8x1xf32>
    %cst_203 = arith.constant 2.000000e+00 : f32
    %952 = vector.broadcast %cst_203 : f32 to vector<1x1xf32>
    %953 = arith.divf %952, %947 : vector<1x1xf32>
    %954 = vector.broadcast %951 : vector<8x1xf32> to vector<8x8xf32>
    %955 = vector.broadcast %942 : vector<1x8xf32> to vector<8x8xf32>
    %956 = arith.mulf %954, %955 : vector<8x8xf32>
    %957 = vector.broadcast %953 : vector<1x1xf32> to vector<8x8xf32>
    %958 = arith.mulf %957, %956 : vector<8x8xf32>
    %959 = arith.subf %35, %958 : vector<8x8xf32>
    %960 = vector.extract_strided_slice %11 {offsets = [1, 360], sizes = [1, 8], strides = [1, 1]} : vector<2x448xf32> to vector<1x8xf32>
    %961 = arith.mulf %960, %960 : vector<1x8xf32>
    %cst_204 = arith.constant dense<0.000000e+00> : vector<1xf32>
    %962 = vector.multi_reduction <add>, %961, %cst_204 [1] : vector<1x8xf32> to vector<1xf32>
    %963 = vector.shape_cast %962 : vector<1xf32> to vector<1x1xf32>
    %cst_205 = arith.constant 9.99999996E-13 : f32
    %964 = vector.broadcast %cst_205 : f32 to vector<1x1xf32>
    %965 = arith.addf %963, %964 : vector<1x1xf32>
    %966 = vector.broadcast %960 : vector<1x8xf32> to vector<8x8xf32>
    %967 = arith.mulf %35, %966 : vector<8x8xf32>
    %cst_206 = arith.constant dense<0.000000e+00> : vector<8xf32>
    %968 = vector.multi_reduction <add>, %967, %cst_206 [1] : vector<8x8xf32> to vector<8xf32>
    %969 = vector.shape_cast %968 : vector<8xf32> to vector<8x1xf32>
    %cst_207 = arith.constant 2.000000e+00 : f32
    %970 = vector.broadcast %cst_207 : f32 to vector<1x1xf32>
    %971 = arith.divf %970, %965 : vector<1x1xf32>
    %972 = vector.broadcast %969 : vector<8x1xf32> to vector<8x8xf32>
    %973 = vector.broadcast %960 : vector<1x8xf32> to vector<8x8xf32>
    %974 = arith.mulf %972, %973 : vector<8x8xf32>
    %975 = vector.broadcast %971 : vector<1x1xf32> to vector<8x8xf32>
    %976 = arith.mulf %975, %974 : vector<8x8xf32>
    %977 = arith.subf %35, %976 : vector<8x8xf32>
    %978 = vector.extract_strided_slice %11 {offsets = [1, 392], sizes = [1, 8], strides = [1, 1]} : vector<2x448xf32> to vector<1x8xf32>
    %979 = arith.mulf %978, %978 : vector<1x8xf32>
    %cst_208 = arith.constant dense<0.000000e+00> : vector<1xf32>
    %980 = vector.multi_reduction <add>, %979, %cst_208 [1] : vector<1x8xf32> to vector<1xf32>
    %981 = vector.shape_cast %980 : vector<1xf32> to vector<1x1xf32>
    %cst_209 = arith.constant 9.99999996E-13 : f32
    %982 = vector.broadcast %cst_209 : f32 to vector<1x1xf32>
    %983 = arith.addf %981, %982 : vector<1x1xf32>
    %984 = vector.broadcast %978 : vector<1x8xf32> to vector<8x8xf32>
    %985 = arith.mulf %35, %984 : vector<8x8xf32>
    %cst_210 = arith.constant dense<0.000000e+00> : vector<8xf32>
    %986 = vector.multi_reduction <add>, %985, %cst_210 [1] : vector<8x8xf32> to vector<8xf32>
    %987 = vector.shape_cast %986 : vector<8xf32> to vector<8x1xf32>
    %cst_211 = arith.constant 2.000000e+00 : f32
    %988 = vector.broadcast %cst_211 : f32 to vector<1x1xf32>
    %989 = arith.divf %988, %983 : vector<1x1xf32>
    %990 = vector.broadcast %987 : vector<8x1xf32> to vector<8x8xf32>
    %991 = vector.broadcast %978 : vector<1x8xf32> to vector<8x8xf32>
    %992 = arith.mulf %990, %991 : vector<8x8xf32>
    %993 = vector.broadcast %989 : vector<1x1xf32> to vector<8x8xf32>
    %994 = arith.mulf %993, %992 : vector<8x8xf32>
    %995 = arith.subf %35, %994 : vector<8x8xf32>
    %996 = vector.extract_strided_slice %11 {offsets = [1, 424], sizes = [1, 8], strides = [1, 1]} : vector<2x448xf32> to vector<1x8xf32>
    %997 = arith.mulf %996, %996 : vector<1x8xf32>
    %cst_212 = arith.constant dense<0.000000e+00> : vector<1xf32>
    %998 = vector.multi_reduction <add>, %997, %cst_212 [1] : vector<1x8xf32> to vector<1xf32>
    %999 = vector.shape_cast %998 : vector<1xf32> to vector<1x1xf32>
    %cst_213 = arith.constant 9.99999996E-13 : f32
    %1000 = vector.broadcast %cst_213 : f32 to vector<1x1xf32>
    %1001 = arith.addf %999, %1000 : vector<1x1xf32>
    %1002 = vector.broadcast %996 : vector<1x8xf32> to vector<8x8xf32>
    %1003 = arith.mulf %35, %1002 : vector<8x8xf32>
    %cst_214 = arith.constant dense<0.000000e+00> : vector<8xf32>
    %1004 = vector.multi_reduction <add>, %1003, %cst_214 [1] : vector<8x8xf32> to vector<8xf32>
    %1005 = vector.shape_cast %1004 : vector<8xf32> to vector<8x1xf32>
    %cst_215 = arith.constant 2.000000e+00 : f32
    %1006 = vector.broadcast %cst_215 : f32 to vector<1x1xf32>
    %1007 = arith.divf %1006, %1001 : vector<1x1xf32>
    %1008 = vector.broadcast %1005 : vector<8x1xf32> to vector<8x8xf32>
    %1009 = vector.broadcast %996 : vector<1x8xf32> to vector<8x8xf32>
    %1010 = arith.mulf %1008, %1009 : vector<8x8xf32>
    %1011 = vector.broadcast %1007 : vector<1x1xf32> to vector<8x8xf32>
    %1012 = arith.mulf %1011, %1010 : vector<8x8xf32>
    %1013 = arith.subf %35, %1012 : vector<8x8xf32>
    %cst_216 = arith.constant dense<0.000000e+00> : vector<8x8xf32>
    %1014 = tpu.matmul %887, %905, %cst_216 {dimension_numbers = #tpu.dot_dimension_numbers<[1], [0], [0], [1], [0, 0, 1, 1], [], []>} : vector<8x8xf32>, vector<8x8xf32>, vector<8x8xf32> -> vector<8x8xf32>
    %cst_217 = arith.constant dense<0.000000e+00> : vector<8x8xf32>
    %1015 = tpu.matmul %1014, %923, %cst_217 {dimension_numbers = #tpu.dot_dimension_numbers<[1], [0], [0], [1], [0, 0, 1, 1], [], []>} : vector<8x8xf32>, vector<8x8xf32>, vector<8x8xf32> -> vector<8x8xf32>
    %cst_218 = arith.constant dense<0.000000e+00> : vector<8x8xf32>
    %1016 = tpu.matmul %1015, %941, %cst_218 {dimension_numbers = #tpu.dot_dimension_numbers<[1], [0], [0], [1], [0, 0, 1, 1], [], []>} : vector<8x8xf32>, vector<8x8xf32>, vector<8x8xf32> -> vector<8x8xf32>
    %cst_219 = arith.constant dense<0.000000e+00> : vector<8x8xf32>
    %1017 = tpu.matmul %1016, %959, %cst_219 {dimension_numbers = #tpu.dot_dimension_numbers<[1], [0], [0], [1], [0, 0, 1, 1], [], []>} : vector<8x8xf32>, vector<8x8xf32>, vector<8x8xf32> -> vector<8x8xf32>
    %cst_220 = arith.constant dense<0.000000e+00> : vector<8x8xf32>
    %1018 = tpu.matmul %1017, %977, %cst_220 {dimension_numbers = #tpu.dot_dimension_numbers<[1], [0], [0], [1], [0, 0, 1, 1], [], []>} : vector<8x8xf32>, vector<8x8xf32>, vector<8x8xf32> -> vector<8x8xf32>
    %cst_221 = arith.constant dense<0.000000e+00> : vector<8x8xf32>
    %1019 = tpu.matmul %1018, %995, %cst_221 {dimension_numbers = #tpu.dot_dimension_numbers<[1], [0], [0], [1], [0, 0, 1, 1], [], []>} : vector<8x8xf32>, vector<8x8xf32>, vector<8x8xf32> -> vector<8x8xf32>
    %cst_222 = arith.constant dense<0.000000e+00> : vector<8x8xf32>
    %1020 = tpu.matmul %1019, %1013, %cst_222 {dimension_numbers = #tpu.dot_dimension_numbers<[1], [0], [0], [1], [0, 0, 1, 1], [], []>} : vector<8x8xf32>, vector<8x8xf32>, vector<8x8xf32> -> vector<8x8xf32>
    %cst_223 = arith.constant dense<0.000000e+00> : vector<8x8xf32>
    %1021 = tpu.matmul %1013, %995, %cst_223 {dimension_numbers = #tpu.dot_dimension_numbers<[1], [0], [0], [1], [0, 0, 1, 1], [], []>} : vector<8x8xf32>, vector<8x8xf32>, vector<8x8xf32> -> vector<8x8xf32>
    %cst_224 = arith.constant dense<0.000000e+00> : vector<8x8xf32>
    %1022 = tpu.matmul %1021, %977, %cst_224 {dimension_numbers = #tpu.dot_dimension_numbers<[1], [0], [0], [1], [0, 0, 1, 1], [], []>} : vector<8x8xf32>, vector<8x8xf32>, vector<8x8xf32> -> vector<8x8xf32>
    %cst_225 = arith.constant dense<0.000000e+00> : vector<8x8xf32>
    %1023 = tpu.matmul %1022, %959, %cst_225 {dimension_numbers = #tpu.dot_dimension_numbers<[1], [0], [0], [1], [0, 0, 1, 1], [], []>} : vector<8x8xf32>, vector<8x8xf32>, vector<8x8xf32> -> vector<8x8xf32>
    %cst_226 = arith.constant dense<0.000000e+00> : vector<8x8xf32>
    %1024 = tpu.matmul %1023, %941, %cst_226 {dimension_numbers = #tpu.dot_dimension_numbers<[1], [0], [0], [1], [0, 0, 1, 1], [], []>} : vector<8x8xf32>, vector<8x8xf32>, vector<8x8xf32> -> vector<8x8xf32>
    %cst_227 = arith.constant dense<0.000000e+00> : vector<8x8xf32>
    %1025 = tpu.matmul %1024, %923, %cst_227 {dimension_numbers = #tpu.dot_dimension_numbers<[1], [0], [0], [1], [0, 0, 1, 1], [], []>} : vector<8x8xf32>, vector<8x8xf32>, vector<8x8xf32> -> vector<8x8xf32>
    %cst_228 = arith.constant dense<0.000000e+00> : vector<8x8xf32>
    %1026 = tpu.matmul %1025, %905, %cst_228 {dimension_numbers = #tpu.dot_dimension_numbers<[1], [0], [0], [1], [0, 0, 1, 1], [], []>} : vector<8x8xf32>, vector<8x8xf32>, vector<8x8xf32> -> vector<8x8xf32>
    %cst_229 = arith.constant dense<0.000000e+00> : vector<8x8xf32>
    %1027 = tpu.matmul %1026, %887, %cst_229 {dimension_numbers = #tpu.dot_dimension_numbers<[1], [0], [0], [1], [0, 0, 1, 1], [], []>} : vector<8x8xf32>, vector<8x8xf32>, vector<8x8xf32> -> vector<8x8xf32>
    %1028 = vector.extract_strided_slice %11 {offsets = [1, 80], sizes = [1, 8], strides = [1, 1]} : vector<2x448xf32> to vector<1x8xf32>
    %1029 = vector.extract_strided_slice %11 {offsets = [1, 88], sizes = [1, 8], strides = [1, 1]} : vector<2x448xf32> to vector<1x8xf32>
    %1030 = vector.extract_strided_slice %11 {offsets = [1, 96], sizes = [1, 8], strides = [1, 1]} : vector<2x448xf32> to vector<1x8xf32>
    %1031 = vector.extract_strided_slice %11 {offsets = [1, 104], sizes = [1, 8], strides = [1, 1]} : vector<2x448xf32> to vector<1x8xf32>
    %1032 = vector.extract_strided_slice %11 {offsets = [1, 112], sizes = [1, 8], strides = [1, 1]} : vector<2x448xf32> to vector<1x8xf32>
    %1033 = vector.extract_strided_slice %11 {offsets = [1, 120], sizes = [1, 8], strides = [1, 1]} : vector<2x448xf32> to vector<1x8xf32>
    %1034 = vector.extract_strided_slice %11 {offsets = [1, 128], sizes = [1, 8], strides = [1, 1]} : vector<2x448xf32> to vector<1x8xf32>
    %1035 = vector.extract_strided_slice %11 {offsets = [1, 136], sizes = [1, 8], strides = [1, 1]} : vector<2x448xf32> to vector<1x8xf32>
    %1036 = vector.broadcast %39 : vector<8x1xf32> to vector<8x8xf32>
    %1037 = vector.broadcast %1028 : vector<1x8xf32> to vector<8x8xf32>
    %1038 = arith.mulf %1036, %1037 : vector<8x8xf32>
    %1039 = vector.broadcast %40 : vector<8x1xf32> to vector<8x8xf32>
    %1040 = vector.broadcast %1029 : vector<1x8xf32> to vector<8x8xf32>
    %1041 = arith.mulf %1039, %1040 : vector<8x8xf32>
    %1042 = arith.addf %1038, %1041 : vector<8x8xf32>
    %1043 = vector.broadcast %41 : vector<8x1xf32> to vector<8x8xf32>
    %1044 = vector.broadcast %1030 : vector<1x8xf32> to vector<8x8xf32>
    %1045 = arith.mulf %1043, %1044 : vector<8x8xf32>
    %1046 = arith.addf %1042, %1045 : vector<8x8xf32>
    %1047 = vector.broadcast %42 : vector<8x1xf32> to vector<8x8xf32>
    %1048 = vector.broadcast %1031 : vector<1x8xf32> to vector<8x8xf32>
    %1049 = arith.mulf %1047, %1048 : vector<8x8xf32>
    %1050 = arith.addf %1046, %1049 : vector<8x8xf32>
    %1051 = vector.broadcast %43 : vector<8x1xf32> to vector<8x8xf32>
    %1052 = vector.broadcast %1032 : vector<1x8xf32> to vector<8x8xf32>
    %1053 = arith.mulf %1051, %1052 : vector<8x8xf32>
    %1054 = arith.addf %1050, %1053 : vector<8x8xf32>
    %1055 = vector.broadcast %44 : vector<8x1xf32> to vector<8x8xf32>
    %1056 = vector.broadcast %1033 : vector<1x8xf32> to vector<8x8xf32>
    %1057 = arith.mulf %1055, %1056 : vector<8x8xf32>
    %1058 = arith.addf %1054, %1057 : vector<8x8xf32>
    %1059 = vector.broadcast %45 : vector<8x1xf32> to vector<8x8xf32>
    %1060 = vector.broadcast %1034 : vector<1x8xf32> to vector<8x8xf32>
    %1061 = arith.mulf %1059, %1060 : vector<8x8xf32>
    %1062 = arith.addf %1058, %1061 : vector<8x8xf32>
    %1063 = vector.broadcast %46 : vector<8x1xf32> to vector<8x8xf32>
    %1064 = vector.broadcast %1035 : vector<1x8xf32> to vector<8x8xf32>
    %1065 = arith.mulf %1063, %1064 : vector<8x8xf32>
    %1066 = arith.addf %1062, %1065 : vector<8x8xf32>
    %1067 = vector.extract_strided_slice %11 {offsets = [1, 208], sizes = [1, 8], strides = [1, 1]} : vector<2x448xf32> to vector<1x8xf32>
    %1068 = vector.extract_strided_slice %11 {offsets = [1, 216], sizes = [1, 8], strides = [1, 1]} : vector<2x448xf32> to vector<1x8xf32>
    %1069 = vector.extract_strided_slice %11 {offsets = [1, 224], sizes = [1, 8], strides = [1, 1]} : vector<2x448xf32> to vector<1x8xf32>
    %1070 = vector.extract_strided_slice %11 {offsets = [1, 232], sizes = [1, 8], strides = [1, 1]} : vector<2x448xf32> to vector<1x8xf32>
    %1071 = vector.extract_strided_slice %11 {offsets = [1, 240], sizes = [1, 8], strides = [1, 1]} : vector<2x448xf32> to vector<1x8xf32>
    %1072 = vector.extract_strided_slice %11 {offsets = [1, 248], sizes = [1, 8], strides = [1, 1]} : vector<2x448xf32> to vector<1x8xf32>
    %1073 = vector.extract_strided_slice %11 {offsets = [1, 256], sizes = [1, 8], strides = [1, 1]} : vector<2x448xf32> to vector<1x8xf32>
    %1074 = vector.extract_strided_slice %11 {offsets = [1, 264], sizes = [1, 8], strides = [1, 1]} : vector<2x448xf32> to vector<1x8xf32>
    %1075 = vector.broadcast %39 : vector<8x1xf32> to vector<8x8xf32>
    %1076 = vector.broadcast %1067 : vector<1x8xf32> to vector<8x8xf32>
    %1077 = arith.mulf %1075, %1076 : vector<8x8xf32>
    %1078 = vector.broadcast %40 : vector<8x1xf32> to vector<8x8xf32>
    %1079 = vector.broadcast %1068 : vector<1x8xf32> to vector<8x8xf32>
    %1080 = arith.mulf %1078, %1079 : vector<8x8xf32>
    %1081 = arith.addf %1077, %1080 : vector<8x8xf32>
    %1082 = vector.broadcast %41 : vector<8x1xf32> to vector<8x8xf32>
    %1083 = vector.broadcast %1069 : vector<1x8xf32> to vector<8x8xf32>
    %1084 = arith.mulf %1082, %1083 : vector<8x8xf32>
    %1085 = arith.addf %1081, %1084 : vector<8x8xf32>
    %1086 = vector.broadcast %42 : vector<8x1xf32> to vector<8x8xf32>
    %1087 = vector.broadcast %1070 : vector<1x8xf32> to vector<8x8xf32>
    %1088 = arith.mulf %1086, %1087 : vector<8x8xf32>
    %1089 = arith.addf %1085, %1088 : vector<8x8xf32>
    %1090 = vector.broadcast %43 : vector<8x1xf32> to vector<8x8xf32>
    %1091 = vector.broadcast %1071 : vector<1x8xf32> to vector<8x8xf32>
    %1092 = arith.mulf %1090, %1091 : vector<8x8xf32>
    %1093 = arith.addf %1089, %1092 : vector<8x8xf32>
    %1094 = vector.broadcast %44 : vector<8x1xf32> to vector<8x8xf32>
    %1095 = vector.broadcast %1072 : vector<1x8xf32> to vector<8x8xf32>
    %1096 = arith.mulf %1094, %1095 : vector<8x8xf32>
    %1097 = arith.addf %1093, %1096 : vector<8x8xf32>
    %1098 = vector.broadcast %45 : vector<8x1xf32> to vector<8x8xf32>
    %1099 = vector.broadcast %1073 : vector<1x8xf32> to vector<8x8xf32>
    %1100 = arith.mulf %1098, %1099 : vector<8x8xf32>
    %1101 = arith.addf %1097, %1100 : vector<8x8xf32>
    %1102 = vector.broadcast %46 : vector<8x1xf32> to vector<8x8xf32>
    %1103 = vector.broadcast %1074 : vector<1x8xf32> to vector<8x8xf32>
    %1104 = arith.mulf %1102, %1103 : vector<8x8xf32>
    %1105 = arith.addf %1101, %1104 : vector<8x8xf32>
    %1106 = vector.extract_strided_slice %11 {offsets = [1, 280], sizes = [1, 8], strides = [1, 1]} : vector<2x448xf32> to vector<1x8xf32>
    %1107 = math.tanh %1106 : vector<1x8xf32>
    %1108 = vector.extract_strided_slice %11 {offsets = [1, 296], sizes = [1, 8], strides = [1, 1]} : vector<2x448xf32> to vector<1x8xf32>
    %1109 = math.tanh %1108 : vector<1x8xf32>
    %1110 = vector.extract_strided_slice %11 {offsets = [1, 440], sizes = [1, 8], strides = [1, 1]} : vector<2x448xf32> to vector<1x8xf32>
    %1111 = arith.mulf %38, %1066 : vector<8x8xf32>
    %1112 = vector.broadcast %1109 : vector<1x8xf32> to vector<8x8xf32>
    %1113 = arith.mulf %35, %1112 : vector<8x8xf32>
    %1114 = arith.addf %1111, %1113 : vector<8x8xf32>
    %1115 = arith.mulf %38, %1105 : vector<8x8xf32>
    %1116 = vector.broadcast %1107 : vector<1x8xf32> to vector<8x8xf32>
    %1117 = arith.mulf %35, %1116 : vector<8x8xf32>
    %1118 = arith.addf %1115, %1117 : vector<8x8xf32>
    %cst_230 = arith.constant dense<0.000000e+00> : vector<1x8xf32>
    %1119 = tpu.matmul %858, %1020, %cst_230 {dimension_numbers = #tpu.dot_dimension_numbers<[1], [0], [0], [1], [0, 0, 1, 1], [], []>} : vector<1x8xf32>, vector<8x8xf32>, vector<1x8xf32> -> vector<1x8xf32>
    %cst_231 = arith.constant dense<0.000000e+00> : vector<1x8xf32>
    %1120 = tpu.matmul %1119, %1114, %cst_231 {dimension_numbers = #tpu.dot_dimension_numbers<[1], [0], [0], [1], [0, 0, 1, 1], [], []>} : vector<1x8xf32>, vector<8x8xf32>, vector<1x8xf32> -> vector<1x8xf32>
    %1121 = arith.addf %1120, %1110 : vector<1x8xf32>
    %1122 = math.tanh %1121 : vector<1x8xf32>
    %cst_232 = arith.constant dense<0.000000e+00> : vector<1x8xf32>
    %1123 = tpu.matmul %1122, %1118, %cst_232 {dimension_numbers = #tpu.dot_dimension_numbers<[1], [0], [0], [1], [0, 0, 1, 1], [], []>} : vector<1x8xf32>, vector<8x8xf32>, vector<1x8xf32> -> vector<1x8xf32>
    %cst_233 = arith.constant dense<0.000000e+00> : vector<1x8xf32>
    %1124 = tpu.matmul %1123, %1027, %cst_233 {dimension_numbers = #tpu.dot_dimension_numbers<[1], [0], [0], [1], [0, 0, 1, 1], [], []>} : vector<1x8xf32>, vector<8x8xf32>, vector<1x8xf32> -> vector<1x8xf32>
    %1125 = arith.addf %1124, %858 : vector<1x8xf32>
    %1126 = arith.mulf %1122, %1122 : vector<1x8xf32>
    %cst_234 = arith.constant 1.000000e+00 : f32
    %1127 = vector.broadcast %cst_234 : f32 to vector<1x8xf32>
    %1128 = arith.subf %1127, %1126 : vector<1x8xf32>
    %1129 = arith.mulf %1107, %1109 : vector<1x8xf32>
    %1130 = arith.mulf %1128, %1129 : vector<1x8xf32>
    %cst_235 = arith.constant 1.000000e+00 : f32
    %1131 = vector.broadcast %cst_235 : f32 to vector<1x8xf32>
    %1132 = arith.addf %1130, %1131 : vector<1x8xf32>
    %1133 = math.log %1132 : vector<1x8xf32>
    %cst_236 = arith.constant dense<0.000000e+00> : vector<1xf32>
    %1134 = vector.multi_reduction <add>, %1133, %cst_236 [1] : vector<1x8xf32> to vector<1xf32>
    %1135 = vector.shape_cast %1134 : vector<1xf32> to vector<1x1xf32>
    %1136 = arith.addf %869, %1135 : vector<1x1xf32>
    %1137 = vector.broadcast %55 : vector<2x1xf32> to vector<2x8xf32>
    %1138 = vector.broadcast %1125 : vector<1x8xf32> to vector<2x8xf32>
    %1139 = arith.mulf %1137, %1138 : vector<2x8xf32>
    %1140 = arith.addf %597, %1139 : vector<2x8xf32>
    %1141 = vector.broadcast %1136 : vector<1x1xf32> to vector<2x1xf32>
    %1142 = arith.mulf %55, %1141 : vector<2x1xf32>
    %1143 = arith.addf %600, %1142 : vector<2x1xf32>
    %c0_237 = arith.constant 0 : index
    %c0_238 = arith.constant 0 : index
    %1144 = vector.load %arg15[%c0_237, %c0_238] : memref<2x8xf32, #tpu.memory_space<vmem>>, vector<2x8xf32>
    tpu.vector_store %arg15[%c0_237, %c0_238], %1140 {strides = array<i32>} : memref<2x8xf32, #tpu.memory_space<vmem>>, vector<2x8xf32>,
    %c0_239 = arith.constant 0 : index
    %c0_240 = arith.constant 0 : index
    %1145 = vector.load %arg13[%c0_239, %c0_240] : memref<2x1xf32, #tpu.memory_space<vmem>>, vector<2x1xf32>
    tpu.vector_store %arg13[%c0_239, %c0_240], %1143 {strides = array<i32>} : memref<2x1xf32, #tpu.memory_space<vmem>>, vector<2x1xf32>,
    %c0_241 = arith.constant 0 : index
    %c0_242 = arith.constant 0 : index
    %1146 = vector.load %arg6[%c0_241, %c0_242] : memref<8x32xf32, #tpu.memory_space<vmem>>, vector<8x32xf32>
    %cst_243 = arith.constant dense<0.000000e+00> : vector<2x32xf32>
    %1147 = tpu.matmul %1140, %1146, %cst_243 {dimension_numbers = #tpu.dot_dimension_numbers<[1], [0], [0], [1], [0, 0, 1, 1], [], []>} : vector<2x8xf32>, vector<8x32xf32>, vector<2x32xf32> -> vector<2x32xf32>
    %c0_244 = arith.constant 0 : index
    %c0_245 = arith.constant 0 : index
    %1148 = vector.load %arg7[%c0_244, %c0_245] : memref<1x32xf32, #tpu.memory_space<vmem>>, vector<1x32xf32>
    %1149 = vector.broadcast %1148 : vector<1x32xf32> to vector<2x32xf32>
    %1150 = arith.addf %1147, %1149 : vector<2x32xf32>
    %1151 = math.tanh %1150 : vector<2x32xf32>
    %c0_246 = arith.constant 0 : index
    %c0_247 = arith.constant 0 : index
    %1152 = vector.load %arg8[%c0_246, %c0_247] : memref<32x64xf32, #tpu.memory_space<vmem>>, vector<32x64xf32>
    %cst_248 = arith.constant dense<0.000000e+00> : vector<2x64xf32>
    %1153 = tpu.matmul %1151, %1152, %cst_248 {dimension_numbers = #tpu.dot_dimension_numbers<[1], [0], [0], [1], [0, 0, 1, 1], [], []>} : vector<2x32xf32>, vector<32x64xf32>, vector<2x64xf32> -> vector<2x64xf32>
    %c0_249 = arith.constant 0 : index
    %c0_250 = arith.constant 0 : index
    %1154 = vector.load %arg9[%c0_249, %c0_250] : memref<1x64xf32, #tpu.memory_space<vmem>>, vector<1x64xf32>
    %1155 = vector.broadcast %1154 : vector<1x64xf32> to vector<2x64xf32>
    %1156 = arith.addf %1153, %1155 : vector<2x64xf32>
    %c0_251 = arith.constant 0 : index
    %c0_252 = arith.constant 0 : index
    %1157 = vector.load %arg10[%c0_251, %c0_252] : memref<2x64xf32, #tpu.memory_space<vmem>>, vector<2x64xf32>
    tpu.vector_store %arg10[%c0_251, %c0_252], %1156 {strides = array<i32>} : memref<2x64xf32, #tpu.memory_space<vmem>>, vector<2x64xf32>,
    return
  }
}

</mosaic_0001>

<llo_original>
// kernel: hs_vae_forward.1
$region0: #{hs_vae_forward.1}
  #allocation0 [shape = 'u32[]', space=smem, size = 0x4, offset = 0x4, fixed_abs, tag = 'smem constant byte address 0x4 - core index']
  #allocation1 [shape = 'u32[144,128]{1,0:T(1,128)}', space=vmem, size = 0x12000, scoped, tag = 'internal scratch']
  %s0 = inlined_call_operand.vmem [shape: f32[2,64], index: 0, kind: input, shape index: {}]
  %s1 = inlined_call_operand.vmem [shape: f32[2,8], index: 1, kind: input, shape index: {}]
  %s2 = inlined_call_operand.vmem [shape: f32[64,32], index: 2, kind: input, shape index: {}]
  %s3 = inlined_call_operand.vmem [shape: f32[1,32], index: 3, kind: input, shape index: {}]
  %s4 = inlined_call_operand.hbm [shape: f32[32,448], index: 4, kind: input, shape index: {}]
  %s5 = inlined_call_operand.vmem [shape: f32[1,448], index: 5, kind: input, shape index: {}]
  %s6 = inlined_call_operand.vmem [shape: f32[8,32], index: 6, kind: input, shape index: {}]
  %s7 = inlined_call_operand.vmem [shape: f32[1,32], index: 7, kind: input, shape index: {}]
  %s8 = inlined_call_operand.vmem [shape: f32[32,64], index: 8, kind: input, shape index: {}]
  %s9 = inlined_call_operand.vmem [shape: f32[1,64], index: 9, kind: input, shape index: {}]
  %s10 = inlined_call_operand.hbm [shape: f32[2,64], index: 10, kind: output, shape index: {0}]
  %s11 = inlined_call_operand.hbm [shape: f32[2,8], index: 11, kind: output, shape index: {1}]
  %s12 = inlined_call_operand.hbm [shape: f32[2,8], index: 12, kind: output, shape index: {2}]
  %s13 = inlined_call_operand.vmem [shape: f32[2,1], index: 13, kind: output, shape index: {3}]
  %s14 = inlined_call_operand.hbm [shape: f32[2,8], index: 14, kind: output, shape index: {4}]
  %s15 = inlined_call_operand.hbm [shape: f32[2,8], index: 15, kind: output, shape index: {5}]
  %16 = xla_tuple %s10, %s11, %s12, %s13, %s14, %s15
  %s17 = sld [smem:[#allocation0]]
  $region94: #{hs_vae_forward.1} parent=0
    _
  %s19 = ssub.s32 1, %s17
  %s20 = scalar_select 0, %s19, %s17
  $region1: #{hs_vae_forward.1} parent=0
    #allocation2 [shape = 'u8[65536]{0}', space=vmem, size = 0x10000, scoped, tag = 'input window, operand 4, single buffered']
    #allocation3 [shape = 's32[1]{0}', space=sflag, size = 0x4, scoped, tag = 'scoped memory for hs_vae_forward.1']
    #allocation4 [shape = 's32[1]{0}', space=sflag, size = 0x4, scoped, tag = 'scoped memory for hs_vae_forward.1']
    #allocation5 [shape = 'u8[1024]{0}', space=vmem, size = 0x400, scoped, tag = 'output window, operand 0, single buffered']
    #allocation6 [shape = 'u8[1024]{0}', space=vmem, size = 0x400, scoped, tag = 'output window, operand 1, single buffered']
    #allocation7 [shape = 's32[1]{0}', space=sflag, size = 0x4, scoped, tag = 'scoped memory for hs_vae_forward.1']
    #allocation8 [shape = 'u8[1024]{0}', space=vmem, size = 0x400, scoped, tag = 'output window, operand 2, single buffered']
    #allocation9 [shape = 'u8[1024]{0}', space=vmem, size = 0x400, scoped, tag = 'output window, operand 4, single buffered']
    #allocation10 [shape = 's32[1]{0}', space=sflag, size = 0x4, scoped, tag = 'scoped memory for hs_vae_forward.1']
    #allocation11 [shape = 'u8[1024]{0}', space=vmem, size = 0x400, scoped, tag = 'output window, operand 5, single buffered']
    %21 = vsyncpa [#allocation3], 0
    %22 = vsyncpa [#allocation4], 0
    %23 = vsyncpa [#allocation7], 0
    %24 = vsyncpa [#allocation10], 0
    // Predicated region
    $region2: #{hs_vae_forward.1} parent=1 // pred_check
      _
    $region3: #{hs_vae_forward.1} parent=1 // pred_check_branch
      %26 = sbr.rel (0) target = $region5
    $region4: #{hs_vae_forward.1} parent=1 // pred_region
      _
    $region5: #{hs_vae_forward.1} parent=1 // pred_fallthru
      _
    // Predicated region
    $region6: #{hs_vae_forward.1} parent=1 // pred_check
      _
    $region7: #{hs_vae_forward.1} parent=1 // pred_check_branch
      %28 = sbr.rel (0) target = $region9
    $region8: #{hs_vae_forward.1} parent=1 // pred_region
      _
    $region9: #{hs_vae_forward.1} parent=1 // pred_fallthru
      _
    // Predicated region
    $region10: #{hs_vae_forward.1} parent=1 // pred_check
      _
    $region11: #{hs_vae_forward.1} parent=1 // pred_check_branch
      %30 = sbr.rel (0) target = $region13
    $region12: #{hs_vae_forward.1} parent=1 // pred_region
      _
    $region13: #{hs_vae_forward.1} parent=1 // pred_fallthru
      _
    // Predicated region
    $region14: #{hs_vae_forward.1} parent=1 // pred_check
      _
    $region15: #{hs_vae_forward.1} parent=1 // pred_check_branch
      %32 = sbr.rel (0) target = $region17
    $region16: #{hs_vae_forward.1} parent=1 // pred_region
      _
    $region17: #{hs_vae_forward.1} parent=1 // pred_fallthru
      _
    // Predicated region
    $region18: #{hs_vae_forward.1} parent=1 // pred_check
      _
    $region19: #{hs_vae_forward.1} parent=1 // pred_check_branch
      %34 = sbr.rel (0) target = $region21
    $region20: #{hs_vae_forward.1} parent=1 // pred_region
      %s36 = ssub.s32 2048, 2048
      %37 = vsyncadd [#allocation3], %s36
      %s38 = sshll.u32 [#allocation2], 4
      %s39 = int_to_ptr.vmem [resolvable:$true] %s38
      %44 = dma.hbm_to_vmem [thread:$0]  %s4, 2048, %s39, [#allocation3], 512, 512, 32
    $region21: #{hs_vae_forward.1} parent=1 // pred_fallthru
      _
    // Predicated region
    $region22: #{hs_vae_forward.1} parent=1 // pred_check
      _
    $region23: #{hs_vae_forward.1} parent=1 // pred_check_branch
      %46 = sbr.rel (0) target = $region25
    $region24: #{hs_vae_forward.1} parent=1 // pred_region
      _
    $region25: #{hs_vae_forward.1} parent=1 // pred_fallthru
      _
    // Predicated region
    $region26: #{hs_vae_forward.1} parent=1 // pred_check
      _
    $region27: #{hs_vae_forward.1} parent=1 // pred_check_branch
      %48 = sbr.rel (0) target = $region29
    $region28: #{hs_vae_forward.1} parent=1 // pred_region
      _
    $region29: #{hs_vae_forward.1} parent=1 // pred_fallthru
      _
    // Predicated region
    $region30: #{hs_vae_forward.1} parent=1 // pred_check
      _
    $region31: #{hs_vae_forward.1} parent=1 // pred_check_branch
      %50 = sbr.rel (0) target = $region33
    $region32: #{hs_vae_forward.1} parent=1 // pred_region
      _
    $region33: #{hs_vae_forward.1} parent=1 // pred_fallthru
      _
    // Predicated region
    $region34: #{hs_vae_forward.1} parent=1 // pred_check
      _
    $region35: #{hs_vae_forward.1} parent=1 // pred_check_branch
      %52 = sbr.rel (0) target = $region37
    $region36: #{hs_vae_forward.1} parent=1 // pred_region
      _
    $region37: #{hs_vae_forward.1} parent=1 // pred_fallthru
      _
    // Predicated region
    $region38: #{hs_vae_forward.1} parent=1 // pred_check
      _
    $region39: #{hs_vae_forward.1} parent=1 // pred_check_branch
      %54 = sbr.rel (0) target = $region41
    $region40: #{hs_vae_forward.1} parent=1 // pred_region
      _
    $region41: #{hs_vae_forward.1} parent=1 // pred_fallthru
      _
    // Predicated region
    $region42: #{hs_vae_forward.1} parent=1 // pred_check
      _
    $region43: #{hs_vae_forward.1} parent=1 // pred_check_branch
      %56 = sbr.rel (0) target = $region45
    $region44: #{hs_vae_forward.1} parent=1 // pred_region
      %57 = dma.done [#allocation3], 2048
    $region45: #{hs_vae_forward.1} parent=1 // pred_fallthru
      _
    %v58 = vld [vmem:[%s0] sm:$0x3]
    %v59 = vld [vmem:[%s2] sm:$0xff]
    %v60 = vld [vmem:[%s2 + $0x8] sm:$0xff]
    %v61 = vld [vmem:[%s2 + $0x10] sm:$0xff]
    %v62 = vld [vmem:[%s2 + $0x18] sm:$0xff]
    %v63 = vld [vmem:[%s2 + $0x20] sm:$0xff]
    %v64 = vld [vmem:[%s2 + $0x28] sm:$0xff]
    %v65 = vld [vmem:[%s2 + $0x30] sm:$0xff]
    %v66 = vld [vmem:[%s2 + $0x38] sm:$0xff]
    %v67 = vld [vmem:[%s3] sm:$0x1]
    %v69 = vlaneseq
    %v70 = vshrl.u32 %v69, 7
    %v71 = vsub.s32 0, %v70
    %v72 = vrot.slane %v67, %v71
    %vm74 = vcmask 523264
    %v76 = vsel %vm74, %v58, 0
    %78 = vmatprep.subr.mxu0 0.0
    %79 = vmatpush1.msra.mxu0 0.0
    %80 = vmatprep.subr.mxu0 0.0
    %81 = vmatpush1.msra.mxu0 0.0
    %82 = vmatprep.subr.mxu0 0.0
    %83 = vmatpush1.msra.mxu0 0.0
    %84 = vmatprep.subr.mxu0 0.0
    %85 = vmatpush1.msra.mxu0 0.0
    %86 = vmatprep.subr.mxu0 0.0
    %87 = vmatpush1.msra.mxu0 0.0
    %88 = vmatprep.subr.mxu0 0.0
    %89 = vmatpush1.msra.mxu0 0.0
    %90 = vmatprep.subr.mxu0 0.0
    %91 = vmatpush1.msra.mxu0 0.0
    %92 = vmatprep.subr.mxu0 0.0
    %93 = vmatpush1.msra.mxu0 0.0
    %94 = vmatprep.subr.mxu0 0.0
    %95 = vmatpush1.msra.mxu0 %v66
    %96 = vmatprep.subr.mxu0 0.0
    %97 = vmatpush1.msra.mxu0 %v65
    %98 = vmatprep.subr.mxu0 0.0
    %99 = vmatpush1.msra.mxu0 %v64
    %100 = vmatprep.subr.mxu0 0.0
    %101 = vmatpush1.msra.mxu0 %v63
    %102 = vmatprep.subr.mxu0 0.0
    %103 = vmatpush1.msra.mxu0 %v62
    %104 = vmatprep.subr.mxu0 0.0
    %105 = vmatpush1.msra.mxu0 %v61
    %106 = vmatprep.subr.mxu0 0.0
    %107 = vmatpush1.msra.mxu0 %v60
    %108 = vmatprep.subr.mxu0 0.0
    %109 = vmatpush1.msra.mxu0 %v59
    %110 = vmatprep.subr.mxu0 0.0
    %111 = vmatpush2.msra.mxu0 0.0
    %112 = vmatprep.subr.mxu0 0.0
    %113 = vmatpush2.msra.mxu0 0.0
    %114 = vmatprep.subr.mxu0 0.0
    %115 = vmatpush2.msra.mxu0 0.0
    %116 = vmatprep.subr.mxu0 0.0
    %117 = vmatpush2.msra.mxu0 0.0
    %118 = vmatprep.subr.mxu0 0.0
    %119 = vmatpush2.msra.mxu0 0.0
    %120 = vmatprep.subr.mxu0 0.0
    %121 = vmatpush2.msra.mxu0 0.0
    %122 = vmatprep.subr.mxu0 0.0
    %123 = vmatpush2.msra.mxu0 0.0
    %124 = vmatprep.subr.mxu0 0.0
    %125 = vmatpush2.msra.mxu0 0.0
    %126 = vmatprep.subr.mxu0 0.0
    %127 = vmatpush2.msra.mxu0 0.0
    %128 = vmatprep.subr.mxu0 0.0
    %129 = vmatpush2.msra.mxu0 0.0
    %130 = vmatprep.subr.mxu0 0.0
    %131 = vmatpush2.msra.mxu0 0.0
    %132 = vmatprep.subr.mxu0 0.0
    %133 = vmatpush2.msra.mxu0 0.0
    %134 = vmatprep.subr.mxu0 0.0
    %135 = vmatpush2.msra.mxu0 0.0
    %136 = vmatprep.subr.mxu0 0.0
    %137 = vmatpush2.msra.mxu0 0.0
    %138 = vmatprep.subr.mxu0 0.0
    %139 = vmatpush2.msra.mxu0 0.0
    %140 = vmatprep.subr.mxu0 0.0
    %141 = vmatpush2.msra.mxu0 0.0
    %142 = vmatprep.mubr.f32.mxu0 0.0
    %143 = vmatmul.mubr.f32.gmra.mxu0 %v76
    %v144 = vpop.f32.mrf.mxu0
    %v145 = vadd.f32 %v72, %v144
    %v146 = vpop.f32.mrf.mxu0
    %147 = vdwg.mxu0
    %v148 = vtanh.pop %v145
    %v149 = vld [vmem:[#allocation2] sm:$0xff]
    %v150 = vld [vmem:[#allocation2 + $0x8] sm:$0xff]
    %v151 = vld [vmem:[#allocation2 + $0x10] sm:$0xff]
    %v152 = vld [vmem:[#allocation2 + $0x18] sm:$0xff]
    %v153 = vld [vmem:[#allocation2 + $0x20] sm:$0xff]
    %v154 = vld [vmem:[#allocation2 + $0x28] sm:$0xff]
    %v155 = vld [vmem:[#allocation2 + $0x30] sm:$0xff]
    %v156 = vld [vmem:[#allocation2 + $0x38] sm:$0xff]
    %v157 = vld [vmem:[#allocation2 + $0x40] sm:$0xff]
    %v158 = vld [vmem:[#allocation2 + $0x48] sm:$0xff]
    %v159 = vld [vmem:[#allocation2 + $0x50] sm:$0xff]
    %v160 = vld [vmem:[#allocation2 + $0x58] sm:$0xff]
    %v161 = vld [vmem:[#allocation2 + $0x60] sm:$0xff]
    %v162 = vld [vmem:[#allocation2 + $0x68] sm:$0xff]
    %v163 = vld [vmem:[#allocation2 + $0x70] sm:$0xff]
    %v164 = vld [vmem:[#allocation2 + $0x78] sm:$0xff]
    %v165 = vld [vmem:[%s5] sm:$0xf]
    %v167 = vlaneseq
    %v168 = vshrl.u32 %v167, 7
    %v169 = vsub.s32 0, %v168
    %v170 = vrot.slane %v165, %v169
    %v171 = vlaneseq
    %v172 = vshrl.u32 %v171, 7
    %v173 = vsub.s32 1, %v172
    %v174 = vrot.slane %v165, %v173
    %v175 = vlaneseq
    %v176 = vshrl.u32 %v175, 7
    %v177 = vsub.s32 2, %v176
    %v178 = vrot.slane %v165, %v177
    %v179 = vlaneseq
    %v180 = vshrl.u32 %v179, 7
    %v181 = vsub.s32 3, %v180
    %v182 = vrot.slane %v165, %v181
    %vm187 = vcmask 261120
    %v189 = vsel %vm187, %v148, 0
    %191 = vmatprep.subr.mxu0 0.0
    %192 = vmatpush1.msra.mxu0 0.0
    %193 = vmatprep.subr.mxu0 0.0
    %194 = vmatpush1.msra.mxu0 0.0
    %195 = vmatprep.subr.mxu0 0.0
    %196 = vmatpush1.msra.mxu0 0.0
    %197 = vmatprep.subr.mxu0 0.0
    %198 = vmatpush1.msra.mxu0 0.0
    %199 = vmatprep.subr.mxu0 0.0
    %200 = vmatpush1.msra.mxu0 0.0
    %201 = vmatprep.subr.mxu0 0.0
    %202 = vmatpush1.msra.mxu0 0.0
    %203 = vmatprep.subr.mxu0 0.0
    %204 = vmatpush1.msra.mxu0 0.0
    %205 = vmatprep.subr.mxu0 0.0
    %206 = vmatpush1.msra.mxu0 0.0
    %207 = vmatprep.subr.mxu0 0.0
    %208 = vmatpush1.msra.mxu0 0.0
    %209 = vmatprep.subr.mxu0 0.0
    %210 = vmatpush1.msra.mxu0 0.0
    %211 = vmatprep.subr.mxu0 0.0
    %212 = vmatpush1.msra.mxu0 0.0
    %213 = vmatprep.subr.mxu0 0.0
    %214 = vmatpush1.msra.mxu0 0.0
    %215 = vmatprep.subr.mxu0 %v162
    %216 = vmatpush1.msra.mxu0 %v161
    %217 = vmatprep.subr.mxu0 %v158
    %218 = vmatpush1.msra.mxu0 %v157
    %219 = vmatprep.subr.mxu0 %v154
    %220 = vmatpush1.msra.mxu0 %v153
    %221 = vmatprep.subr.mxu0 %v150
    %222 = vmatpush1.msra.mxu0 %v149
    %223 = vmatprep.subr.mxu0 0.0
    %224 = vmatpush2.msra.mxu0 0.0
    %225 = vmatprep.subr.mxu0 0.0
    %226 = vmatpush2.msra.mxu0 0.0
    %227 = vmatprep.subr.mxu0 0.0
    %228 = vmatpush2.msra.mxu0 0.0
    %229 = vmatprep.subr.mxu0 0.0
    %230 = vmatpush2.msra.mxu0 0.0
    %231 = vmatprep.subr.mxu0 0.0
    %232 = vmatpush2.msra.mxu0 0.0
    %233 = vmatprep.subr.mxu0 0.0
    %234 = vmatpush2.msra.mxu0 0.0
    %235 = vmatprep.subr.mxu0 0.0
    %236 = vmatpush2.msra.mxu0 0.0
    %237 = vmatprep.subr.mxu0 0.0
    %238 = vmatpush2.msra.mxu0 0.0
    %239 = vmatprep.subr.mxu0 0.0
    %240 = vmatpush2.msra.mxu0 0.0
    %241 = vmatprep.subr.mxu0 0.0
    %242 = vmatpush2.msra.mxu0 0.0
    %243 = vmatprep.subr.mxu0 0.0
    %244 = vmatpush2.msra.mxu0 0.0
    %245 = vmatprep.subr.mxu0 0.0
    %246 = vmatpush2.msra.mxu0 0.0
    %247 = vmatprep.subr.mxu0 0.0
    %248 = vmatpush2.msra.mxu0 0.0
    %249 = vmatprep.subr.mxu0 0.0
    %250 = vmatpush2.msra.mxu0 0.0
    %251 = vmatprep.subr.mxu0 0.0
    %252 = vmatpush2.msra.mxu0 0.0
    %253 = vmatprep.subr.mxu0 0.0
    %254 = vmatpush2.msra.mxu0 0.0
    %255 = vmatprep.mubr.f32.mxu0 0.0
    %256 = vmatmul.mubr.f32.gmra.mxu0 %v189
    %v257 = vpop.f32.mrf.mxu0
    %v258 = vadd.f32 %v170, %v257
    %v259 = vpop.f32.mrf.mxu0
    %v260 = vadd.f32 %v174, %v259
    %261 = vdwg.mxu0
    %262 = vmatprep.subr.mxu0 0.0
    %263 = vmatpush1.msra.mxu0 0.0
    %264 = vmatprep.subr.mxu0 0.0
    %265 = vmatpush1.msra.mxu0 0.0
    %266 = vmatprep.subr.mxu0 0.0
    %267 = vmatpush1.msra.mxu0 0.0
    %268 = vmatprep.subr.mxu0 0.0
    %269 = vmatpush1.msra.mxu0 0.0
    %270 = vmatprep.subr.mxu0 0.0
    %271 = vmatpush1.msra.mxu0 0.0
    %272 = vmatprep.subr.mxu0 0.0
    %273 = vmatpush1.msra.mxu0 0.0
    %274 = vmatprep.subr.mxu0 0.0
    %275 = vmatpush1.msra.mxu0 0.0
    %276 = vmatprep.subr.mxu0 0.0
    %277 = vmatpush1.msra.mxu0 0.0
    %278 = vmatprep.subr.mxu0 0.0
    %279 = vmatpush1.msra.mxu0 0.0
    %280 = vmatprep.subr.mxu0 0.0
    %281 = vmatpush1.msra.mxu0 0.0
    %282 = vmatprep.subr.mxu0 0.0
    %283 = vmatpush1.msra.mxu0 0.0
    %284 = vmatprep.subr.mxu0 0.0
    %285 = vmatpush1.msra.mxu0 0.0
    %286 = vmatprep.subr.mxu0 %v164
    %287 = vmatpush1.msra.mxu0 %v163
    %288 = vmatprep.subr.mxu0 %v160
    %289 = vmatpush1.msra.mxu0 %v159
    %290 = vmatprep.subr.mxu0 %v156
    %291 = vmatpush1.msra.mxu0 %v155
    %292 = vmatprep.subr.mxu0 %v152
    %293 = vmatpush1.msra.mxu0 %v151
    %294 = vmatprep.subr.mxu0 0.0
    %295 = vmatpush2.msra.mxu0 0.0
    %296 = vmatprep.subr.mxu0 0.0
    %297 = vmatpush2.msra.mxu0 0.0
    %298 = vmatprep.subr.mxu0 0.0
    %299 = vmatpush2.msra.mxu0 0.0
    %300 = vmatprep.subr.mxu0 0.0
    %301 = vmatpush2.msra.mxu0 0.0
    %302 = vmatprep.subr.mxu0 0.0
    %303 = vmatpush2.msra.mxu0 0.0
    %304 = vmatprep.subr.mxu0 0.0
    %305 = vmatpush2.msra.mxu0 0.0
    %306 = vmatprep.subr.mxu0 0.0
    %307 = vmatpush2.msra.mxu0 0.0
    %308 = vmatprep.subr.mxu0 0.0
    %309 = vmatpush2.msra.mxu0 0.0
    %310 = vmatprep.subr.mxu0 0.0
    %311 = vmatpush2.msra.mxu0 0.0
    %312 = vmatprep.subr.mxu0 0.0
    %313 = vmatpush2.msra.mxu0 0.0
    %314 = vmatprep.subr.mxu0 0.0
    %315 = vmatpush2.msra.mxu0 0.0
    %316 = vmatprep.subr.mxu0 0.0
    %317 = vmatpush2.msra.mxu0 0.0
    %318 = vmatprep.subr.mxu0 0.0
    %319 = vmatpush2.msra.mxu0 0.0
    %320 = vmatprep.subr.mxu0 0.0
    %321 = vmatpush2.msra.mxu0 0.0
    %322 = vmatprep.subr.mxu0 0.0
    %323 = vmatpush2.msra.mxu0 0.0
    %324 = vmatprep.subr.mxu0 0.0
    %325 = vmatpush2.msra.mxu0 0.0
    %326 = vmatprep.mubr.f32.mxu0 0.0
    %327 = vmatmul.mubr.f32.gmra.mxu0 %v189
    %v328 = vpop.f32.mrf.mxu0
    %v329 = vadd.f32 %v178, %v328
    %v330 = vpop.f32.mrf.mxu0
    %v331 = vadd.f32 %v182, %v330
    %332 = vdwg.mxu0
    %v333 = vmax.f32 %v258, 0.0
    %v334 = vand.u32 2147483647, %v258
    %v335 = vsub.f32 0.0, %v334
    %v336 = vmul.f32 %v335, 1.442695
    %v337 = vpow.pop %v336
    %v338 = vadd.f32 %v337, 1.0
    %v339 = vlog2.pop %v338
    %v340 = vmul.f32 %v339, 0.6931472
    %v341 = vadd.f32 %v333, %v340
    %vm342 = vcmask 58368
    %343 = vst.msk [vmem:[#allocation6] sm:$0x3] %vm342, %v258
    %345 = vrot.lane.b32.xlu0 %v341, 120
    %v346 = vpop.permute.xlu0 %345
    %348 = vst.msk [vmem:[#allocation8] sm:$0x3] %vm342, %v346
    %v349 = vrsqrt.pop %v341
    %v350 = vmul.f32 %v341, %v349
    %vm351 = vcmp.eq.f32.partialorder %v341, inf
    %v352 = vsel %vm351, %v341, %v350
    %vm353 = vcmp.eq.f32.partialorder %v341, 0.0
    %v354 = vand.u32 %v341, 2147483648
    %v355 = vsel %vm353, %v354, %v352
    %v356 = vld [vmem:[%s1] sm:$0x3]
    %358 = vrot.lane.b32.xlu0 %v356, 8
    %v359 = vpop.permute.xlu0 %358
    %v361 = vmul.f32 %v355, %v359
    %363 = vrot.lane.b32.xlu0 %v361, 120
    %v364 = vpop.permute.xlu0 %363
    %v366 = vadd.f32 %v258, %v364
    %367 = vst.msk [vmem:[#allocation9] sm:$0x3] %vm342, %v366
    %v368 = vlaneseq
    %v369 = vshrl.u32 %v368, 7
    %v370 = vlaneseq
    %v371 = vand.u32 %v370, 127
    %vm372 = vcmp.eq.s32.totalorder %v369, %v371
    %v373 = vsel %vm372, 1, 0
    %v374 = vcvt.s32.f32 %v373
    %vm375 = vcmp.lt.s32.totalorder %v371, %v369
    %v376 = vsel %vm375, 1, 0
    %v377 = vcvt.s32.f32 %v376
    %vm378 = vcmp.eq.s32.totalorder %v369, 0
    %v379 = vsel %vm378, 1, 0
    %v380 = vcvt.s32.f32 %v379
    %vm381 = vcmp.eq.s32.totalorder %v369, 1
    %v382 = vsel %vm381, 1, 0
    %v383 = vcvt.s32.f32 %v382
    %v384 = vmul.f32 %v329, %v329
    %386 = vrot.lane.b32.xlu0 %v384, 80
    %v387 = vpop.permute.xlu0 %386
    %vm389 = vcmask 57344
    %v390 = vsel %vm389, %v387, 0.0
    %391 = vadd.xlane.f32.xlu0 %v390
    %v392 = vpop.xlane.xlu0 %391
    %v393 = vadd.f32 %v392, 1e-12
    %v394 = vlaneseq
    %v395 = vshrl.u32 %v394, 7
    %v396 = vsub.s32 0, %v395
    %v397 = vrot.slane %v329, %v396
    %399 = vrot.lane.b32.xlu0 %v397, 80
    %v400 = vpop.permute.xlu0 %399
    %v402 = vmul.f32 %v374, %v400
    %vm403 = vcmask 64512
    %v404 = vsel %vm403, %v402, 0.0
    %405 = vadd.xlane.f32.xlu0 %v404
    %v406 = vpop.xlane.xlu0 %405
    %v407 = vrcp.pop %v393
    %v408 = vmul.f32 2.0, %v407
    %v409 = vmul.f32 %v406, %v397
    %v410 = vlaneseq
    %v411 = vshrl.u32 %v410, 7
    %v412 = vsub.s32 0, %v411
    %v413 = vrot.slane %v408, %v412
    %v414 = vmul.f32 %v413, %v409
    %416 = vrot.lane.b32.xlu0 %v414, 80
    %v417 = vpop.permute.xlu0 %416
    %v419 = vsub.f32 %v374, %v417
    %420 = vrot.lane.b32.xlu0 %v384, 48
    %v421 = vpop.permute.xlu0 %420
    %v423 = vsel %vm389, %v421, 0.0
    %424 = vadd.xlane.f32.xlu0 %v423
    %v425 = vpop.xlane.xlu0 %424
    %v426 = vadd.f32 %v425, 1e-12
    %427 = vrot.lane.b32.xlu0 %v397, 48
    %v428 = vpop.permute.xlu0 %427
    %v430 = vmul.f32 %v374, %v428
    %v431 = vsel %vm403, %v430, 0.0
    %432 = vadd.xlane.f32.xlu0 %v431
    %v433 = vpop.xlane.xlu0 %432
    %v434 = vrcp.pop %v426
    %v435 = vmul.f32 2.0, %v434
    %v436 = vmul.f32 %v433, %v397
    %v437 = vlaneseq
    %v438 = vshrl.u32 %v437, 7
    %v439 = vsub.s32 0, %v438
    %v440 = vrot.slane %v435, %v439
    %v441 = vmul.f32 %v440, %v436
    %443 = vrot.lane.b32.xlu0 %v441, 48
    %v444 = vpop.permute.xlu0 %443
    %v446 = vsub.f32 %v374, %v444
    %447 = vrot.lane.b32.xlu0 %v384, 16
    %v448 = vpop.permute.xlu0 %447
    %v450 = vsel %vm389, %v448, 0.0
    %451 = vadd.xlane.f32.xlu0 %v450
    %v452 = vpop.xlane.xlu0 %451
    %v453 = vadd.f32 %v452, 1e-12
    %454 = vrot.lane.b32.xlu0 %v397, 16
    %v455 = vpop.permute.xlu0 %454
    %v457 = vmul.f32 %v374, %v455
    %v458 = vsel %vm403, %v457, 0.0
    %459 = vadd.xlane.f32.xlu0 %v458
    %v460 = vpop.xlane.xlu0 %459
    %v461 = vrcp.pop %v453
    %v462 = vmul.f32 2.0, %v461
    %v463 = vmul.f32 %v460, %v397
    %v464 = vlaneseq
    %v465 = vshrl.u32 %v464, 7
    %v466 = vsub.s32 0, %v465
    %v467 = vrot.slane %v462, %v466
    %v468 = vmul.f32 %v467, %v463
    %470 = vrot.lane.b32.xlu0 %v468, 16
    %v471 = vpop.permute.xlu0 %470
    %v473 = vsub.f32 %v374, %v471
    %v474 = vmul.f32 %v331, %v331
    %476 = vrot.lane.b32.xlu0 %v474, 112
    %v477 = vpop.permute.xlu0 %476
    %v479 = vsel %vm389, %v477, 0.0
    %480 = vadd.xlane.f32.xlu0 %v479
    %v481 = vpop.xlane.xlu0 %480
    %v482 = vadd.f32 %v481, 1e-12
    %v483 = vlaneseq
    %v484 = vshrl.u32 %v483, 7
    %v485 = vsub.s32 0, %v484
    %v486 = vrot.slane %v331, %v485
    %488 = vrot.lane.b32.xlu0 %v486, 112
    %v489 = vpop.permute.xlu0 %488
    %v491 = vmul.f32 %v374, %v489
    %v492 = vsel %vm403, %v491, 0.0
    %493 = vadd.xlane.f32.xlu0 %v492
    %v494 = vpop.xlane.xlu0 %493
    %v495 = vrcp.pop %v482
    %v496 = vmul.f32 2.0, %v495
    %v497 = vmul.f32 %v494, %v486
    %v498 = vlaneseq
    %v499 = vshrl.u32 %v498, 7
    %v500 = vsub.s32 0, %v499
    %v501 = vrot.slane %v496, %v500
    %v502 = vmul.f32 %v501, %v497
    %504 = vrot.lane.b32.xlu0 %v502, 112
    %v505 = vpop.permute.xlu0 %504
    %v507 = vsub.f32 %v374, %v505
    %vm508 = vcmask 58369
    %v509 = vsel %vm508, %v387, 0.0
    %510 = vadd.xlane.f32.xlu0 %v509
    %v511 = vpop.xlane.xlu0 %510
    %v512 = vadd.f32 %v511, 1e-12
    %v513 = vlaneseq
    %v514 = vshrl.u32 %v513, 7
    %v515 = vsub.s32 1, %v514
    %v516 = vrot.slane %v329, %v515
    %518 = vrot.lane.b32.xlu0 %v516, 80
    %v519 = vpop.permute.xlu0 %518
    %v521 = vmul.f32 %v374, %v519
    %v522 = vsel %vm403, %v521, 0.0
    %523 = vadd.xlane.f32.xlu0 %v522
    %v524 = vpop.xlane.xlu0 %523
    %v525 = vrcp.pop %v512
    %v526 = vmul.f32 2.0, %v525
    %v527 = vmul.f32 %v524, %v516
    %v528 = vlaneseq
    %v529 = vshrl.u32 %v528, 7
    %v530 = vsub.s32 1, %v529
    %v531 = vrot.slane %v526, %v530
    %v532 = vmul.f32 %v531, %v527
    %534 = vrot.lane.b32.xlu0 %v532, 80
    %v535 = vpop.permute.xlu0 %534
    %v537 = vsub.f32 %v374, %v535
    %v538 = vsel %vm508, %v421, 0.0
    %539 = vadd.xlane.f32.xlu0 %v538
    %v540 = vpop.xlane.xlu0 %539
    %v541 = vadd.f32 %v540, 1e-12
    %542 = vrot.lane.b32.xlu0 %v516, 48
    %v543 = vpop.permute.xlu0 %542
    %v545 = vmul.f32 %v374, %v543
    %v546 = vsel %vm403, %v545, 0.0
    %547 = vadd.xlane.f32.xlu0 %v546
    %v548 = vpop.xlane.xlu0 %547
    %v549 = vrcp.pop %v541
    %v550 = vmul.f32 2.0, %v549
    %v551 = vmul.f32 %v548, %v516
    %v552 = vlaneseq
    %v553 = vshrl.u32 %v552, 7
    %v554 = vsub.s32 1, %v553
    %v555 = vrot.slane %v550, %v554
    %v556 = vmul.f32 %v555, %v551
    %558 = vrot.lane.b32.xlu0 %v556, 48
    %v559 = vpop.permute.xlu0 %558
    %v561 = vsub.f32 %v374, %v559
    %v562 = vsel %vm508, %v448, 0.0
    %563 = vadd.xlane.f32.xlu0 %v562
    %v564 = vpop.xlane.xlu0 %563
    %v565 = vadd.f32 %v564, 1e-12
    %566 = vrot.lane.b32.xlu0 %v516, 16
    %v567 = vpop.permute.xlu0 %566
    %v569 = vmul.f32 %v374, %v567
    %v570 = vsel %vm403, %v569, 0.0
    %571 = vadd.xlane.f32.xlu0 %v570
    %v572 = vpop.xlane.xlu0 %571
    %v573 = vrcp.pop %v565
    %v574 = vmul.f32 2.0, %v573
    %v575 = vmul.f32 %v572, %v516
    %v576 = vlaneseq
    %v577 = vshrl.u32 %v576, 7
    %v578 = vsub.s32 1, %v577
    %v579 = vrot.slane %v574, %v578
    %v580 = vmul.f32 %v579, %v575
    %582 = vrot.lane.b32.xlu0 %v580, 16
    %v583 = vpop.permute.xlu0 %582
    %v585 = vsub.f32 %v374, %v583
    %v586 = vsel %vm508, %v477, 0.0
    %587 = vadd.xlane.f32.xlu0 %v586
    %v588 = vpop.xlane.xlu0 %587
    %v589 = vadd.f32 %v588, 1e-12
    %v590 = vlaneseq
    %v591 = vshrl.u32 %v590, 7
    %v592 = vsub.s32 1, %v591
    %v593 = vrot.slane %v331, %v592
    %595 = vrot.lane.b32.xlu0 %v593, 112
    %v596 = vpop.permute.xlu0 %595
    %v598 = vmul.f32 %v374, %v596
    %v599 = vsel %vm403, %v598, 0.0
    %600 = vadd.xlane.f32.xlu0 %v599
    %v601 = vpop.xlane.xlu0 %600
    %v602 = vrcp.pop %v589
    %v603 = vmul.f32 2.0, %v602
    %v604 = vmul.f32 %v601, %v593
    %v605 = vlaneseq
    %v606 = vshrl.u32 %v605, 7
    %v607 = vsub.s32 1, %v606
    %v608 = vrot.slane %v603, %v607
    %v609 = vmul.f32 %v608, %v604
    %611 = vrot.lane.b32.xlu0 %v609, 112
    %v612 = vpop.permute.xlu0 %611
    %v614 = vsub.f32 %v374, %v612
    %v616 = vsel %vm403, %v419, 0
    %618 = vmatprep.subr.mxu0 0.0
    %619 = vmatpush1.msra.mxu0 0.0
    %620 = vmatprep.subr.mxu0 0.0
    %621 = vmatpush1.msra.mxu0 0.0
    %622 = vmatprep.subr.mxu0 0.0
    %623 = vmatpush1.msra.mxu0 0.0
    %624 = vmatprep.subr.mxu0 0.0
    %625 = vmatpush1.msra.mxu0 0.0
    %626 = vmatprep.subr.mxu0 0.0
    %627 = vmatpush1.msra.mxu0 0.0
    %628 = vmatprep.subr.mxu0 0.0
    %629 = vmatpush1.msra.mxu0 0.0
    %630 = vmatprep.subr.mxu0 0.0
    %631 = vmatpush1.msra.mxu0 0.0
    %632 = vmatprep.subr.mxu0 0.0
    %633 = vmatpush1.msra.mxu0 0.0
    %634 = vmatprep.subr.mxu0 0.0
    %635 = vmatpush1.msra.mxu0 0.0
    %636 = vmatprep.subr.mxu0 0.0
    %637 = vmatpush1.msra.mxu0 0.0
    %638 = vmatprep.subr.mxu0 0.0
    %639 = vmatpush1.msra.mxu0 0.0
    %640 = vmatprep.subr.mxu0 0.0
    %641 = vmatpush1.msra.mxu0 0.0
    %642 = vmatprep.subr.mxu0 0.0
    %643 = vmatpush1.msra.mxu0 0.0
    %644 = vmatprep.subr.mxu0 0.0
    %645 = vmatpush1.msra.mxu0 0.0
    %646 = vmatprep.subr.mxu0 0.0
    %647 = vmatpush1.msra.mxu0 0.0
    %648 = vmatprep.subr.mxu0 0.0
    %649 = vmatpush1.msra.mxu0 %v446
    %650 = vmatprep.subr.mxu0 0.0
    %651 = vmatpush2.msra.mxu0 0.0
    %652 = vmatprep.subr.mxu0 0.0
    %653 = vmatpush2.msra.mxu0 0.0
    %654 = vmatprep.subr.mxu0 0.0
    %655 = vmatpush2.msra.mxu0 0.0
    %656 = vmatprep.subr.mxu0 0.0
    %657 = vmatpush2.msra.mxu0 0.0
    %658 = vmatprep.subr.mxu0 0.0
    %659 = vmatpush2.msra.mxu0 0.0
    %660 = vmatprep.subr.mxu0 0.0
    %661 = vmatpush2.msra.mxu0 0.0
    %662 = vmatprep.subr.mxu0 0.0
    %663 = vmatpush2.msra.mxu0 0.0
    %664 = vmatprep.subr.mxu0 0.0
    %665 = vmatpush2.msra.mxu0 0.0
    %666 = vmatprep.subr.mxu0 0.0
    %667 = vmatpush2.msra.mxu0 0.0
    %668 = vmatprep.subr.mxu0 0.0
    %669 = vmatpush2.msra.mxu0 0.0
    %670 = vmatprep.subr.mxu0 0.0
    %671 = vmatpush2.msra.mxu0 0.0
    %672 = vmatprep.subr.mxu0 0.0
    %673 = vmatpush2.msra.mxu0 0.0
    %674 = vmatprep.subr.mxu0 0.0
    %675 = vmatpush2.msra.mxu0 0.0
    %676 = vmatprep.subr.mxu0 0.0
    %677 = vmatpush2.msra.mxu0 0.0
    %678 = vmatprep.subr.mxu0 0.0
    %679 = vmatpush2.msra.mxu0 0.0
    %680 = vmatprep.subr.mxu0 0.0
    %681 = vmatpush2.msra.mxu0 0.0
    %682 = vmatprep.mubr.f32.mxu0 0.0
    %683 = vmatmul.mubr.f32.gmra.mxu0 %v616
    %v684 = vpop.f32.mrf.mxu0
    %v685 = vadd.f32 0.0, %v684
    %v686 = vpop.f32.mrf.mxu0
    %687 = vdwg.mxu0
    %v689 = vsel %vm403, %v685, 0
    %691 = vmatprep.subr.mxu0 0.0
    %692 = vmatpush1.msra.mxu0 0.0
    %693 = vmatprep.subr.mxu0 0.0
    %694 = vmatpush1.msra.mxu0 0.0
    %695 = vmatprep.subr.mxu0 0.0
    %696 = vmatpush1.msra.mxu0 0.0
    %697 = vmatprep.subr.mxu0 0.0
    %698 = vmatpush1.msra.mxu0 0.0
    %699 = vmatprep.subr.mxu0 0.0
    %700 = vmatpush1.msra.mxu0 0.0
    %701 = vmatprep.subr.mxu0 0.0
    %702 = vmatpush1.msra.mxu0 0.0
    %703 = vmatprep.subr.mxu0 0.0
    %704 = vmatpush1.msra.mxu0 0.0
    %705 = vmatprep.subr.mxu0 0.0
    %706 = vmatpush1.msra.mxu0 0.0
    %707 = vmatprep.subr.mxu0 0.0
    %708 = vmatpush1.msra.mxu0 0.0
    %709 = vmatprep.subr.mxu0 0.0
    %710 = vmatpush1.msra.mxu0 0.0
    %711 = vmatprep.subr.mxu0 0.0
    %712 = vmatpush1.msra.mxu0 0.0
    %713 = vmatprep.subr.mxu0 0.0
    %714 = vmatpush1.msra.mxu0 0.0
    %715 = vmatprep.subr.mxu0 0.0
    %716 = vmatpush1.msra.mxu0 0.0
    %717 = vmatprep.subr.mxu0 0.0
    %718 = vmatpush1.msra.mxu0 0.0
    %719 = vmatprep.subr.mxu0 0.0
    %720 = vmatpush1.msra.mxu0 0.0
    %721 = vmatprep.subr.mxu0 0.0
    %722 = vmatpush1.msra.mxu0 %v473
    %723 = vmatprep.subr.mxu0 0.0
    %724 = vmatpush2.msra.mxu0 0.0
    %725 = vmatprep.subr.mxu0 0.0
    %726 = vmatpush2.msra.mxu0 0.0
    %727 = vmatprep.subr.mxu0 0.0
    %728 = vmatpush2.msra.mxu0 0.0
    %729 = vmatprep.subr.mxu0 0.0
    %730 = vmatpush2.msra.mxu0 0.0
    %731 = vmatprep.subr.mxu0 0.0
    %732 = vmatpush2.msra.mxu0 0.0
    %733 = vmatprep.subr.mxu0 0.0
    %734 = vmatpush2.msra.mxu0 0.0
    %735 = vmatprep.subr.mxu0 0.0
    %736 = vmatpush2.msra.mxu0 0.0
    %737 = vmatprep.subr.mxu0 0.0
    %738 = vmatpush2.msra.mxu0 0.0
    %739 = vmatprep.subr.mxu0 0.0
    %740 = vmatpush2.msra.mxu0 0.0
    %741 = vmatprep.subr.mxu0 0.0
    %742 = vmatpush2.msra.mxu0 0.0
    %743 = vmatprep.subr.mxu0 0.0
    %744 = vmatpush2.msra.mxu0 0.0
    %745 = vmatprep.subr.mxu0 0.0
    %746 = vmatpush2.msra.mxu0 0.0
    %747 = vmatprep.subr.mxu0 0.0
    %748 = vmatpush2.msra.mxu0 0.0
    %749 = vmatprep.subr.mxu0 0.0
    %750 = vmatpush2.msra.mxu0 0.0
    %751 = vmatprep.subr.mxu0 0.0
    %752 = vmatpush2.msra.mxu0 0.0
    %753 = vmatprep.subr.mxu0 0.0
    %754 = vmatpush2.msra.mxu0 0.0
    %755 = vmatprep.mubr.f32.mxu0 0.0
    %756 = vmatmul.mubr.f32.gmra.mxu0 %v689
    %v757 = vpop.f32.mrf.mxu0
    %v758 = vadd.f32 0.0, %v757
    %v759 = vpop.f32.mrf.mxu0
    %760 = vdwg.mxu0
    %v762 = vsel %vm403, %v758, 0
    %764 = vmatprep.subr.mxu0 0.0
    %765 = vmatpush1.msra.mxu0 0.0
    %766 = vmatprep.subr.mxu0 0.0
    %767 = vmatpush1.msra.mxu0 0.0
    %768 = vmatprep.subr.mxu0 0.0
    %769 = vmatpush1.msra.mxu0 0.0
    %770 = vmatprep.subr.mxu0 0.0
    %771 = vmatpush1.msra.mxu0 0.0
    %772 = vmatprep.subr.mxu0 0.0
    %773 = vmatpush1.msra.mxu0 0.0
    %774 = vmatprep.subr.mxu0 0.0
    %775 = vmatpush1.msra.mxu0 0.0
    %776 = vmatprep.subr.mxu0 0.0
    %777 = vmatpush1.msra.mxu0 0.0
    %778 = vmatprep.subr.mxu0 0.0
    %779 = vmatpush1.msra.mxu0 0.0
    %780 = vmatprep.subr.mxu0 0.0
    %781 = vmatpush1.msra.mxu0 0.0
    %782 = vmatprep.subr.mxu0 0.0
    %783 = vmatpush1.msra.mxu0 0.0
    %784 = vmatprep.subr.mxu0 0.0
    %785 = vmatpush1.msra.mxu0 0.0
    %786 = vmatprep.subr.mxu0 0.0
    %787 = vmatpush1.msra.mxu0 0.0
    %788 = vmatprep.subr.mxu0 0.0
    %789 = vmatpush1.msra.mxu0 0.0
    %790 = vmatprep.subr.mxu0 0.0
    %791 = vmatpush1.msra.mxu0 0.0
    %792 = vmatprep.subr.mxu0 0.0
    %793 = vmatpush1.msra.mxu0 0.0
    %794 = vmatprep.subr.mxu0 0.0
    %795 = vmatpush1.msra.mxu0 %v507
    %796 = vmatprep.subr.mxu0 0.0
    %797 = vmatpush2.msra.mxu0 0.0
    %798 = vmatprep.subr.mxu0 0.0
    %799 = vmatpush2.msra.mxu0 0.0
    %800 = vmatprep.subr.mxu0 0.0
    %801 = vmatpush2.msra.mxu0 0.0
    %802 = vmatprep.subr.mxu0 0.0
    %803 = vmatpush2.msra.mxu0 0.0
    %804 = vmatprep.subr.mxu0 0.0
    %805 = vmatpush2.msra.mxu0 0.0
    %806 = vmatprep.subr.mxu0 0.0
    %807 = vmatpush2.msra.mxu0 0.0
    %808 = vmatprep.subr.mxu0 0.0
    %809 = vmatpush2.msra.mxu0 0.0
    %810 = vmatprep.subr.mxu0 0.0
    %811 = vmatpush2.msra.mxu0 0.0
    %812 = vmatprep.subr.mxu0 0.0
    %813 = vmatpush2.msra.mxu0 0.0
    %814 = vmatprep.subr.mxu0 0.0
    %815 = vmatpush2.msra.mxu0 0.0
    %816 = vmatprep.subr.mxu0 0.0
    %817 = vmatpush2.msra.mxu0 0.0
    %818 = vmatprep.subr.mxu0 0.0
    %819 = vmatpush2.msra.mxu0 0.0
    %820 = vmatprep.subr.mxu0 0.0
    %821 = vmatpush2.msra.mxu0 0.0
    %822 = vmatprep.subr.mxu0 0.0
    %823 = vmatpush2.msra.mxu0 0.0
    %824 = vmatprep.subr.mxu0 0.0
    %825 = vmatpush2.msra.mxu0 0.0
    %826 = vmatprep.subr.mxu0 0.0
    %827 = vmatpush2.msra.mxu0 0.0
    %828 = vmatprep.mubr.f32.mxu0 0.0
    %829 = vmatmul.mubr.f32.gmra.mxu0 %v762
    %v830 = vpop.f32.mrf.mxu0
    %v831 = vadd.f32 0.0, %v830
    %v832 = vpop.f32.mrf.mxu0
    %833 = vdwg.mxu0
    %v835 = vsel %vm403, %v831, 0
    %837 = vmatprep.subr.mxu0 0.0
    %838 = vmatpush1.msra.mxu0 0.0
    %839 = vmatprep.subr.mxu0 0.0
    %840 = vmatpush1.msra.mxu0 0.0
    %841 = vmatprep.subr.mxu0 0.0
    %842 = vmatpush1.msra.mxu0 0.0
    %843 = vmatprep.subr.mxu0 0.0
    %844 = vmatpush1.msra.mxu0 0.0
    %845 = vmatprep.subr.mxu0 0.0
    %846 = vmatpush1.msra.mxu0 0.0
    %847 = vmatprep.subr.mxu0 0.0
    %848 = vmatpush1.msra.mxu0 0.0
    %849 = vmatprep.subr.mxu0 0.0
    %850 = vmatpush1.msra.mxu0 0.0
    %851 = vmatprep.subr.mxu0 0.0
    %852 = vmatpush1.msra.mxu0 0.0
    %853 = vmatprep.subr.mxu0 0.0
    %854 = vmatpush1.msra.mxu0 0.0
    %855 = vmatprep.subr.mxu0 0.0
    %856 = vmatpush1.msra.mxu0 0.0
    %857 = vmatprep.subr.mxu0 0.0
    %858 = vmatpush1.msra.mxu0 0.0
    %859 = vmatprep.subr.mxu0 0.0
    %860 = vmatpush1.msra.mxu0 0.0
    %861 = vmatprep.subr.mxu0 0.0
    %862 = vmatpush1.msra.mxu0 0.0
    %863 = vmatprep.subr.mxu0 0.0
    %864 = vmatpush1.msra.mxu0 0.0
    %865 = vmatprep.subr.mxu0 0.0
    %866 = vmatpush1.msra.mxu0 0.0
    %867 = vmatprep.subr.mxu0 0.0
    %868 = vmatpush1.msra.mxu0 %v537
    %869 = vmatprep.subr.mxu0 0.0
    %870 = vmatpush2.msra.mxu0 0.0
    %871 = vmatprep.subr.mxu0 0.0
    %872 = vmatpush2.msra.mxu0 0.0
    %873 = vmatprep.subr.mxu0 0.0
    %874 = vmatpush2.msra.mxu0 0.0
    %875 = vmatprep.subr.mxu0 0.0
    %876 = vmatpush2.msra.mxu0 0.0
    %877 = vmatprep.subr.mxu0 0.0
    %878 = vmatpush2.msra.mxu0 0.0
    %879 = vmatprep.subr.mxu0 0.0
    %880 = vmatpush2.msra.mxu0 0.0
    %881 = vmatprep.subr.mxu0 0.0
    %882 = vmatpush2.msra.mxu0 0.0
    %883 = vmatprep.subr.mxu0 0.0
    %884 = vmatpush2.msra.mxu0 0.0
    %885 = vmatprep.subr.mxu0 0.0
    %886 = vmatpush2.msra.mxu0 0.0
    %887 = vmatprep.subr.mxu0 0.0
    %888 = vmatpush2.msra.mxu0 0.0
    %889 = vmatprep.subr.mxu0 0.0
    %890 = vmatpush2.msra.mxu0 0.0
    %891 = vmatprep.subr.mxu0 0.0
    %892 = vmatpush2.msra.mxu0 0.0
    %893 = vmatprep.subr.mxu0 0.0
    %894 = vmatpush2.msra.mxu0 0.0
    %895 = vmatprep.subr.mxu0 0.0
    %896 = vmatpush2.msra.mxu0 0.0
    %897 = vmatprep.subr.mxu0 0.0
    %898 = vmatpush2.msra.mxu0 0.0
    %899 = vmatprep.subr.mxu0 0.0
    %900 = vmatpush2.msra.mxu0 0.0
    %901 = vmatprep.mubr.f32.mxu0 0.0
    %902 = vmatmul.mubr.f32.gmra.mxu0 %v835
    %v903 = vpop.f32.mrf.mxu0
    %v904 = vadd.f32 0.0, %v903
    %v905 = vpop.f32.mrf.mxu0
    %906 = vdwg.mxu0
    %v908 = vsel %vm403, %v904, 0
    %910 = vmatprep.subr.mxu0 0.0
    %911 = vmatpush1.msra.mxu0 0.0
    %912 = vmatprep.subr.mxu0 0.0
    %913 = vmatpush1.msra.mxu0 0.0
    %914 = vmatprep.subr.mxu0 0.0
    %915 = vmatpush1.msra.mxu0 0.0
    %916 = vmatprep.subr.mxu0 0.0
    %917 = vmatpush1.msra.mxu0 0.0
    %918 = vmatprep.subr.mxu0 0.0
    %919 = vmatpush1.msra.mxu0 0.0
    %920 = vmatprep.subr.mxu0 0.0
    %921 = vmatpush1.msra.mxu0 0.0
    %922 = vmatprep.subr.mxu0 0.0
    %923 = vmatpush1.msra.mxu0 0.0
    %924 = vmatprep.subr.mxu0 0.0
    %925 = vmatpush1.msra.mxu0 0.0
    %926 = vmatprep.subr.mxu0 0.0
    %927 = vmatpush1.msra.mxu0 0.0
    %928 = vmatprep.subr.mxu0 0.0
    %929 = vmatpush1.msra.mxu0 0.0
    %930 = vmatprep.subr.mxu0 0.0
    %931 = vmatpush1.msra.mxu0 0.0
    %932 = vmatprep.subr.mxu0 0.0
    %933 = vmatpush1.msra.mxu0 0.0
    %934 = vmatprep.subr.mxu0 0.0
    %935 = vmatpush1.msra.mxu0 0.0
    %936 = vmatprep.subr.mxu0 0.0
    %937 = vmatpush1.msra.mxu0 0.0
    %938 = vmatprep.subr.mxu0 0.0
    %939 = vmatpush1.msra.mxu0 0.0
    %940 = vmatprep.subr.mxu0 0.0
    %941 = vmatpush1.msra.mxu0 %v561
    %942 = vmatprep.subr.mxu0 0.0
    %943 = vmatpush2.msra.mxu0 0.0
    %944 = vmatprep.subr.mxu0 0.0
    %945 = vmatpush2.msra.mxu0 0.0
    %946 = vmatprep.subr.mxu0 0.0
    %947 = vmatpush2.msra.mxu0 0.0
    %948 = vmatprep.subr.mxu0 0.0
    %949 = vmatpush2.msra.mxu0 0.0
    %950 = vmatprep.subr.mxu0 0.0
    %951 = vmatpush2.msra.mxu0 0.0
    %952 = vmatprep.subr.mxu0 0.0
    %953 = vmatpush2.msra.mxu0 0.0
    %954 = vmatprep.subr.mxu0 0.0
    %955 = vmatpush2.msra.mxu0 0.0
    %956 = vmatprep.subr.mxu0 0.0
    %957 = vmatpush2.msra.mxu0 0.0
    %958 = vmatprep.subr.mxu0 0.0
    %959 = vmatpush2.msra.mxu0 0.0
    %960 = vmatprep.subr.mxu0 0.0
    %961 = vmatpush2.msra.mxu0 0.0
    %962 = vmatprep.subr.mxu0 0.0
    %963 = vmatpush2.msra.mxu0 0.0
    %964 = vmatprep.subr.mxu0 0.0
    %965 = vmatpush2.msra.mxu0 0.0
    %966 = vmatprep.subr.mxu0 0.0
    %967 = vmatpush2.msra.mxu0 0.0
    %968 = vmatprep.subr.mxu0 0.0
    %969 = vmatpush2.msra.mxu0 0.0
    %970 = vmatprep.subr.mxu0 0.0
    %971 = vmatpush2.msra.mxu0 0.0
    %972 = vmatprep.subr.mxu0 0.0
    %973 = vmatpush2.msra.mxu0 0.0
    %974 = vmatprep.mubr.f32.mxu0 0.0
    %975 = vmatmul.mubr.f32.gmra.mxu0 %v908
    %v976 = vpop.f32.mrf.mxu0
    %v977 = vadd.f32 0.0, %v976
    %v978 = vpop.f32.mrf.mxu0
    %979 = vdwg.mxu0
    %v981 = vsel %vm403, %v977, 0
    %983 = vmatprep.subr.mxu0 0.0
    %984 = vmatpush1.msra.mxu0 0.0
    %985 = vmatprep.subr.mxu0 0.0
    %986 = vmatpush1.msra.mxu0 0.0
    %987 = vmatprep.subr.mxu0 0.0
    %988 = vmatpush1.msra.mxu0 0.0
    %989 = vmatprep.subr.mxu0 0.0
    %990 = vmatpush1.msra.mxu0 0.0
    %991 = vmatprep.subr.mxu0 0.0
    %992 = vmatpush1.msra.mxu0 0.0
    %993 = vmatprep.subr.mxu0 0.0
    %994 = vmatpush1.msra.mxu0 0.0
    %995 = vmatprep.subr.mxu0 0.0
    %996 = vmatpush1.msra.mxu0 0.0
    %997 = vmatprep.subr.mxu0 0.0
    %998 = vmatpush1.msra.mxu0 0.0
    %999 = vmatprep.subr.mxu0 0.0
    %1000 = vmatpush1.msra.mxu0 0.0
    %1001 = vmatprep.subr.mxu0 0.0
    %1002 = vmatpush1.msra.mxu0 0.0
    %1003 = vmatprep.subr.mxu0 0.0
    %1004 = vmatpush1.msra.mxu0 0.0
    %1005 = vmatprep.subr.mxu0 0.0
    %1006 = vmatpush1.msra.mxu0 0.0
    %1007 = vmatprep.subr.mxu0 0.0
    %1008 = vmatpush1.msra.mxu0 0.0
    %1009 = vmatprep.subr.mxu0 0.0
    %1010 = vmatpush1.msra.mxu0 0.0
    %1011 = vmatprep.subr.mxu0 0.0
    %1012 = vmatpush1.msra.mxu0 0.0
    %1013 = vmatprep.subr.mxu0 0.0
    %1014 = vmatpush1.msra.mxu0 %v585
    %1015 = vmatprep.subr.mxu0 0.0
    %1016 = vmatpush2.msra.mxu0 0.0
    %1017 = vmatprep.subr.mxu0 0.0
    %1018 = vmatpush2.msra.mxu0 0.0
    %1019 = vmatprep.subr.mxu0 0.0
    %1020 = vmatpush2.msra.mxu0 0.0
    %1021 = vmatprep.subr.mxu0 0.0
    %1022 = vmatpush2.msra.mxu0 0.0
    %1023 = vmatprep.subr.mxu0 0.0
    %1024 = vmatpush2.msra.mxu0 0.0
    %1025 = vmatprep.subr.mxu0 0.0
    %1026 = vmatpush2.msra.mxu0 0.0
    %1027 = vmatprep.subr.mxu0 0.0
    %1028 = vmatpush2.msra.mxu0 0.0
    %1029 = vmatprep.subr.mxu0 0.0
    %1030 = vmatpush2.msra.mxu0 0.0
    %1031 = vmatprep.subr.mxu0 0.0
    %1032 = vmatpush2.msra.mxu0 0.0
    %1033 = vmatprep.subr.mxu0 0.0
    %1034 = vmatpush2.msra.mxu0 0.0
    %1035 = vmatprep.subr.mxu0 0.0
    %1036 = vmatpush2.msra.mxu0 0.0
    %1037 = vmatprep.subr.mxu0 0.0
    %1038 = vmatpush2.msra.mxu0 0.0
    %1039 = vmatprep.subr.mxu0 0.0
    %1040 = vmatpush2.msra.mxu0 0.0
    %1041 = vmatprep.subr.mxu0 0.0
    %1042 = vmatpush2.msra.mxu0 0.0
    %1043 = vmatprep.subr.mxu0 0.0
    %1044 = vmatpush2.msra.mxu0 0.0
    %1045 = vmatprep.subr.mxu0 0.0
    %1046 = vmatpush2.msra.mxu0 0.0
    %1047 = vmatprep.mubr.f32.mxu0 0.0
    %1048 = vmatmul.mubr.f32.gmra.mxu0 %v981
    %v1049 = vpop.f32.mrf.mxu0
    %v1050 = vadd.f32 0.0, %v1049
    %v1051 = vpop.f32.mrf.mxu0
    %1052 = vdwg.mxu0
    %v1054 = vsel %vm403, %v1050, 0
    %1056 = vmatprep.subr.mxu0 0.0
    %1057 = vmatpush1.msra.mxu0 0.0
    %1058 = vmatprep.subr.mxu0 0.0
    %1059 = vmatpush1.msra.mxu0 0.0
    %1060 = vmatprep.subr.mxu0 0.0
    %1061 = vmatpush1.msra.mxu0 0.0
    %1062 = vmatprep.subr.mxu0 0.0
    %1063 = vmatpush1.msra.mxu0 0.0
    %1064 = vmatprep.subr.mxu0 0.0
    %1065 = vmatpush1.msra.mxu0 0.0
    %1066 = vmatprep.subr.mxu0 0.0
    %1067 = vmatpush1.msra.mxu0 0.0
    %1068 = vmatprep.subr.mxu0 0.0
    %1069 = vmatpush1.msra.mxu0 0.0
    %1070 = vmatprep.subr.mxu0 0.0
    %1071 = vmatpush1.msra.mxu0 0.0
    %1072 = vmatprep.subr.mxu0 0.0
    %1073 = vmatpush1.msra.mxu0 0.0
    %1074 = vmatprep.subr.mxu0 0.0
    %1075 = vmatpush1.msra.mxu0 0.0
    %1076 = vmatprep.subr.mxu0 0.0
    %1077 = vmatpush1.msra.mxu0 0.0
    %1078 = vmatprep.subr.mxu0 0.0
    %1079 = vmatpush1.msra.mxu0 0.0
    %1080 = vmatprep.subr.mxu0 0.0
    %1081 = vmatpush1.msra.mxu0 0.0
    %1082 = vmatprep.subr.mxu0 0.0
    %1083 = vmatpush1.msra.mxu0 0.0
    %1084 = vmatprep.subr.mxu0 0.0
    %1085 = vmatpush1.msra.mxu0 0.0
    %1086 = vmatprep.subr.mxu0 0.0
    %1087 = vmatpush1.msra.mxu0 %v614
    %1088 = vmatprep.subr.mxu0 0.0
    %1089 = vmatpush2.msra.mxu0 0.0
    %1090 = vmatprep.subr.mxu0 0.0
    %1091 = vmatpush2.msra.mxu0 0.0
    %1092 = vmatprep.subr.mxu0 0.0
    %1093 = vmatpush2.msra.mxu0 0.0
    %1094 = vmatprep.subr.mxu0 0.0
    %1095 = vmatpush2.msra.mxu0 0.0
    %1096 = vmatprep.subr.mxu0 0.0
    %1097 = vmatpush2.msra.mxu0 0.0
    %1098 = vmatprep.subr.mxu0 0.0
    %1099 = vmatpush2.msra.mxu0 0.0
    %1100 = vmatprep.subr.mxu0 0.0
    %1101 = vmatpush2.msra.mxu0 0.0
    %1102 = vmatprep.subr.mxu0 0.0
    %1103 = vmatpush2.msra.mxu0 0.0
    %1104 = vmatprep.subr.mxu0 0.0
    %1105 = vmatpush2.msra.mxu0 0.0
    %1106 = vmatprep.subr.mxu0 0.0
    %1107 = vmatpush2.msra.mxu0 0.0
    %1108 = vmatprep.subr.mxu0 0.0
    %1109 = vmatpush2.msra.mxu0 0.0
    %1110 = vmatprep.subr.mxu0 0.0
    %1111 = vmatpush2.msra.mxu0 0.0
    %1112 = vmatprep.subr.mxu0 0.0
    %1113 = vmatpush2.msra.mxu0 0.0
    %1114 = vmatprep.subr.mxu0 0.0
    %1115 = vmatpush2.msra.mxu0 0.0
    %1116 = vmatprep.subr.mxu0 0.0
    %1117 = vmatpush2.msra.mxu0 0.0
    %1118 = vmatprep.subr.mxu0 0.0
    %1119 = vmatpush2.msra.mxu0 0.0
    %1120 = vmatprep.mubr.f32.mxu0 0.0
    %1121 = vmatmul.mubr.f32.gmra.mxu0 %v1054
    %v1122 = vpop.f32.mrf.mxu0
    %v1123 = vadd.f32 0.0, %v1122
    %v1124 = vpop.f32.mrf.mxu0
    %1125 = vdwg.mxu0
    %v1127 = vsel %vm403, %v614, 0
    %1129 = vmatprep.subr.mxu0 0.0
    %1130 = vmatpush1.msra.mxu0 0.0
    %1131 = vmatprep.subr.mxu0 0.0
    %1132 = vmatpush1.msra.mxu0 0.0
    %1133 = vmatprep.subr.mxu0 0.0
    %1134 = vmatpush1.msra.mxu0 0.0
    %1135 = vmatprep.subr.mxu0 0.0
    %1136 = vmatpush1.msra.mxu0 0.0
    %1137 = vmatprep.subr.mxu0 0.0
    %1138 = vmatpush1.msra.mxu0 0.0
    %1139 = vmatprep.subr.mxu0 0.0
    %1140 = vmatpush1.msra.mxu0 0.0
    %1141 = vmatprep.subr.mxu0 0.0
    %1142 = vmatpush1.msra.mxu0 0.0
    %1143 = vmatprep.subr.mxu0 0.0
    %1144 = vmatpush1.msra.mxu0 0.0
    %1145 = vmatprep.subr.mxu0 0.0
    %1146 = vmatpush1.msra.mxu0 0.0
    %1147 = vmatprep.subr.mxu0 0.0
    %1148 = vmatpush1.msra.mxu0 0.0
    %1149 = vmatprep.subr.mxu0 0.0
    %1150 = vmatpush1.msra.mxu0 0.0
    %1151 = vmatprep.subr.mxu0 0.0
    %1152 = vmatpush1.msra.mxu0 0.0
    %1153 = vmatprep.subr.mxu0 0.0
    %1154 = vmatpush1.msra.mxu0 0.0
    %1155 = vmatprep.subr.mxu0 0.0
    %1156 = vmatpush1.msra.mxu0 0.0
    %1157 = vmatprep.subr.mxu0 0.0
    %1158 = vmatpush1.msra.mxu0 0.0
    %1159 = vmatprep.subr.mxu0 0.0
    %1160 = vmatpush1.msra.mxu0 %v585
    %1161 = vmatprep.subr.mxu0 0.0
    %1162 = vmatpush2.msra.mxu0 0.0
    %1163 = vmatprep.subr.mxu0 0.0
    %1164 = vmatpush2.msra.mxu0 0.0
    %1165 = vmatprep.subr.mxu0 0.0
    %1166 = vmatpush2.msra.mxu0 0.0
    %1167 = vmatprep.subr.mxu0 0.0
    %1168 = vmatpush2.msra.mxu0 0.0
    %1169 = vmatprep.subr.mxu0 0.0
    %1170 = vmatpush2.msra.mxu0 0.0
    %1171 = vmatprep.subr.mxu0 0.0
    %1172 = vmatpush2.msra.mxu0 0.0
    %1173 = vmatprep.subr.mxu0 0.0
    %1174 = vmatpush2.msra.mxu0 0.0
    %1175 = vmatprep.subr.mxu0 0.0
    %1176 = vmatpush2.msra.mxu0 0.0
    %1177 = vmatprep.subr.mxu0 0.0
    %1178 = vmatpush2.msra.mxu0 0.0
    %1179 = vmatprep.subr.mxu0 0.0
    %1180 = vmatpush2.msra.mxu0 0.0
    %1181 = vmatprep.subr.mxu0 0.0
    %1182 = vmatpush2.msra.mxu0 0.0
    %1183 = vmatprep.subr.mxu0 0.0
    %1184 = vmatpush2.msra.mxu0 0.0
    %1185 = vmatprep.subr.mxu0 0.0
    %1186 = vmatpush2.msra.mxu0 0.0
    %1187 = vmatprep.subr.mxu0 0.0
    %1188 = vmatpush2.msra.mxu0 0.0
    %1189 = vmatprep.subr.mxu0 0.0
    %1190 = vmatpush2.msra.mxu0 0.0
    %1191 = vmatprep.subr.mxu0 0.0
    %1192 = vmatpush2.msra.mxu0 0.0
    %1193 = vmatprep.mubr.f32.mxu0 0.0
    %1194 = vmatmul.mubr.f32.gmra.mxu0 %v1127
    %v1195 = vpop.f32.mrf.mxu0
    %v1196 = vadd.f32 0.0, %v1195
    %v1197 = vpop.f32.mrf.mxu0
    %1198 = vdwg.mxu0
    %v1200 = vsel %vm403, %v1196, 0
    %1202 = vmatprep.subr.mxu0 0.0
    %1203 = vmatpush1.msra.mxu0 0.0
    %1204 = vmatprep.subr.mxu0 0.0
    %1205 = vmatpush1.msra.mxu0 0.0
    %1206 = vmatprep.subr.mxu0 0.0
    %1207 = vmatpush1.msra.mxu0 0.0
    %1208 = vmatprep.subr.mxu0 0.0
    %1209 = vmatpush1.msra.mxu0 0.0
    %1210 = vmatprep.subr.mxu0 0.0
    %1211 = vmatpush1.msra.mxu0 0.0
    %1212 = vmatprep.subr.mxu0 0.0
    %1213 = vmatpush1.msra.mxu0 0.0
    %1214 = vmatprep.subr.mxu0 0.0
    %1215 = vmatpush1.msra.mxu0 0.0
    %1216 = vmatprep.subr.mxu0 0.0
    %1217 = vmatpush1.msra.mxu0 0.0
    %1218 = vmatprep.subr.mxu0 0.0
    %1219 = vmatpush1.msra.mxu0 0.0
    %1220 = vmatprep.subr.mxu0 0.0
    %1221 = vmatpush1.msra.mxu0 0.0
    %1222 = vmatprep.subr.mxu0 0.0
    %1223 = vmatpush1.msra.mxu0 0.0
    %1224 = vmatprep.subr.mxu0 0.0
    %1225 = vmatpush1.msra.mxu0 0.0
    %1226 = vmatprep.subr.mxu0 0.0
    %1227 = vmatpush1.msra.mxu0 0.0
    %1228 = vmatprep.subr.mxu0 0.0
    %1229 = vmatpush1.msra.mxu0 0.0
    %1230 = vmatprep.subr.mxu0 0.0
    %1231 = vmatpush1.msra.mxu0 0.0
    %1232 = vmatprep.subr.mxu0 0.0
    %1233 = vmatpush1.msra.mxu0 %v561
    %1234 = vmatprep.subr.mxu0 0.0
    %1235 = vmatpush2.msra.mxu0 0.0
    %1236 = vmatprep.subr.mxu0 0.0
    %1237 = vmatpush2.msra.mxu0 0.0
    %1238 = vmatprep.subr.mxu0 0.0
    %1239 = vmatpush2.msra.mxu0 0.0
    %1240 = vmatprep.subr.mxu0 0.0
    %1241 = vmatpush2.msra.mxu0 0.0
    %1242 = vmatprep.subr.mxu0 0.0
    %1243 = vmatpush2.msra.mxu0 0.0
    %1244 = vmatprep.subr.mxu0 0.0
    %1245 = vmatpush2.msra.mxu0 0.0
    %1246 = vmatprep.subr.mxu0 0.0
    %1247 = vmatpush2.msra.mxu0 0.0
    %1248 = vmatprep.subr.mxu0 0.0
    %1249 = vmatpush2.msra.mxu0 0.0
    %1250 = vmatprep.subr.mxu0 0.0
    %1251 = vmatpush2.msra.mxu0 0.0
    %1252 = vmatprep.subr.mxu0 0.0
    %1253 = vmatpush2.msra.mxu0 0.0
    %1254 = vmatprep.subr.mxu0 0.0
    %1255 = vmatpush2.msra.mxu0 0.0
    %1256 = vmatprep.subr.mxu0 0.0
    %1257 = vmatpush2.msra.mxu0 0.0
    %1258 = vmatprep.subr.mxu0 0.0
    %1259 = vmatpush2.msra.mxu0 0.0
    %1260 = vmatprep.subr.mxu0 0.0
    %1261 = vmatpush2.msra.mxu0 0.0
    %1262 = vmatprep.subr.mxu0 0.0
    %1263 = vmatpush2.msra.mxu0 0.0
    %1264 = vmatprep.subr.mxu0 0.0
    %1265 = vmatpush2.msra.mxu0 0.0
    %1266 = vmatprep.mubr.f32.mxu0 0.0
    %1267 = vmatmul.mubr.f32.gmra.mxu0 %v1200
    %v1268 = vpop.f32.mrf.mxu0
    %v1269 = vadd.f32 0.0, %v1268
    %v1270 = vpop.f32.mrf.mxu0
    %1271 = vdwg.mxu0
    %v1273 = vsel %vm403, %v1269, 0
    %1275 = vmatprep.subr.mxu0 0.0
    %1276 = vmatpush1.msra.mxu0 0.0
    %1277 = vmatprep.subr.mxu0 0.0
    %1278 = vmatpush1.msra.mxu0 0.0
    %1279 = vmatprep.subr.mxu0 0.0
    %1280 = vmatpush1.msra.mxu0 0.0
    %1281 = vmatprep.subr.mxu0 0.0
    %1282 = vmatpush1.msra.mxu0 0.0
    %1283 = vmatprep.subr.mxu0 0.0
    %1284 = vmatpush1.msra.mxu0 0.0
    %1285 = vmatprep.subr.mxu0 0.0
    %1286 = vmatpush1.msra.mxu0 0.0
    %1287 = vmatprep.subr.mxu0 0.0
    %1288 = vmatpush1.msra.mxu0 0.0
    %1289 = vmatprep.subr.mxu0 0.0
    %1290 = vmatpush1.msra.mxu0 0.0
    %1291 = vmatprep.subr.mxu0 0.0
    %1292 = vmatpush1.msra.mxu0 0.0
    %1293 = vmatprep.subr.mxu0 0.0
    %1294 = vmatpush1.msra.mxu0 0.0
    %1295 = vmatprep.subr.mxu0 0.0
    %1296 = vmatpush1.msra.mxu0 0.0
    %1297 = vmatprep.subr.mxu0 0.0
    %1298 = vmatpush1.msra.mxu0 0.0
    %1299 = vmatprep.subr.mxu0 0.0
    %1300 = vmatpush1.msra.mxu0 0.0
    %1301 = vmatprep.subr.mxu0 0.0
    %1302 = vmatpush1.msra.mxu0 0.0
    %1303 = vmatprep.subr.mxu0 0.0
    %1304 = vmatpush1.msra.mxu0 0.0
    %1305 = vmatprep.subr.mxu0 0.0
    %1306 = vmatpush1.msra.mxu0 %v537
    %1307 = vmatprep.subr.mxu0 0.0
    %1308 = vmatpush2.msra.mxu0 0.0
    %1309 = vmatprep.subr.mxu0 0.0
    %1310 = vmatpush2.msra.mxu0 0.0
    %1311 = vmatprep.subr.mxu0 0.0
    %1312 = vmatpush2.msra.mxu0 0.0
    %1313 = vmatprep.subr.mxu0 0.0
    %1314 = vmatpush2.msra.mxu0 0.0
    %1315 = vmatprep.subr.mxu0 0.0
    %1316 = vmatpush2.msra.mxu0 0.0
    %1317 = vmatprep.subr.mxu0 0.0
    %1318 = vmatpush2.msra.mxu0 0.0
    %1319 = vmatprep.subr.mxu0 0.0
    %1320 = vmatpush2.msra.mxu0 0.0
    %1321 = vmatprep.subr.mxu0 0.0
    %1322 = vmatpush2.msra.mxu0 0.0
    %1323 = vmatprep.subr.mxu0 0.0
    %1324 = vmatpush2.msra.mxu0 0.0
    %1325 = vmatprep.subr.mxu0 0.0
    %1326 = vmatpush2.msra.mxu0 0.0
    %1327 = vmatprep.subr.mxu0 0.0
    %1328 = vmatpush2.msra.mxu0 0.0
    %1329 = vmatprep.subr.mxu0 0.0
    %1330 = vmatpush2.msra.mxu0 0.0
    %1331 = vmatprep.subr.mxu0 0.0
    %1332 = vmatpush2.msra.mxu0 0.0
    %1333 = vmatprep.subr.mxu0 0.0
    %1334 = vmatpush2.msra.mxu0 0.0
    %1335 = vmatprep.subr.mxu0 0.0
    %1336 = vmatpush2.msra.mxu0 0.0
    %1337 = vmatprep.subr.mxu0 0.0
    %1338 = vmatpush2.msra.mxu0 0.0
    %1339 = vmatprep.mubr.f32.mxu0 0.0
    %1340 = vmatmul.mubr.f32.gmra.mxu0 %v1273
    %v1341 = vpop.f32.mrf.mxu0
    %v1342 = vadd.f32 0.0, %v1341
    %v1343 = vpop.f32.mrf.mxu0
    %1344 = vdwg.mxu0
    %v1346 = vsel %vm403, %v1342, 0
    %1348 = vmatprep.subr.mxu0 0.0
    %1349 = vmatpush1.msra.mxu0 0.0
    %1350 = vmatprep.subr.mxu0 0.0
    %1351 = vmatpush1.msra.mxu0 0.0
    %1352 = vmatprep.subr.mxu0 0.0
    %1353 = vmatpush1.msra.mxu0 0.0
    %1354 = vmatprep.subr.mxu0 0.0
    %1355 = vmatpush1.msra.mxu0 0.0
    %1356 = vmatprep.subr.mxu0 0.0
    %1357 = vmatpush1.msra.mxu0 0.0
    %1358 = vmatprep.subr.mxu0 0.0
    %1359 = vmatpush1.msra.mxu0 0.0
    %1360 = vmatprep.subr.mxu0 0.0
    %1361 = vmatpush1.msra.mxu0 0.0
    %1362 = vmatprep.subr.mxu0 0.0
    %1363 = vmatpush1.msra.mxu0 0.0
    %1364 = vmatprep.subr.mxu0 0.0
    %1365 = vmatpush1.msra.mxu0 0.0
    %1366 = vmatprep.subr.mxu0 0.0
    %1367 = vmatpush1.msra.mxu0 0.0
    %1368 = vmatprep.subr.mxu0 0.0
    %1369 = vmatpush1.msra.mxu0 0.0
    %1370 = vmatprep.subr.mxu0 0.0
    %1371 = vmatpush1.msra.mxu0 0.0
    %1372 = vmatprep.subr.mxu0 0.0
    %1373 = vmatpush1.msra.mxu0 0.0
    %1374 = vmatprep.subr.mxu0 0.0
    %1375 = vmatpush1.msra.mxu0 0.0
    %1376 = vmatprep.subr.mxu0 0.0
    %1377 = vmatpush1.msra.mxu0 0.0
    %1378 = vmatprep.subr.mxu0 0.0
    %1379 = vmatpush1.msra.mxu0 %v507
    %1380 = vmatprep.subr.mxu0 0.0
    %1381 = vmatpush2.msra.mxu0 0.0
    %1382 = vmatprep.subr.mxu0 0.0
    %1383 = vmatpush2.msra.mxu0 0.0
    %1384 = vmatprep.subr.mxu0 0.0
    %1385 = vmatpush2.msra.mxu0 0.0
    %1386 = vmatprep.subr.mxu0 0.0
    %1387 = vmatpush2.msra.mxu0 0.0
    %1388 = vmatprep.subr.mxu0 0.0
    %1389 = vmatpush2.msra.mxu0 0.0
    %1390 = vmatprep.subr.mxu0 0.0
    %1391 = vmatpush2.msra.mxu0 0.0
    %1392 = vmatprep.subr.mxu0 0.0
    %1393 = vmatpush2.msra.mxu0 0.0
    %1394 = vmatprep.subr.mxu0 0.0
    %1395 = vmatpush2.msra.mxu0 0.0
    %1396 = vmatprep.subr.mxu0 0.0
    %1397 = vmatpush2.msra.mxu0 0.0
    %1398 = vmatprep.subr.mxu0 0.0
    %1399 = vmatpush2.msra.mxu0 0.0
    %1400 = vmatprep.subr.mxu0 0.0
    %1401 = vmatpush2.msra.mxu0 0.0
    %1402 = vmatprep.subr.mxu0 0.0
    %1403 = vmatpush2.msra.mxu0 0.0
    %1404 = vmatprep.subr.mxu0 0.0
    %1405 = vmatpush2.msra.mxu0 0.0
    %1406 = vmatprep.subr.mxu0 0.0
    %1407 = vmatpush2.msra.mxu0 0.0
    %1408 = vmatprep.subr.mxu0 0.0
    %1409 = vmatpush2.msra.mxu0 0.0
    %1410 = vmatprep.subr.mxu0 0.0
    %1411 = vmatpush2.msra.mxu0 0.0
    %1412 = vmatprep.mubr.f32.mxu0 0.0
    %1413 = vmatmul.mubr.f32.gmra.mxu0 %v1346
    %v1414 = vpop.f32.mrf.mxu0
    %v1415 = vadd.f32 0.0, %v1414
    %v1416 = vpop.f32.mrf.mxu0
    %1417 = vdwg.mxu0
    %v1419 = vsel %vm403, %v1415, 0
    %1421 = vmatprep.subr.mxu0 0.0
    %1422 = vmatpush1.msra.mxu0 0.0
    %1423 = vmatprep.subr.mxu0 0.0
    %1424 = vmatpush1.msra.mxu0 0.0
    %1425 = vmatprep.subr.mxu0 0.0
    %1426 = vmatpush1.msra.mxu0 0.0
    %1427 = vmatprep.subr.mxu0 0.0
    %1428 = vmatpush1.msra.mxu0 0.0
    %1429 = vmatprep.subr.mxu0 0.0
    %1430 = vmatpush1.msra.mxu0 0.0
    %1431 = vmatprep.subr.mxu0 0.0
    %1432 = vmatpush1.msra.mxu0 0.0
    %1433 = vmatprep.subr.mxu0 0.0
    %1434 = vmatpush1.msra.mxu0 0.0
    %1435 = vmatprep.subr.mxu0 0.0
    %1436 = vmatpush1.msra.mxu0 0.0
    %1437 = vmatprep.subr.mxu0 0.0
    %1438 = vmatpush1.msra.mxu0 0.0
    %1439 = vmatprep.subr.mxu0 0.0
    %1440 = vmatpush1.msra.mxu0 0.0
    %1441 = vmatprep.subr.mxu0 0.0
    %1442 = vmatpush1.msra.mxu0 0.0
    %1443 = vmatprep.subr.mxu0 0.0
    %1444 = vmatpush1.msra.mxu0 0.0
    %1445 = vmatprep.subr.mxu0 0.0
    %1446 = vmatpush1.msra.mxu0 0.0
    %1447 = vmatprep.subr.mxu0 0.0
    %1448 = vmatpush1.msra.mxu0 0.0
    %1449 = vmatprep.subr.mxu0 0.0
    %1450 = vmatpush1.msra.mxu0 0.0
    %1451 = vmatprep.subr.mxu0 0.0
    %1452 = vmatpush1.msra.mxu0 %v473
    %1453 = vmatprep.subr.mxu0 0.0
    %1454 = vmatpush2.msra.mxu0 0.0
    %1455 = vmatprep.subr.mxu0 0.0
    %1456 = vmatpush2.msra.mxu0 0.0
    %1457 = vmatprep.subr.mxu0 0.0
    %1458 = vmatpush2.msra.mxu0 0.0
    %1459 = vmatprep.subr.mxu0 0.0
    %1460 = vmatpush2.msra.mxu0 0.0
    %1461 = vmatprep.subr.mxu0 0.0
    %1462 = vmatpush2.msra.mxu0 0.0
    %1463 = vmatprep.subr.mxu0 0.0
    %1464 = vmatpush2.msra.mxu0 0.0
    %1465 = vmatprep.subr.mxu0 0.0
    %1466 = vmatpush2.msra.mxu0 0.0
    %1467 = vmatprep.subr.mxu0 0.0
    %1468 = vmatpush2.msra.mxu0 0.0
    %1469 = vmatprep.subr.mxu0 0.0
    %1470 = vmatpush2.msra.mxu0 0.0
    %1471 = vmatprep.subr.mxu0 0.0
    %1472 = vmatpush2.msra.mxu0 0.0
    %1473 = vmatprep.subr.mxu0 0.0
    %1474 = vmatpush2.msra.mxu0 0.0
    %1475 = vmatprep.subr.mxu0 0.0
    %1476 = vmatpush2.msra.mxu0 0.0
    %1477 = vmatprep.subr.mxu0 0.0
    %1478 = vmatpush2.msra.mxu0 0.0
    %1479 = vmatprep.subr.mxu0 0.0
    %1480 = vmatpush2.msra.mxu0 0.0
    %1481 = vmatprep.subr.mxu0 0.0
    %1482 = vmatpush2.msra.mxu0 0.0
    %1483 = vmatprep.subr.mxu0 0.0
    %1484 = vmatpush2.msra.mxu0 0.0
    %1485 = vmatprep.mubr.f32.mxu0 0.0
    %1486 = vmatmul.mubr.f32.gmra.mxu0 %v1419
    %v1487 = vpop.f32.mrf.mxu0
    %v1488 = vadd.f32 0.0, %v1487
    %v1489 = vpop.f32.mrf.mxu0
    %1490 = vdwg.mxu0
    %v1492 = vsel %vm403, %v1488, 0
    %1494 = vmatprep.subr.mxu0 0.0
    %1495 = vmatpush1.msra.mxu0 0.0
    %1496 = vmatprep.subr.mxu0 0.0
    %1497 = vmatpush1.msra.mxu0 0.0
    %1498 = vmatprep.subr.mxu0 0.0
    %1499 = vmatpush1.msra.mxu0 0.0
    %1500 = vmatprep.subr.mxu0 0.0
    %1501 = vmatpush1.msra.mxu0 0.0
    %1502 = vmatprep.subr.mxu0 0.0
    %1503 = vmatpush1.msra.mxu0 0.0
    %1504 = vmatprep.subr.mxu0 0.0
    %1505 = vmatpush1.msra.mxu0 0.0
    %1506 = vmatprep.subr.mxu0 0.0
    %1507 = vmatpush1.msra.mxu0 0.0
    %1508 = vmatprep.subr.mxu0 0.0
    %1509 = vmatpush1.msra.mxu0 0.0
    %1510 = vmatprep.subr.mxu0 0.0
    %1511 = vmatpush1.msra.mxu0 0.0
    %1512 = vmatprep.subr.mxu0 0.0
    %1513 = vmatpush1.msra.mxu0 0.0
    %1514 = vmatprep.subr.mxu0 0.0
    %1515 = vmatpush1.msra.mxu0 0.0
    %1516 = vmatprep.subr.mxu0 0.0
    %1517 = vmatpush1.msra.mxu0 0.0
    %1518 = vmatprep.subr.mxu0 0.0
    %1519 = vmatpush1.msra.mxu0 0.0
    %1520 = vmatprep.subr.mxu0 0.0
    %1521 = vmatpush1.msra.mxu0 0.0
    %1522 = vmatprep.subr.mxu0 0.0
    %1523 = vmatpush1.msra.mxu0 0.0
    %1524 = vmatprep.subr.mxu0 0.0
    %1525 = vmatpush1.msra.mxu0 %v446
    %1526 = vmatprep.subr.mxu0 0.0
    %1527 = vmatpush2.msra.mxu0 0.0
    %1528 = vmatprep.subr.mxu0 0.0
    %1529 = vmatpush2.msra.mxu0 0.0
    %1530 = vmatprep.subr.mxu0 0.0
    %1531 = vmatpush2.msra.mxu0 0.0
    %1532 = vmatprep.subr.mxu0 0.0
    %1533 = vmatpush2.msra.mxu0 0.0
    %1534 = vmatprep.subr.mxu0 0.0
    %1535 = vmatpush2.msra.mxu0 0.0
    %1536 = vmatprep.subr.mxu0 0.0
    %1537 = vmatpush2.msra.mxu0 0.0
    %1538 = vmatprep.subr.mxu0 0.0
    %1539 = vmatpush2.msra.mxu0 0.0
    %1540 = vmatprep.subr.mxu0 0.0
    %1541 = vmatpush2.msra.mxu0 0.0
    %1542 = vmatprep.subr.mxu0 0.0
    %1543 = vmatpush2.msra.mxu0 0.0
    %1544 = vmatprep.subr.mxu0 0.0
    %1545 = vmatpush2.msra.mxu0 0.0
    %1546 = vmatprep.subr.mxu0 0.0
    %1547 = vmatpush2.msra.mxu0 0.0
    %1548 = vmatprep.subr.mxu0 0.0
    %1549 = vmatpush2.msra.mxu0 0.0
    %1550 = vmatprep.subr.mxu0 0.0
    %1551 = vmatpush2.msra.mxu0 0.0
    %1552 = vmatprep.subr.mxu0 0.0
    %1553 = vmatpush2.msra.mxu0 0.0
    %1554 = vmatprep.subr.mxu0 0.0
    %1555 = vmatpush2.msra.mxu0 0.0
    %1556 = vmatprep.subr.mxu0 0.0
    %1557 = vmatpush2.msra.mxu0 0.0
    %1558 = vmatprep.mubr.f32.mxu0 0.0
    %1559 = vmatmul.mubr.f32.gmra.mxu0 %v1492
    %v1560 = vpop.f32.mrf.mxu0
    %v1561 = vadd.f32 0.0, %v1560
    %v1562 = vpop.f32.mrf.mxu0
    %1563 = vdwg.mxu0
    %v1565 = vsel %vm403, %v1561, 0
    %1567 = vmatprep.subr.mxu0 0.0
    %1568 = vmatpush1.msra.mxu0 0.0
    %1569 = vmatprep.subr.mxu0 0.0
    %1570 = vmatpush1.msra.mxu0 0.0
    %1571 = vmatprep.subr.mxu0 0.0
    %1572 = vmatpush1.msra.mxu0 0.0
    %1573 = vmatprep.subr.mxu0 0.0
    %1574 = vmatpush1.msra.mxu0 0.0
    %1575 = vmatprep.subr.mxu0 0.0
    %1576 = vmatpush1.msra.mxu0 0.0
    %1577 = vmatprep.subr.mxu0 0.0
    %1578 = vmatpush1.msra.mxu0 0.0
    %1579 = vmatprep.subr.mxu0 0.0
    %1580 = vmatpush1.msra.mxu0 0.0
    %1581 = vmatprep.subr.mxu0 0.0
    %1582 = vmatpush1.msra.mxu0 0.0
    %1583 = vmatprep.subr.mxu0 0.0
    %1584 = vmatpush1.msra.mxu0 0.0
    %1585 = vmatprep.subr.mxu0 0.0
    %1586 = vmatpush1.msra.mxu0 0.0
    %1587 = vmatprep.subr.mxu0 0.0
    %1588 = vmatpush1.msra.mxu0 0.0
    %1589 = vmatprep.subr.mxu0 0.0
    %1590 = vmatpush1.msra.mxu0 0.0
    %1591 = vmatprep.subr.mxu0 0.0
    %1592 = vmatpush1.msra.mxu0 0.0
    %1593 = vmatprep.subr.mxu0 0.0
    %1594 = vmatpush1.msra.mxu0 0.0
    %1595 = vmatprep.subr.mxu0 0.0
    %1596 = vmatpush1.msra.mxu0 0.0
    %1597 = vmatprep.subr.mxu0 0.0
    %1598 = vmatpush1.msra.mxu0 %v419
    %1599 = vmatprep.subr.mxu0 0.0
    %1600 = vmatpush2.msra.mxu0 0.0
    %1601 = vmatprep.subr.mxu0 0.0
    %1602 = vmatpush2.msra.mxu0 0.0
    %1603 = vmatprep.subr.mxu0 0.0
    %1604 = vmatpush2.msra.mxu0 0.0
    %1605 = vmatprep.subr.mxu0 0.0
    %1606 = vmatpush2.msra.mxu0 0.0
    %1607 = vmatprep.subr.mxu0 0.0
    %1608 = vmatpush2.msra.mxu0 0.0
    %1609 = vmatprep.subr.mxu0 0.0
    %1610 = vmatpush2.msra.mxu0 0.0
    %1611 = vmatprep.subr.mxu0 0.0
    %1612 = vmatpush2.msra.mxu0 0.0
    %1613 = vmatprep.subr.mxu0 0.0
    %1614 = vmatpush2.msra.mxu0 0.0
    %1615 = vmatprep.subr.mxu0 0.0
    %1616 = vmatpush2.msra.mxu0 0.0
    %1617 = vmatprep.subr.mxu0 0.0
    %1618 = vmatpush2.msra.mxu0 0.0
    %1619 = vmatprep.subr.mxu0 0.0
    %1620 = vmatpush2.msra.mxu0 0.0
    %1621 = vmatprep.subr.mxu0 0.0
    %1622 = vmatpush2.msra.mxu0 0.0
    %1623 = vmatprep.subr.mxu0 0.0
    %1624 = vmatpush2.msra.mxu0 0.0
    %1625 = vmatprep.subr.mxu0 0.0
    %1626 = vmatpush2.msra.mxu0 0.0
    %1627 = vmatprep.subr.mxu0 0.0
    %1628 = vmatpush2.msra.mxu0 0.0
    %1629 = vmatprep.subr.mxu0 0.0
    %1630 = vmatpush2.msra.mxu0 0.0
    %1631 = vmatprep.mubr.f32.mxu0 0.0
    %1632 = vmatmul.mubr.f32.gmra.mxu0 %v1565
    %v1633 = vpop.f32.mrf.mxu0
    %v1634 = vadd.f32 0.0, %v1633
    %v1635 = vpop.f32.mrf.mxu0
    %1636 = vdwg.mxu0
    %1638 = vset.pattern.permute.xlu0 0
    %1639 = vperm.xlu0 %1638, %v374
    %v1640 = vpop.permute.xlu0 %1639
    %v1642 = vlaneseq
    %v1643 = vshrl.u32 %v1642, 7
    %v1644 = vsub.s32 0, %v1643
    %v1645 = vrot.slane %v258, %v1644
    %v1646 = vmul.f32 %v1640, %v1645
    %1647 = vset.pattern.permute.xlu0 1
    %1648 = vperm.xlu0 %1647, %v374
    %v1649 = vpop.permute.xlu0 %1648
    %v1651 = vmul.f32 %v1649, %v1645
    %1653 = vrot.lane.b32.xlu0 %v1651, 120
    %v1654 = vpop.permute.xlu0 %1653
    %v1656 = vadd.f32 %v1646, %v1654
    %1657 = vset.pattern.permute.xlu0 2
    %1658 = vperm.xlu0 %1657, %v374
    %v1659 = vpop.permute.xlu0 %1658
    %v1661 = vmul.f32 %v1659, %v1645
    %1663 = vrot.lane.b32.xlu0 %v1661, 112
    %v1664 = vpop.permute.xlu0 %1663
    %v1666 = vadd.f32 %v1656, %v1664
    %1667 = vset.pattern.permute.xlu0 3
    %1668 = vperm.xlu0 %1667, %v374
    %v1669 = vpop.permute.xlu0 %1668
    %v1671 = vmul.f32 %v1669, %v1645
    %1673 = vrot.lane.b32.xlu0 %v1671, 104
    %v1674 = vpop.permute.xlu0 %1673
    %v1676 = vadd.f32 %v1666, %v1674
    %1677 = vset.pattern.permute.xlu0 4
    %1678 = vperm.xlu0 %1677, %v374
    %v1679 = vpop.permute.xlu0 %1678
    %v1681 = vmul.f32 %v1679, %v1645
    %1683 = vrot.lane.b32.xlu0 %v1681, 96
    %v1684 = vpop.permute.xlu0 %1683
    %v1686 = vadd.f32 %v1676, %v1684
    %1687 = vset.pattern.permute.xlu0 5
    %1688 = vperm.xlu0 %1687, %v374
    %v1689 = vpop.permute.xlu0 %1688
    %v1691 = vmul.f32 %v1689, %v1645
    %1693 = vrot.lane.b32.xlu0 %v1691, 88
    %v1694 = vpop.permute.xlu0 %1693
    %v1696 = vadd.f32 %v1686, %v1694
    %1697 = vset.pattern.permute.xlu0 6
    %1698 = vperm.xlu0 %1697, %v374
    %v1699 = vpop.permute.xlu0 %1698
    %v1701 = vmul.f32 %v1699, %v1645
    %1703 = vrot.lane.b32.xlu0 %v1701, 80
    %v1704 = vpop.permute.xlu0 %1703
    %v1706 = vadd.f32 %v1696, %v1704
    %1707 = vset.pattern.permute.xlu0 7
    %1708 = vperm.xlu0 %1707, %v374
    %v1709 = vpop.permute.xlu0 %1708
    %v1711 = vmul.f32 %v1709, %v1645
    %1713 = vrot.lane.b32.xlu0 %v1711, 72
    %v1714 = vpop.permute.xlu0 %1713
    %v1716 = vadd.f32 %v1706, %v1714
    %v1717 = vlaneseq
    %v1718 = vshrl.u32 %v1717, 7
    %v1719 = vsub.s32 0, %v1718
    %v1720 = vrot.slane %v260, %v1719
    %v1721 = vmul.f32 %v1640, %v1720
    %v1722 = vmul.f32 %v1649, %v1720
    %1724 = vrot.lane.b32.xlu0 %v1722, 120
    %v1725 = vpop.permute.xlu0 %1724
    %v1727 = vadd.f32 %v1721, %v1725
    %v1728 = vmul.f32 %v1659, %v1720
    %1730 = vrot.lane.b32.xlu0 %v1728, 112
    %v1731 = vpop.permute.xlu0 %1730
    %v1733 = vadd.f32 %v1727, %v1731
    %v1734 = vmul.f32 %v1669, %v1720
    %1736 = vrot.lane.b32.xlu0 %v1734, 104
    %v1737 = vpop.permute.xlu0 %1736
    %v1739 = vadd.f32 %v1733, %v1737
    %v1740 = vmul.f32 %v1679, %v1720
    %1742 = vrot.lane.b32.xlu0 %v1740, 96
    %v1743 = vpop.permute.xlu0 %1742
    %v1745 = vadd.f32 %v1739, %v1743
    %v1746 = vmul.f32 %v1689, %v1720
    %1748 = vrot.lane.b32.xlu0 %v1746, 88
    %v1749 = vpop.permute.xlu0 %1748
    %v1751 = vadd.f32 %v1745, %v1749
    %v1752 = vmul.f32 %v1699, %v1720
    %1754 = vrot.lane.b32.xlu0 %v1752, 80
    %v1755 = vpop.permute.xlu0 %1754
    %v1757 = vadd.f32 %v1751, %v1755
    %v1758 = vmul.f32 %v1709, %v1720
    %1760 = vrot.lane.b32.xlu0 %v1758, 72
    %v1761 = vpop.permute.xlu0 %1760
    %v1763 = vadd.f32 %v1757, %v1761
    %v1764 = vtanh.pop %v329
    %1766 = vrot.lane.b32.xlu0 %v1716, 112
    %v1767 = vpop.permute.xlu0 %1766
    %v1769 = vmul.f32 %v377, %v1767
    %v1770 = vlaneseq
    %v1771 = vshrl.u32 %v1770, 7
    %v1772 = vsub.s32 0, %v1771
    %v1773 = vrot.slane %v1764, %v1772
    %1775 = vrot.lane.b32.xlu0 %v1773, 96
    %v1776 = vpop.permute.xlu0 %1775
    %v1778 = vmul.f32 %v374, %v1776
    %v1779 = vadd.f32 %v1769, %v1778
    %1781 = vrot.lane.b32.xlu0 %v1763, 112
    %v1782 = vpop.permute.xlu0 %1781
    %v1784 = vmul.f32 %v377, %v1782
    %1785 = vrot.lane.b32.xlu0 %v1773, 112
    %v1786 = vpop.permute.xlu0 %1785
    %v1788 = vmul.f32 %v374, %v1786
    %v1789 = vadd.f32 %v1784, %v1788
    %v1791 = vsel %vm403, %v366, 0
    %1793 = vmatprep.subr.mxu0 0.0
    %1794 = vmatpush1.msra.mxu0 0.0
    %1795 = vmatprep.subr.mxu0 0.0
    %1796 = vmatpush1.msra.mxu0 0.0
    %1797 = vmatprep.subr.mxu0 0.0
    %1798 = vmatpush1.msra.mxu0 0.0
    %1799 = vmatprep.subr.mxu0 0.0
    %1800 = vmatpush1.msra.mxu0 0.0
    %1801 = vmatprep.subr.mxu0 0.0
    %1802 = vmatpush1.msra.mxu0 0.0
    %1803 = vmatprep.subr.mxu0 0.0
    %1804 = vmatpush1.msra.mxu0 0.0
    %1805 = vmatprep.subr.mxu0 0.0
    %1806 = vmatpush1.msra.mxu0 0.0
    %1807 = vmatprep.subr.mxu0 0.0
    %1808 = vmatpush1.msra.mxu0 0.0
    %1809 = vmatprep.subr.mxu0 0.0
    %1810 = vmatpush1.msra.mxu0 0.0
    %1811 = vmatprep.subr.mxu0 0.0
    %1812 = vmatpush1.msra.mxu0 0.0
    %1813 = vmatprep.subr.mxu0 0.0
    %1814 = vmatpush1.msra.mxu0 0.0
    %1815 = vmatprep.subr.mxu0 0.0
    %1816 = vmatpush1.msra.mxu0 0.0
    %1817 = vmatprep.subr.mxu0 0.0
    %1818 = vmatpush1.msra.mxu0 0.0
    %1819 = vmatprep.subr.mxu0 0.0
    %1820 = vmatpush1.msra.mxu0 0.0
    %1821 = vmatprep.subr.mxu0 0.0
    %1822 = vmatpush1.msra.mxu0 0.0
    %1823 = vmatprep.subr.mxu0 0.0
    %1824 = vmatpush1.msra.mxu0 %v1123
    %1825 = vmatprep.subr.mxu0 0.0
    %1826 = vmatpush2.msra.mxu0 0.0
    %1827 = vmatprep.subr.mxu0 0.0
    %1828 = vmatpush2.msra.mxu0 0.0
    %1829 = vmatprep.subr.mxu0 0.0
    %1830 = vmatpush2.msra.mxu0 0.0
    %1831 = vmatprep.subr.mxu0 0.0
    %1832 = vmatpush2.msra.mxu0 0.0
    %1833 = vmatprep.subr.mxu0 0.0
    %1834 = vmatpush2.msra.mxu0 0.0
    %1835 = vmatprep.subr.mxu0 0.0
    %1836 = vmatpush2.msra.mxu0 0.0
    %1837 = vmatprep.subr.mxu0 0.0
    %1838 = vmatpush2.msra.mxu0 0.0
    %1839 = vmatprep.subr.mxu0 0.0
    %1840 = vmatpush2.msra.mxu0 0.0
    %1841 = vmatprep.subr.mxu0 0.0
    %1842 = vmatpush2.msra.mxu0 0.0
    %1843 = vmatprep.subr.mxu0 0.0
    %1844 = vmatpush2.msra.mxu0 0.0
    %1845 = vmatprep.subr.mxu0 0.0
    %1846 = vmatpush2.msra.mxu0 0.0
    %1847 = vmatprep.subr.mxu0 0.0
    %1848 = vmatpush2.msra.mxu0 0.0
    %1849 = vmatprep.subr.mxu0 0.0
    %1850 = vmatpush2.msra.mxu0 0.0
    %1851 = vmatprep.subr.mxu0 0.0
    %1852 = vmatpush2.msra.mxu0 0.0
    %1853 = vmatprep.subr.mxu0 0.0
    %1854 = vmatpush2.msra.mxu0 0.0
    %1855 = vmatprep.subr.mxu0 0.0
    %1856 = vmatpush2.msra.mxu0 0.0
    %1857 = vmatprep.mubr.f32.mxu0 0.0
    %1858 = vmatmul.mubr.f32.gmra.mxu0 %v1791
    %v1859 = vpop.f32.mrf.mxu0
    %v1860 = vadd.f32 0.0, %v1859
    %v1861 = vpop.f32.mrf.mxu0
    %1862 = vdwg.mxu0
    %1864 = vrot.lane.b32.xlu0 %v331, 80
    %v1865 = vpop.permute.xlu0 %1864
    %v1868 = vsel %vm403, %v1860, 0
    %1870 = vmatprep.subr.mxu0 0.0
    %1871 = vmatpush1.msra.mxu0 0.0
    %1872 = vmatprep.subr.mxu0 0.0
    %1873 = vmatpush1.msra.mxu0 0.0
    %1874 = vmatprep.subr.mxu0 0.0
    %1875 = vmatpush1.msra.mxu0 0.0
    %1876 = vmatprep.subr.mxu0 0.0
    %1877 = vmatpush1.msra.mxu0 0.0
    %1878 = vmatprep.subr.mxu0 0.0
    %1879 = vmatpush1.msra.mxu0 0.0
    %1880 = vmatprep.subr.mxu0 0.0
    %1881 = vmatpush1.msra.mxu0 0.0
    %1882 = vmatprep.subr.mxu0 0.0
    %1883 = vmatpush1.msra.mxu0 0.0
    %1884 = vmatprep.subr.mxu0 0.0
    %1885 = vmatpush1.msra.mxu0 0.0
    %1886 = vmatprep.subr.mxu0 0.0
    %1887 = vmatpush1.msra.mxu0 0.0
    %1888 = vmatprep.subr.mxu0 0.0
    %1889 = vmatpush1.msra.mxu0 0.0
    %1890 = vmatprep.subr.mxu0 0.0
    %1891 = vmatpush1.msra.mxu0 0.0
    %1892 = vmatprep.subr.mxu0 0.0
    %1893 = vmatpush1.msra.mxu0 0.0
    %1894 = vmatprep.subr.mxu0 0.0
    %1895 = vmatpush1.msra.mxu0 0.0
    %1896 = vmatprep.subr.mxu0 0.0
    %1897 = vmatpush1.msra.mxu0 0.0
    %1898 = vmatprep.subr.mxu0 0.0
    %1899 = vmatpush1.msra.mxu0 0.0
    %1900 = vmatprep.subr.mxu0 0.0
    %1901 = vmatpush1.msra.mxu0 %v1779
    %1902 = vmatprep.subr.mxu0 0.0
    %1903 = vmatpush2.msra.mxu0 0.0
    %1904 = vmatprep.subr.mxu0 0.0
    %1905 = vmatpush2.msra.mxu0 0.0
    %1906 = vmatprep.subr.mxu0 0.0
    %1907 = vmatpush2.msra.mxu0 0.0
    %1908 = vmatprep.subr.mxu0 0.0
    %1909 = vmatpush2.msra.mxu0 0.0
    %1910 = vmatprep.subr.mxu0 0.0
    %1911 = vmatpush2.msra.mxu0 0.0
    %1912 = vmatprep.subr.mxu0 0.0
    %1913 = vmatpush2.msra.mxu0 0.0
    %1914 = vmatprep.subr.mxu0 0.0
    %1915 = vmatpush2.msra.mxu0 0.0
    %1916 = vmatprep.subr.mxu0 0.0
    %1917 = vmatpush2.msra.mxu0 0.0
    %1918 = vmatprep.subr.mxu0 0.0
    %1919 = vmatpush2.msra.mxu0 0.0
    %1920 = vmatprep.subr.mxu0 0.0
    %1921 = vmatpush2.msra.mxu0 0.0
    %1922 = vmatprep.subr.mxu0 0.0
    %1923 = vmatpush2.msra.mxu0 0.0
    %1924 = vmatprep.subr.mxu0 0.0
    %1925 = vmatpush2.msra.mxu0 0.0
    %1926 = vmatprep.subr.mxu0 0.0
    %1927 = vmatpush2.msra.mxu0 0.0
    %1928 = vmatprep.subr.mxu0 0.0
    %1929 = vmatpush2.msra.mxu0 0.0
    %1930 = vmatprep.subr.mxu0 0.0
    %1931 = vmatpush2.msra.mxu0 0.0
    %1932 = vmatprep.subr.mxu0 0.0
    %1933 = vmatpush2.msra.mxu0 0.0
    %1934 = vmatprep.mubr.f32.mxu0 0.0
    %1935 = vmatmul.mubr.f32.gmra.mxu0 %v1868
    %v1936 = vpop.f32.mrf.mxu0
    %v1937 = vadd.f32 %v1865, %v1936
    %v1938 = vpop.f32.mrf.mxu0
    %1939 = vdwg.mxu0
    %v1940 = vtanh.pop %v1937
    %v1942 = vsel %vm403, %v1940, 0
    %1944 = vmatprep.subr.mxu0 0.0
    %1945 = vmatpush1.msra.mxu0 0.0
    %1946 = vmatprep.subr.mxu0 0.0
    %1947 = vmatpush1.msra.mxu0 0.0
    %1948 = vmatprep.subr.mxu0 0.0
    %1949 = vmatpush1.msra.mxu0 0.0
    %1950 = vmatprep.subr.mxu0 0.0
    %1951 = vmatpush1.msra.mxu0 0.0
    %1952 = vmatprep.subr.mxu0 0.0
    %1953 = vmatpush1.msra.mxu0 0.0
    %1954 = vmatprep.subr.mxu0 0.0
    %1955 = vmatpush1.msra.mxu0 0.0
    %1956 = vmatprep.subr.mxu0 0.0
    %1957 = vmatpush1.msra.mxu0 0.0
    %1958 = vmatprep.subr.mxu0 0.0
    %1959 = vmatpush1.msra.mxu0 0.0
    %1960 = vmatprep.subr.mxu0 0.0
    %1961 = vmatpush1.msra.mxu0 0.0
    %1962 = vmatprep.subr.mxu0 0.0
    %1963 = vmatpush1.msra.mxu0 0.0
    %1964 = vmatprep.subr.mxu0 0.0
    %1965 = vmatpush1.msra.mxu0 0.0
    %1966 = vmatprep.subr.mxu0 0.0
    %1967 = vmatpush1.msra.mxu0 0.0
    %1968 = vmatprep.subr.mxu0 0.0
    %1969 = vmatpush1.msra.mxu0 0.0
    %1970 = vmatprep.subr.mxu0 0.0
    %1971 = vmatpush1.msra.mxu0 0.0
    %1972 = vmatprep.subr.mxu0 0.0
    %1973 = vmatpush1.msra.mxu0 0.0
    %1974 = vmatprep.subr.mxu0 0.0
    %1975 = vmatpush1.msra.mxu0 %v1789
    %1976 = vmatprep.subr.mxu0 0.0
    %1977 = vmatpush2.msra.mxu0 0.0
    %1978 = vmatprep.subr.mxu0 0.0
    %1979 = vmatpush2.msra.mxu0 0.0
    %1980 = vmatprep.subr.mxu0 0.0
    %1981 = vmatpush2.msra.mxu0 0.0
    %1982 = vmatprep.subr.mxu0 0.0
    %1983 = vmatpush2.msra.mxu0 0.0
    %1984 = vmatprep.subr.mxu0 0.0
    %1985 = vmatpush2.msra.mxu0 0.0
    %1986 = vmatprep.subr.mxu0 0.0
    %1987 = vmatpush2.msra.mxu0 0.0
    %1988 = vmatprep.subr.mxu0 0.0
    %1989 = vmatpush2.msra.mxu0 0.0
    %1990 = vmatprep.subr.mxu0 0.0
    %1991 = vmatpush2.msra.mxu0 0.0
    %1992 = vmatprep.subr.mxu0 0.0
    %1993 = vmatpush2.msra.mxu0 0.0
    %1994 = vmatprep.subr.mxu0 0.0
    %1995 = vmatpush2.msra.mxu0 0.0
    %1996 = vmatprep.subr.mxu0 0.0
    %1997 = vmatpush2.msra.mxu0 0.0
    %1998 = vmatprep.subr.mxu0 0.0
    %1999 = vmatpush2.msra.mxu0 0.0
    %2000 = vmatprep.subr.mxu0 0.0
    %2001 = vmatpush2.msra.mxu0 0.0
    %2002 = vmatprep.subr.mxu0 0.0
    %2003 = vmatpush2.msra.mxu0 0.0
    %2004 = vmatprep.subr.mxu0 0.0
    %2005 = vmatpush2.msra.mxu0 0.0
    %2006 = vmatprep.subr.mxu0 0.0
    %2007 = vmatpush2.msra.mxu0 0.0
    %2008 = vmatprep.mubr.f32.mxu0 0.0
    %2009 = vmatmul.mubr.f32.gmra.mxu0 %v1942
    %v2010 = vpop.f32.mrf.mxu0
    %v2011 = vadd.f32 0.0, %v2010
    %v2012 = vpop.f32.mrf.mxu0
    %2013 = vdwg.mxu0
    %v2015 = vsel %vm403, %v2011, 0
    %2017 = vmatprep.subr.mxu0 0.0
    %2018 = vmatpush1.msra.mxu0 0.0
    %2019 = vmatprep.subr.mxu0 0.0
    %2020 = vmatpush1.msra.mxu0 0.0
    %2021 = vmatprep.subr.mxu0 0.0
    %2022 = vmatpush1.msra.mxu0 0.0
    %2023 = vmatprep.subr.mxu0 0.0
    %2024 = vmatpush1.msra.mxu0 0.0
    %2025 = vmatprep.subr.mxu0 0.0
    %2026 = vmatpush1.msra.mxu0 0.0
    %2027 = vmatprep.subr.mxu0 0.0
    %2028 = vmatpush1.msra.mxu0 0.0
    %2029 = vmatprep.subr.mxu0 0.0
    %2030 = vmatpush1.msra.mxu0 0.0
    %2031 = vmatprep.subr.mxu0 0.0
    %2032 = vmatpush1.msra.mxu0 0.0
    %2033 = vmatprep.subr.mxu0 0.0
    %2034 = vmatpush1.msra.mxu0 0.0
    %2035 = vmatprep.subr.mxu0 0.0
    %2036 = vmatpush1.msra.mxu0 0.0
    %2037 = vmatprep.subr.mxu0 0.0
    %2038 = vmatpush1.msra.mxu0 0.0
    %2039 = vmatprep.subr.mxu0 0.0
    %2040 = vmatpush1.msra.mxu0 0.0
    %2041 = vmatprep.subr.mxu0 0.0
    %2042 = vmatpush1.msra.mxu0 0.0
    %2043 = vmatprep.subr.mxu0 0.0
    %2044 = vmatpush1.msra.mxu0 0.0
    %2045 = vmatprep.subr.mxu0 0.0
    %2046 = vmatpush1.msra.mxu0 0.0
    %2047 = vmatprep.subr.mxu0 0.0
    %2048 = vmatpush1.msra.mxu0 %v1634
    %2049 = vmatprep.subr.mxu0 0.0
    %2050 = vmatpush2.msra.mxu0 0.0
    %2051 = vmatprep.subr.mxu0 0.0
    %2052 = vmatpush2.msra.mxu0 0.0
    %2053 = vmatprep.subr.mxu0 0.0
    %2054 = vmatpush2.msra.mxu0 0.0
    %2055 = vmatprep.subr.mxu0 0.0
    %2056 = vmatpush2.msra.mxu0 0.0
    %2057 = vmatprep.subr.mxu0 0.0
    %2058 = vmatpush2.msra.mxu0 0.0
    %2059 = vmatprep.subr.mxu0 0.0
    %2060 = vmatpush2.msra.mxu0 0.0
    %2061 = vmatprep.subr.mxu0 0.0
    %2062 = vmatpush2.msra.mxu0 0.0
    %2063 = vmatprep.subr.mxu0 0.0
    %2064 = vmatpush2.msra.mxu0 0.0
    %2065 = vmatprep.subr.mxu0 0.0
    %2066 = vmatpush2.msra.mxu0 0.0
    %2067 = vmatprep.subr.mxu0 0.0
    %2068 = vmatpush2.msra.mxu0 0.0
    %2069 = vmatprep.subr.mxu0 0.0
    %2070 = vmatpush2.msra.mxu0 0.0
    %2071 = vmatprep.subr.mxu0 0.0
    %2072 = vmatpush2.msra.mxu0 0.0
    %2073 = vmatprep.subr.mxu0 0.0
    %2074 = vmatpush2.msra.mxu0 0.0
    %2075 = vmatprep.subr.mxu0 0.0
    %2076 = vmatpush2.msra.mxu0 0.0
    %2077 = vmatprep.subr.mxu0 0.0
    %2078 = vmatpush2.msra.mxu0 0.0
    %2079 = vmatprep.subr.mxu0 0.0
    %2080 = vmatpush2.msra.mxu0 0.0
    %2081 = vmatprep.mubr.f32.mxu0 0.0
    %2082 = vmatmul.mubr.f32.gmra.mxu0 %v2015
    %v2083 = vpop.f32.mrf.mxu0
    %v2084 = vadd.f32 %v366, %v2083
    %v2085 = vpop.f32.mrf.mxu0
    %2086 = vdwg.mxu0
    %v2087 = vmul.f32 %v1940, %v1940
    %v2088 = vsub.f32 1.0, %v2087
    %2090 = vrot.lane.b32.xlu0 %v1764, 112
    %v2091 = vpop.permute.xlu0 %2090
    %v2093 = vmul.f32 %v1764, %v2091
    %2095 = vrot.lane.b32.xlu0 %v2093, 112
    %v2096 = vpop.permute.xlu0 %2095
    %v2098 = vmul.f32 %v2088, %v2096
    %v2099 = vadd.f32 %v2098, 1.0
    %v2100 = vlog2.pop %v2099
    %v2101 = vmul.f32 %v2100, 0.6931472
    %v2102 = vsel %vm389, %v2101, 0.0
    %2103 = vadd.xlane.f32.xlu0 %v2102
    %v2104 = vpop.xlane.xlu0 %2103
    %v2105 = vadd.f32 %v2104, 0.0
    %2106 = vrot.lane.b32.xlu0 %v384, 64
    %v2107 = vpop.permute.xlu0 %2106
    %v2109 = vsel %vm389, %v2107, 0.0
    %2110 = vadd.xlane.f32.xlu0 %v2109
    %v2111 = vpop.xlane.xlu0 %2110
    %v2112 = vadd.f32 %v2111, 1e-12
    %2113 = vrot.lane.b32.xlu0 %v397, 64
    %v2114 = vpop.permute.xlu0 %2113
    %v2116 = vmul.f32 %v374, %v2114
    %v2117 = vsel %vm403, %v2116, 0.0
    %2118 = vadd.xlane.f32.xlu0 %v2117
    %v2119 = vpop.xlane.xlu0 %2118
    %v2120 = vrcp.pop %v2112
    %v2121 = vmul.f32 2.0, %v2120
    %v2122 = vmul.f32 %v2119, %v397
    %v2123 = vlaneseq
    %v2124 = vshrl.u32 %v2123, 7
    %v2125 = vsub.s32 0, %v2124
    %v2126 = vrot.slane %v2121, %v2125
    %v2127 = vmul.f32 %v2126, %v2122
    %2129 = vrot.lane.b32.xlu0 %v2127, 64
    %v2130 = vpop.permute.xlu0 %2129
    %v2132 = vsub.f32 %v374, %v2130
    %2133 = vrot.lane.b32.xlu0 %v384, 32
    %v2134 = vpop.permute.xlu0 %2133
    %v2136 = vsel %vm389, %v2134, 0.0
    %2137 = vadd.xlane.f32.xlu0 %v2136
    %v2138 = vpop.xlane.xlu0 %2137
    %v2139 = vadd.f32 %v2138, 1e-12
    %2140 = vrot.lane.b32.xlu0 %v397, 32
    %v2141 = vpop.permute.xlu0 %2140
    %v2143 = vmul.f32 %v374, %v2141
    %v2144 = vsel %vm403, %v2143, 0.0
    %2145 = vadd.xlane.f32.xlu0 %v2144
    %v2146 = vpop.xlane.xlu0 %2145
    %v2147 = vrcp.pop %v2139
    %v2148 = vmul.f32 2.0, %v2147
    %v2149 = vmul.f32 %v2146, %v397
    %v2150 = vlaneseq
    %v2151 = vshrl.u32 %v2150, 7
    %v2152 = vsub.s32 0, %v2151
    %v2153 = vrot.slane %v2148, %v2152
    %v2154 = vmul.f32 %v2153, %v2149
    %2156 = vrot.lane.b32.xlu0 %v2154, 32
    %v2157 = vpop.permute.xlu0 %2156
    %v2159 = vsub.f32 %v374, %v2157
    %v2160 = vsel %vm389, %v474, 0.0
    %2161 = vadd.xlane.f32.xlu0 %v2160
    %v2162 = vpop.xlane.xlu0 %2161
    %v2163 = vadd.f32 %v2162, 1e-12
    %v2164 = vmul.f32 %v374, %v486
    %v2165 = vsel %vm403, %v2164, 0.0
    %2166 = vadd.xlane.f32.xlu0 %v2165
    %v2167 = vpop.xlane.xlu0 %2166
    %v2168 = vrcp.pop %v2163
    %v2169 = vmul.f32 2.0, %v2168
    %v2170 = vmul.f32 %v2167, %v486
    %v2171 = vlaneseq
    %v2172 = vshrl.u32 %v2171, 7
    %v2173 = vsub.s32 0, %v2172
    %v2174 = vrot.slane %v2169, %v2173
    %v2175 = vmul.f32 %v2174, %v2170
    %v2176 = vsub.f32 %v374, %v2175
    %2177 = vrot.lane.b32.xlu0 %v474, 96
    %v2178 = vpop.permute.xlu0 %2177
    %v2180 = vsel %vm389, %v2178, 0.0
    %2181 = vadd.xlane.f32.xlu0 %v2180
    %v2182 = vpop.xlane.xlu0 %2181
    %v2183 = vadd.f32 %v2182, 1e-12
    %2184 = vrot.lane.b32.xlu0 %v486, 96
    %v2185 = vpop.permute.xlu0 %2184
    %v2187 = vmul.f32 %v374, %v2185
    %v2188 = vsel %vm403, %v2187, 0.0
    %2189 = vadd.xlane.f32.xlu0 %v2188
    %v2190 = vpop.xlane.xlu0 %2189
    %v2191 = vrcp.pop %v2183
    %v2192 = vmul.f32 2.0, %v2191
    %v2193 = vmul.f32 %v2190, %v486
    %v2194 = vlaneseq
    %v2195 = vshrl.u32 %v2194, 7
    %v2196 = vsub.s32 0, %v2195
    %v2197 = vrot.slane %v2192, %v2196
    %v2198 = vmul.f32 %v2197, %v2193
    %2200 = vrot.lane.b32.xlu0 %v2198, 96
    %v2201 = vpop.permute.xlu0 %2200
    %v2203 = vsub.f32 %v374, %v2201
    %v2204 = vsel %vm508, %v2107, 0.0
    %2205 = vadd.xlane.f32.xlu0 %v2204
    %v2206 = vpop.xlane.xlu0 %2205
    %v2207 = vadd.f32 %v2206, 1e-12
    %2208 = vrot.lane.b32.xlu0 %v516, 64
    %v2209 = vpop.permute.xlu0 %2208
    %v2211 = vmul.f32 %v374, %v2209
    %v2212 = vsel %vm403, %v2211, 0.0
    %2213 = vadd.xlane.f32.xlu0 %v2212
    %v2214 = vpop.xlane.xlu0 %2213
    %v2215 = vrcp.pop %v2207
    %v2216 = vmul.f32 2.0, %v2215
    %v2217 = vmul.f32 %v2214, %v516
    %v2218 = vlaneseq
    %v2219 = vshrl.u32 %v2218, 7
    %v2220 = vsub.s32 1, %v2219
    %v2221 = vrot.slane %v2216, %v2220
    %v2222 = vmul.f32 %v2221, %v2217
    %2224 = vrot.lane.b32.xlu0 %v2222, 64
    %v2225 = vpop.permute.xlu0 %2224
    %v2227 = vsub.f32 %v374, %v2225
    %v2228 = vsel %vm508, %v2134, 0.0
    %2229 = vadd.xlane.f32.xlu0 %v2228
    %v2230 = vpop.xlane.xlu0 %2229
    %v2231 = vadd.f32 %v2230, 1e-12
    %2232 = vrot.lane.b32.xlu0 %v516, 32
    %v2233 = vpop.permute.xlu0 %2232
    %v2235 = vmul.f32 %v374, %v2233
    %v2236 = vsel %vm403, %v2235, 0.0
    %2237 = vadd.xlane.f32.xlu0 %v2236
    %v2238 = vpop.xlane.xlu0 %2237
    %v2239 = vrcp.pop %v2231
    %v2240 = vmul.f32 2.0, %v2239
    %v2241 = vmul.f32 %v2238, %v516
    %v2242 = vlaneseq
    %v2243 = vshrl.u32 %v2242, 7
    %v2244 = vsub.s32 1, %v2243
    %v2245 = vrot.slane %v2240, %v2244
    %v2246 = vmul.f32 %v2245, %v2241
    %2248 = vrot.lane.b32.xlu0 %v2246, 32
    %v2249 = vpop.permute.xlu0 %2248
    %v2251 = vsub.f32 %v374, %v2249
    %v2252 = vsel %vm508, %v474, 0.0
    %2253 = vadd.xlane.f32.xlu0 %v2252
    %v2254 = vpop.xlane.xlu0 %2253
    %v2255 = vadd.f32 %v2254, 1e-12
    %v2256 = vmul.f32 %v374, %v593
    %v2257 = vsel %vm403, %v2256, 0.0
    %2258 = vadd.xlane.f32.xlu0 %v2257
    %v2259 = vpop.xlane.xlu0 %2258
    %v2260 = vrcp.pop %v2255
    %v2261 = vmul.f32 2.0, %v2260
    %v2262 = vmul.f32 %v2259, %v593
    %v2263 = vlaneseq
    %v2264 = vshrl.u32 %v2263, 7
    %v2265 = vsub.s32 1, %v2264
    %v2266 = vrot.slane %v2261, %v2265
    %v2267 = vmul.f32 %v2266, %v2262
    %v2268 = vsub.f32 %v374, %v2267
    %v2269 = vsel %vm508, %v2178, 0.0
    %2270 = vadd.xlane.f32.xlu0 %v2269
    %v2271 = vpop.xlane.xlu0 %2270
    %v2272 = vadd.f32 %v2271, 1e-12
    %2273 = vrot.lane.b32.xlu0 %v593, 96
    %v2274 = vpop.permute.xlu0 %2273
    %v2276 = vmul.f32 %v374, %v2274
    %v2277 = vsel %vm403, %v2276, 0.0
    %2278 = vadd.xlane.f32.xlu0 %v2277
    %v2279 = vpop.xlane.xlu0 %2278
    %v2280 = vrcp.pop %v2272
    %v2281 = vmul.f32 2.0, %v2280
    %v2282 = vmul.f32 %v2279, %v593
    %v2283 = vlaneseq
    %v2284 = vshrl.u32 %v2283, 7
    %v2285 = vsub.s32 1, %v2284
    %v2286 = vrot.slane %v2281, %v2285
    %v2287 = vmul.f32 %v2286, %v2282
    %2289 = vrot.lane.b32.xlu0 %v2287, 96
    %v2290 = vpop.permute.xlu0 %2289
    %v2292 = vsub.f32 %v374, %v2290
    %v2294 = vsel %vm403, %v2132, 0
    %2296 = vmatprep.subr.mxu0 0.0
    %2297 = vmatpush1.msra.mxu0 0.0
    %2298 = vmatprep.subr.mxu0 0.0
    %2299 = vmatpush1.msra.mxu0 0.0
    %2300 = vmatprep.subr.mxu0 0.0
    %2301 = vmatpush1.msra.mxu0 0.0
    %2302 = vmatprep.subr.mxu0 0.0
    %2303 = vmatpush1.msra.mxu0 0.0
    %2304 = vmatprep.subr.mxu0 0.0
    %2305 = vmatpush1.msra.mxu0 0.0
    %2306 = vmatprep.subr.mxu0 0.0
    %2307 = vmatpush1.msra.mxu0 0.0
    %2308 = vmatprep.subr.mxu0 0.0
    %2309 = vmatpush1.msra.mxu0 0.0
    %2310 = vmatprep.subr.mxu0 0.0
    %2311 = vmatpush1.msra.mxu0 0.0
    %2312 = vmatprep.subr.mxu0 0.0
    %2313 = vmatpush1.msra.mxu0 0.0
    %2314 = vmatprep.subr.mxu0 0.0
    %2315 = vmatpush1.msra.mxu0 0.0
    %2316 = vmatprep.subr.mxu0 0.0
    %2317 = vmatpush1.msra.mxu0 0.0
    %2318 = vmatprep.subr.mxu0 0.0
    %2319 = vmatpush1.msra.mxu0 0.0
    %2320 = vmatprep.subr.mxu0 0.0
    %2321 = vmatpush1.msra.mxu0 0.0
    %2322 = vmatprep.subr.mxu0 0.0
    %2323 = vmatpush1.msra.mxu0 0.0
    %2324 = vmatprep.subr.mxu0 0.0
    %2325 = vmatpush1.msra.mxu0 0.0
    %2326 = vmatprep.subr.mxu0 0.0
    %2327 = vmatpush1.msra.mxu0 %v2159
    %2328 = vmatprep.subr.mxu0 0.0
    %2329 = vmatpush2.msra.mxu0 0.0
    %2330 = vmatprep.subr.mxu0 0.0
    %2331 = vmatpush2.msra.mxu0 0.0
    %2332 = vmatprep.subr.mxu0 0.0
    %2333 = vmatpush2.msra.mxu0 0.0
    %2334 = vmatprep.subr.mxu0 0.0
    %2335 = vmatpush2.msra.mxu0 0.0
    %2336 = vmatprep.subr.mxu0 0.0
    %2337 = vmatpush2.msra.mxu0 0.0
    %2338 = vmatprep.subr.mxu0 0.0
    %2339 = vmatpush2.msra.mxu0 0.0
    %2340 = vmatprep.subr.mxu0 0.0
    %2341 = vmatpush2.msra.mxu0 0.0
    %2342 = vmatprep.subr.mxu0 0.0
    %2343 = vmatpush2.msra.mxu0 0.0
    %2344 = vmatprep.subr.mxu0 0.0
    %2345 = vmatpush2.msra.mxu0 0.0
    %2346 = vmatprep.subr.mxu0 0.0
    %2347 = vmatpush2.msra.mxu0 0.0
    %2348 = vmatprep.subr.mxu0 0.0
    %2349 = vmatpush2.msra.mxu0 0.0
    %2350 = vmatprep.subr.mxu0 0.0
    %2351 = vmatpush2.msra.mxu0 0.0
    %2352 = vmatprep.subr.mxu0 0.0
    %2353 = vmatpush2.msra.mxu0 0.0
    %2354 = vmatprep.subr.mxu0 0.0
    %2355 = vmatpush2.msra.mxu0 0.0
    %2356 = vmatprep.subr.mxu0 0.0
    %2357 = vmatpush2.msra.mxu0 0.0
    %2358 = vmatprep.subr.mxu0 0.0
    %2359 = vmatpush2.msra.mxu0 0.0
    %2360 = vmatprep.mubr.f32.mxu0 0.0
    %2361 = vmatmul.mubr.f32.gmra.mxu0 %v2294
    %v2362 = vpop.f32.mrf.mxu0
    %v2363 = vadd.f32 0.0, %v2362
    %v2364 = vpop.f32.mrf.mxu0
    %2365 = vdwg.mxu0
    %v2367 = vsel %vm403, %v2363, 0
    %2369 = vmatprep.subr.mxu0 0.0
    %2370 = vmatpush1.msra.mxu0 0.0
    %2371 = vmatprep.subr.mxu0 0.0
    %2372 = vmatpush1.msra.mxu0 0.0
    %2373 = vmatprep.subr.mxu0 0.0
    %2374 = vmatpush1.msra.mxu0 0.0
    %2375 = vmatprep.subr.mxu0 0.0
    %2376 = vmatpush1.msra.mxu0 0.0
    %2377 = vmatprep.subr.mxu0 0.0
    %2378 = vmatpush1.msra.mxu0 0.0
    %2379 = vmatprep.subr.mxu0 0.0
    %2380 = vmatpush1.msra.mxu0 0.0
    %2381 = vmatprep.subr.mxu0 0.0
    %2382 = vmatpush1.msra.mxu0 0.0
    %2383 = vmatprep.subr.mxu0 0.0
    %2384 = vmatpush1.msra.mxu0 0.0
    %2385 = vmatprep.subr.mxu0 0.0
    %2386 = vmatpush1.msra.mxu0 0.0
    %2387 = vmatprep.subr.mxu0 0.0
    %2388 = vmatpush1.msra.mxu0 0.0
    %2389 = vmatprep.subr.mxu0 0.0
    %2390 = vmatpush1.msra.mxu0 0.0
    %2391 = vmatprep.subr.mxu0 0.0
    %2392 = vmatpush1.msra.mxu0 0.0
    %2393 = vmatprep.subr.mxu0 0.0
    %2394 = vmatpush1.msra.mxu0 0.0
    %2395 = vmatprep.subr.mxu0 0.0
    %2396 = vmatpush1.msra.mxu0 0.0
    %2397 = vmatprep.subr.mxu0 0.0
    %2398 = vmatpush1.msra.mxu0 0.0
    %2399 = vmatprep.subr.mxu0 0.0
    %2400 = vmatpush1.msra.mxu0 %v2176
    %2401 = vmatprep.subr.mxu0 0.0
    %2402 = vmatpush2.msra.mxu0 0.0
    %2403 = vmatprep.subr.mxu0 0.0
    %2404 = vmatpush2.msra.mxu0 0.0
    %2405 = vmatprep.subr.mxu0 0.0
    %2406 = vmatpush2.msra.mxu0 0.0
    %2407 = vmatprep.subr.mxu0 0.0
    %2408 = vmatpush2.msra.mxu0 0.0
    %2409 = vmatprep.subr.mxu0 0.0
    %2410 = vmatpush2.msra.mxu0 0.0
    %2411 = vmatprep.subr.mxu0 0.0
    %2412 = vmatpush2.msra.mxu0 0.0
    %2413 = vmatprep.subr.mxu0 0.0
    %2414 = vmatpush2.msra.mxu0 0.0
    %2415 = vmatprep.subr.mxu0 0.0
    %2416 = vmatpush2.msra.mxu0 0.0
    %2417 = vmatprep.subr.mxu0 0.0
    %2418 = vmatpush2.msra.mxu0 0.0
    %2419 = vmatprep.subr.mxu0 0.0
    %2420 = vmatpush2.msra.mxu0 0.0
    %2421 = vmatprep.subr.mxu0 0.0
    %2422 = vmatpush2.msra.mxu0 0.0
    %2423 = vmatprep.subr.mxu0 0.0
    %2424 = vmatpush2.msra.mxu0 0.0
    %2425 = vmatprep.subr.mxu0 0.0
    %2426 = vmatpush2.msra.mxu0 0.0
    %2427 = vmatprep.subr.mxu0 0.0
    %2428 = vmatpush2.msra.mxu0 0.0
    %2429 = vmatprep.subr.mxu0 0.0
    %2430 = vmatpush2.msra.mxu0 0.0
    %2431 = vmatprep.subr.mxu0 0.0
    %2432 = vmatpush2.msra.mxu0 0.0
    %2433 = vmatprep.mubr.f32.mxu0 0.0
    %2434 = vmatmul.mubr.f32.gmra.mxu0 %v2367
    %v2435 = vpop.f32.mrf.mxu0
    %v2436 = vadd.f32 0.0, %v2435
    %v2437 = vpop.f32.mrf.mxu0
    %2438 = vdwg.mxu0
    %v2440 = vsel %vm403, %v2436, 0
    %2442 = vmatprep.subr.mxu0 0.0
    %2443 = vmatpush1.msra.mxu0 0.0
    %2444 = vmatprep.subr.mxu0 0.0
    %2445 = vmatpush1.msra.mxu0 0.0
    %2446 = vmatprep.subr.mxu0 0.0
    %2447 = vmatpush1.msra.mxu0 0.0
    %2448 = vmatprep.subr.mxu0 0.0
    %2449 = vmatpush1.msra.mxu0 0.0
    %2450 = vmatprep.subr.mxu0 0.0
    %2451 = vmatpush1.msra.mxu0 0.0
    %2452 = vmatprep.subr.mxu0 0.0
    %2453 = vmatpush1.msra.mxu0 0.0
    %2454 = vmatprep.subr.mxu0 0.0
    %2455 = vmatpush1.msra.mxu0 0.0
    %2456 = vmatprep.subr.mxu0 0.0
    %2457 = vmatpush1.msra.mxu0 0.0
    %2458 = vmatprep.subr.mxu0 0.0
    %2459 = vmatpush1.msra.mxu0 0.0
    %2460 = vmatprep.subr.mxu0 0.0
    %2461 = vmatpush1.msra.mxu0 0.0
    %2462 = vmatprep.subr.mxu0 0.0
    %2463 = vmatpush1.msra.mxu0 0.0
    %2464 = vmatprep.subr.mxu0 0.0
    %2465 = vmatpush1.msra.mxu0 0.0
    %2466 = vmatprep.subr.mxu0 0.0
    %2467 = vmatpush1.msra.mxu0 0.0
    %2468 = vmatprep.subr.mxu0 0.0
    %2469 = vmatpush1.msra.mxu0 0.0
    %2470 = vmatprep.subr.mxu0 0.0
    %2471 = vmatpush1.msra.mxu0 0.0
    %2472 = vmatprep.subr.mxu0 0.0
    %2473 = vmatpush1.msra.mxu0 %v2203
    %2474 = vmatprep.subr.mxu0 0.0
    %2475 = vmatpush2.msra.mxu0 0.0
    %2476 = vmatprep.subr.mxu0 0.0
    %2477 = vmatpush2.msra.mxu0 0.0
    %2478 = vmatprep.subr.mxu0 0.0
    %2479 = vmatpush2.msra.mxu0 0.0
    %2480 = vmatprep.subr.mxu0 0.0
    %2481 = vmatpush2.msra.mxu0 0.0
    %2482 = vmatprep.subr.mxu0 0.0
    %2483 = vmatpush2.msra.mxu0 0.0
    %2484 = vmatprep.subr.mxu0 0.0
    %2485 = vmatpush2.msra.mxu0 0.0
    %2486 = vmatprep.subr.mxu0 0.0
    %2487 = vmatpush2.msra.mxu0 0.0
    %2488 = vmatprep.subr.mxu0 0.0
    %2489 = vmatpush2.msra.mxu0 0.0
    %2490 = vmatprep.subr.mxu0 0.0
    %2491 = vmatpush2.msra.mxu0 0.0
    %2492 = vmatprep.subr.mxu0 0.0
    %2493 = vmatpush2.msra.mxu0 0.0
    %2494 = vmatprep.subr.mxu0 0.0
    %2495 = vmatpush2.msra.mxu0 0.0
    %2496 = vmatprep.subr.mxu0 0.0
    %2497 = vmatpush2.msra.mxu0 0.0
    %2498 = vmatprep.subr.mxu0 0.0
    %2499 = vmatpush2.msra.mxu0 0.0
    %2500 = vmatprep.subr.mxu0 0.0
    %2501 = vmatpush2.msra.mxu0 0.0
    %2502 = vmatprep.subr.mxu0 0.0
    %2503 = vmatpush2.msra.mxu0 0.0
    %2504 = vmatprep.subr.mxu0 0.0
    %2505 = vmatpush2.msra.mxu0 0.0
    %2506 = vmatprep.mubr.f32.mxu0 0.0
    %2507 = vmatmul.mubr.f32.gmra.mxu0 %v2440
    %v2508 = vpop.f32.mrf.mxu0
    %v2509 = vadd.f32 0.0, %v2508
    %v2510 = vpop.f32.mrf.mxu0
    %2511 = vdwg.mxu0
    %v2513 = vsel %vm403, %v2509, 0
    %2515 = vmatprep.subr.mxu0 0.0
    %2516 = vmatpush1.msra.mxu0 0.0
    %2517 = vmatprep.subr.mxu0 0.0
    %2518 = vmatpush1.msra.mxu0 0.0
    %2519 = vmatprep.subr.mxu0 0.0
    %2520 = vmatpush1.msra.mxu0 0.0
    %2521 = vmatprep.subr.mxu0 0.0
    %2522 = vmatpush1.msra.mxu0 0.0
    %2523 = vmatprep.subr.mxu0 0.0
    %2524 = vmatpush1.msra.mxu0 0.0
    %2525 = vmatprep.subr.mxu0 0.0
    %2526 = vmatpush1.msra.mxu0 0.0
    %2527 = vmatprep.subr.mxu0 0.0
    %2528 = vmatpush1.msra.mxu0 0.0
    %2529 = vmatprep.subr.mxu0 0.0
    %2530 = vmatpush1.msra.mxu0 0.0
    %2531 = vmatprep.subr.mxu0 0.0
    %2532 = vmatpush1.msra.mxu0 0.0
    %2533 = vmatprep.subr.mxu0 0.0
    %2534 = vmatpush1.msra.mxu0 0.0
    %2535 = vmatprep.subr.mxu0 0.0
    %2536 = vmatpush1.msra.mxu0 0.0
    %2537 = vmatprep.subr.mxu0 0.0
    %2538 = vmatpush1.msra.mxu0 0.0
    %2539 = vmatprep.subr.mxu0 0.0
    %2540 = vmatpush1.msra.mxu0 0.0
    %2541 = vmatprep.subr.mxu0 0.0
    %2542 = vmatpush1.msra.mxu0 0.0
    %2543 = vmatprep.subr.mxu0 0.0
    %2544 = vmatpush1.msra.mxu0 0.0
    %2545 = vmatprep.subr.mxu0 0.0
    %2546 = vmatpush1.msra.mxu0 %v2227
    %2547 = vmatprep.subr.mxu0 0.0
    %2548 = vmatpush2.msra.mxu0 0.0
    %2549 = vmatprep.subr.mxu0 0.0
    %2550 = vmatpush2.msra.mxu0 0.0
    %2551 = vmatprep.subr.mxu0 0.0
    %2552 = vmatpush2.msra.mxu0 0.0
    %2553 = vmatprep.subr.mxu0 0.0
    %2554 = vmatpush2.msra.mxu0 0.0
    %2555 = vmatprep.subr.mxu0 0.0
    %2556 = vmatpush2.msra.mxu0 0.0
    %2557 = vmatprep.subr.mxu0 0.0
    %2558 = vmatpush2.msra.mxu0 0.0
    %2559 = vmatprep.subr.mxu0 0.0
    %2560 = vmatpush2.msra.mxu0 0.0
    %2561 = vmatprep.subr.mxu0 0.0
    %2562 = vmatpush2.msra.mxu0 0.0
    %2563 = vmatprep.subr.mxu0 0.0
    %2564 = vmatpush2.msra.mxu0 0.0
    %2565 = vmatprep.subr.mxu0 0.0
    %2566 = vmatpush2.msra.mxu0 0.0
    %2567 = vmatprep.subr.mxu0 0.0
    %2568 = vmatpush2.msra.mxu0 0.0
    %2569 = vmatprep.subr.mxu0 0.0
    %2570 = vmatpush2.msra.mxu0 0.0
    %2571 = vmatprep.subr.mxu0 0.0
    %2572 = vmatpush2.msra.mxu0 0.0
    %2573 = vmatprep.subr.mxu0 0.0
    %2574 = vmatpush2.msra.mxu0 0.0
    %2575 = vmatprep.subr.mxu0 0.0
    %2576 = vmatpush2.msra.mxu0 0.0
    %2577 = vmatprep.subr.mxu0 0.0
    %2578 = vmatpush2.msra.mxu0 0.0
    %2579 = vmatprep.mubr.f32.mxu0 0.0
    %2580 = vmatmul.mubr.f32.gmra.mxu0 %v2513
    %v2581 = vpop.f32.mrf.mxu0
    %v2582 = vadd.f32 0.0, %v2581
    %v2583 = vpop.f32.mrf.mxu0
    %2584 = vdwg.mxu0
    %v2586 = vsel %vm403, %v2582, 0
    %2588 = vmatprep.subr.mxu0 0.0
    %2589 = vmatpush1.msra.mxu0 0.0
    %2590 = vmatprep.subr.mxu0 0.0
    %2591 = vmatpush1.msra.mxu0 0.0
    %2592 = vmatprep.subr.mxu0 0.0
    %2593 = vmatpush1.msra.mxu0 0.0
    %2594 = vmatprep.subr.mxu0 0.0
    %2595 = vmatpush1.msra.mxu0 0.0
    %2596 = vmatprep.subr.mxu0 0.0
    %2597 = vmatpush1.msra.mxu0 0.0
    %2598 = vmatprep.subr.mxu0 0.0
    %2599 = vmatpush1.msra.mxu0 0.0
    %2600 = vmatprep.subr.mxu0 0.0
    %2601 = vmatpush1.msra.mxu0 0.0
    %2602 = vmatprep.subr.mxu0 0.0
    %2603 = vmatpush1.msra.mxu0 0.0
    %2604 = vmatprep.subr.mxu0 0.0
    %2605 = vmatpush1.msra.mxu0 0.0
    %2606 = vmatprep.subr.mxu0 0.0
    %2607 = vmatpush1.msra.mxu0 0.0
    %2608 = vmatprep.subr.mxu0 0.0
    %2609 = vmatpush1.msra.mxu0 0.0
    %2610 = vmatprep.subr.mxu0 0.0
    %2611 = vmatpush1.msra.mxu0 0.0
    %2612 = vmatprep.subr.mxu0 0.0
    %2613 = vmatpush1.msra.mxu0 0.0
    %2614 = vmatprep.subr.mxu0 0.0
    %2615 = vmatpush1.msra.mxu0 0.0
    %2616 = vmatprep.subr.mxu0 0.0
    %2617 = vmatpush1.msra.mxu0 0.0
    %2618 = vmatprep.subr.mxu0 0.0
    %2619 = vmatpush1.msra.mxu0 %v2251
    %2620 = vmatprep.subr.mxu0 0.0
    %2621 = vmatpush2.msra.mxu0 0.0
    %2622 = vmatprep.subr.mxu0 0.0
    %2623 = vmatpush2.msra.mxu0 0.0
    %2624 = vmatprep.subr.mxu0 0.0
    %2625 = vmatpush2.msra.mxu0 0.0
    %2626 = vmatprep.subr.mxu0 0.0
    %2627 = vmatpush2.msra.mxu0 0.0
    %2628 = vmatprep.subr.mxu0 0.0
    %2629 = vmatpush2.msra.mxu0 0.0
    %2630 = vmatprep.subr.mxu0 0.0
    %2631 = vmatpush2.msra.mxu0 0.0
    %2632 = vmatprep.subr.mxu0 0.0
    %2633 = vmatpush2.msra.mxu0 0.0
    %2634 = vmatprep.subr.mxu0 0.0
    %2635 = vmatpush2.msra.mxu0 0.0
    %2636 = vmatprep.subr.mxu0 0.0
    %2637 = vmatpush2.msra.mxu0 0.0
    %2638 = vmatprep.subr.mxu0 0.0
    %2639 = vmatpush2.msra.mxu0 0.0
    %2640 = vmatprep.subr.mxu0 0.0
    %2641 = vmatpush2.msra.mxu0 0.0
    %2642 = vmatprep.subr.mxu0 0.0
    %2643 = vmatpush2.msra.mxu0 0.0
    %2644 = vmatprep.subr.mxu0 0.0
    %2645 = vmatpush2.msra.mxu0 0.0
    %2646 = vmatprep.subr.mxu0 0.0
    %2647 = vmatpush2.msra.mxu0 0.0
    %2648 = vmatprep.subr.mxu0 0.0
    %2649 = vmatpush2.msra.mxu0 0.0
    %2650 = vmatprep.subr.mxu0 0.0
    %2651 = vmatpush2.msra.mxu0 0.0
    %2652 = vmatprep.mubr.f32.mxu0 0.0
    %2653 = vmatmul.mubr.f32.gmra.mxu0 %v2586
    %v2654 = vpop.f32.mrf.mxu0
    %v2655 = vadd.f32 0.0, %v2654
    %v2656 = vpop.f32.mrf.mxu0
    %2657 = vdwg.mxu0
    %v2659 = vsel %vm403, %v2655, 0
    %2661 = vmatprep.subr.mxu0 0.0
    %2662 = vmatpush1.msra.mxu0 0.0
    %2663 = vmatprep.subr.mxu0 0.0
    %2664 = vmatpush1.msra.mxu0 0.0
    %2665 = vmatprep.subr.mxu0 0.0
    %2666 = vmatpush1.msra.mxu0 0.0
    %2667 = vmatprep.subr.mxu0 0.0
    %2668 = vmatpush1.msra.mxu0 0.0
    %2669 = vmatprep.subr.mxu0 0.0
    %2670 = vmatpush1.msra.mxu0 0.0
    %2671 = vmatprep.subr.mxu0 0.0
    %2672 = vmatpush1.msra.mxu0 0.0
    %2673 = vmatprep.subr.mxu0 0.0
    %2674 = vmatpush1.msra.mxu0 0.0
    %2675 = vmatprep.subr.mxu0 0.0
    %2676 = vmatpush1.msra.mxu0 0.0
    %2677 = vmatprep.subr.mxu0 0.0
    %2678 = vmatpush1.msra.mxu0 0.0
    %2679 = vmatprep.subr.mxu0 0.0
    %2680 = vmatpush1.msra.mxu0 0.0
    %2681 = vmatprep.subr.mxu0 0.0
    %2682 = vmatpush1.msra.mxu0 0.0
    %2683 = vmatprep.subr.mxu0 0.0
    %2684 = vmatpush1.msra.mxu0 0.0
    %2685 = vmatprep.subr.mxu0 0.0
    %2686 = vmatpush1.msra.mxu0 0.0
    %2687 = vmatprep.subr.mxu0 0.0
    %2688 = vmatpush1.msra.mxu0 0.0
    %2689 = vmatprep.subr.mxu0 0.0
    %2690 = vmatpush1.msra.mxu0 0.0
    %2691 = vmatprep.subr.mxu0 0.0
    %2692 = vmatpush1.msra.mxu0 %v2268
    %2693 = vmatprep.subr.mxu0 0.0
    %2694 = vmatpush2.msra.mxu0 0.0
    %2695 = vmatprep.subr.mxu0 0.0
    %2696 = vmatpush2.msra.mxu0 0.0
    %2697 = vmatprep.subr.mxu0 0.0
    %2698 = vmatpush2.msra.mxu0 0.0
    %2699 = vmatprep.subr.mxu0 0.0
    %2700 = vmatpush2.msra.mxu0 0.0
    %2701 = vmatprep.subr.mxu0 0.0
    %2702 = vmatpush2.msra.mxu0 0.0
    %2703 = vmatprep.subr.mxu0 0.0
    %2704 = vmatpush2.msra.mxu0 0.0
    %2705 = vmatprep.subr.mxu0 0.0
    %2706 = vmatpush2.msra.mxu0 0.0
    %2707 = vmatprep.subr.mxu0 0.0
    %2708 = vmatpush2.msra.mxu0 0.0
    %2709 = vmatprep.subr.mxu0 0.0
    %2710 = vmatpush2.msra.mxu0 0.0
    %2711 = vmatprep.subr.mxu0 0.0
    %2712 = vmatpush2.msra.mxu0 0.0
    %2713 = vmatprep.subr.mxu0 0.0
    %2714 = vmatpush2.msra.mxu0 0.0
    %2715 = vmatprep.subr.mxu0 0.0
    %2716 = vmatpush2.msra.mxu0 0.0
    %2717 = vmatprep.subr.mxu0 0.0
    %2718 = vmatpush2.msra.mxu0 0.0
    %2719 = vmatprep.subr.mxu0 0.0
    %2720 = vmatpush2.msra.mxu0 0.0
    %2721 = vmatprep.subr.mxu0 0.0
    %2722 = vmatpush2.msra.mxu0 0.0
    %2723 = vmatprep.subr.mxu0 0.0
    %2724 = vmatpush2.msra.mxu0 0.0
    %2725 = vmatprep.mubr.f32.mxu0 0.0
    %2726 = vmatmul.mubr.f32.gmra.mxu0 %v2659
    %v2727 = vpop.f32.mrf.mxu0
    %v2728 = vadd.f32 0.0, %v2727
    %v2729 = vpop.f32.mrf.mxu0
    %2730 = vdwg.mxu0
    %v2732 = vsel %vm403, %v2728, 0
    %2734 = vmatprep.subr.mxu0 0.0
    %2735 = vmatpush1.msra.mxu0 0.0
    %2736 = vmatprep.subr.mxu0 0.0
    %2737 = vmatpush1.msra.mxu0 0.0
    %2738 = vmatprep.subr.mxu0 0.0
    %2739 = vmatpush1.msra.mxu0 0.0
    %2740 = vmatprep.subr.mxu0 0.0
    %2741 = vmatpush1.msra.mxu0 0.0
    %2742 = vmatprep.subr.mxu0 0.0
    %2743 = vmatpush1.msra.mxu0 0.0
    %2744 = vmatprep.subr.mxu0 0.0
    %2745 = vmatpush1.msra.mxu0 0.0
    %2746 = vmatprep.subr.mxu0 0.0
    %2747 = vmatpush1.msra.mxu0 0.0
    %2748 = vmatprep.subr.mxu0 0.0
    %2749 = vmatpush1.msra.mxu0 0.0
    %2750 = vmatprep.subr.mxu0 0.0
    %2751 = vmatpush1.msra.mxu0 0.0
    %2752 = vmatprep.subr.mxu0 0.0
    %2753 = vmatpush1.msra.mxu0 0.0
    %2754 = vmatprep.subr.mxu0 0.0
    %2755 = vmatpush1.msra.mxu0 0.0
    %2756 = vmatprep.subr.mxu0 0.0
    %2757 = vmatpush1.msra.mxu0 0.0
    %2758 = vmatprep.subr.mxu0 0.0
    %2759 = vmatpush1.msra.mxu0 0.0
    %2760 = vmatprep.subr.mxu0 0.0
    %2761 = vmatpush1.msra.mxu0 0.0
    %2762 = vmatprep.subr.mxu0 0.0
    %2763 = vmatpush1.msra.mxu0 0.0
    %2764 = vmatprep.subr.mxu0 0.0
    %2765 = vmatpush1.msra.mxu0 %v2292
    %2766 = vmatprep.subr.mxu0 0.0
    %2767 = vmatpush2.msra.mxu0 0.0
    %2768 = vmatprep.subr.mxu0 0.0
    %2769 = vmatpush2.msra.mxu0 0.0
    %2770 = vmatprep.subr.mxu0 0.0
    %2771 = vmatpush2.msra.mxu0 0.0
    %2772 = vmatprep.subr.mxu0 0.0
    %2773 = vmatpush2.msra.mxu0 0.0
    %2774 = vmatprep.subr.mxu0 0.0
    %2775 = vmatpush2.msra.mxu0 0.0
    %2776 = vmatprep.subr.mxu0 0.0
    %2777 = vmatpush2.msra.mxu0 0.0
    %2778 = vmatprep.subr.mxu0 0.0
    %2779 = vmatpush2.msra.mxu0 0.0
    %2780 = vmatprep.subr.mxu0 0.0
    %2781 = vmatpush2.msra.mxu0 0.0
    %2782 = vmatprep.subr.mxu0 0.0
    %2783 = vmatpush2.msra.mxu0 0.0
    %2784 = vmatprep.subr.mxu0 0.0
    %2785 = vmatpush2.msra.mxu0 0.0
    %2786 = vmatprep.subr.mxu0 0.0
    %2787 = vmatpush2.msra.mxu0 0.0
    %2788 = vmatprep.subr.mxu0 0.0
    %2789 = vmatpush2.msra.mxu0 0.0
    %2790 = vmatprep.subr.mxu0 0.0
    %2791 = vmatpush2.msra.mxu0 0.0
    %2792 = vmatprep.subr.mxu0 0.0
    %2793 = vmatpush2.msra.mxu0 0.0
    %2794 = vmatprep.subr.mxu0 0.0
    %2795 = vmatpush2.msra.mxu0 0.0
    %2796 = vmatprep.subr.mxu0 0.0
    %2797 = vmatpush2.msra.mxu0 0.0
    %2798 = vmatprep.mubr.f32.mxu0 0.0
    %2799 = vmatmul.mubr.f32.gmra.mxu0 %v2732
    %v2800 = vpop.f32.mrf.mxu0
    %v2801 = vadd.f32 0.0, %v2800
    %v2802 = vpop.f32.mrf.mxu0
    %2803 = vdwg.mxu0
    %v2805 = vsel %vm403, %v2292, 0
    %2807 = vmatprep.subr.mxu0 0.0
    %2808 = vmatpush1.msra.mxu0 0.0
    %2809 = vmatprep.subr.mxu0 0.0
    %2810 = vmatpush1.msra.mxu0 0.0
    %2811 = vmatprep.subr.mxu0 0.0
    %2812 = vmatpush1.msra.mxu0 0.0
    %2813 = vmatprep.subr.mxu0 0.0
    %2814 = vmatpush1.msra.mxu0 0.0
    %2815 = vmatprep.subr.mxu0 0.0
    %2816 = vmatpush1.msra.mxu0 0.0
    %2817 = vmatprep.subr.mxu0 0.0
    %2818 = vmatpush1.msra.mxu0 0.0
    %2819 = vmatprep.subr.mxu0 0.0
    %2820 = vmatpush1.msra.mxu0 0.0
    %2821 = vmatprep.subr.mxu0 0.0
    %2822 = vmatpush1.msra.mxu0 0.0
    %2823 = vmatprep.subr.mxu0 0.0
    %2824 = vmatpush1.msra.mxu0 0.0
    %2825 = vmatprep.subr.mxu0 0.0
    %2826 = vmatpush1.msra.mxu0 0.0
    %2827 = vmatprep.subr.mxu0 0.0
    %2828 = vmatpush1.msra.mxu0 0.0
    %2829 = vmatprep.subr.mxu0 0.0
    %2830 = vmatpush1.msra.mxu0 0.0
    %2831 = vmatprep.subr.mxu0 0.0
    %2832 = vmatpush1.msra.mxu0 0.0
    %2833 = vmatprep.subr.mxu0 0.0
    %2834 = vmatpush1.msra.mxu0 0.0
    %2835 = vmatprep.subr.mxu0 0.0
    %2836 = vmatpush1.msra.mxu0 0.0
    %2837 = vmatprep.subr.mxu0 0.0
    %2838 = vmatpush1.msra.mxu0 %v2268
    %2839 = vmatprep.subr.mxu0 0.0
    %2840 = vmatpush2.msra.mxu0 0.0
    %2841 = vmatprep.subr.mxu0 0.0
    %2842 = vmatpush2.msra.mxu0 0.0
    %2843 = vmatprep.subr.mxu0 0.0
    %2844 = vmatpush2.msra.mxu0 0.0
    %2845 = vmatprep.subr.mxu0 0.0
    %2846 = vmatpush2.msra.mxu0 0.0
    %2847 = vmatprep.subr.mxu0 0.0
    %2848 = vmatpush2.msra.mxu0 0.0
    %2849 = vmatprep.subr.mxu0 0.0
    %2850 = vmatpush2.msra.mxu0 0.0
    %2851 = vmatprep.subr.mxu0 0.0
    %2852 = vmatpush2.msra.mxu0 0.0
    %2853 = vmatprep.subr.mxu0 0.0
    %2854 = vmatpush2.msra.mxu0 0.0
    %2855 = vmatprep.subr.mxu0 0.0
    %2856 = vmatpush2.msra.mxu0 0.0
    %2857 = vmatprep.subr.mxu0 0.0
    %2858 = vmatpush2.msra.mxu0 0.0
    %2859 = vmatprep.subr.mxu0 0.0
    %2860 = vmatpush2.msra.mxu0 0.0
    %2861 = vmatprep.subr.mxu0 0.0
    %2862 = vmatpush2.msra.mxu0 0.0
    %2863 = vmatprep.subr.mxu0 0.0
    %2864 = vmatpush2.msra.mxu0 0.0
    %2865 = vmatprep.subr.mxu0 0.0
    %2866 = vmatpush2.msra.mxu0 0.0
    %2867 = vmatprep.subr.mxu0 0.0
    %2868 = vmatpush2.msra.mxu0 0.0
    %2869 = vmatprep.subr.mxu0 0.0
    %2870 = vmatpush2.msra.mxu0 0.0
    %2871 = vmatprep.mubr.f32.mxu0 0.0
    %2872 = vmatmul.mubr.f32.gmra.mxu0 %v2805
    %v2873 = vpop.f32.mrf.mxu0
    %v2874 = vadd.f32 0.0, %v2873
    %v2875 = vpop.f32.mrf.mxu0
    %2876 = vdwg.mxu0
    %v2878 = vsel %vm403, %v2874, 0
    %2880 = vmatprep.subr.mxu0 0.0
    %2881 = vmatpush1.msra.mxu0 0.0
    %2882 = vmatprep.subr.mxu0 0.0
    %2883 = vmatpush1.msra.mxu0 0.0
    %2884 = vmatprep.subr.mxu0 0.0
    %2885 = vmatpush1.msra.mxu0 0.0
    %2886 = vmatprep.subr.mxu0 0.0
    %2887 = vmatpush1.msra.mxu0 0.0
    %2888 = vmatprep.subr.mxu0 0.0
    %2889 = vmatpush1.msra.mxu0 0.0
    %2890 = vmatprep.subr.mxu0 0.0
    %2891 = vmatpush1.msra.mxu0 0.0
    %2892 = vmatprep.subr.mxu0 0.0
    %2893 = vmatpush1.msra.mxu0 0.0
    %2894 = vmatprep.subr.mxu0 0.0
    %2895 = vmatpush1.msra.mxu0 0.0
    %2896 = vmatprep.subr.mxu0 0.0
    %2897 = vmatpush1.msra.mxu0 0.0
    %2898 = vmatprep.subr.mxu0 0.0
    %2899 = vmatpush1.msra.mxu0 0.0
    %2900 = vmatprep.subr.mxu0 0.0
    %2901 = vmatpush1.msra.mxu0 0.0
    %2902 = vmatprep.subr.mxu0 0.0
    %2903 = vmatpush1.msra.mxu0 0.0
    %2904 = vmatprep.subr.mxu0 0.0
    %2905 = vmatpush1.msra.mxu0 0.0
    %2906 = vmatprep.subr.mxu0 0.0
    %2907 = vmatpush1.msra.mxu0 0.0
    %2908 = vmatprep.subr.mxu0 0.0
    %2909 = vmatpush1.msra.mxu0 0.0
    %2910 = vmatprep.subr.mxu0 0.0
    %2911 = vmatpush1.msra.mxu0 %v2251
    %2912 = vmatprep.subr.mxu0 0.0
    %2913 = vmatpush2.msra.mxu0 0.0
    %2914 = vmatprep.subr.mxu0 0.0
    %2915 = vmatpush2.msra.mxu0 0.0
    %2916 = vmatprep.subr.mxu0 0.0
    %2917 = vmatpush2.msra.mxu0 0.0
    %2918 = vmatprep.subr.mxu0 0.0
    %2919 = vmatpush2.msra.mxu0 0.0
    %2920 = vmatprep.subr.mxu0 0.0
    %2921 = vmatpush2.msra.mxu0 0.0
    %2922 = vmatprep.subr.mxu0 0.0
    %2923 = vmatpush2.msra.mxu0 0.0
    %2924 = vmatprep.subr.mxu0 0.0
    %2925 = vmatpush2.msra.mxu0 0.0
    %2926 = vmatprep.subr.mxu0 0.0
    %2927 = vmatpush2.msra.mxu0 0.0
    %2928 = vmatprep.subr.mxu0 0.0
    %2929 = vmatpush2.msra.mxu0 0.0
    %2930 = vmatprep.subr.mxu0 0.0
    %2931 = vmatpush2.msra.mxu0 0.0
    %2932 = vmatprep.subr.mxu0 0.0
    %2933 = vmatpush2.msra.mxu0 0.0
    %2934 = vmatprep.subr.mxu0 0.0
    %2935 = vmatpush2.msra.mxu0 0.0
    %2936 = vmatprep.subr.mxu0 0.0
    %2937 = vmatpush2.msra.mxu0 0.0
    %2938 = vmatprep.subr.mxu0 0.0
    %2939 = vmatpush2.msra.mxu0 0.0
    %2940 = vmatprep.subr.mxu0 0.0
    %2941 = vmatpush2.msra.mxu0 0.0
    %2942 = vmatprep.subr.mxu0 0.0
    %2943 = vmatpush2.msra.mxu0 0.0
    %2944 = vmatprep.mubr.f32.mxu0 0.0
    %2945 = vmatmul.mubr.f32.gmra.mxu0 %v2878
    %v2946 = vpop.f32.mrf.mxu0
    %v2947 = vadd.f32 0.0, %v2946
    %v2948 = vpop.f32.mrf.mxu0
    %2949 = vdwg.mxu0
    %v2951 = vsel %vm403, %v2947, 0
    %2953 = vmatprep.subr.mxu0 0.0
    %2954 = vmatpush1.msra.mxu0 0.0
    %2955 = vmatprep.subr.mxu0 0.0
    %2956 = vmatpush1.msra.mxu0 0.0
    %2957 = vmatprep.subr.mxu0 0.0
    %2958 = vmatpush1.msra.mxu0 0.0
    %2959 = vmatprep.subr.mxu0 0.0
    %2960 = vmatpush1.msra.mxu0 0.0
    %2961 = vmatprep.subr.mxu0 0.0
    %2962 = vmatpush1.msra.mxu0 0.0
    %2963 = vmatprep.subr.mxu0 0.0
    %2964 = vmatpush1.msra.mxu0 0.0
    %2965 = vmatprep.subr.mxu0 0.0
    %2966 = vmatpush1.msra.mxu0 0.0
    %2967 = vmatprep.subr.mxu0 0.0
    %2968 = vmatpush1.msra.mxu0 0.0
    %2969 = vmatprep.subr.mxu0 0.0
    %2970 = vmatpush1.msra.mxu0 0.0
    %2971 = vmatprep.subr.mxu0 0.0
    %2972 = vmatpush1.msra.mxu0 0.0
    %2973 = vmatprep.subr.mxu0 0.0
    %2974 = vmatpush1.msra.mxu0 0.0
    %2975 = vmatprep.subr.mxu0 0.0
    %2976 = vmatpush1.msra.mxu0 0.0
    %2977 = vmatprep.subr.mxu0 0.0
    %2978 = vmatpush1.msra.mxu0 0.0
    %2979 = vmatprep.subr.mxu0 0.0
    %2980 = vmatpush1.msra.mxu0 0.0
    %2981 = vmatprep.subr.mxu0 0.0
    %2982 = vmatpush1.msra.mxu0 0.0
    %2983 = vmatprep.subr.mxu0 0.0
    %2984 = vmatpush1.msra.mxu0 %v2227
    %2985 = vmatprep.subr.mxu0 0.0
    %2986 = vmatpush2.msra.mxu0 0.0
    %2987 = vmatprep.subr.mxu0 0.0
    %2988 = vmatpush2.msra.mxu0 0.0
    %2989 = vmatprep.subr.mxu0 0.0
    %2990 = vmatpush2.msra.mxu0 0.0
    %2991 = vmatprep.subr.mxu0 0.0
    %2992 = vmatpush2.msra.mxu0 0.0
    %2993 = vmatprep.subr.mxu0 0.0
    %2994 = vmatpush2.msra.mxu0 0.0
    %2995 = vmatprep.subr.mxu0 0.0
    %2996 = vmatpush2.msra.mxu0 0.0
    %2997 = vmatprep.subr.mxu0 0.0
    %2998 = vmatpush2.msra.mxu0 0.0
    %2999 = vmatprep.subr.mxu0 0.0
    %3000 = vmatpush2.msra.mxu0 0.0
    %3001 = vmatprep.subr.mxu0 0.0
    %3002 = vmatpush2.msra.mxu0 0.0
    %3003 = vmatprep.subr.mxu0 0.0
    %3004 = vmatpush2.msra.mxu0 0.0
    %3005 = vmatprep.subr.mxu0 0.0
    %3006 = vmatpush2.msra.mxu0 0.0
    %3007 = vmatprep.subr.mxu0 0.0
    %3008 = vmatpush2.msra.mxu0 0.0
    %3009 = vmatprep.subr.mxu0 0.0
    %3010 = vmatpush2.msra.mxu0 0.0
    %3011 = vmatprep.subr.mxu0 0.0
    %3012 = vmatpush2.msra.mxu0 0.0
    %3013 = vmatprep.subr.mxu0 0.0
    %3014 = vmatpush2.msra.mxu0 0.0
    %3015 = vmatprep.subr.mxu0 0.0
    %3016 = vmatpush2.msra.mxu0 0.0
    %3017 = vmatprep.mubr.f32.mxu0 0.0
    %3018 = vmatmul.mubr.f32.gmra.mxu0 %v2951
    %v3019 = vpop.f32.mrf.mxu0
    %v3020 = vadd.f32 0.0, %v3019
    %v3021 = vpop.f32.mrf.mxu0
    %3022 = vdwg.mxu0
    %v3024 = vsel %vm403, %v3020, 0
    %3026 = vmatprep.subr.mxu0 0.0
    %3027 = vmatpush1.msra.mxu0 0.0
    %3028 = vmatprep.subr.mxu0 0.0
    %3029 = vmatpush1.msra.mxu0 0.0
    %3030 = vmatprep.subr.mxu0 0.0
    %3031 = vmatpush1.msra.mxu0 0.0
    %3032 = vmatprep.subr.mxu0 0.0
    %3033 = vmatpush1.msra.mxu0 0.0
    %3034 = vmatprep.subr.mxu0 0.0
    %3035 = vmatpush1.msra.mxu0 0.0
    %3036 = vmatprep.subr.mxu0 0.0
    %3037 = vmatpush1.msra.mxu0 0.0
    %3038 = vmatprep.subr.mxu0 0.0
    %3039 = vmatpush1.msra.mxu0 0.0
    %3040 = vmatprep.subr.mxu0 0.0
    %3041 = vmatpush1.msra.mxu0 0.0
    %3042 = vmatprep.subr.mxu0 0.0
    %3043 = vmatpush1.msra.mxu0 0.0
    %3044 = vmatprep.subr.mxu0 0.0
    %3045 = vmatpush1.msra.mxu0 0.0
    %3046 = vmatprep.subr.mxu0 0.0
    %3047 = vmatpush1.msra.mxu0 0.0
    %3048 = vmatprep.subr.mxu0 0.0
    %3049 = vmatpush1.msra.mxu0 0.0
    %3050 = vmatprep.subr.mxu0 0.0
    %3051 = vmatpush1.msra.mxu0 0.0
    %3052 = vmatprep.subr.mxu0 0.0
    %3053 = vmatpush1.msra.mxu0 0.0
    %3054 = vmatprep.subr.mxu0 0.0
    %3055 = vmatpush1.msra.mxu0 0.0
    %3056 = vmatprep.subr.mxu0 0.0
    %3057 = vmatpush1.msra.mxu0 %v2203
    %3058 = vmatprep.subr.mxu0 0.0
    %3059 = vmatpush2.msra.mxu0 0.0
    %3060 = vmatprep.subr.mxu0 0.0
    %3061 = vmatpush2.msra.mxu0 0.0
    %3062 = vmatprep.subr.mxu0 0.0
    %3063 = vmatpush2.msra.mxu0 0.0
    %3064 = vmatprep.subr.mxu0 0.0
    %3065 = vmatpush2.msra.mxu0 0.0
    %3066 = vmatprep.subr.mxu0 0.0
    %3067 = vmatpush2.msra.mxu0 0.0
    %3068 = vmatprep.subr.mxu0 0.0
    %3069 = vmatpush2.msra.mxu0 0.0
    %3070 = vmatprep.subr.mxu0 0.0
    %3071 = vmatpush2.msra.mxu0 0.0
    %3072 = vmatprep.subr.mxu0 0.0
    %3073 = vmatpush2.msra.mxu0 0.0
    %3074 = vmatprep.subr.mxu0 0.0
    %3075 = vmatpush2.msra.mxu0 0.0
    %3076 = vmatprep.subr.mxu0 0.0
    %3077 = vmatpush2.msra.mxu0 0.0
    %3078 = vmatprep.subr.mxu0 0.0
    %3079 = vmatpush2.msra.mxu0 0.0
    %3080 = vmatprep.subr.mxu0 0.0
    %3081 = vmatpush2.msra.mxu0 0.0
    %3082 = vmatprep.subr.mxu0 0.0
    %3083 = vmatpush2.msra.mxu0 0.0
    %3084 = vmatprep.subr.mxu0 0.0
    %3085 = vmatpush2.msra.mxu0 0.0
    %3086 = vmatprep.subr.mxu0 0.0
    %3087 = vmatpush2.msra.mxu0 0.0
    %3088 = vmatprep.subr.mxu0 0.0
    %3089 = vmatpush2.msra.mxu0 0.0
    %3090 = vmatprep.mubr.f32.mxu0 0.0
    %3091 = vmatmul.mubr.f32.gmra.mxu0 %v3024
    %v3092 = vpop.f32.mrf.mxu0
    %v3093 = vadd.f32 0.0, %v3092
    %v3094 = vpop.f32.mrf.mxu0
    %3095 = vdwg.mxu0
    %v3097 = vsel %vm403, %v3093, 0
    %3099 = vmatprep.subr.mxu0 0.0
    %3100 = vmatpush1.msra.mxu0 0.0
    %3101 = vmatprep.subr.mxu0 0.0
    %3102 = vmatpush1.msra.mxu0 0.0
    %3103 = vmatprep.subr.mxu0 0.0
    %3104 = vmatpush1.msra.mxu0 0.0
    %3105 = vmatprep.subr.mxu0 0.0
    %3106 = vmatpush1.msra.mxu0 0.0
    %3107 = vmatprep.subr.mxu0 0.0
    %3108 = vmatpush1.msra.mxu0 0.0
    %3109 = vmatprep.subr.mxu0 0.0
    %3110 = vmatpush1.msra.mxu0 0.0
    %3111 = vmatprep.subr.mxu0 0.0
    %3112 = vmatpush1.msra.mxu0 0.0
    %3113 = vmatprep.subr.mxu0 0.0
    %3114 = vmatpush1.msra.mxu0 0.0
    %3115 = vmatprep.subr.mxu0 0.0
    %3116 = vmatpush1.msra.mxu0 0.0
    %3117 = vmatprep.subr.mxu0 0.0
    %3118 = vmatpush1.msra.mxu0 0.0
    %3119 = vmatprep.subr.mxu0 0.0
    %3120 = vmatpush1.msra.mxu0 0.0
    %3121 = vmatprep.subr.mxu0 0.0
    %3122 = vmatpush1.msra.mxu0 0.0
    %3123 = vmatprep.subr.mxu0 0.0
    %3124 = vmatpush1.msra.mxu0 0.0
    %3125 = vmatprep.subr.mxu0 0.0
    %3126 = vmatpush1.msra.mxu0 0.0
    %3127 = vmatprep.subr.mxu0 0.0
    %3128 = vmatpush1.msra.mxu0 0.0
    %3129 = vmatprep.subr.mxu0 0.0
    %3130 = vmatpush1.msra.mxu0 %v2176
    %3131 = vmatprep.subr.mxu0 0.0
    %3132 = vmatpush2.msra.mxu0 0.0
    %3133 = vmatprep.subr.mxu0 0.0
    %3134 = vmatpush2.msra.mxu0 0.0
    %3135 = vmatprep.subr.mxu0 0.0
    %3136 = vmatpush2.msra.mxu0 0.0
    %3137 = vmatprep.subr.mxu0 0.0
    %3138 = vmatpush2.msra.mxu0 0.0
    %3139 = vmatprep.subr.mxu0 0.0
    %3140 = vmatpush2.msra.mxu0 0.0
    %3141 = vmatprep.subr.mxu0 0.0
    %3142 = vmatpush2.msra.mxu0 0.0
    %3143 = vmatprep.subr.mxu0 0.0
    %3144 = vmatpush2.msra.mxu0 0.0
    %3145 = vmatprep.subr.mxu0 0.0
    %3146 = vmatpush2.msra.mxu0 0.0
    %3147 = vmatprep.subr.mxu0 0.0
    %3148 = vmatpush2.msra.mxu0 0.0
    %3149 = vmatprep.subr.mxu0 0.0
    %3150 = vmatpush2.msra.mxu0 0.0
    %3151 = vmatprep.subr.mxu0 0.0
    %3152 = vmatpush2.msra.mxu0 0.0
    %3153 = vmatprep.subr.mxu0 0.0
    %3154 = vmatpush2.msra.mxu0 0.0
    %3155 = vmatprep.subr.mxu0 0.0
    %3156 = vmatpush2.msra.mxu0 0.0
    %3157 = vmatprep.subr.mxu0 0.0
    %3158 = vmatpush2.msra.mxu0 0.0
    %3159 = vmatprep.subr.mxu0 0.0
    %3160 = vmatpush2.msra.mxu0 0.0
    %3161 = vmatprep.subr.mxu0 0.0
    %3162 = vmatpush2.msra.mxu0 0.0
    %3163 = vmatprep.mubr.f32.mxu0 0.0
    %3164 = vmatmul.mubr.f32.gmra.mxu0 %v3097
    %v3165 = vpop.f32.mrf.mxu0
    %v3166 = vadd.f32 0.0, %v3165
    %v3167 = vpop.f32.mrf.mxu0
    %3168 = vdwg.mxu0
    %v3170 = vsel %vm403, %v3166, 0
    %3172 = vmatprep.subr.mxu0 0.0
    %3173 = vmatpush1.msra.mxu0 0.0
    %3174 = vmatprep.subr.mxu0 0.0
    %3175 = vmatpush1.msra.mxu0 0.0
    %3176 = vmatprep.subr.mxu0 0.0
    %3177 = vmatpush1.msra.mxu0 0.0
    %3178 = vmatprep.subr.mxu0 0.0
    %3179 = vmatpush1.msra.mxu0 0.0
    %3180 = vmatprep.subr.mxu0 0.0
    %3181 = vmatpush1.msra.mxu0 0.0
    %3182 = vmatprep.subr.mxu0 0.0
    %3183 = vmatpush1.msra.mxu0 0.0
    %3184 = vmatprep.subr.mxu0 0.0
    %3185 = vmatpush1.msra.mxu0 0.0
    %3186 = vmatprep.subr.mxu0 0.0
    %3187 = vmatpush1.msra.mxu0 0.0
    %3188 = vmatprep.subr.mxu0 0.0
    %3189 = vmatpush1.msra.mxu0 0.0
    %3190 = vmatprep.subr.mxu0 0.0
    %3191 = vmatpush1.msra.mxu0 0.0
    %3192 = vmatprep.subr.mxu0 0.0
    %3193 = vmatpush1.msra.mxu0 0.0
    %3194 = vmatprep.subr.mxu0 0.0
    %3195 = vmatpush1.msra.mxu0 0.0
    %3196 = vmatprep.subr.mxu0 0.0
    %3197 = vmatpush1.msra.mxu0 0.0
    %3198 = vmatprep.subr.mxu0 0.0
    %3199 = vmatpush1.msra.mxu0 0.0
    %3200 = vmatprep.subr.mxu0 0.0
    %3201 = vmatpush1.msra.mxu0 0.0
    %3202 = vmatprep.subr.mxu0 0.0
    %3203 = vmatpush1.msra.mxu0 %v2159
    %3204 = vmatprep.subr.mxu0 0.0
    %3205 = vmatpush2.msra.mxu0 0.0
    %3206 = vmatprep.subr.mxu0 0.0
    %3207 = vmatpush2.msra.mxu0 0.0
    %3208 = vmatprep.subr.mxu0 0.0
    %3209 = vmatpush2.msra.mxu0 0.0
    %3210 = vmatprep.subr.mxu0 0.0
    %3211 = vmatpush2.msra.mxu0 0.0
    %3212 = vmatprep.subr.mxu0 0.0
    %3213 = vmatpush2.msra.mxu0 0.0
    %3214 = vmatprep.subr.mxu0 0.0
    %3215 = vmatpush2.msra.mxu0 0.0
    %3216 = vmatprep.subr.mxu0 0.0
    %3217 = vmatpush2.msra.mxu0 0.0
    %3218 = vmatprep.subr.mxu0 0.0
    %3219 = vmatpush2.msra.mxu0 0.0
    %3220 = vmatprep.subr.mxu0 0.0
    %3221 = vmatpush2.msra.mxu0 0.0
    %3222 = vmatprep.subr.mxu0 0.0
    %3223 = vmatpush2.msra.mxu0 0.0
    %3224 = vmatprep.subr.mxu0 0.0
    %3225 = vmatpush2.msra.mxu0 0.0
    %3226 = vmatprep.subr.mxu0 0.0
    %3227 = vmatpush2.msra.mxu0 0.0
    %3228 = vmatprep.subr.mxu0 0.0
    %3229 = vmatpush2.msra.mxu0 0.0
    %3230 = vmatprep.subr.mxu0 0.0
    %3231 = vmatpush2.msra.mxu0 0.0
    %3232 = vmatprep.subr.mxu0 0.0
    %3233 = vmatpush2.msra.mxu0 0.0
    %3234 = vmatprep.subr.mxu0 0.0
    %3235 = vmatpush2.msra.mxu0 0.0
    %3236 = vmatprep.mubr.f32.mxu0 0.0
    %3237 = vmatmul.mubr.f32.gmra.mxu0 %v3170
    %v3238 = vpop.f32.mrf.mxu0
    %v3239 = vadd.f32 0.0, %v3238
    %v3240 = vpop.f32.mrf.mxu0
    %3241 = vdwg.mxu0
    %v3243 = vsel %vm403, %v3239, 0
    %3245 = vmatprep.subr.mxu0 0.0
    %3246 = vmatpush1.msra.mxu0 0.0
    %3247 = vmatprep.subr.mxu0 0.0
    %3248 = vmatpush1.msra.mxu0 0.0
    %3249 = vmatprep.subr.mxu0 0.0
    %3250 = vmatpush1.msra.mxu0 0.0
    %3251 = vmatprep.subr.mxu0 0.0
    %3252 = vmatpush1.msra.mxu0 0.0
    %3253 = vmatprep.subr.mxu0 0.0
    %3254 = vmatpush1.msra.mxu0 0.0
    %3255 = vmatprep.subr.mxu0 0.0
    %3256 = vmatpush1.msra.mxu0 0.0
    %3257 = vmatprep.subr.mxu0 0.0
    %3258 = vmatpush1.msra.mxu0 0.0
    %3259 = vmatprep.subr.mxu0 0.0
    %3260 = vmatpush1.msra.mxu0 0.0
    %3261 = vmatprep.subr.mxu0 0.0
    %3262 = vmatpush1.msra.mxu0 0.0
    %3263 = vmatprep.subr.mxu0 0.0
    %3264 = vmatpush1.msra.mxu0 0.0
    %3265 = vmatprep.subr.mxu0 0.0
    %3266 = vmatpush1.msra.mxu0 0.0
    %3267 = vmatprep.subr.mxu0 0.0
    %3268 = vmatpush1.msra.mxu0 0.0
    %3269 = vmatprep.subr.mxu0 0.0
    %3270 = vmatpush1.msra.mxu0 0.0
    %3271 = vmatprep.subr.mxu0 0.0
    %3272 = vmatpush1.msra.mxu0 0.0
    %3273 = vmatprep.subr.mxu0 0.0
    %3274 = vmatpush1.msra.mxu0 0.0
    %3275 = vmatprep.subr.mxu0 0.0
    %3276 = vmatpush1.msra.mxu0 %v2132
    %3277 = vmatprep.subr.mxu0 0.0
    %3278 = vmatpush2.msra.mxu0 0.0
    %3279 = vmatprep.subr.mxu0 0.0
    %3280 = vmatpush2.msra.mxu0 0.0
    %3281 = vmatprep.subr.mxu0 0.0
    %3282 = vmatpush2.msra.mxu0 0.0
    %3283 = vmatprep.subr.mxu0 0.0
    %3284 = vmatpush2.msra.mxu0 0.0
    %3285 = vmatprep.subr.mxu0 0.0
    %3286 = vmatpush2.msra.mxu0 0.0
    %3287 = vmatprep.subr.mxu0 0.0
    %3288 = vmatpush2.msra.mxu0 0.0
    %3289 = vmatprep.subr.mxu0 0.0
    %3290 = vmatpush2.msra.mxu0 0.0
    %3291 = vmatprep.subr.mxu0 0.0
    %3292 = vmatpush2.msra.mxu0 0.0
    %3293 = vmatprep.subr.mxu0 0.0
    %3294 = vmatpush2.msra.mxu0 0.0
    %3295 = vmatprep.subr.mxu0 0.0
    %3296 = vmatpush2.msra.mxu0 0.0
    %3297 = vmatprep.subr.mxu0 0.0
    %3298 = vmatpush2.msra.mxu0 0.0
    %3299 = vmatprep.subr.mxu0 0.0
    %3300 = vmatpush2.msra.mxu0 0.0
    %3301 = vmatprep.subr.mxu0 0.0
    %3302 = vmatpush2.msra.mxu0 0.0
    %3303 = vmatprep.subr.mxu0 0.0
    %3304 = vmatpush2.msra.mxu0 0.0
    %3305 = vmatprep.subr.mxu0 0.0
    %3306 = vmatpush2.msra.mxu0 0.0
    %3307 = vmatprep.subr.mxu0 0.0
    %3308 = vmatpush2.msra.mxu0 0.0
    %3309 = vmatprep.mubr.f32.mxu0 0.0
    %3310 = vmatmul.mubr.f32.gmra.mxu0 %v3243
    %v3311 = vpop.f32.mrf.mxu0
    %v3312 = vadd.f32 0.0, %v3311
    %v3313 = vpop.f32.mrf.mxu0
    %3314 = vdwg.mxu0
    %v3315 = vadd.f32 %v1696, %v1755
    %v3316 = vadd.f32 %v3315, %v1761
    %v3317 = vmul.f32 %v1699, %v397
    %3319 = vrot.lane.b32.xlu0 %v3317, 80
    %v3320 = vpop.permute.xlu0 %3319
    %v3322 = vadd.f32 %v1751, %v3320
    %v3323 = vmul.f32 %v1709, %v397
    %3325 = vrot.lane.b32.xlu0 %v3323, 72
    %v3326 = vpop.permute.xlu0 %3325
    %v3328 = vadd.f32 %v3322, %v3326
    %3330 = vrot.lane.b32.xlu0 %v3316, 48
    %v3331 = vpop.permute.xlu0 %3330
    %v3333 = vmul.f32 %v377, %v3331
    %3334 = vrot.lane.b32.xlu0 %v1773, 88
    %v3335 = vpop.permute.xlu0 %3334
    %v3337 = vmul.f32 %v374, %v3335
    %v3338 = vadd.f32 %v3333, %v3337
    %3340 = vrot.lane.b32.xlu0 %v3328, 48
    %v3341 = vpop.permute.xlu0 %3340
    %v3343 = vmul.f32 %v377, %v3341
    %3344 = vrot.lane.b32.xlu0 %v1773, 104
    %v3345 = vpop.permute.xlu0 %3344
    %v3347 = vmul.f32 %v374, %v3345
    %v3348 = vadd.f32 %v3343, %v3347
    %v3350 = vsel %vm403, %v2084, 0
    %3352 = vmatprep.subr.mxu0 0.0
    %3353 = vmatpush1.msra.mxu0 0.0
    %3354 = vmatprep.subr.mxu0 0.0
    %3355 = vmatpush1.msra.mxu0 0.0
    %3356 = vmatprep.subr.mxu0 0.0
    %3357 = vmatpush1.msra.mxu0 0.0
    %3358 = vmatprep.subr.mxu0 0.0
    %3359 = vmatpush1.msra.mxu0 0.0
    %3360 = vmatprep.subr.mxu0 0.0
    %3361 = vmatpush1.msra.mxu0 0.0
    %3362 = vmatprep.subr.mxu0 0.0
    %3363 = vmatpush1.msra.mxu0 0.0
    %3364 = vmatprep.subr.mxu0 0.0
    %3365 = vmatpush1.msra.mxu0 0.0
    %3366 = vmatprep.subr.mxu0 0.0
    %3367 = vmatpush1.msra.mxu0 0.0
    %3368 = vmatprep.subr.mxu0 0.0
    %3369 = vmatpush1.msra.mxu0 0.0
    %3370 = vmatprep.subr.mxu0 0.0
    %3371 = vmatpush1.msra.mxu0 0.0
    %3372 = vmatprep.subr.mxu0 0.0
    %3373 = vmatpush1.msra.mxu0 0.0
    %3374 = vmatprep.subr.mxu0 0.0
    %3375 = vmatpush1.msra.mxu0 0.0
    %3376 = vmatprep.subr.mxu0 0.0
    %3377 = vmatpush1.msra.mxu0 0.0
    %3378 = vmatprep.subr.mxu0 0.0
    %3379 = vmatpush1.msra.mxu0 0.0
    %3380 = vmatprep.subr.mxu0 0.0
    %3381 = vmatpush1.msra.mxu0 0.0
    %3382 = vmatprep.subr.mxu0 0.0
    %3383 = vmatpush1.msra.mxu0 %v2801
    %3384 = vmatprep.subr.mxu0 0.0
    %3385 = vmatpush2.msra.mxu0 0.0
    %3386 = vmatprep.subr.mxu0 0.0
    %3387 = vmatpush2.msra.mxu0 0.0
    %3388 = vmatprep.subr.mxu0 0.0
    %3389 = vmatpush2.msra.mxu0 0.0
    %3390 = vmatprep.subr.mxu0 0.0
    %3391 = vmatpush2.msra.mxu0 0.0
    %3392 = vmatprep.subr.mxu0 0.0
    %3393 = vmatpush2.msra.mxu0 0.0
    %3394 = vmatprep.subr.mxu0 0.0
    %3395 = vmatpush2.msra.mxu0 0.0
    %3396 = vmatprep.subr.mxu0 0.0
    %3397 = vmatpush2.msra.mxu0 0.0
    %3398 = vmatprep.subr.mxu0 0.0
    %3399 = vmatpush2.msra.mxu0 0.0
    %3400 = vmatprep.subr.mxu0 0.0
    %3401 = vmatpush2.msra.mxu0 0.0
    %3402 = vmatprep.subr.mxu0 0.0
    %3403 = vmatpush2.msra.mxu0 0.0
    %3404 = vmatprep.subr.mxu0 0.0
    %3405 = vmatpush2.msra.mxu0 0.0
    %3406 = vmatprep.subr.mxu0 0.0
    %3407 = vmatpush2.msra.mxu0 0.0
    %3408 = vmatprep.subr.mxu0 0.0
    %3409 = vmatpush2.msra.mxu0 0.0
    %3410 = vmatprep.subr.mxu0 0.0
    %3411 = vmatpush2.msra.mxu0 0.0
    %3412 = vmatprep.subr.mxu0 0.0
    %3413 = vmatpush2.msra.mxu0 0.0
    %3414 = vmatprep.subr.mxu0 0.0
    %3415 = vmatpush2.msra.mxu0 0.0
    %3416 = vmatprep.mubr.f32.mxu0 0.0
    %3417 = vmatmul.mubr.f32.gmra.mxu0 %v3350
    %v3418 = vpop.f32.mrf.mxu0
    %v3419 = vadd.f32 0.0, %v3418
    %v3420 = vpop.f32.mrf.mxu0
    %3421 = vdwg.mxu0
    %3422 = vrot.lane.b32.xlu0 %v331, 72
    %v3423 = vpop.permute.xlu0 %3422
    %v3426 = vsel %vm403, %v3419, 0
    %3428 = vmatprep.subr.mxu0 0.0
    %3429 = vmatpush1.msra.mxu0 0.0
    %3430 = vmatprep.subr.mxu0 0.0
    %3431 = vmatpush1.msra.mxu0 0.0
    %3432 = vmatprep.subr.mxu0 0.0
    %3433 = vmatpush1.msra.mxu0 0.0
    %3434 = vmatprep.subr.mxu0 0.0
    %3435 = vmatpush1.msra.mxu0 0.0
    %3436 = vmatprep.subr.mxu0 0.0
    %3437 = vmatpush1.msra.mxu0 0.0
    %3438 = vmatprep.subr.mxu0 0.0
    %3439 = vmatpush1.msra.mxu0 0.0
    %3440 = vmatprep.subr.mxu0 0.0
    %3441 = vmatpush1.msra.mxu0 0.0
    %3442 = vmatprep.subr.mxu0 0.0
    %3443 = vmatpush1.msra.mxu0 0.0
    %3444 = vmatprep.subr.mxu0 0.0
    %3445 = vmatpush1.msra.mxu0 0.0
    %3446 = vmatprep.subr.mxu0 0.0
    %3447 = vmatpush1.msra.mxu0 0.0
    %3448 = vmatprep.subr.mxu0 0.0
    %3449 = vmatpush1.msra.mxu0 0.0
    %3450 = vmatprep.subr.mxu0 0.0
    %3451 = vmatpush1.msra.mxu0 0.0
    %3452 = vmatprep.subr.mxu0 0.0
    %3453 = vmatpush1.msra.mxu0 0.0
    %3454 = vmatprep.subr.mxu0 0.0
    %3455 = vmatpush1.msra.mxu0 0.0
    %3456 = vmatprep.subr.mxu0 0.0
    %3457 = vmatpush1.msra.mxu0 0.0
    %3458 = vmatprep.subr.mxu0 0.0
    %3459 = vmatpush1.msra.mxu0 %v3338
    %3460 = vmatprep.subr.mxu0 0.0
    %3461 = vmatpush2.msra.mxu0 0.0
    %3462 = vmatprep.subr.mxu0 0.0
    %3463 = vmatpush2.msra.mxu0 0.0
    %3464 = vmatprep.subr.mxu0 0.0
    %3465 = vmatpush2.msra.mxu0 0.0
    %3466 = vmatprep.subr.mxu0 0.0
    %3467 = vmatpush2.msra.mxu0 0.0
    %3468 = vmatprep.subr.mxu0 0.0
    %3469 = vmatpush2.msra.mxu0 0.0
    %3470 = vmatprep.subr.mxu0 0.0
    %3471 = vmatpush2.msra.mxu0 0.0
    %3472 = vmatprep.subr.mxu0 0.0
    %3473 = vmatpush2.msra.mxu0 0.0
    %3474 = vmatprep.subr.mxu0 0.0
    %3475 = vmatpush2.msra.mxu0 0.0
    %3476 = vmatprep.subr.mxu0 0.0
    %3477 = vmatpush2.msra.mxu0 0.0
    %3478 = vmatprep.subr.mxu0 0.0
    %3479 = vmatpush2.msra.mxu0 0.0
    %3480 = vmatprep.subr.mxu0 0.0
    %3481 = vmatpush2.msra.mxu0 0.0
    %3482 = vmatprep.subr.mxu0 0.0
    %3483 = vmatpush2.msra.mxu0 0.0
    %3484 = vmatprep.subr.mxu0 0.0
    %3485 = vmatpush2.msra.mxu0 0.0
    %3486 = vmatprep.subr.mxu0 0.0
    %3487 = vmatpush2.msra.mxu0 0.0
    %3488 = vmatprep.subr.mxu0 0.0
    %3489 = vmatpush2.msra.mxu0 0.0
    %3490 = vmatprep.subr.mxu0 0.0
    %3491 = vmatpush2.msra.mxu0 0.0
    %3492 = vmatprep.mubr.f32.mxu0 0.0
    %3493 = vmatmul.mubr.f32.gmra.mxu0 %v3426
    %v3494 = vpop.f32.mrf.mxu0
    %v3495 = vadd.f32 %v3423, %v3494
    %v3496 = vpop.f32.mrf.mxu0
    %3497 = vdwg.mxu0
    %v3498 = vtanh.pop %v3495
    %v3500 = vsel %vm403, %v3498, 0
    %3502 = vmatprep.subr.mxu0 0.0
    %3503 = vmatpush1.msra.mxu0 0.0
    %3504 = vmatprep.subr.mxu0 0.0
    %3505 = vmatpush1.msra.mxu0 0.0
    %3506 = vmatprep.subr.mxu0 0.0
    %3507 = vmatpush1.msra.mxu0 0.0
    %3508 = vmatprep.subr.mxu0 0.0
    %3509 = vmatpush1.msra.mxu0 0.0
    %3510 = vmatprep.subr.mxu0 0.0
    %3511 = vmatpush1.msra.mxu0 0.0
    %3512 = vmatprep.subr.mxu0 0.0
    %3513 = vmatpush1.msra.mxu0 0.0
    %3514 = vmatprep.subr.mxu0 0.0
    %3515 = vmatpush1.msra.mxu0 0.0
    %3516 = vmatprep.subr.mxu0 0.0
    %3517 = vmatpush1.msra.mxu0 0.0
    %3518 = vmatprep.subr.mxu0 0.0
    %3519 = vmatpush1.msra.mxu0 0.0
    %3520 = vmatprep.subr.mxu0 0.0
    %3521 = vmatpush1.msra.mxu0 0.0
    %3522 = vmatprep.subr.mxu0 0.0
    %3523 = vmatpush1.msra.mxu0 0.0
    %3524 = vmatprep.subr.mxu0 0.0
    %3525 = vmatpush1.msra.mxu0 0.0
    %3526 = vmatprep.subr.mxu0 0.0
    %3527 = vmatpush1.msra.mxu0 0.0
    %3528 = vmatprep.subr.mxu0 0.0
    %3529 = vmatpush1.msra.mxu0 0.0
    %3530 = vmatprep.subr.mxu0 0.0
    %3531 = vmatpush1.msra.mxu0 0.0
    %3532 = vmatprep.subr.mxu0 0.0
    %3533 = vmatpush1.msra.mxu0 %v3348
    %3534 = vmatprep.subr.mxu0 0.0
    %3535 = vmatpush2.msra.mxu0 0.0
    %3536 = vmatprep.subr.mxu0 0.0
    %3537 = vmatpush2.msra.mxu0 0.0
    %3538 = vmatprep.subr.mxu0 0.0
    %3539 = vmatpush2.msra.mxu0 0.0
    %3540 = vmatprep.subr.mxu0 0.0
    %3541 = vmatpush2.msra.mxu0 0.0
    %3542 = vmatprep.subr.mxu0 0.0
    %3543 = vmatpush2.msra.mxu0 0.0
    %3544 = vmatprep.subr.mxu0 0.0
    %3545 = vmatpush2.msra.mxu0 0.0
    %3546 = vmatprep.subr.mxu0 0.0
    %3547 = vmatpush2.msra.mxu0 0.0
    %3548 = vmatprep.subr.mxu0 0.0
    %3549 = vmatpush2.msra.mxu0 0.0
    %3550 = vmatprep.subr.mxu0 0.0
    %3551 = vmatpush2.msra.mxu0 0.0
    %3552 = vmatprep.subr.mxu0 0.0
    %3553 = vmatpush2.msra.mxu0 0.0
    %3554 = vmatprep.subr.mxu0 0.0
    %3555 = vmatpush2.msra.mxu0 0.0
    %3556 = vmatprep.subr.mxu0 0.0
    %3557 = vmatpush2.msra.mxu0 0.0
    %3558 = vmatprep.subr.mxu0 0.0
    %3559 = vmatpush2.msra.mxu0 0.0
    %3560 = vmatprep.subr.mxu0 0.0
    %3561 = vmatpush2.msra.mxu0 0.0
    %3562 = vmatprep.subr.mxu0 0.0
    %3563 = vmatpush2.msra.mxu0 0.0
    %3564 = vmatprep.subr.mxu0 0.0
    %3565 = vmatpush2.msra.mxu0 0.0
    %3566 = vmatprep.mubr.f32.mxu0 0.0
    %3567 = vmatmul.mubr.f32.gmra.mxu0 %v3500
    %v3568 = vpop.f32.mrf.mxu0
    %v3569 = vadd.f32 0.0, %v3568
    %v3570 = vpop.f32.mrf.mxu0
    %3571 = vdwg.mxu0
    %v3573 = vsel %vm403, %v3569, 0
    %3575 = vmatprep.subr.mxu0 0.0
    %3576 = vmatpush1.msra.mxu0 0.0
    %3577 = vmatprep.subr.mxu0 0.0
    %3578 = vmatpush1.msra.mxu0 0.0
    %3579 = vmatprep.subr.mxu0 0.0
    %3580 = vmatpush1.msra.mxu0 0.0
    %3581 = vmatprep.subr.mxu0 0.0
    %3582 = vmatpush1.msra.mxu0 0.0
    %3583 = vmatprep.subr.mxu0 0.0
    %3584 = vmatpush1.msra.mxu0 0.0
    %3585 = vmatprep.subr.mxu0 0.0
    %3586 = vmatpush1.msra.mxu0 0.0
    %3587 = vmatprep.subr.mxu0 0.0
    %3588 = vmatpush1.msra.mxu0 0.0
    %3589 = vmatprep.subr.mxu0 0.0
    %3590 = vmatpush1.msra.mxu0 0.0
    %3591 = vmatprep.subr.mxu0 0.0
    %3592 = vmatpush1.msra.mxu0 0.0
    %3593 = vmatprep.subr.mxu0 0.0
    %3594 = vmatpush1.msra.mxu0 0.0
    %3595 = vmatprep.subr.mxu0 0.0
    %3596 = vmatpush1.msra.mxu0 0.0
    %3597 = vmatprep.subr.mxu0 0.0
    %3598 = vmatpush1.msra.mxu0 0.0
    %3599 = vmatprep.subr.mxu0 0.0
    %3600 = vmatpush1.msra.mxu0 0.0
    %3601 = vmatprep.subr.mxu0 0.0
    %3602 = vmatpush1.msra.mxu0 0.0
    %3603 = vmatprep.subr.mxu0 0.0
    %3604 = vmatpush1.msra.mxu0 0.0
    %3605 = vmatprep.subr.mxu0 0.0
    %3606 = vmatpush1.msra.mxu0 %v3312
    %3607 = vmatprep.subr.mxu0 0.0
    %3608 = vmatpush2.msra.mxu0 0.0
    %3609 = vmatprep.subr.mxu0 0.0
    %3610 = vmatpush2.msra.mxu0 0.0
    %3611 = vmatprep.subr.mxu0 0.0
    %3612 = vmatpush2.msra.mxu0 0.0
    %3613 = vmatprep.subr.mxu0 0.0
    %3614 = vmatpush2.msra.mxu0 0.0
    %3615 = vmatprep.subr.mxu0 0.0
    %3616 = vmatpush2.msra.mxu0 0.0
    %3617 = vmatprep.subr.mxu0 0.0
    %3618 = vmatpush2.msra.mxu0 0.0
    %3619 = vmatprep.subr.mxu0 0.0
    %3620 = vmatpush2.msra.mxu0 0.0
    %3621 = vmatprep.subr.mxu0 0.0
    %3622 = vmatpush2.msra.mxu0 0.0
    %3623 = vmatprep.subr.mxu0 0.0
    %3624 = vmatpush2.msra.mxu0 0.0
    %3625 = vmatprep.subr.mxu0 0.0
    %3626 = vmatpush2.msra.mxu0 0.0
    %3627 = vmatprep.subr.mxu0 0.0
    %3628 = vmatpush2.msra.mxu0 0.0
    %3629 = vmatprep.subr.mxu0 0.0
    %3630 = vmatpush2.msra.mxu0 0.0
    %3631 = vmatprep.subr.mxu0 0.0
    %3632 = vmatpush2.msra.mxu0 0.0
    %3633 = vmatprep.subr.mxu0 0.0
    %3634 = vmatpush2.msra.mxu0 0.0
    %3635 = vmatprep.subr.mxu0 0.0
    %3636 = vmatpush2.msra.mxu0 0.0
    %3637 = vmatprep.subr.mxu0 0.0
    %3638 = vmatpush2.msra.mxu0 0.0
    %3639 = vmatprep.mubr.f32.mxu0 0.0
    %3640 = vmatmul.mubr.f32.gmra.mxu0 %v3573
    %v3641 = vpop.f32.mrf.mxu0
    %v3642 = vadd.f32 %v2084, %v3641
    %v3643 = vpop.f32.mrf.mxu0
    %3644 = vdwg.mxu0
    %v3645 = vmul.f32 %v3498, %v3498
    %v3646 = vsub.f32 1.0, %v3645
    %3647 = vrot.lane.b32.xlu0 %v2093, 104
    %v3648 = vpop.permute.xlu0 %3647
    %v3650 = vmul.f32 %v3646, %v3648
    %v3651 = vadd.f32 %v3650, 1.0
    %v3652 = vlog2.pop %v3651
    %v3653 = vmul.f32 %v3652, 0.6931472
    %v3654 = vsel %vm389, %v3653, 0.0
    %3655 = vadd.xlane.f32.xlu0 %v3654
    %v3656 = vpop.xlane.xlu0 %3655
    %v3657 = vadd.f32 %v2105, %v3656
    %v3658 = vlaneseq
    %v3659 = vshrl.u32 %v3658, 7
    %v3660 = vsub.s32 0, %v3659
    %v3661 = vrot.slane %v3642, %v3660
    %v3662 = vmul.f32 %v380, %v3661
    %v3663 = vadd.f32 %v3662, 0.0
    %v3664 = vlaneseq
    %v3665 = vshrl.u32 %v3664, 7
    %v3666 = vsub.s32 0, %v3665
    %v3667 = vrot.slane %v3657, %v3666
    %v3668 = vmul.f32 %v380, %v3667
    %v3669 = vadd.f32 %v3668, 0.0
    %3670 = vrot.lane.b32.xlu0 %v384, 72
    %v3671 = vpop.permute.xlu0 %3670
    %v3673 = vsel %vm389, %v3671, 0.0
    %3674 = vadd.xlane.f32.xlu0 %v3673
    %v3675 = vpop.xlane.xlu0 %3674
    %v3676 = vadd.f32 %v3675, 1e-12
    %3677 = vrot.lane.b32.xlu0 %v397, 72
    %v3678 = vpop.permute.xlu0 %3677
    %v3680 = vmul.f32 %v374, %v3678
    %v3681 = vsel %vm403, %v3680, 0.0
    %3682 = vadd.xlane.f32.xlu0 %v3681
    %v3683 = vpop.xlane.xlu0 %3682
    %v3684 = vrcp.pop %v3676
    %v3685 = vmul.f32 2.0, %v3684
    %v3686 = vmul.f32 %v3683, %v397
    %v3687 = vlaneseq
    %v3688 = vshrl.u32 %v3687, 7
    %v3689 = vsub.s32 0, %v3688
    %v3690 = vrot.slane %v3685, %v3689
    %v3691 = vmul.f32 %v3690, %v3686
    %3693 = vrot.lane.b32.xlu0 %v3691, 72
    %v3694 = vpop.permute.xlu0 %3693
    %v3696 = vsub.f32 %v374, %v3694
    %3697 = vrot.lane.b32.xlu0 %v384, 40
    %v3698 = vpop.permute.xlu0 %3697
    %v3700 = vsel %vm389, %v3698, 0.0
    %3701 = vadd.xlane.f32.xlu0 %v3700
    %v3702 = vpop.xlane.xlu0 %3701
    %v3703 = vadd.f32 %v3702, 1e-12
    %3704 = vrot.lane.b32.xlu0 %v397, 40
    %v3705 = vpop.permute.xlu0 %3704
    %v3707 = vmul.f32 %v374, %v3705
    %v3708 = vsel %vm403, %v3707, 0.0
    %3709 = vadd.xlane.f32.xlu0 %v3708
    %v3710 = vpop.xlane.xlu0 %3709
    %v3711 = vrcp.pop %v3703
    %v3712 = vmul.f32 2.0, %v3711
    %v3713 = vmul.f32 %v3710, %v397
    %v3714 = vlaneseq
    %v3715 = vshrl.u32 %v3714, 7
    %v3716 = vsub.s32 0, %v3715
    %v3717 = vrot.slane %v3712, %v3716
    %v3718 = vmul.f32 %v3717, %v3713
    %3720 = vrot.lane.b32.xlu0 %v3718, 40
    %v3721 = vpop.permute.xlu0 %3720
    %v3723 = vsub.f32 %v374, %v3721
    %3724 = vrot.lane.b32.xlu0 %v384, 8
    %v3725 = vpop.permute.xlu0 %3724
    %v3727 = vsel %vm389, %v3725, 0.0
    %3728 = vadd.xlane.f32.xlu0 %v3727
    %v3729 = vpop.xlane.xlu0 %3728
    %v3730 = vadd.f32 %v3729, 1e-12
    %3731 = vrot.lane.b32.xlu0 %v397, 8
    %v3732 = vpop.permute.xlu0 %3731
    %v3734 = vmul.f32 %v374, %v3732
    %v3735 = vsel %vm403, %v3734, 0.0
    %3736 = vadd.xlane.f32.xlu0 %v3735
    %v3737 = vpop.xlane.xlu0 %3736
    %v3738 = vrcp.pop %v3730
    %v3739 = vmul.f32 2.0, %v3738
    %v3740 = vmul.f32 %v3737, %v397
    %v3741 = vlaneseq
    %v3742 = vshrl.u32 %v3741, 7
    %v3743 = vsub.s32 0, %v3742
    %v3744 = vrot.slane %v3739, %v3743
    %v3745 = vmul.f32 %v3744, %v3740
    %3747 = vrot.lane.b32.xlu0 %v3745, 8
    %v3748 = vpop.permute.xlu0 %3747
    %v3750 = vsub.f32 %v374, %v3748
    %3751 = vrot.lane.b32.xlu0 %v474, 104
    %v3752 = vpop.permute.xlu0 %3751
    %v3754 = vsel %vm389, %v3752, 0.0
    %3755 = vadd.xlane.f32.xlu0 %v3754
    %v3756 = vpop.xlane.xlu0 %3755
    %v3757 = vadd.f32 %v3756, 1e-12
    %3758 = vrot.lane.b32.xlu0 %v486, 104
    %v3759 = vpop.permute.xlu0 %3758
    %v3761 = vmul.f32 %v374, %v3759
    %v3762 = vsel %vm403, %v3761, 0.0
    %3763 = vadd.xlane.f32.xlu0 %v3762
    %v3764 = vpop.xlane.xlu0 %3763
    %v3765 = vrcp.pop %v3757
    %v3766 = vmul.f32 2.0, %v3765
    %v3767 = vmul.f32 %v3764, %v486
    %v3768 = vlaneseq
    %v3769 = vshrl.u32 %v3768, 7
    %v3770 = vsub.s32 0, %v3769
    %v3771 = vrot.slane %v3766, %v3770
    %v3772 = vmul.f32 %v3771, %v3767
    %3774 = vrot.lane.b32.xlu0 %v3772, 104
    %v3775 = vpop.permute.xlu0 %3774
    %v3777 = vsub.f32 %v374, %v3775
    %v3778 = vsel %vm508, %v3671, 0.0
    %3779 = vadd.xlane.f32.xlu0 %v3778
    %v3780 = vpop.xlane.xlu0 %3779
    %v3781 = vadd.f32 %v3780, 1e-12
    %3782 = vrot.lane.b32.xlu0 %v516, 72
    %v3783 = vpop.permute.xlu0 %3782
    %v3785 = vmul.f32 %v374, %v3783
    %v3786 = vsel %vm403, %v3785, 0.0
    %3787 = vadd.xlane.f32.xlu0 %v3786
    %v3788 = vpop.xlane.xlu0 %3787
    %v3789 = vrcp.pop %v3781
    %v3790 = vmul.f32 2.0, %v3789
    %v3791 = vmul.f32 %v3788, %v516
    %v3792 = vlaneseq
    %v3793 = vshrl.u32 %v3792, 7
    %v3794 = vsub.s32 1, %v3793
    %v3795 = vrot.slane %v3790, %v3794
    %v3796 = vmul.f32 %v3795, %v3791
    %3798 = vrot.lane.b32.xlu0 %v3796, 72
    %v3799 = vpop.permute.xlu0 %3798
    %v3801 = vsub.f32 %v374, %v3799
    %v3802 = vsel %vm508, %v3698, 0.0
    %3803 = vadd.xlane.f32.xlu0 %v3802
    %v3804 = vpop.xlane.xlu0 %3803
    %v3805 = vadd.f32 %v3804, 1e-12
    %3806 = vrot.lane.b32.xlu0 %v516, 40
    %v3807 = vpop.permute.xlu0 %3806
    %v3809 = vmul.f32 %v374, %v3807
    %v3810 = vsel %vm403, %v3809, 0.0
    %3811 = vadd.xlane.f32.xlu0 %v3810
    %v3812 = vpop.xlane.xlu0 %3811
    %v3813 = vrcp.pop %v3805
    %v3814 = vmul.f32 2.0, %v3813
    %v3815 = vmul.f32 %v3812, %v516
    %v3816 = vlaneseq
    %v3817 = vshrl.u32 %v3816, 7
    %v3818 = vsub.s32 1, %v3817
    %v3819 = vrot.slane %v3814, %v3818
    %v3820 = vmul.f32 %v3819, %v3815
    %3822 = vrot.lane.b32.xlu0 %v3820, 40
    %v3823 = vpop.permute.xlu0 %3822
    %v3825 = vsub.f32 %v374, %v3823
    %v3826 = vsel %vm508, %v3725, 0.0
    %3827 = vadd.xlane.f32.xlu0 %v3826
    %v3828 = vpop.xlane.xlu0 %3827
    %v3829 = vadd.f32 %v3828, 1e-12
    %3830 = vrot.lane.b32.xlu0 %v516, 8
    %v3831 = vpop.permute.xlu0 %3830
    %v3833 = vmul.f32 %v374, %v3831
    %v3834 = vsel %vm403, %v3833, 0.0
    %3835 = vadd.xlane.f32.xlu0 %v3834
    %v3836 = vpop.xlane.xlu0 %3835
    %v3837 = vrcp.pop %v3829
    %v3838 = vmul.f32 2.0, %v3837
    %v3839 = vmul.f32 %v3836, %v516
    %v3840 = vlaneseq
    %v3841 = vshrl.u32 %v3840, 7
    %v3842 = vsub.s32 1, %v3841
    %v3843 = vrot.slane %v3838, %v3842
    %v3844 = vmul.f32 %v3843, %v3839
    %3846 = vrot.lane.b32.xlu0 %v3844, 8
    %v3847 = vpop.permute.xlu0 %3846
    %v3849 = vsub.f32 %v374, %v3847
    %v3850 = vsel %vm508, %v3752, 0.0
    %3851 = vadd.xlane.f32.xlu0 %v3850
    %v3852 = vpop.xlane.xlu0 %3851
    %v3853 = vadd.f32 %v3852, 1e-12
    %3854 = vrot.lane.b32.xlu0 %v593, 104
    %v3855 = vpop.permute.xlu0 %3854
    %v3857 = vmul.f32 %v374, %v3855
    %v3858 = vsel %vm403, %v3857, 0.0
    %3859 = vadd.xlane.f32.xlu0 %v3858
    %v3860 = vpop.xlane.xlu0 %3859
    %v3861 = vrcp.pop %v3853
    %v3862 = vmul.f32 2.0, %v3861
    %v3863 = vmul.f32 %v3860, %v593
    %v3864 = vlaneseq
    %v3865 = vshrl.u32 %v3864, 7
    %v3866 = vsub.s32 1, %v3865
    %v3867 = vrot.slane %v3862, %v3866
    %v3868 = vmul.f32 %v3867, %v3863
    %3870 = vrot.lane.b32.xlu0 %v3868, 104
    %v3871 = vpop.permute.xlu0 %3870
    %v3873 = vsub.f32 %v374, %v3871
    %v3875 = vsel %vm403, %v3696, 0
    %3877 = vmatprep.subr.mxu0 0.0
    %3878 = vmatpush1.msra.mxu0 0.0
    %3879 = vmatprep.subr.mxu0 0.0
    %3880 = vmatpush1.msra.mxu0 0.0
    %3881 = vmatprep.subr.mxu0 0.0
    %3882 = vmatpush1.msra.mxu0 0.0
    %3883 = vmatprep.subr.mxu0 0.0
    %3884 = vmatpush1.msra.mxu0 0.0
    %3885 = vmatprep.subr.mxu0 0.0
    %3886 = vmatpush1.msra.mxu0 0.0
    %3887 = vmatprep.subr.mxu0 0.0
    %3888 = vmatpush1.msra.mxu0 0.0
    %3889 = vmatprep.subr.mxu0 0.0
    %3890 = vmatpush1.msra.mxu0 0.0
    %3891 = vmatprep.subr.mxu0 0.0
    %3892 = vmatpush1.msra.mxu0 0.0
    %3893 = vmatprep.subr.mxu0 0.0
    %3894 = vmatpush1.msra.mxu0 0.0
    %3895 = vmatprep.subr.mxu0 0.0
    %3896 = vmatpush1.msra.mxu0 0.0
    %3897 = vmatprep.subr.mxu0 0.0
    %3898 = vmatpush1.msra.mxu0 0.0
    %3899 = vmatprep.subr.mxu0 0.0
    %3900 = vmatpush1.msra.mxu0 0.0
    %3901 = vmatprep.subr.mxu0 0.0
    %3902 = vmatpush1.msra.mxu0 0.0
    %3903 = vmatprep.subr.mxu0 0.0
    %3904 = vmatpush1.msra.mxu0 0.0
    %3905 = vmatprep.subr.mxu0 0.0
    %3906 = vmatpush1.msra.mxu0 0.0
    %3907 = vmatprep.subr.mxu0 0.0
    %3908 = vmatpush1.msra.mxu0 %v3723
    %3909 = vmatprep.subr.mxu0 0.0
    %3910 = vmatpush2.msra.mxu0 0.0
    %3911 = vmatprep.subr.mxu0 0.0
    %3912 = vmatpush2.msra.mxu0 0.0
    %3913 = vmatprep.subr.mxu0 0.0
    %3914 = vmatpush2.msra.mxu0 0.0
    %3915 = vmatprep.subr.mxu0 0.0
    %3916 = vmatpush2.msra.mxu0 0.0
    %3917 = vmatprep.subr.mxu0 0.0
    %3918 = vmatpush2.msra.mxu0 0.0
    %3919 = vmatprep.subr.mxu0 0.0
    %3920 = vmatpush2.msra.mxu0 0.0
    %3921 = vmatprep.subr.mxu0 0.0
    %3922 = vmatpush2.msra.mxu0 0.0
    %3923 = vmatprep.subr.mxu0 0.0
    %3924 = vmatpush2.msra.mxu0 0.0
    %3925 = vmatprep.subr.mxu0 0.0
    %3926 = vmatpush2.msra.mxu0 0.0
    %3927 = vmatprep.subr.mxu0 0.0
    %3928 = vmatpush2.msra.mxu0 0.0
    %3929 = vmatprep.subr.mxu0 0.0
    %3930 = vmatpush2.msra.mxu0 0.0
    %3931 = vmatprep.subr.mxu0 0.0
    %3932 = vmatpush2.msra.mxu0 0.0
    %3933 = vmatprep.subr.mxu0 0.0
    %3934 = vmatpush2.msra.mxu0 0.0
    %3935 = vmatprep.subr.mxu0 0.0
    %3936 = vmatpush2.msra.mxu0 0.0
    %3937 = vmatprep.subr.mxu0 0.0
    %3938 = vmatpush2.msra.mxu0 0.0
    %3939 = vmatprep.subr.mxu0 0.0
    %3940 = vmatpush2.msra.mxu0 0.0
    %3941 = vmatprep.mubr.f32.mxu0 0.0
    %3942 = vmatmul.mubr.f32.gmra.mxu0 %v3875
    %v3943 = vpop.f32.mrf.mxu0
    %v3944 = vadd.f32 0.0, %v3943
    %v3945 = vpop.f32.mrf.mxu0
    %3946 = vdwg.mxu0
    %v3948 = vsel %vm403, %v3944, 0
    %3950 = vmatprep.subr.mxu0 0.0
    %3951 = vmatpush1.msra.mxu0 0.0
    %3952 = vmatprep.subr.mxu0 0.0
    %3953 = vmatpush1.msra.mxu0 0.0
    %3954 = vmatprep.subr.mxu0 0.0
    %3955 = vmatpush1.msra.mxu0 0.0
    %3956 = vmatprep.subr.mxu0 0.0
    %3957 = vmatpush1.msra.mxu0 0.0
    %3958 = vmatprep.subr.mxu0 0.0
    %3959 = vmatpush1.msra.mxu0 0.0
    %3960 = vmatprep.subr.mxu0 0.0
    %3961 = vmatpush1.msra.mxu0 0.0
    %3962 = vmatprep.subr.mxu0 0.0
    %3963 = vmatpush1.msra.mxu0 0.0
    %3964 = vmatprep.subr.mxu0 0.0
    %3965 = vmatpush1.msra.mxu0 0.0
    %3966 = vmatprep.subr.mxu0 0.0
    %3967 = vmatpush1.msra.mxu0 0.0
    %3968 = vmatprep.subr.mxu0 0.0
    %3969 = vmatpush1.msra.mxu0 0.0
    %3970 = vmatprep.subr.mxu0 0.0
    %3971 = vmatpush1.msra.mxu0 0.0
    %3972 = vmatprep.subr.mxu0 0.0
    %3973 = vmatpush1.msra.mxu0 0.0
    %3974 = vmatprep.subr.mxu0 0.0
    %3975 = vmatpush1.msra.mxu0 0.0
    %3976 = vmatprep.subr.mxu0 0.0
    %3977 = vmatpush1.msra.mxu0 0.0
    %3978 = vmatprep.subr.mxu0 0.0
    %3979 = vmatpush1.msra.mxu0 0.0
    %3980 = vmatprep.subr.mxu0 0.0
    %3981 = vmatpush1.msra.mxu0 %v3750
    %3982 = vmatprep.subr.mxu0 0.0
    %3983 = vmatpush2.msra.mxu0 0.0
    %3984 = vmatprep.subr.mxu0 0.0
    %3985 = vmatpush2.msra.mxu0 0.0
    %3986 = vmatprep.subr.mxu0 0.0
    %3987 = vmatpush2.msra.mxu0 0.0
    %3988 = vmatprep.subr.mxu0 0.0
    %3989 = vmatpush2.msra.mxu0 0.0
    %3990 = vmatprep.subr.mxu0 0.0
    %3991 = vmatpush2.msra.mxu0 0.0
    %3992 = vmatprep.subr.mxu0 0.0
    %3993 = vmatpush2.msra.mxu0 0.0
    %3994 = vmatprep.subr.mxu0 0.0
    %3995 = vmatpush2.msra.mxu0 0.0
    %3996 = vmatprep.subr.mxu0 0.0
    %3997 = vmatpush2.msra.mxu0 0.0
    %3998 = vmatprep.subr.mxu0 0.0
    %3999 = vmatpush2.msra.mxu0 0.0
    %4000 = vmatprep.subr.mxu0 0.0
    %4001 = vmatpush2.msra.mxu0 0.0
    %4002 = vmatprep.subr.mxu0 0.0
    %4003 = vmatpush2.msra.mxu0 0.0
    %4004 = vmatprep.subr.mxu0 0.0
    %4005 = vmatpush2.msra.mxu0 0.0
    %4006 = vmatprep.subr.mxu0 0.0
    %4007 = vmatpush2.msra.mxu0 0.0
    %4008 = vmatprep.subr.mxu0 0.0
    %4009 = vmatpush2.msra.mxu0 0.0
    %4010 = vmatprep.subr.mxu0 0.0
    %4011 = vmatpush2.msra.mxu0 0.0
    %4012 = vmatprep.subr.mxu0 0.0
    %4013 = vmatpush2.msra.mxu0 0.0
    %4014 = vmatprep.mubr.f32.mxu0 0.0
    %4015 = vmatmul.mubr.f32.gmra.mxu0 %v3948
    %v4016 = vpop.f32.mrf.mxu0
    %v4017 = vadd.f32 0.0, %v4016
    %v4018 = vpop.f32.mrf.mxu0
    %4019 = vdwg.mxu0
    %v4021 = vsel %vm403, %v4017, 0
    %4023 = vmatprep.subr.mxu0 0.0
    %4024 = vmatpush1.msra.mxu0 0.0
    %4025 = vmatprep.subr.mxu0 0.0
    %4026 = vmatpush1.msra.mxu0 0.0
    %4027 = vmatprep.subr.mxu0 0.0
    %4028 = vmatpush1.msra.mxu0 0.0
    %4029 = vmatprep.subr.mxu0 0.0
    %4030 = vmatpush1.msra.mxu0 0.0
    %4031 = vmatprep.subr.mxu0 0.0
    %4032 = vmatpush1.msra.mxu0 0.0
    %4033 = vmatprep.subr.mxu0 0.0
    %4034 = vmatpush1.msra.mxu0 0.0
    %4035 = vmatprep.subr.mxu0 0.0
    %4036 = vmatpush1.msra.mxu0 0.0
    %4037 = vmatprep.subr.mxu0 0.0
    %4038 = vmatpush1.msra.mxu0 0.0
    %4039 = vmatprep.subr.mxu0 0.0
    %4040 = vmatpush1.msra.mxu0 0.0
    %4041 = vmatprep.subr.mxu0 0.0
    %4042 = vmatpush1.msra.mxu0 0.0
    %4043 = vmatprep.subr.mxu0 0.0
    %4044 = vmatpush1.msra.mxu0 0.0
    %4045 = vmatprep.subr.mxu0 0.0
    %4046 = vmatpush1.msra.mxu0 0.0
    %4047 = vmatprep.subr.mxu0 0.0
    %4048 = vmatpush1.msra.mxu0 0.0
    %4049 = vmatprep.subr.mxu0 0.0
    %4050 = vmatpush1.msra.mxu0 0.0
    %4051 = vmatprep.subr.mxu0 0.0
    %4052 = vmatpush1.msra.mxu0 0.0
    %4053 = vmatprep.subr.mxu0 0.0
    %4054 = vmatpush1.msra.mxu0 %v3777
    %4055 = vmatprep.subr.mxu0 0.0
    %4056 = vmatpush2.msra.mxu0 0.0
    %4057 = vmatprep.subr.mxu0 0.0
    %4058 = vmatpush2.msra.mxu0 0.0
    %4059 = vmatprep.subr.mxu0 0.0
    %4060 = vmatpush2.msra.mxu0 0.0
    %4061 = vmatprep.subr.mxu0 0.0
    %4062 = vmatpush2.msra.mxu0 0.0
    %4063 = vmatprep.subr.mxu0 0.0
    %4064 = vmatpush2.msra.mxu0 0.0
    %4065 = vmatprep.subr.mxu0 0.0
    %4066 = vmatpush2.msra.mxu0 0.0
    %4067 = vmatprep.subr.mxu0 0.0
    %4068 = vmatpush2.msra.mxu0 0.0
    %4069 = vmatprep.subr.mxu0 0.0
    %4070 = vmatpush2.msra.mxu0 0.0
    %4071 = vmatprep.subr.mxu0 0.0
    %4072 = vmatpush2.msra.mxu0 0.0
    %4073 = vmatprep.subr.mxu0 0.0
    %4074 = vmatpush2.msra.mxu0 0.0
    %4075 = vmatprep.subr.mxu0 0.0
    %4076 = vmatpush2.msra.mxu0 0.0
    %4077 = vmatprep.subr.mxu0 0.0
    %4078 = vmatpush2.msra.mxu0 0.0
    %4079 = vmatprep.subr.mxu0 0.0
    %4080 = vmatpush2.msra.mxu0 0.0
    %4081 = vmatprep.subr.mxu0 0.0
    %4082 = vmatpush2.msra.mxu0 0.0
    %4083 = vmatprep.subr.mxu0 0.0
    %4084 = vmatpush2.msra.mxu0 0.0
    %4085 = vmatprep.subr.mxu0 0.0
    %4086 = vmatpush2.msra.mxu0 0.0
    %4087 = vmatprep.mubr.f32.mxu0 0.0
    %4088 = vmatmul.mubr.f32.gmra.mxu0 %v4021
    %v4089 = vpop.f32.mrf.mxu0
    %v4090 = vadd.f32 0.0, %v4089
    %v4091 = vpop.f32.mrf.mxu0
    %4092 = vdwg.mxu0
    %v4094 = vsel %vm403, %v4090, 0
    %4096 = vmatprep.subr.mxu0 0.0
    %4097 = vmatpush1.msra.mxu0 0.0
    %4098 = vmatprep.subr.mxu0 0.0
    %4099 = vmatpush1.msra.mxu0 0.0
    %4100 = vmatprep.subr.mxu0 0.0
    %4101 = vmatpush1.msra.mxu0 0.0
    %4102 = vmatprep.subr.mxu0 0.0
    %4103 = vmatpush1.msra.mxu0 0.0
    %4104 = vmatprep.subr.mxu0 0.0
    %4105 = vmatpush1.msra.mxu0 0.0
    %4106 = vmatprep.subr.mxu0 0.0
    %4107 = vmatpush1.msra.mxu0 0.0
    %4108 = vmatprep.subr.mxu0 0.0
    %4109 = vmatpush1.msra.mxu0 0.0
    %4110 = vmatprep.subr.mxu0 0.0
    %4111 = vmatpush1.msra.mxu0 0.0
    %4112 = vmatprep.subr.mxu0 0.0
    %4113 = vmatpush1.msra.mxu0 0.0
    %4114 = vmatprep.subr.mxu0 0.0
    %4115 = vmatpush1.msra.mxu0 0.0
    %4116 = vmatprep.subr.mxu0 0.0
    %4117 = vmatpush1.msra.mxu0 0.0
    %4118 = vmatprep.subr.mxu0 0.0
    %4119 = vmatpush1.msra.mxu0 0.0
    %4120 = vmatprep.subr.mxu0 0.0
    %4121 = vmatpush1.msra.mxu0 0.0
    %4122 = vmatprep.subr.mxu0 0.0
    %4123 = vmatpush1.msra.mxu0 0.0
    %4124 = vmatprep.subr.mxu0 0.0
    %4125 = vmatpush1.msra.mxu0 0.0
    %4126 = vmatprep.subr.mxu0 0.0
    %4127 = vmatpush1.msra.mxu0 %v3801
    %4128 = vmatprep.subr.mxu0 0.0
    %4129 = vmatpush2.msra.mxu0 0.0
    %4130 = vmatprep.subr.mxu0 0.0
    %4131 = vmatpush2.msra.mxu0 0.0
    %4132 = vmatprep.subr.mxu0 0.0
    %4133 = vmatpush2.msra.mxu0 0.0
    %4134 = vmatprep.subr.mxu0 0.0
    %4135 = vmatpush2.msra.mxu0 0.0
    %4136 = vmatprep.subr.mxu0 0.0
    %4137 = vmatpush2.msra.mxu0 0.0
    %4138 = vmatprep.subr.mxu0 0.0
    %4139 = vmatpush2.msra.mxu0 0.0
    %4140 = vmatprep.subr.mxu0 0.0
    %4141 = vmatpush2.msra.mxu0 0.0
    %4142 = vmatprep.subr.mxu0 0.0
    %4143 = vmatpush2.msra.mxu0 0.0
    %4144 = vmatprep.subr.mxu0 0.0
    %4145 = vmatpush2.msra.mxu0 0.0
    %4146 = vmatprep.subr.mxu0 0.0
    %4147 = vmatpush2.msra.mxu0 0.0
    %4148 = vmatprep.subr.mxu0 0.0
    %4149 = vmatpush2.msra.mxu0 0.0
    %4150 = vmatprep.subr.mxu0 0.0
    %4151 = vmatpush2.msra.mxu0 0.0
    %4152 = vmatprep.subr.mxu0 0.0
    %4153 = vmatpush2.msra.mxu0 0.0
    %4154 = vmatprep.subr.mxu0 0.0
    %4155 = vmatpush2.msra.mxu0 0.0
    %4156 = vmatprep.subr.mxu0 0.0
    %4157 = vmatpush2.msra.mxu0 0.0
    %4158 = vmatprep.subr.mxu0 0.0
    %4159 = vmatpush2.msra.mxu0 0.0
    %4160 = vmatprep.mubr.f32.mxu0 0.0
    %4161 = vmatmul.mubr.f32.gmra.mxu0 %v4094
    %v4162 = vpop.f32.mrf.mxu0
    %v4163 = vadd.f32 0.0, %v4162
    %v4164 = vpop.f32.mrf.mxu0
    %4165 = vdwg.mxu0
    %v4167 = vsel %vm403, %v4163, 0
    %4169 = vmatprep.subr.mxu0 0.0
    %4170 = vmatpush1.msra.mxu0 0.0
    %4171 = vmatprep.subr.mxu0 0.0
    %4172 = vmatpush1.msra.mxu0 0.0
    %4173 = vmatprep.subr.mxu0 0.0
    %4174 = vmatpush1.msra.mxu0 0.0
    %4175 = vmatprep.subr.mxu0 0.0
    %4176 = vmatpush1.msra.mxu0 0.0
    %4177 = vmatprep.subr.mxu0 0.0
    %4178 = vmatpush1.msra.mxu0 0.0
    %4179 = vmatprep.subr.mxu0 0.0
    %4180 = vmatpush1.msra.mxu0 0.0
    %4181 = vmatprep.subr.mxu0 0.0
    %4182 = vmatpush1.msra.mxu0 0.0
    %4183 = vmatprep.subr.mxu0 0.0
    %4184 = vmatpush1.msra.mxu0 0.0
    %4185 = vmatprep.subr.mxu0 0.0
    %4186 = vmatpush1.msra.mxu0 0.0
    %4187 = vmatprep.subr.mxu0 0.0
    %4188 = vmatpush1.msra.mxu0 0.0
    %4189 = vmatprep.subr.mxu0 0.0
    %4190 = vmatpush1.msra.mxu0 0.0
    %4191 = vmatprep.subr.mxu0 0.0
    %4192 = vmatpush1.msra.mxu0 0.0
    %4193 = vmatprep.subr.mxu0 0.0
    %4194 = vmatpush1.msra.mxu0 0.0
    %4195 = vmatprep.subr.mxu0 0.0
    %4196 = vmatpush1.msra.mxu0 0.0
    %4197 = vmatprep.subr.mxu0 0.0
    %4198 = vmatpush1.msra.mxu0 0.0
    %4199 = vmatprep.subr.mxu0 0.0
    %4200 = vmatpush1.msra.mxu0 %v3825
    %4201 = vmatprep.subr.mxu0 0.0
    %4202 = vmatpush2.msra.mxu0 0.0
    %4203 = vmatprep.subr.mxu0 0.0
    %4204 = vmatpush2.msra.mxu0 0.0
    %4205 = vmatprep.subr.mxu0 0.0
    %4206 = vmatpush2.msra.mxu0 0.0
    %4207 = vmatprep.subr.mxu0 0.0
    %4208 = vmatpush2.msra.mxu0 0.0
    %4209 = vmatprep.subr.mxu0 0.0
    %4210 = vmatpush2.msra.mxu0 0.0
    %4211 = vmatprep.subr.mxu0 0.0
    %4212 = vmatpush2.msra.mxu0 0.0
    %4213 = vmatprep.subr.mxu0 0.0
    %4214 = vmatpush2.msra.mxu0 0.0
    %4215 = vmatprep.subr.mxu0 0.0
    %4216 = vmatpush2.msra.mxu0 0.0
    %4217 = vmatprep.subr.mxu0 0.0
    %4218 = vmatpush2.msra.mxu0 0.0
    %4219 = vmatprep.subr.mxu0 0.0
    %4220 = vmatpush2.msra.mxu0 0.0
    %4221 = vmatprep.subr.mxu0 0.0
    %4222 = vmatpush2.msra.mxu0 0.0
    %4223 = vmatprep.subr.mxu0 0.0
    %4224 = vmatpush2.msra.mxu0 0.0
    %4225 = vmatprep.subr.mxu0 0.0
    %4226 = vmatpush2.msra.mxu0 0.0
    %4227 = vmatprep.subr.mxu0 0.0
    %4228 = vmatpush2.msra.mxu0 0.0
    %4229 = vmatprep.subr.mxu0 0.0
    %4230 = vmatpush2.msra.mxu0 0.0
    %4231 = vmatprep.subr.mxu0 0.0
    %4232 = vmatpush2.msra.mxu0 0.0
    %4233 = vmatprep.mubr.f32.mxu0 0.0
    %4234 = vmatmul.mubr.f32.gmra.mxu0 %v4167
    %v4235 = vpop.f32.mrf.mxu0
    %v4236 = vadd.f32 0.0, %v4235
    %v4237 = vpop.f32.mrf.mxu0
    %4238 = vdwg.mxu0
    %v4240 = vsel %vm403, %v4236, 0
    %4242 = vmatprep.subr.mxu0 0.0
    %4243 = vmatpush1.msra.mxu0 0.0
    %4244 = vmatprep.subr.mxu0 0.0
    %4245 = vmatpush1.msra.mxu0 0.0
    %4246 = vmatprep.subr.mxu0 0.0
    %4247 = vmatpush1.msra.mxu0 0.0
    %4248 = vmatprep.subr.mxu0 0.0
    %4249 = vmatpush1.msra.mxu0 0.0
    %4250 = vmatprep.subr.mxu0 0.0
    %4251 = vmatpush1.msra.mxu0 0.0
    %4252 = vmatprep.subr.mxu0 0.0
    %4253 = vmatpush1.msra.mxu0 0.0
    %4254 = vmatprep.subr.mxu0 0.0
    %4255 = vmatpush1.msra.mxu0 0.0
    %4256 = vmatprep.subr.mxu0 0.0
    %4257 = vmatpush1.msra.mxu0 0.0
    %4258 = vmatprep.subr.mxu0 0.0
    %4259 = vmatpush1.msra.mxu0 0.0
    %4260 = vmatprep.subr.mxu0 0.0
    %4261 = vmatpush1.msra.mxu0 0.0
    %4262 = vmatprep.subr.mxu0 0.0
    %4263 = vmatpush1.msra.mxu0 0.0
    %4264 = vmatprep.subr.mxu0 0.0
    %4265 = vmatpush1.msra.mxu0 0.0
    %4266 = vmatprep.subr.mxu0 0.0
    %4267 = vmatpush1.msra.mxu0 0.0
    %4268 = vmatprep.subr.mxu0 0.0
    %4269 = vmatpush1.msra.mxu0 0.0
    %4270 = vmatprep.subr.mxu0 0.0
    %4271 = vmatpush1.msra.mxu0 0.0
    %4272 = vmatprep.subr.mxu0 0.0
    %4273 = vmatpush1.msra.mxu0 %v3849
    %4274 = vmatprep.subr.mxu0 0.0
    %4275 = vmatpush2.msra.mxu0 0.0
    %4276 = vmatprep.subr.mxu0 0.0
    %4277 = vmatpush2.msra.mxu0 0.0
    %4278 = vmatprep.subr.mxu0 0.0
    %4279 = vmatpush2.msra.mxu0 0.0
    %4280 = vmatprep.subr.mxu0 0.0
    %4281 = vmatpush2.msra.mxu0 0.0
    %4282 = vmatprep.subr.mxu0 0.0
    %4283 = vmatpush2.msra.mxu0 0.0
    %4284 = vmatprep.subr.mxu0 0.0
    %4285 = vmatpush2.msra.mxu0 0.0
    %4286 = vmatprep.subr.mxu0 0.0
    %4287 = vmatpush2.msra.mxu0 0.0
    %4288 = vmatprep.subr.mxu0 0.0
    %4289 = vmatpush2.msra.mxu0 0.0
    %4290 = vmatprep.subr.mxu0 0.0
    %4291 = vmatpush2.msra.mxu0 0.0
    %4292 = vmatprep.subr.mxu0 0.0
    %4293 = vmatpush2.msra.mxu0 0.0
    %4294 = vmatprep.subr.mxu0 0.0
    %4295 = vmatpush2.msra.mxu0 0.0
    %4296 = vmatprep.subr.mxu0 0.0
    %4297 = vmatpush2.msra.mxu0 0.0
    %4298 = vmatprep.subr.mxu0 0.0
    %4299 = vmatpush2.msra.mxu0 0.0
    %4300 = vmatprep.subr.mxu0 0.0
    %4301 = vmatpush2.msra.mxu0 0.0
    %4302 = vmatprep.subr.mxu0 0.0
    %4303 = vmatpush2.msra.mxu0 0.0
    %4304 = vmatprep.subr.mxu0 0.0
    %4305 = vmatpush2.msra.mxu0 0.0
    %4306 = vmatprep.mubr.f32.mxu0 0.0
    %4307 = vmatmul.mubr.f32.gmra.mxu0 %v4240
    %v4308 = vpop.f32.mrf.mxu0
    %v4309 = vadd.f32 0.0, %v4308
    %v4310 = vpop.f32.mrf.mxu0
    %4311 = vdwg.mxu0
    %v4313 = vsel %vm403, %v4309, 0
    %4315 = vmatprep.subr.mxu0 0.0
    %4316 = vmatpush1.msra.mxu0 0.0
    %4317 = vmatprep.subr.mxu0 0.0
    %4318 = vmatpush1.msra.mxu0 0.0
    %4319 = vmatprep.subr.mxu0 0.0
    %4320 = vmatpush1.msra.mxu0 0.0
    %4321 = vmatprep.subr.mxu0 0.0
    %4322 = vmatpush1.msra.mxu0 0.0
    %4323 = vmatprep.subr.mxu0 0.0
    %4324 = vmatpush1.msra.mxu0 0.0
    %4325 = vmatprep.subr.mxu0 0.0
    %4326 = vmatpush1.msra.mxu0 0.0
    %4327 = vmatprep.subr.mxu0 0.0
    %4328 = vmatpush1.msra.mxu0 0.0
    %4329 = vmatprep.subr.mxu0 0.0
    %4330 = vmatpush1.msra.mxu0 0.0
    %4331 = vmatprep.subr.mxu0 0.0
    %4332 = vmatpush1.msra.mxu0 0.0
    %4333 = vmatprep.subr.mxu0 0.0
    %4334 = vmatpush1.msra.mxu0 0.0
    %4335 = vmatprep.subr.mxu0 0.0
    %4336 = vmatpush1.msra.mxu0 0.0
    %4337 = vmatprep.subr.mxu0 0.0
    %4338 = vmatpush1.msra.mxu0 0.0
    %4339 = vmatprep.subr.mxu0 0.0
    %4340 = vmatpush1.msra.mxu0 0.0
    %4341 = vmatprep.subr.mxu0 0.0
    %4342 = vmatpush1.msra.mxu0 0.0
    %4343 = vmatprep.subr.mxu0 0.0
    %4344 = vmatpush1.msra.mxu0 0.0
    %4345 = vmatprep.subr.mxu0 0.0
    %4346 = vmatpush1.msra.mxu0 %v3873
    %4347 = vmatprep.subr.mxu0 0.0
    %4348 = vmatpush2.msra.mxu0 0.0
    %4349 = vmatprep.subr.mxu0 0.0
    %4350 = vmatpush2.msra.mxu0 0.0
    %4351 = vmatprep.subr.mxu0 0.0
    %4352 = vmatpush2.msra.mxu0 0.0
    %4353 = vmatprep.subr.mxu0 0.0
    %4354 = vmatpush2.msra.mxu0 0.0
    %4355 = vmatprep.subr.mxu0 0.0
    %4356 = vmatpush2.msra.mxu0 0.0
    %4357 = vmatprep.subr.mxu0 0.0
    %4358 = vmatpush2.msra.mxu0 0.0
    %4359 = vmatprep.subr.mxu0 0.0
    %4360 = vmatpush2.msra.mxu0 0.0
    %4361 = vmatprep.subr.mxu0 0.0
    %4362 = vmatpush2.msra.mxu0 0.0
    %4363 = vmatprep.subr.mxu0 0.0
    %4364 = vmatpush2.msra.mxu0 0.0
    %4365 = vmatprep.subr.mxu0 0.0
    %4366 = vmatpush2.msra.mxu0 0.0
    %4367 = vmatprep.subr.mxu0 0.0
    %4368 = vmatpush2.msra.mxu0 0.0
    %4369 = vmatprep.subr.mxu0 0.0
    %4370 = vmatpush2.msra.mxu0 0.0
    %4371 = vmatprep.subr.mxu0 0.0
    %4372 = vmatpush2.msra.mxu0 0.0
    %4373 = vmatprep.subr.mxu0 0.0
    %4374 = vmatpush2.msra.mxu0 0.0
    %4375 = vmatprep.subr.mxu0 0.0
    %4376 = vmatpush2.msra.mxu0 0.0
    %4377 = vmatprep.subr.mxu0 0.0
    %4378 = vmatpush2.msra.mxu0 0.0
    %4379 = vmatprep.mubr.f32.mxu0 0.0
    %4380 = vmatmul.mubr.f32.gmra.mxu0 %v4313
    %v4381 = vpop.f32.mrf.mxu0
    %v4382 = vadd.f32 0.0, %v4381
    %v4383 = vpop.f32.mrf.mxu0
    %4384 = vdwg.mxu0
    %v4386 = vsel %vm403, %v3873, 0
    %4388 = vmatprep.subr.mxu0 0.0
    %4389 = vmatpush1.msra.mxu0 0.0
    %4390 = vmatprep.subr.mxu0 0.0
    %4391 = vmatpush1.msra.mxu0 0.0
    %4392 = vmatprep.subr.mxu0 0.0
    %4393 = vmatpush1.msra.mxu0 0.0
    %4394 = vmatprep.subr.mxu0 0.0
    %4395 = vmatpush1.msra.mxu0 0.0
    %4396 = vmatprep.subr.mxu0 0.0
    %4397 = vmatpush1.msra.mxu0 0.0
    %4398 = vmatprep.subr.mxu0 0.0
    %4399 = vmatpush1.msra.mxu0 0.0
    %4400 = vmatprep.subr.mxu0 0.0
    %4401 = vmatpush1.msra.mxu0 0.0
    %4402 = vmatprep.subr.mxu0 0.0
    %4403 = vmatpush1.msra.mxu0 0.0
    %4404 = vmatprep.subr.mxu0 0.0
    %4405 = vmatpush1.msra.mxu0 0.0
    %4406 = vmatprep.subr.mxu0 0.0
    %4407 = vmatpush1.msra.mxu0 0.0
    %4408 = vmatprep.subr.mxu0 0.0
    %4409 = vmatpush1.msra.mxu0 0.0
    %4410 = vmatprep.subr.mxu0 0.0
    %4411 = vmatpush1.msra.mxu0 0.0
    %4412 = vmatprep.subr.mxu0 0.0
    %4413 = vmatpush1.msra.mxu0 0.0
    %4414 = vmatprep.subr.mxu0 0.0
    %4415 = vmatpush1.msra.mxu0 0.0
    %4416 = vmatprep.subr.mxu0 0.0
    %4417 = vmatpush1.msra.mxu0 0.0
    %4418 = vmatprep.subr.mxu0 0.0
    %4419 = vmatpush1.msra.mxu0 %v3849
    %4420 = vmatprep.subr.mxu0 0.0
    %4421 = vmatpush2.msra.mxu0 0.0
    %4422 = vmatprep.subr.mxu0 0.0
    %4423 = vmatpush2.msra.mxu0 0.0
    %4424 = vmatprep.subr.mxu0 0.0
    %4425 = vmatpush2.msra.mxu0 0.0
    %4426 = vmatprep.subr.mxu0 0.0
    %4427 = vmatpush2.msra.mxu0 0.0
    %4428 = vmatprep.subr.mxu0 0.0
    %4429 = vmatpush2.msra.mxu0 0.0
    %4430 = vmatprep.subr.mxu0 0.0
    %4431 = vmatpush2.msra.mxu0 0.0
    %4432 = vmatprep.subr.mxu0 0.0
    %4433 = vmatpush2.msra.mxu0 0.0
    %4434 = vmatprep.subr.mxu0 0.0
    %4435 = vmatpush2.msra.mxu0 0.0
    %4436 = vmatprep.subr.mxu0 0.0
    %4437 = vmatpush2.msra.mxu0 0.0
    %4438 = vmatprep.subr.mxu0 0.0
    %4439 = vmatpush2.msra.mxu0 0.0
    %4440 = vmatprep.subr.mxu0 0.0
    %4441 = vmatpush2.msra.mxu0 0.0
    %4442 = vmatprep.subr.mxu0 0.0
    %4443 = vmatpush2.msra.mxu0 0.0
    %4444 = vmatprep.subr.mxu0 0.0
    %4445 = vmatpush2.msra.mxu0 0.0
    %4446 = vmatprep.subr.mxu0 0.0
    %4447 = vmatpush2.msra.mxu0 0.0
    %4448 = vmatprep.subr.mxu0 0.0
    %4449 = vmatpush2.msra.mxu0 0.0
    %4450 = vmatprep.subr.mxu0 0.0
    %4451 = vmatpush2.msra.mxu0 0.0
    %4452 = vmatprep.mubr.f32.mxu0 0.0
    %4453 = vmatmul.mubr.f32.gmra.mxu0 %v4386
    %v4454 = vpop.f32.mrf.mxu0
    %v4455 = vadd.f32 0.0, %v4454
    %v4456 = vpop.f32.mrf.mxu0
    %4457 = vdwg.mxu0
    %v4459 = vsel %vm403, %v4455, 0
    %4461 = vmatprep.subr.mxu0 0.0
    %4462 = vmatpush1.msra.mxu0 0.0
    %4463 = vmatprep.subr.mxu0 0.0
    %4464 = vmatpush1.msra.mxu0 0.0
    %4465 = vmatprep.subr.mxu0 0.0
    %4466 = vmatpush1.msra.mxu0 0.0
    %4467 = vmatprep.subr.mxu0 0.0
    %4468 = vmatpush1.msra.mxu0 0.0
    %4469 = vmatprep.subr.mxu0 0.0
    %4470 = vmatpush1.msra.mxu0 0.0
    %4471 = vmatprep.subr.mxu0 0.0
    %4472 = vmatpush1.msra.mxu0 0.0
    %4473 = vmatprep.subr.mxu0 0.0
    %4474 = vmatpush1.msra.mxu0 0.0
    %4475 = vmatprep.subr.mxu0 0.0
    %4476 = vmatpush1.msra.mxu0 0.0
    %4477 = vmatprep.subr.mxu0 0.0
    %4478 = vmatpush1.msra.mxu0 0.0
    %4479 = vmatprep.subr.mxu0 0.0
    %4480 = vmatpush1.msra.mxu0 0.0
    %4481 = vmatprep.subr.mxu0 0.0
    %4482 = vmatpush1.msra.mxu0 0.0
    %4483 = vmatprep.subr.mxu0 0.0
    %4484 = vmatpush1.msra.mxu0 0.0
    %4485 = vmatprep.subr.mxu0 0.0
    %4486 = vmatpush1.msra.mxu0 0.0
    %4487 = vmatprep.subr.mxu0 0.0
    %4488 = vmatpush1.msra.mxu0 0.0
    %4489 = vmatprep.subr.mxu0 0.0
    %4490 = vmatpush1.msra.mxu0 0.0
    %4491 = vmatprep.subr.mxu0 0.0
    %4492 = vmatpush1.msra.mxu0 %v3825
    %4493 = vmatprep.subr.mxu0 0.0
    %4494 = vmatpush2.msra.mxu0 0.0
    %4495 = vmatprep.subr.mxu0 0.0
    %4496 = vmatpush2.msra.mxu0 0.0
    %4497 = vmatprep.subr.mxu0 0.0
    %4498 = vmatpush2.msra.mxu0 0.0
    %4499 = vmatprep.subr.mxu0 0.0
    %4500 = vmatpush2.msra.mxu0 0.0
    %4501 = vmatprep.subr.mxu0 0.0
    %4502 = vmatpush2.msra.mxu0 0.0
    %4503 = vmatprep.subr.mxu0 0.0
    %4504 = vmatpush2.msra.mxu0 0.0
    %4505 = vmatprep.subr.mxu0 0.0
    %4506 = vmatpush2.msra.mxu0 0.0
    %4507 = vmatprep.subr.mxu0 0.0
    %4508 = vmatpush2.msra.mxu0 0.0
    %4509 = vmatprep.subr.mxu0 0.0
    %4510 = vmatpush2.msra.mxu0 0.0
    %4511 = vmatprep.subr.mxu0 0.0
    %4512 = vmatpush2.msra.mxu0 0.0
    %4513 = vmatprep.subr.mxu0 0.0
    %4514 = vmatpush2.msra.mxu0 0.0
    %4515 = vmatprep.subr.mxu0 0.0
    %4516 = vmatpush2.msra.mxu0 0.0
    %4517 = vmatprep.subr.mxu0 0.0
    %4518 = vmatpush2.msra.mxu0 0.0
    %4519 = vmatprep.subr.mxu0 0.0
    %4520 = vmatpush2.msra.mxu0 0.0
    %4521 = vmatprep.subr.mxu0 0.0
    %4522 = vmatpush2.msra.mxu0 0.0
    %4523 = vmatprep.subr.mxu0 0.0
    %4524 = vmatpush2.msra.mxu0 0.0
    %4525 = vmatprep.mubr.f32.mxu0 0.0
    %4526 = vmatmul.mubr.f32.gmra.mxu0 %v4459
    %v4527 = vpop.f32.mrf.mxu0
    %v4528 = vadd.f32 0.0, %v4527
    %v4529 = vpop.f32.mrf.mxu0
    %4530 = vdwg.mxu0
    %v4532 = vsel %vm403, %v4528, 0
    %4534 = vmatprep.subr.mxu0 0.0
    %4535 = vmatpush1.msra.mxu0 0.0
    %4536 = vmatprep.subr.mxu0 0.0
    %4537 = vmatpush1.msra.mxu0 0.0
    %4538 = vmatprep.subr.mxu0 0.0
    %4539 = vmatpush1.msra.mxu0 0.0
    %4540 = vmatprep.subr.mxu0 0.0
    %4541 = vmatpush1.msra.mxu0 0.0
    %4542 = vmatprep.subr.mxu0 0.0
    %4543 = vmatpush1.msra.mxu0 0.0
    %4544 = vmatprep.subr.mxu0 0.0
    %4545 = vmatpush1.msra.mxu0 0.0
    %4546 = vmatprep.subr.mxu0 0.0
    %4547 = vmatpush1.msra.mxu0 0.0
    %4548 = vmatprep.subr.mxu0 0.0
    %4549 = vmatpush1.msra.mxu0 0.0
    %4550 = vmatprep.subr.mxu0 0.0
    %4551 = vmatpush1.msra.mxu0 0.0
    %4552 = vmatprep.subr.mxu0 0.0
    %4553 = vmatpush1.msra.mxu0 0.0
    %4554 = vmatprep.subr.mxu0 0.0
    %4555 = vmatpush1.msra.mxu0 0.0
    %4556 = vmatprep.subr.mxu0 0.0
    %4557 = vmatpush1.msra.mxu0 0.0
    %4558 = vmatprep.subr.mxu0 0.0
    %4559 = vmatpush1.msra.mxu0 0.0
    %4560 = vmatprep.subr.mxu0 0.0
    %4561 = vmatpush1.msra.mxu0 0.0
    %4562 = vmatprep.subr.mxu0 0.0
    %4563 = vmatpush1.msra.mxu0 0.0
    %4564 = vmatprep.subr.mxu0 0.0
    %4565 = vmatpush1.msra.mxu0 %v3801
    %4566 = vmatprep.subr.mxu0 0.0
    %4567 = vmatpush2.msra.mxu0 0.0
    %4568 = vmatprep.subr.mxu0 0.0
    %4569 = vmatpush2.msra.mxu0 0.0
    %4570 = vmatprep.subr.mxu0 0.0
    %4571 = vmatpush2.msra.mxu0 0.0
    %4572 = vmatprep.subr.mxu0 0.0
    %4573 = vmatpush2.msra.mxu0 0.0
    %4574 = vmatprep.subr.mxu0 0.0
    %4575 = vmatpush2.msra.mxu0 0.0
    %4576 = vmatprep.subr.mxu0 0.0
    %4577 = vmatpush2.msra.mxu0 0.0
    %4578 = vmatprep.subr.mxu0 0.0
    %4579 = vmatpush2.msra.mxu0 0.0
    %4580 = vmatprep.subr.mxu0 0.0
    %4581 = vmatpush2.msra.mxu0 0.0
    %4582 = vmatprep.subr.mxu0 0.0
    %4583 = vmatpush2.msra.mxu0 0.0
    %4584 = vmatprep.subr.mxu0 0.0
    %4585 = vmatpush2.msra.mxu0 0.0
    %4586 = vmatprep.subr.mxu0 0.0
    %4587 = vmatpush2.msra.mxu0 0.0
    %4588 = vmatprep.subr.mxu0 0.0
    %4589 = vmatpush2.msra.mxu0 0.0
    %4590 = vmatprep.subr.mxu0 0.0
    %4591 = vmatpush2.msra.mxu0 0.0
    %4592 = vmatprep.subr.mxu0 0.0
    %4593 = vmatpush2.msra.mxu0 0.0
    %4594 = vmatprep.subr.mxu0 0.0
    %4595 = vmatpush2.msra.mxu0 0.0
    %4596 = vmatprep.subr.mxu0 0.0
    %4597 = vmatpush2.msra.mxu0 0.0
    %4598 = vmatprep.mubr.f32.mxu0 0.0
    %4599 = vmatmul.mubr.f32.gmra.mxu0 %v4532
    %v4600 = vpop.f32.mrf.mxu0
    %v4601 = vadd.f32 0.0, %v4600
    %v4602 = vpop.f32.mrf.mxu0
    %4603 = vdwg.mxu0
    %v4605 = vsel %vm403, %v4601, 0
    %4607 = vmatprep.subr.mxu0 0.0
    %4608 = vmatpush1.msra.mxu0 0.0
    %4609 = vmatprep.subr.mxu0 0.0
    %4610 = vmatpush1.msra.mxu0 0.0
    %4611 = vmatprep.subr.mxu0 0.0
    %4612 = vmatpush1.msra.mxu0 0.0
    %4613 = vmatprep.subr.mxu0 0.0
    %4614 = vmatpush1.msra.mxu0 0.0
    %4615 = vmatprep.subr.mxu0 0.0
    %4616 = vmatpush1.msra.mxu0 0.0
    %4617 = vmatprep.subr.mxu0 0.0
    %4618 = vmatpush1.msra.mxu0 0.0
    %4619 = vmatprep.subr.mxu0 0.0
    %4620 = vmatpush1.msra.mxu0 0.0
    %4621 = vmatprep.subr.mxu0 0.0
    %4622 = vmatpush1.msra.mxu0 0.0
    %4623 = vmatprep.subr.mxu0 0.0
    %4624 = vmatpush1.msra.mxu0 0.0
    %4625 = vmatprep.subr.mxu0 0.0
    %4626 = vmatpush1.msra.mxu0 0.0
    %4627 = vmatprep.subr.mxu0 0.0
    %4628 = vmatpush1.msra.mxu0 0.0
    %4629 = vmatprep.subr.mxu0 0.0
    %4630 = vmatpush1.msra.mxu0 0.0
    %4631 = vmatprep.subr.mxu0 0.0
    %4632 = vmatpush1.msra.mxu0 0.0
    %4633 = vmatprep.subr.mxu0 0.0
    %4634 = vmatpush1.msra.mxu0 0.0
    %4635 = vmatprep.subr.mxu0 0.0
    %4636 = vmatpush1.msra.mxu0 0.0
    %4637 = vmatprep.subr.mxu0 0.0
    %4638 = vmatpush1.msra.mxu0 %v3777
    %4639 = vmatprep.subr.mxu0 0.0
    %4640 = vmatpush2.msra.mxu0 0.0
    %4641 = vmatprep.subr.mxu0 0.0
    %4642 = vmatpush2.msra.mxu0 0.0
    %4643 = vmatprep.subr.mxu0 0.0
    %4644 = vmatpush2.msra.mxu0 0.0
    %4645 = vmatprep.subr.mxu0 0.0
    %4646 = vmatpush2.msra.mxu0 0.0
    %4647 = vmatprep.subr.mxu0 0.0
    %4648 = vmatpush2.msra.mxu0 0.0
    %4649 = vmatprep.subr.mxu0 0.0
    %4650 = vmatpush2.msra.mxu0 0.0
    %4651 = vmatprep.subr.mxu0 0.0
    %4652 = vmatpush2.msra.mxu0 0.0
    %4653 = vmatprep.subr.mxu0 0.0
    %4654 = vmatpush2.msra.mxu0 0.0
    %4655 = vmatprep.subr.mxu0 0.0
    %4656 = vmatpush2.msra.mxu0 0.0
    %4657 = vmatprep.subr.mxu0 0.0
    %4658 = vmatpush2.msra.mxu0 0.0
    %4659 = vmatprep.subr.mxu0 0.0
    %4660 = vmatpush2.msra.mxu0 0.0
    %4661 = vmatprep.subr.mxu0 0.0
    %4662 = vmatpush2.msra.mxu0 0.0
    %4663 = vmatprep.subr.mxu0 0.0
    %4664 = vmatpush2.msra.mxu0 0.0
    %4665 = vmatprep.subr.mxu0 0.0
    %4666 = vmatpush2.msra.mxu0 0.0
    %4667 = vmatprep.subr.mxu0 0.0
    %4668 = vmatpush2.msra.mxu0 0.0
    %4669 = vmatprep.subr.mxu0 0.0
    %4670 = vmatpush2.msra.mxu0 0.0
    %4671 = vmatprep.mubr.f32.mxu0 0.0
    %4672 = vmatmul.mubr.f32.gmra.mxu0 %v4605
    %v4673 = vpop.f32.mrf.mxu0
    %v4674 = vadd.f32 0.0, %v4673
    %v4675 = vpop.f32.mrf.mxu0
    %4676 = vdwg.mxu0
    %v4678 = vsel %vm403, %v4674, 0
    %4680 = vmatprep.subr.mxu0 0.0
    %4681 = vmatpush1.msra.mxu0 0.0
    %4682 = vmatprep.subr.mxu0 0.0
    %4683 = vmatpush1.msra.mxu0 0.0
    %4684 = vmatprep.subr.mxu0 0.0
    %4685 = vmatpush1.msra.mxu0 0.0
    %4686 = vmatprep.subr.mxu0 0.0
    %4687 = vmatpush1.msra.mxu0 0.0
    %4688 = vmatprep.subr.mxu0 0.0
    %4689 = vmatpush1.msra.mxu0 0.0
    %4690 = vmatprep.subr.mxu0 0.0
    %4691 = vmatpush1.msra.mxu0 0.0
    %4692 = vmatprep.subr.mxu0 0.0
    %4693 = vmatpush1.msra.mxu0 0.0
    %4694 = vmatprep.subr.mxu0 0.0
    %4695 = vmatpush1.msra.mxu0 0.0
    %4696 = vmatprep.subr.mxu0 0.0
    %4697 = vmatpush1.msra.mxu0 0.0
    %4698 = vmatprep.subr.mxu0 0.0
    %4699 = vmatpush1.msra.mxu0 0.0
    %4700 = vmatprep.subr.mxu0 0.0
    %4701 = vmatpush1.msra.mxu0 0.0
    %4702 = vmatprep.subr.mxu0 0.0
    %4703 = vmatpush1.msra.mxu0 0.0
    %4704 = vmatprep.subr.mxu0 0.0
    %4705 = vmatpush1.msra.mxu0 0.0
    %4706 = vmatprep.subr.mxu0 0.0
    %4707 = vmatpush1.msra.mxu0 0.0
    %4708 = vmatprep.subr.mxu0 0.0
    %4709 = vmatpush1.msra.mxu0 0.0
    %4710 = vmatprep.subr.mxu0 0.0
    %4711 = vmatpush1.msra.mxu0 %v3750
    %4712 = vmatprep.subr.mxu0 0.0
    %4713 = vmatpush2.msra.mxu0 0.0
    %4714 = vmatprep.subr.mxu0 0.0
    %4715 = vmatpush2.msra.mxu0 0.0
    %4716 = vmatprep.subr.mxu0 0.0
    %4717 = vmatpush2.msra.mxu0 0.0
    %4718 = vmatprep.subr.mxu0 0.0
    %4719 = vmatpush2.msra.mxu0 0.0
    %4720 = vmatprep.subr.mxu0 0.0
    %4721 = vmatpush2.msra.mxu0 0.0
    %4722 = vmatprep.subr.mxu0 0.0
    %4723 = vmatpush2.msra.mxu0 0.0
    %4724 = vmatprep.subr.mxu0 0.0
    %4725 = vmatpush2.msra.mxu0 0.0
    %4726 = vmatprep.subr.mxu0 0.0
    %4727 = vmatpush2.msra.mxu0 0.0
    %4728 = vmatprep.subr.mxu0 0.0
    %4729 = vmatpush2.msra.mxu0 0.0
    %4730 = vmatprep.subr.mxu0 0.0
    %4731 = vmatpush2.msra.mxu0 0.0
    %4732 = vmatprep.subr.mxu0 0.0
    %4733 = vmatpush2.msra.mxu0 0.0
    %4734 = vmatprep.subr.mxu0 0.0
    %4735 = vmatpush2.msra.mxu0 0.0
    %4736 = vmatprep.subr.mxu0 0.0
    %4737 = vmatpush2.msra.mxu0 0.0
    %4738 = vmatprep.subr.mxu0 0.0
    %4739 = vmatpush2.msra.mxu0 0.0
    %4740 = vmatprep.subr.mxu0 0.0
    %4741 = vmatpush2.msra.mxu0 0.0
    %4742 = vmatprep.subr.mxu0 0.0
    %4743 = vmatpush2.msra.mxu0 0.0
    %4744 = vmatprep.mubr.f32.mxu0 0.0
    %4745 = vmatmul.mubr.f32.gmra.mxu0 %v4678
    %v4746 = vpop.f32.mrf.mxu0
    %v4747 = vadd.f32 0.0, %v4746
    %v4748 = vpop.f32.mrf.mxu0
    %4749 = vdwg.mxu0
    %v4751 = vsel %vm403, %v4747, 0
    %4753 = vmatprep.subr.mxu0 0.0
    %4754 = vmatpush1.msra.mxu0 0.0
    %4755 = vmatprep.subr.mxu0 0.0
    %4756 = vmatpush1.msra.mxu0 0.0
    %4757 = vmatprep.subr.mxu0 0.0
    %4758 = vmatpush1.msra.mxu0 0.0
    %4759 = vmatprep.subr.mxu0 0.0
    %4760 = vmatpush1.msra.mxu0 0.0
    %4761 = vmatprep.subr.mxu0 0.0
    %4762 = vmatpush1.msra.mxu0 0.0
    %4763 = vmatprep.subr.mxu0 0.0
    %4764 = vmatpush1.msra.mxu0 0.0
    %4765 = vmatprep.subr.mxu0 0.0
    %4766 = vmatpush1.msra.mxu0 0.0
    %4767 = vmatprep.subr.mxu0 0.0
    %4768 = vmatpush1.msra.mxu0 0.0
    %4769 = vmatprep.subr.mxu0 0.0
    %4770 = vmatpush1.msra.mxu0 0.0
    %4771 = vmatprep.subr.mxu0 0.0
    %4772 = vmatpush1.msra.mxu0 0.0
    %4773 = vmatprep.subr.mxu0 0.0
    %4774 = vmatpush1.msra.mxu0 0.0
    %4775 = vmatprep.subr.mxu0 0.0
    %4776 = vmatpush1.msra.mxu0 0.0
    %4777 = vmatprep.subr.mxu0 0.0
    %4778 = vmatpush1.msra.mxu0 0.0
    %4779 = vmatprep.subr.mxu0 0.0
    %4780 = vmatpush1.msra.mxu0 0.0
    %4781 = vmatprep.subr.mxu0 0.0
    %4782 = vmatpush1.msra.mxu0 0.0
    %4783 = vmatprep.subr.mxu0 0.0
    %4784 = vmatpush1.msra.mxu0 %v3723
    %4785 = vmatprep.subr.mxu0 0.0
    %4786 = vmatpush2.msra.mxu0 0.0
    %4787 = vmatprep.subr.mxu0 0.0
    %4788 = vmatpush2.msra.mxu0 0.0
    %4789 = vmatprep.subr.mxu0 0.0
    %4790 = vmatpush2.msra.mxu0 0.0
    %4791 = vmatprep.subr.mxu0 0.0
    %4792 = vmatpush2.msra.mxu0 0.0
    %4793 = vmatprep.subr.mxu0 0.0
    %4794 = vmatpush2.msra.mxu0 0.0
    %4795 = vmatprep.subr.mxu0 0.0
    %4796 = vmatpush2.msra.mxu0 0.0
    %4797 = vmatprep.subr.mxu0 0.0
    %4798 = vmatpush2.msra.mxu0 0.0
    %4799 = vmatprep.subr.mxu0 0.0
    %4800 = vmatpush2.msra.mxu0 0.0
    %4801 = vmatprep.subr.mxu0 0.0
    %4802 = vmatpush2.msra.mxu0 0.0
    %4803 = vmatprep.subr.mxu0 0.0
    %4804 = vmatpush2.msra.mxu0 0.0
    %4805 = vmatprep.subr.mxu0 0.0
    %4806 = vmatpush2.msra.mxu0 0.0
    %4807 = vmatprep.subr.mxu0 0.0
    %4808 = vmatpush2.msra.mxu0 0.0
    %4809 = vmatprep.subr.mxu0 0.0
    %4810 = vmatpush2.msra.mxu0 0.0
    %4811 = vmatprep.subr.mxu0 0.0
    %4812 = vmatpush2.msra.mxu0 0.0
    %4813 = vmatprep.subr.mxu0 0.0
    %4814 = vmatpush2.msra.mxu0 0.0
    %4815 = vmatprep.subr.mxu0 0.0
    %4816 = vmatpush2.msra.mxu0 0.0
    %4817 = vmatprep.mubr.f32.mxu0 0.0
    %4818 = vmatmul.mubr.f32.gmra.mxu0 %v4751
    %v4819 = vpop.f32.mrf.mxu0
    %v4820 = vadd.f32 0.0, %v4819
    %v4821 = vpop.f32.mrf.mxu0
    %4822 = vdwg.mxu0
    %v4824 = vsel %vm403, %v4820, 0
    %4826 = vmatprep.subr.mxu0 0.0
    %4827 = vmatpush1.msra.mxu0 0.0
    %4828 = vmatprep.subr.mxu0 0.0
    %4829 = vmatpush1.msra.mxu0 0.0
    %4830 = vmatprep.subr.mxu0 0.0
    %4831 = vmatpush1.msra.mxu0 0.0
    %4832 = vmatprep.subr.mxu0 0.0
    %4833 = vmatpush1.msra.mxu0 0.0
    %4834 = vmatprep.subr.mxu0 0.0
    %4835 = vmatpush1.msra.mxu0 0.0
    %4836 = vmatprep.subr.mxu0 0.0
    %4837 = vmatpush1.msra.mxu0 0.0
    %4838 = vmatprep.subr.mxu0 0.0
    %4839 = vmatpush1.msra.mxu0 0.0
    %4840 = vmatprep.subr.mxu0 0.0
    %4841 = vmatpush1.msra.mxu0 0.0
    %4842 = vmatprep.subr.mxu0 0.0
    %4843 = vmatpush1.msra.mxu0 0.0
    %4844 = vmatprep.subr.mxu0 0.0
    %4845 = vmatpush1.msra.mxu0 0.0
    %4846 = vmatprep.subr.mxu0 0.0
    %4847 = vmatpush1.msra.mxu0 0.0
    %4848 = vmatprep.subr.mxu0 0.0
    %4849 = vmatpush1.msra.mxu0 0.0
    %4850 = vmatprep.subr.mxu0 0.0
    %4851 = vmatpush1.msra.mxu0 0.0
    %4852 = vmatprep.subr.mxu0 0.0
    %4853 = vmatpush1.msra.mxu0 0.0
    %4854 = vmatprep.subr.mxu0 0.0
    %4855 = vmatpush1.msra.mxu0 0.0
    %4856 = vmatprep.subr.mxu0 0.0
    %4857 = vmatpush1.msra.mxu0 %v3696
    %4858 = vmatprep.subr.mxu0 0.0
    %4859 = vmatpush2.msra.mxu0 0.0
    %4860 = vmatprep.subr.mxu0 0.0
    %4861 = vmatpush2.msra.mxu0 0.0
    %4862 = vmatprep.subr.mxu0 0.0
    %4863 = vmatpush2.msra.mxu0 0.0
    %4864 = vmatprep.subr.mxu0 0.0
    %4865 = vmatpush2.msra.mxu0 0.0
    %4866 = vmatprep.subr.mxu0 0.0
    %4867 = vmatpush2.msra.mxu0 0.0
    %4868 = vmatprep.subr.mxu0 0.0
    %4869 = vmatpush2.msra.mxu0 0.0
    %4870 = vmatprep.subr.mxu0 0.0
    %4871 = vmatpush2.msra.mxu0 0.0
    %4872 = vmatprep.subr.mxu0 0.0
    %4873 = vmatpush2.msra.mxu0 0.0
    %4874 = vmatprep.subr.mxu0 0.0
    %4875 = vmatpush2.msra.mxu0 0.0
    %4876 = vmatprep.subr.mxu0 0.0
    %4877 = vmatpush2.msra.mxu0 0.0
    %4878 = vmatprep.subr.mxu0 0.0
    %4879 = vmatpush2.msra.mxu0 0.0
    %4880 = vmatprep.subr.mxu0 0.0
    %4881 = vmatpush2.msra.mxu0 0.0
    %4882 = vmatprep.subr.mxu0 0.0
    %4883 = vmatpush2.msra.mxu0 0.0
    %4884 = vmatprep.subr.mxu0 0.0
    %4885 = vmatpush2.msra.mxu0 0.0
    %4886 = vmatprep.subr.mxu0 0.0
    %4887 = vmatpush2.msra.mxu0 0.0
    %4888 = vmatprep.subr.mxu0 0.0
    %4889 = vmatpush2.msra.mxu0 0.0
    %4890 = vmatprep.mubr.f32.mxu0 0.0
    %4891 = vmatmul.mubr.f32.gmra.mxu0 %v4824
    %v4892 = vpop.f32.mrf.mxu0
    %v4893 = vadd.f32 0.0, %v4892
    %v4894 = vpop.f32.mrf.mxu0
    %4895 = vdwg.mxu0
    %v4896 = vlaneseq
    %v4897 = vshrl.u32 %v4896, 7
    %v4898 = vsub.s32 1, %v4897
    %v4899 = vrot.slane %v258, %v4898
    %v4900 = vmul.f32 %v1640, %v4899
    %v4901 = vmul.f32 %v1649, %v4899
    %4903 = vrot.lane.b32.xlu0 %v4901, 120
    %v4904 = vpop.permute.xlu0 %4903
    %v4906 = vadd.f32 %v4900, %v4904
    %v4907 = vmul.f32 %v1659, %v4899
    %4909 = vrot.lane.b32.xlu0 %v4907, 112
    %v4910 = vpop.permute.xlu0 %4909
    %v4912 = vadd.f32 %v4906, %v4910
    %v4913 = vmul.f32 %v1669, %v4899
    %4915 = vrot.lane.b32.xlu0 %v4913, 104
    %v4916 = vpop.permute.xlu0 %4915
    %v4918 = vadd.f32 %v4912, %v4916
    %v4919 = vmul.f32 %v1679, %v4899
    %4921 = vrot.lane.b32.xlu0 %v4919, 96
    %v4922 = vpop.permute.xlu0 %4921
    %v4924 = vadd.f32 %v4918, %v4922
    %v4925 = vmul.f32 %v1689, %v4899
    %4927 = vrot.lane.b32.xlu0 %v4925, 88
    %v4928 = vpop.permute.xlu0 %4927
    %v4930 = vadd.f32 %v4924, %v4928
    %v4931 = vmul.f32 %v1699, %v4899
    %4933 = vrot.lane.b32.xlu0 %v4931, 80
    %v4934 = vpop.permute.xlu0 %4933
    %v4936 = vadd.f32 %v4930, %v4934
    %v4937 = vmul.f32 %v1709, %v4899
    %4939 = vrot.lane.b32.xlu0 %v4937, 72
    %v4940 = vpop.permute.xlu0 %4939
    %v4942 = vadd.f32 %v4936, %v4940
    %v4943 = vlaneseq
    %v4944 = vshrl.u32 %v4943, 7
    %v4945 = vsub.s32 1, %v4944
    %v4946 = vrot.slane %v260, %v4945
    %v4947 = vmul.f32 %v1640, %v4946
    %v4948 = vmul.f32 %v1649, %v4946
    %4950 = vrot.lane.b32.xlu0 %v4948, 120
    %v4951 = vpop.permute.xlu0 %4950
    %v4953 = vadd.f32 %v4947, %v4951
    %v4954 = vmul.f32 %v1659, %v4946
    %4956 = vrot.lane.b32.xlu0 %v4954, 112
    %v4957 = vpop.permute.xlu0 %4956
    %v4959 = vadd.f32 %v4953, %v4957
    %v4960 = vmul.f32 %v1669, %v4946
    %4962 = vrot.lane.b32.xlu0 %v4960, 104
    %v4963 = vpop.permute.xlu0 %4962
    %v4965 = vadd.f32 %v4959, %v4963
    %v4966 = vmul.f32 %v1679, %v4946
    %4968 = vrot.lane.b32.xlu0 %v4966, 96
    %v4969 = vpop.permute.xlu0 %4968
    %v4971 = vadd.f32 %v4965, %v4969
    %v4972 = vmul.f32 %v1689, %v4946
    %4974 = vrot.lane.b32.xlu0 %v4972, 88
    %v4975 = vpop.permute.xlu0 %4974
    %v4977 = vadd.f32 %v4971, %v4975
    %v4978 = vmul.f32 %v1699, %v4946
    %4980 = vrot.lane.b32.xlu0 %v4978, 80
    %v4981 = vpop.permute.xlu0 %4980
    %v4983 = vadd.f32 %v4977, %v4981
    %v4984 = vmul.f32 %v1709, %v4946
    %4986 = vrot.lane.b32.xlu0 %v4984, 72
    %v4987 = vpop.permute.xlu0 %4986
    %v4989 = vadd.f32 %v4983, %v4987
    %4991 = vrot.lane.b32.xlu0 %v4942, 112
    %v4992 = vpop.permute.xlu0 %4991
    %v4994 = vmul.f32 %v377, %v4992
    %v4995 = vlaneseq
    %v4996 = vshrl.u32 %v4995, 7
    %v4997 = vsub.s32 1, %v4996
    %v4998 = vrot.slane %v1764, %v4997
    %5000 = vrot.lane.b32.xlu0 %v4998, 96
    %v5001 = vpop.permute.xlu0 %5000
    %v5003 = vmul.f32 %v374, %v5001
    %v5004 = vadd.f32 %v4994, %v5003
    %5006 = vrot.lane.b32.xlu0 %v4989, 112
    %v5007 = vpop.permute.xlu0 %5006
    %v5009 = vmul.f32 %v377, %v5007
    %5010 = vrot.lane.b32.xlu0 %v4998, 112
    %v5011 = vpop.permute.xlu0 %5010
    %v5013 = vmul.f32 %v374, %v5011
    %v5014 = vadd.f32 %v5009, %v5013
    %v5015 = vrot.slane %v366, 1
    %v5016 = vsel %vm403, %v5015, 0
    %5018 = vmatprep.subr.mxu0 0.0
    %5019 = vmatpush1.msra.mxu0 0.0
    %5020 = vmatprep.subr.mxu0 0.0
    %5021 = vmatpush1.msra.mxu0 0.0
    %5022 = vmatprep.subr.mxu0 0.0
    %5023 = vmatpush1.msra.mxu0 0.0
    %5024 = vmatprep.subr.mxu0 0.0
    %5025 = vmatpush1.msra.mxu0 0.0
    %5026 = vmatprep.subr.mxu0 0.0
    %5027 = vmatpush1.msra.mxu0 0.0
    %5028 = vmatprep.subr.mxu0 0.0
    %5029 = vmatpush1.msra.mxu0 0.0
    %5030 = vmatprep.subr.mxu0 0.0
    %5031 = vmatpush1.msra.mxu0 0.0
    %5032 = vmatprep.subr.mxu0 0.0
    %5033 = vmatpush1.msra.mxu0 0.0
    %5034 = vmatprep.subr.mxu0 0.0
    %5035 = vmatpush1.msra.mxu0 0.0
    %5036 = vmatprep.subr.mxu0 0.0
    %5037 = vmatpush1.msra.mxu0 0.0
    %5038 = vmatprep.subr.mxu0 0.0
    %5039 = vmatpush1.msra.mxu0 0.0
    %5040 = vmatprep.subr.mxu0 0.0
    %5041 = vmatpush1.msra.mxu0 0.0
    %5042 = vmatprep.subr.mxu0 0.0
    %5043 = vmatpush1.msra.mxu0 0.0
    %5044 = vmatprep.subr.mxu0 0.0
    %5045 = vmatpush1.msra.mxu0 0.0
    %5046 = vmatprep.subr.mxu0 0.0
    %5047 = vmatpush1.msra.mxu0 0.0
    %5048 = vmatprep.subr.mxu0 0.0
    %5049 = vmatpush1.msra.mxu0 %v4382
    %5050 = vmatprep.subr.mxu0 0.0
    %5051 = vmatpush2.msra.mxu0 0.0
    %5052 = vmatprep.subr.mxu0 0.0
    %5053 = vmatpush2.msra.mxu0 0.0
    %5054 = vmatprep.subr.mxu0 0.0
    %5055 = vmatpush2.msra.mxu0 0.0
    %5056 = vmatprep.subr.mxu0 0.0
    %5057 = vmatpush2.msra.mxu0 0.0
    %5058 = vmatprep.subr.mxu0 0.0
    %5059 = vmatpush2.msra.mxu0 0.0
    %5060 = vmatprep.subr.mxu0 0.0
    %5061 = vmatpush2.msra.mxu0 0.0
    %5062 = vmatprep.subr.mxu0 0.0
    %5063 = vmatpush2.msra.mxu0 0.0
    %5064 = vmatprep.subr.mxu0 0.0
    %5065 = vmatpush2.msra.mxu0 0.0
    %5066 = vmatprep.subr.mxu0 0.0
    %5067 = vmatpush2.msra.mxu0 0.0
    %5068 = vmatprep.subr.mxu0 0.0
    %5069 = vmatpush2.msra.mxu0 0.0
    %5070 = vmatprep.subr.mxu0 0.0
    %5071 = vmatpush2.msra.mxu0 0.0
    %5072 = vmatprep.subr.mxu0 0.0
    %5073 = vmatpush2.msra.mxu0 0.0
    %5074 = vmatprep.subr.mxu0 0.0
    %5075 = vmatpush2.msra.mxu0 0.0
    %5076 = vmatprep.subr.mxu0 0.0
    %5077 = vmatpush2.msra.mxu0 0.0
    %5078 = vmatprep.subr.mxu0 0.0
    %5079 = vmatpush2.msra.mxu0 0.0
    %5080 = vmatprep.subr.mxu0 0.0
    %5081 = vmatpush2.msra.mxu0 0.0
    %5082 = vmatprep.mubr.f32.mxu0 0.0
    %5083 = vmatmul.mubr.f32.gmra.mxu0 %v5016
    %v5084 = vpop.f32.mrf.mxu0
    %v5085 = vadd.f32 0.0, %v5084
    %v5086 = vpop.f32.mrf.mxu0
    %5087 = vdwg.mxu0
    %v5088 = vrot.slane %v331, 1
    %5089 = vrot.lane.b32.xlu0 %v5088, 80
    %v5090 = vpop.permute.xlu0 %5089
    %v5093 = vsel %vm403, %v5085, 0
    %5095 = vmatprep.subr.mxu0 0.0
    %5096 = vmatpush1.msra.mxu0 0.0
    %5097 = vmatprep.subr.mxu0 0.0
    %5098 = vmatpush1.msra.mxu0 0.0
    %5099 = vmatprep.subr.mxu0 0.0
    %5100 = vmatpush1.msra.mxu0 0.0
    %5101 = vmatprep.subr.mxu0 0.0
    %5102 = vmatpush1.msra.mxu0 0.0
    %5103 = vmatprep.subr.mxu0 0.0
    %5104 = vmatpush1.msra.mxu0 0.0
    %5105 = vmatprep.subr.mxu0 0.0
    %5106 = vmatpush1.msra.mxu0 0.0
    %5107 = vmatprep.subr.mxu0 0.0
    %5108 = vmatpush1.msra.mxu0 0.0
    %5109 = vmatprep.subr.mxu0 0.0
    %5110 = vmatpush1.msra.mxu0 0.0
    %5111 = vmatprep.subr.mxu0 0.0
    %5112 = vmatpush1.msra.mxu0 0.0
    %5113 = vmatprep.subr.mxu0 0.0
    %5114 = vmatpush1.msra.mxu0 0.0
    %5115 = vmatprep.subr.mxu0 0.0
    %5116 = vmatpush1.msra.mxu0 0.0
    %5117 = vmatprep.subr.mxu0 0.0
    %5118 = vmatpush1.msra.mxu0 0.0
    %5119 = vmatprep.subr.mxu0 0.0
    %5120 = vmatpush1.msra.mxu0 0.0
    %5121 = vmatprep.subr.mxu0 0.0
    %5122 = vmatpush1.msra.mxu0 0.0
    %5123 = vmatprep.subr.mxu0 0.0
    %5124 = vmatpush1.msra.mxu0 0.0
    %5125 = vmatprep.subr.mxu0 0.0
    %5126 = vmatpush1.msra.mxu0 %v5004
    %5127 = vmatprep.subr.mxu0 0.0
    %5128 = vmatpush2.msra.mxu0 0.0
    %5129 = vmatprep.subr.mxu0 0.0
    %5130 = vmatpush2.msra.mxu0 0.0
    %5131 = vmatprep.subr.mxu0 0.0
    %5132 = vmatpush2.msra.mxu0 0.0
    %5133 = vmatprep.subr.mxu0 0.0
    %5134 = vmatpush2.msra.mxu0 0.0
    %5135 = vmatprep.subr.mxu0 0.0
    %5136 = vmatpush2.msra.mxu0 0.0
    %5137 = vmatprep.subr.mxu0 0.0
    %5138 = vmatpush2.msra.mxu0 0.0
    %5139 = vmatprep.subr.mxu0 0.0
    %5140 = vmatpush2.msra.mxu0 0.0
    %5141 = vmatprep.subr.mxu0 0.0
    %5142 = vmatpush2.msra.mxu0 0.0
    %5143 = vmatprep.subr.mxu0 0.0
    %5144 = vmatpush2.msra.mxu0 0.0
    %5145 = vmatprep.subr.mxu0 0.0
    %5146 = vmatpush2.msra.mxu0 0.0
    %5147 = vmatprep.subr.mxu0 0.0
    %5148 = vmatpush2.msra.mxu0 0.0
    %5149 = vmatprep.subr.mxu0 0.0
    %5150 = vmatpush2.msra.mxu0 0.0
    %5151 = vmatprep.subr.mxu0 0.0
    %5152 = vmatpush2.msra.mxu0 0.0
    %5153 = vmatprep.subr.mxu0 0.0
    %5154 = vmatpush2.msra.mxu0 0.0
    %5155 = vmatprep.subr.mxu0 0.0
    %5156 = vmatpush2.msra.mxu0 0.0
    %5157 = vmatprep.subr.mxu0 0.0
    %5158 = vmatpush2.msra.mxu0 0.0
    %5159 = vmatprep.mubr.f32.mxu0 0.0
    %5160 = vmatmul.mubr.f32.gmra.mxu0 %v5093
    %v5161 = vpop.f32.mrf.mxu0
    %v5162 = vadd.f32 %v5090, %v5161
    %v5163 = vpop.f32.mrf.mxu0
    %5164 = vdwg.mxu0
    %v5165 = vtanh.pop %v5162
    %v5167 = vsel %vm403, %v5165, 0
    %5169 = vmatprep.subr.mxu0 0.0
    %5170 = vmatpush1.msra.mxu0 0.0
    %5171 = vmatprep.subr.mxu0 0.0
    %5172 = vmatpush1.msra.mxu0 0.0
    %5173 = vmatprep.subr.mxu0 0.0
    %5174 = vmatpush1.msra.mxu0 0.0
    %5175 = vmatprep.subr.mxu0 0.0
    %5176 = vmatpush1.msra.mxu0 0.0
    %5177 = vmatprep.subr.mxu0 0.0
    %5178 = vmatpush1.msra.mxu0 0.0
    %5179 = vmatprep.subr.mxu0 0.0
    %5180 = vmatpush1.msra.mxu0 0.0
    %5181 = vmatprep.subr.mxu0 0.0
    %5182 = vmatpush1.msra.mxu0 0.0
    %5183 = vmatprep.subr.mxu0 0.0
    %5184 = vmatpush1.msra.mxu0 0.0
    %5185 = vmatprep.subr.mxu0 0.0
    %5186 = vmatpush1.msra.mxu0 0.0
    %5187 = vmatprep.subr.mxu0 0.0
    %5188 = vmatpush1.msra.mxu0 0.0
    %5189 = vmatprep.subr.mxu0 0.0
    %5190 = vmatpush1.msra.mxu0 0.0
    %5191 = vmatprep.subr.mxu0 0.0
    %5192 = vmatpush1.msra.mxu0 0.0
    %5193 = vmatprep.subr.mxu0 0.0
    %5194 = vmatpush1.msra.mxu0 0.0
    %5195 = vmatprep.subr.mxu0 0.0
    %5196 = vmatpush1.msra.mxu0 0.0
    %5197 = vmatprep.subr.mxu0 0.0
    %5198 = vmatpush1.msra.mxu0 0.0
    %5199 = vmatprep.subr.mxu0 0.0
    %5200 = vmatpush1.msra.mxu0 %v5014
    %5201 = vmatprep.subr.mxu0 0.0
    %5202 = vmatpush2.msra.mxu0 0.0
    %5203 = vmatprep.subr.mxu0 0.0
    %5204 = vmatpush2.msra.mxu0 0.0
    %5205 = vmatprep.subr.mxu0 0.0
    %5206 = vmatpush2.msra.mxu0 0.0
    %5207 = vmatprep.subr.mxu0 0.0
    %5208 = vmatpush2.msra.mxu0 0.0
    %5209 = vmatprep.subr.mxu0 0.0
    %5210 = vmatpush2.msra.mxu0 0.0
    %5211 = vmatprep.subr.mxu0 0.0
    %5212 = vmatpush2.msra.mxu0 0.0
    %5213 = vmatprep.subr.mxu0 0.0
    %5214 = vmatpush2.msra.mxu0 0.0
    %5215 = vmatprep.subr.mxu0 0.0
    %5216 = vmatpush2.msra.mxu0 0.0
    %5217 = vmatprep.subr.mxu0 0.0
    %5218 = vmatpush2.msra.mxu0 0.0
    %5219 = vmatprep.subr.mxu0 0.0
    %5220 = vmatpush2.msra.mxu0 0.0
    %5221 = vmatprep.subr.mxu0 0.0
    %5222 = vmatpush2.msra.mxu0 0.0
    %5223 = vmatprep.subr.mxu0 0.0
    %5224 = vmatpush2.msra.mxu0 0.0
    %5225 = vmatprep.subr.mxu0 0.0
    %5226 = vmatpush2.msra.mxu0 0.0
    %5227 = vmatprep.subr.mxu0 0.0
    %5228 = vmatpush2.msra.mxu0 0.0
    %5229 = vmatprep.subr.mxu0 0.0
    %5230 = vmatpush2.msra.mxu0 0.0
    %5231 = vmatprep.subr.mxu0 0.0
    %5232 = vmatpush2.msra.mxu0 0.0
    %5233 = vmatprep.mubr.f32.mxu0 0.0
    %5234 = vmatmul.mubr.f32.gmra.mxu0 %v5167
    %v5235 = vpop.f32.mrf.mxu0
    %v5236 = vadd.f32 0.0, %v5235
    %v5237 = vpop.f32.mrf.mxu0
    %5238 = vdwg.mxu0
    %v5241 = vsel %vm403, %v5236, 0
    %5243 = vmatprep.subr.mxu0 0.0
    %5244 = vmatpush1.msra.mxu0 0.0
    %5245 = vmatprep.subr.mxu0 0.0
    %5246 = vmatpush1.msra.mxu0 0.0
    %5247 = vmatprep.subr.mxu0 0.0
    %5248 = vmatpush1.msra.mxu0 0.0
    %5249 = vmatprep.subr.mxu0 0.0
    %5250 = vmatpush1.msra.mxu0 0.0
    %5251 = vmatprep.subr.mxu0 0.0
    %5252 = vmatpush1.msra.mxu0 0.0
    %5253 = vmatprep.subr.mxu0 0.0
    %5254 = vmatpush1.msra.mxu0 0.0
    %5255 = vmatprep.subr.mxu0 0.0
    %5256 = vmatpush1.msra.mxu0 0.0
    %5257 = vmatprep.subr.mxu0 0.0
    %5258 = vmatpush1.msra.mxu0 0.0
    %5259 = vmatprep.subr.mxu0 0.0
    %5260 = vmatpush1.msra.mxu0 0.0
    %5261 = vmatprep.subr.mxu0 0.0
    %5262 = vmatpush1.msra.mxu0 0.0
    %5263 = vmatprep.subr.mxu0 0.0
    %5264 = vmatpush1.msra.mxu0 0.0
    %5265 = vmatprep.subr.mxu0 0.0
    %5266 = vmatpush1.msra.mxu0 0.0
    %5267 = vmatprep.subr.mxu0 0.0
    %5268 = vmatpush1.msra.mxu0 0.0
    %5269 = vmatprep.subr.mxu0 0.0
    %5270 = vmatpush1.msra.mxu0 0.0
    %5271 = vmatprep.subr.mxu0 0.0
    %5272 = vmatpush1.msra.mxu0 0.0
    %5273 = vmatprep.subr.mxu0 0.0
    %5274 = vmatpush1.msra.mxu0 %v4893
    %5275 = vmatprep.subr.mxu0 0.0
    %5276 = vmatpush2.msra.mxu0 0.0
    %5277 = vmatprep.subr.mxu0 0.0
    %5278 = vmatpush2.msra.mxu0 0.0
    %5279 = vmatprep.subr.mxu0 0.0
    %5280 = vmatpush2.msra.mxu0 0.0
    %5281 = vmatprep.subr.mxu0 0.0
    %5282 = vmatpush2.msra.mxu0 0.0
    %5283 = vmatprep.subr.mxu0 0.0
    %5284 = vmatpush2.msra.mxu0 0.0
    %5285 = vmatprep.subr.mxu0 0.0
    %5286 = vmatpush2.msra.mxu0 0.0
    %5287 = vmatprep.subr.mxu0 0.0
    %5288 = vmatpush2.msra.mxu0 0.0
    %5289 = vmatprep.subr.mxu0 0.0
    %5290 = vmatpush2.msra.mxu0 0.0
    %5291 = vmatprep.subr.mxu0 0.0
    %5292 = vmatpush2.msra.mxu0 0.0
    %5293 = vmatprep.subr.mxu0 0.0
    %5294 = vmatpush2.msra.mxu0 0.0
    %5295 = vmatprep.subr.mxu0 0.0
    %5296 = vmatpush2.msra.mxu0 0.0
    %5297 = vmatprep.subr.mxu0 0.0
    %5298 = vmatpush2.msra.mxu0 0.0
    %5299 = vmatprep.subr.mxu0 0.0
    %5300 = vmatpush2.msra.mxu0 0.0
    %5301 = vmatprep.subr.mxu0 0.0
    %5302 = vmatpush2.msra.mxu0 0.0
    %5303 = vmatprep.subr.mxu0 0.0
    %5304 = vmatpush2.msra.mxu0 0.0
    %5305 = vmatprep.subr.mxu0 0.0
    %5306 = vmatpush2.msra.mxu0 0.0
    %5307 = vmatprep.mubr.f32.mxu0 0.0
    %5308 = vmatmul.mubr.f32.gmra.mxu0 %v5241
    %v5309 = vpop.f32.mrf.mxu0
    %v5310 = vadd.f32 %v5015, %v5309
    %v5311 = vpop.f32.mrf.mxu0
    %5312 = vdwg.mxu0
    %v5313 = vmul.f32 %v5165, %v5165
    %v5314 = vsub.f32 1.0, %v5313
    %v5315 = vrot.slane %v2093, 1
    %5316 = vrot.lane.b32.xlu0 %v5315, 112
    %v5317 = vpop.permute.xlu0 %5316
    %v5319 = vmul.f32 %v5314, %v5317
    %v5320 = vadd.f32 %v5319, 1.0
    %v5321 = vlog2.pop %v5320
    %v5322 = vmul.f32 %v5321, 0.6931472
    %v5323 = vsel %vm389, %v5322, 0.0
    %5324 = vadd.xlane.f32.xlu0 %v5323
    %v5325 = vpop.xlane.xlu0 %5324
    %v5326 = vadd.f32 %v5325, 0.0
    %5327 = vrot.lane.b32.xlu0 %v384, 56
    %v5328 = vpop.permute.xlu0 %5327
    %v5330 = vsel %vm389, %v5328, 0.0
    %5331 = vadd.xlane.f32.xlu0 %v5330
    %v5332 = vpop.xlane.xlu0 %5331
    %v5333 = vadd.f32 %v5332, 1e-12
    %5334 = vrot.lane.b32.xlu0 %v397, 56
    %v5335 = vpop.permute.xlu0 %5334
    %v5337 = vmul.f32 %v374, %v5335
    %v5338 = vsel %vm403, %v5337, 0.0
    %5339 = vadd.xlane.f32.xlu0 %v5338
    %v5340 = vpop.xlane.xlu0 %5339
    %v5341 = vrcp.pop %v5333
    %v5342 = vmul.f32 2.0, %v5341
    %v5343 = vmul.f32 %v5340, %v397
    %v5344 = vlaneseq
    %v5345 = vshrl.u32 %v5344, 7
    %v5346 = vsub.s32 0, %v5345
    %v5347 = vrot.slane %v5342, %v5346
    %v5348 = vmul.f32 %v5347, %v5343
    %5350 = vrot.lane.b32.xlu0 %v5348, 56
    %v5351 = vpop.permute.xlu0 %5350
    %v5353 = vsub.f32 %v374, %v5351
    %5354 = vrot.lane.b32.xlu0 %v384, 24
    %v5355 = vpop.permute.xlu0 %5354
    %v5357 = vsel %vm389, %v5355, 0.0
    %5358 = vadd.xlane.f32.xlu0 %v5357
    %v5359 = vpop.xlane.xlu0 %5358
    %v5360 = vadd.f32 %v5359, 1e-12
    %5361 = vrot.lane.b32.xlu0 %v397, 24
    %v5362 = vpop.permute.xlu0 %5361
    %v5364 = vmul.f32 %v374, %v5362
    %v5365 = vsel %vm403, %v5364, 0.0
    %5366 = vadd.xlane.f32.xlu0 %v5365
    %v5367 = vpop.xlane.xlu0 %5366
    %v5368 = vrcp.pop %v5360
    %v5369 = vmul.f32 2.0, %v5368
    %v5370 = vmul.f32 %v5367, %v397
    %v5371 = vlaneseq
    %v5372 = vshrl.u32 %v5371, 7
    %v5373 = vsub.s32 0, %v5372
    %v5374 = vrot.slane %v5369, %v5373
    %v5375 = vmul.f32 %v5374, %v5370
    %5377 = vrot.lane.b32.xlu0 %v5375, 24
    %v5378 = vpop.permute.xlu0 %5377
    %v5380 = vsub.f32 %v374, %v5378
    %5381 = vrot.lane.b32.xlu0 %v474, 120
    %v5382 = vpop.permute.xlu0 %5381
    %v5384 = vsel %vm389, %v5382, 0.0
    %5385 = vadd.xlane.f32.xlu0 %v5384
    %v5386 = vpop.xlane.xlu0 %5385
    %v5387 = vadd.f32 %v5386, 1e-12
    %5388 = vrot.lane.b32.xlu0 %v486, 120
    %v5389 = vpop.permute.xlu0 %5388
    %v5391 = vmul.f32 %v374, %v5389
    %v5392 = vsel %vm403, %v5391, 0.0
    %5393 = vadd.xlane.f32.xlu0 %v5392
    %v5394 = vpop.xlane.xlu0 %5393
    %v5395 = vrcp.pop %v5387
    %v5396 = vmul.f32 2.0, %v5395
    %v5397 = vmul.f32 %v5394, %v486
    %v5398 = vlaneseq
    %v5399 = vshrl.u32 %v5398, 7
    %v5400 = vsub.s32 0, %v5399
    %v5401 = vrot.slane %v5396, %v5400
    %v5402 = vmul.f32 %v5401, %v5397
    %5404 = vrot.lane.b32.xlu0 %v5402, 120
    %v5405 = vpop.permute.xlu0 %5404
    %v5407 = vsub.f32 %v374, %v5405
    %5408 = vrot.lane.b32.xlu0 %v474, 88
    %v5409 = vpop.permute.xlu0 %5408
    %v5411 = vsel %vm389, %v5409, 0.0
    %5412 = vadd.xlane.f32.xlu0 %v5411
    %v5413 = vpop.xlane.xlu0 %5412
    %v5414 = vadd.f32 %v5413, 1e-12
    %5415 = vrot.lane.b32.xlu0 %v486, 88
    %v5416 = vpop.permute.xlu0 %5415
    %v5418 = vmul.f32 %v374, %v5416
    %v5419 = vsel %vm403, %v5418, 0.0
    %5420 = vadd.xlane.f32.xlu0 %v5419
    %v5421 = vpop.xlane.xlu0 %5420
    %v5422 = vrcp.pop %v5414
    %v5423 = vmul.f32 2.0, %v5422
    %v5424 = vmul.f32 %v5421, %v486
    %v5425 = vlaneseq
    %v5426 = vshrl.u32 %v5425, 7
    %v5427 = vsub.s32 0, %v5426
    %v5428 = vrot.slane %v5423, %v5427
    %v5429 = vmul.f32 %v5428, %v5424
    %5431 = vrot.lane.b32.xlu0 %v5429, 88
    %v5432 = vpop.permute.xlu0 %5431
    %v5434 = vsub.f32 %v374, %v5432
    %v5435 = vsel %vm508, %v5328, 0.0
    %5436 = vadd.xlane.f32.xlu0 %v5435
    %v5437 = vpop.xlane.xlu0 %5436
    %v5438 = vadd.f32 %v5437, 1e-12
    %5439 = vrot.lane.b32.xlu0 %v516, 56
    %v5440 = vpop.permute.xlu0 %5439
    %v5442 = vmul.f32 %v374, %v5440
    %v5443 = vsel %vm403, %v5442, 0.0
    %5444 = vadd.xlane.f32.xlu0 %v5443
    %v5445 = vpop.xlane.xlu0 %5444
    %v5446 = vrcp.pop %v5438
    %v5447 = vmul.f32 2.0, %v5446
    %v5448 = vmul.f32 %v5445, %v516
    %v5449 = vlaneseq
    %v5450 = vshrl.u32 %v5449, 7
    %v5451 = vsub.s32 1, %v5450
    %v5452 = vrot.slane %v5447, %v5451
    %v5453 = vmul.f32 %v5452, %v5448
    %5455 = vrot.lane.b32.xlu0 %v5453, 56
    %v5456 = vpop.permute.xlu0 %5455
    %v5458 = vsub.f32 %v374, %v5456
    %v5459 = vsel %vm508, %v5355, 0.0
    %5460 = vadd.xlane.f32.xlu0 %v5459
    %v5461 = vpop.xlane.xlu0 %5460
    %v5462 = vadd.f32 %v5461, 1e-12
    %5463 = vrot.lane.b32.xlu0 %v516, 24
    %v5464 = vpop.permute.xlu0 %5463
    %v5466 = vmul.f32 %v374, %v5464
    %v5467 = vsel %vm403, %v5466, 0.0
    %5468 = vadd.xlane.f32.xlu0 %v5467
    %v5469 = vpop.xlane.xlu0 %5468
    %v5470 = vrcp.pop %v5462
    %v5471 = vmul.f32 2.0, %v5470
    %v5472 = vmul.f32 %v5469, %v516
    %v5473 = vlaneseq
    %v5474 = vshrl.u32 %v5473, 7
    %v5475 = vsub.s32 1, %v5474
    %v5476 = vrot.slane %v5471, %v5475
    %v5477 = vmul.f32 %v5476, %v5472
    %5479 = vrot.lane.b32.xlu0 %v5477, 24
    %v5480 = vpop.permute.xlu0 %5479
    %v5482 = vsub.f32 %v374, %v5480
    %v5483 = vsel %vm508, %v5382, 0.0
    %5484 = vadd.xlane.f32.xlu0 %v5483
    %v5485 = vpop.xlane.xlu0 %5484
    %v5486 = vadd.f32 %v5485, 1e-12
    %5487 = vrot.lane.b32.xlu0 %v593, 120
    %v5488 = vpop.permute.xlu0 %5487
    %v5490 = vmul.f32 %v374, %v5488
    %v5491 = vsel %vm403, %v5490, 0.0
    %5492 = vadd.xlane.f32.xlu0 %v5491
    %v5493 = vpop.xlane.xlu0 %5492
    %v5494 = vrcp.pop %v5486
    %v5495 = vmul.f32 2.0, %v5494
    %v5496 = vmul.f32 %v5493, %v593
    %v5497 = vlaneseq
    %v5498 = vshrl.u32 %v5497, 7
    %v5499 = vsub.s32 1, %v5498
    %v5500 = vrot.slane %v5495, %v5499
    %v5501 = vmul.f32 %v5500, %v5496
    %5503 = vrot.lane.b32.xlu0 %v5501, 120
    %v5504 = vpop.permute.xlu0 %5503
    %v5506 = vsub.f32 %v374, %v5504
    %v5507 = vsel %vm508, %v5409, 0.0
    %5508 = vadd.xlane.f32.xlu0 %v5507
    %v5509 = vpop.xlane.xlu0 %5508
    %v5510 = vadd.f32 %v5509, 1e-12
    %5511 = vrot.lane.b32.xlu0 %v593, 88
    %v5512 = vpop.permute.xlu0 %5511
    %v5514 = vmul.f32 %v374, %v5512
    %v5515 = vsel %vm403, %v5514, 0.0
    %5516 = vadd.xlane.f32.xlu0 %v5515
    %v5517 = vpop.xlane.xlu0 %5516
    %v5518 = vrcp.pop %v5510
    %v5519 = vmul.f32 2.0, %v5518
    %v5520 = vmul.f32 %v5517, %v593
    %v5521 = vlaneseq
    %v5522 = vshrl.u32 %v5521, 7
    %v5523 = vsub.s32 1, %v5522
    %v5524 = vrot.slane %v5519, %v5523
    %v5525 = vmul.f32 %v5524, %v5520
    %5527 = vrot.lane.b32.xlu0 %v5525, 88
    %v5528 = vpop.permute.xlu0 %5527
    %v5530 = vsub.f32 %v374, %v5528
    %v5532 = vsel %vm403, %v5353, 0
    %5534 = vmatprep.subr.mxu0 0.0
    %5535 = vmatpush1.msra.mxu0 0.0
    %5536 = vmatprep.subr.mxu0 0.0
    %5537 = vmatpush1.msra.mxu0 0.0
    %5538 = vmatprep.subr.mxu0 0.0
    %5539 = vmatpush1.msra.mxu0 0.0
    %5540 = vmatprep.subr.mxu0 0.0
    %5541 = vmatpush1.msra.mxu0 0.0
    %5542 = vmatprep.subr.mxu0 0.0
    %5543 = vmatpush1.msra.mxu0 0.0
    %5544 = vmatprep.subr.mxu0 0.0
    %5545 = vmatpush1.msra.mxu0 0.0
    %5546 = vmatprep.subr.mxu0 0.0
    %5547 = vmatpush1.msra.mxu0 0.0
    %5548 = vmatprep.subr.mxu0 0.0
    %5549 = vmatpush1.msra.mxu0 0.0
    %5550 = vmatprep.subr.mxu0 0.0
    %5551 = vmatpush1.msra.mxu0 0.0
    %5552 = vmatprep.subr.mxu0 0.0
    %5553 = vmatpush1.msra.mxu0 0.0
    %5554 = vmatprep.subr.mxu0 0.0
    %5555 = vmatpush1.msra.mxu0 0.0
    %5556 = vmatprep.subr.mxu0 0.0
    %5557 = vmatpush1.msra.mxu0 0.0
    %5558 = vmatprep.subr.mxu0 0.0
    %5559 = vmatpush1.msra.mxu0 0.0
    %5560 = vmatprep.subr.mxu0 0.0
    %5561 = vmatpush1.msra.mxu0 0.0
    %5562 = vmatprep.subr.mxu0 0.0
    %5563 = vmatpush1.msra.mxu0 0.0
    %5564 = vmatprep.subr.mxu0 0.0
    %5565 = vmatpush1.msra.mxu0 %v5380
    %5566 = vmatprep.subr.mxu0 0.0
    %5567 = vmatpush2.msra.mxu0 0.0
    %5568 = vmatprep.subr.mxu0 0.0
    %5569 = vmatpush2.msra.mxu0 0.0
    %5570 = vmatprep.subr.mxu0 0.0
    %5571 = vmatpush2.msra.mxu0 0.0
    %5572 = vmatprep.subr.mxu0 0.0
    %5573 = vmatpush2.msra.mxu0 0.0
    %5574 = vmatprep.subr.mxu0 0.0
    %5575 = vmatpush2.msra.mxu0 0.0
    %5576 = vmatprep.subr.mxu0 0.0
    %5577 = vmatpush2.msra.mxu0 0.0
    %5578 = vmatprep.subr.mxu0 0.0
    %5579 = vmatpush2.msra.mxu0 0.0
    %5580 = vmatprep.subr.mxu0 0.0
    %5581 = vmatpush2.msra.mxu0 0.0
    %5582 = vmatprep.subr.mxu0 0.0
    %5583 = vmatpush2.msra.mxu0 0.0
    %5584 = vmatprep.subr.mxu0 0.0
    %5585 = vmatpush2.msra.mxu0 0.0
    %5586 = vmatprep.subr.mxu0 0.0
    %5587 = vmatpush2.msra.mxu0 0.0
    %5588 = vmatprep.subr.mxu0 0.0
    %5589 = vmatpush2.msra.mxu0 0.0
    %5590 = vmatprep.subr.mxu0 0.0
    %5591 = vmatpush2.msra.mxu0 0.0
    %5592 = vmatprep.subr.mxu0 0.0
    %5593 = vmatpush2.msra.mxu0 0.0
    %5594 = vmatprep.subr.mxu0 0.0
    %5595 = vmatpush2.msra.mxu0 0.0
    %5596 = vmatprep.subr.mxu0 0.0
    %5597 = vmatpush2.msra.mxu0 0.0
    %5598 = vmatprep.mubr.f32.mxu0 0.0
    %5599 = vmatmul.mubr.f32.gmra.mxu0 %v5532
    %v5600 = vpop.f32.mrf.mxu0
    %v5601 = vadd.f32 0.0, %v5600
    %v5602 = vpop.f32.mrf.mxu0
    %5603 = vdwg.mxu0
    %v5605 = vsel %vm403, %v5601, 0
    %5607 = vmatprep.subr.mxu0 0.0
    %5608 = vmatpush1.msra.mxu0 0.0
    %5609 = vmatprep.subr.mxu0 0.0
    %5610 = vmatpush1.msra.mxu0 0.0
    %5611 = vmatprep.subr.mxu0 0.0
    %5612 = vmatpush1.msra.mxu0 0.0
    %5613 = vmatprep.subr.mxu0 0.0
    %5614 = vmatpush1.msra.mxu0 0.0
    %5615 = vmatprep.subr.mxu0 0.0
    %5616 = vmatpush1.msra.mxu0 0.0
    %5617 = vmatprep.subr.mxu0 0.0
    %5618 = vmatpush1.msra.mxu0 0.0
    %5619 = vmatprep.subr.mxu0 0.0
    %5620 = vmatpush1.msra.mxu0 0.0
    %5621 = vmatprep.subr.mxu0 0.0
    %5622 = vmatpush1.msra.mxu0 0.0
    %5623 = vmatprep.subr.mxu0 0.0
    %5624 = vmatpush1.msra.mxu0 0.0
    %5625 = vmatprep.subr.mxu0 0.0
    %5626 = vmatpush1.msra.mxu0 0.0
    %5627 = vmatprep.subr.mxu0 0.0
    %5628 = vmatpush1.msra.mxu0 0.0
    %5629 = vmatprep.subr.mxu0 0.0
    %5630 = vmatpush1.msra.mxu0 0.0
    %5631 = vmatprep.subr.mxu0 0.0
    %5632 = vmatpush1.msra.mxu0 0.0
    %5633 = vmatprep.subr.mxu0 0.0
    %5634 = vmatpush1.msra.mxu0 0.0
    %5635 = vmatprep.subr.mxu0 0.0
    %5636 = vmatpush1.msra.mxu0 0.0
    %5637 = vmatprep.subr.mxu0 0.0
    %5638 = vmatpush1.msra.mxu0 %v5407
    %5639 = vmatprep.subr.mxu0 0.0
    %5640 = vmatpush2.msra.mxu0 0.0
    %5641 = vmatprep.subr.mxu0 0.0
    %5642 = vmatpush2.msra.mxu0 0.0
    %5643 = vmatprep.subr.mxu0 0.0
    %5644 = vmatpush2.msra.mxu0 0.0
    %5645 = vmatprep.subr.mxu0 0.0
    %5646 = vmatpush2.msra.mxu0 0.0
    %5647 = vmatprep.subr.mxu0 0.0
    %5648 = vmatpush2.msra.mxu0 0.0
    %5649 = vmatprep.subr.mxu0 0.0
    %5650 = vmatpush2.msra.mxu0 0.0
    %5651 = vmatprep.subr.mxu0 0.0
    %5652 = vmatpush2.msra.mxu0 0.0
    %5653 = vmatprep.subr.mxu0 0.0
    %5654 = vmatpush2.msra.mxu0 0.0
    %5655 = vmatprep.subr.mxu0 0.0
    %5656 = vmatpush2.msra.mxu0 0.0
    %5657 = vmatprep.subr.mxu0 0.0
    %5658 = vmatpush2.msra.mxu0 0.0
    %5659 = vmatprep.subr.mxu0 0.0
    %5660 = vmatpush2.msra.mxu0 0.0
    %5661 = vmatprep.subr.mxu0 0.0
    %5662 = vmatpush2.msra.mxu0 0.0
    %5663 = vmatprep.subr.mxu0 0.0
    %5664 = vmatpush2.msra.mxu0 0.0
    %5665 = vmatprep.subr.mxu0 0.0
    %5666 = vmatpush2.msra.mxu0 0.0
    %5667 = vmatprep.subr.mxu0 0.0
    %5668 = vmatpush2.msra.mxu0 0.0
    %5669 = vmatprep.subr.mxu0 0.0
    %5670 = vmatpush2.msra.mxu0 0.0
    %5671 = vmatprep.mubr.f32.mxu0 0.0
    %5672 = vmatmul.mubr.f32.gmra.mxu0 %v5605
    %v5673 = vpop.f32.mrf.mxu0
    %v5674 = vadd.f32 0.0, %v5673
    %v5675 = vpop.f32.mrf.mxu0
    %5676 = vdwg.mxu0
    %v5678 = vsel %vm403, %v5674, 0
    %5680 = vmatprep.subr.mxu0 0.0
    %5681 = vmatpush1.msra.mxu0 0.0
    %5682 = vmatprep.subr.mxu0 0.0
    %5683 = vmatpush1.msra.mxu0 0.0
    %5684 = vmatprep.subr.mxu0 0.0
    %5685 = vmatpush1.msra.mxu0 0.0
    %5686 = vmatprep.subr.mxu0 0.0
    %5687 = vmatpush1.msra.mxu0 0.0
    %5688 = vmatprep.subr.mxu0 0.0
    %5689 = vmatpush1.msra.mxu0 0.0
    %5690 = vmatprep.subr.mxu0 0.0
    %5691 = vmatpush1.msra.mxu0 0.0
    %5692 = vmatprep.subr.mxu0 0.0
    %5693 = vmatpush1.msra.mxu0 0.0
    %5694 = vmatprep.subr.mxu0 0.0
    %5695 = vmatpush1.msra.mxu0 0.0
    %5696 = vmatprep.subr.mxu0 0.0
    %5697 = vmatpush1.msra.mxu0 0.0
    %5698 = vmatprep.subr.mxu0 0.0
    %5699 = vmatpush1.msra.mxu0 0.0
    %5700 = vmatprep.subr.mxu0 0.0
    %5701 = vmatpush1.msra.mxu0 0.0
    %5702 = vmatprep.subr.mxu0 0.0
    %5703 = vmatpush1.msra.mxu0 0.0
    %5704 = vmatprep.subr.mxu0 0.0
    %5705 = vmatpush1.msra.mxu0 0.0
    %5706 = vmatprep.subr.mxu0 0.0
    %5707 = vmatpush1.msra.mxu0 0.0
    %5708 = vmatprep.subr.mxu0 0.0
    %5709 = vmatpush1.msra.mxu0 0.0
    %5710 = vmatprep.subr.mxu0 0.0
    %5711 = vmatpush1.msra.mxu0 %v5434
    %5712 = vmatprep.subr.mxu0 0.0
    %5713 = vmatpush2.msra.mxu0 0.0
    %5714 = vmatprep.subr.mxu0 0.0
    %5715 = vmatpush2.msra.mxu0 0.0
    %5716 = vmatprep.subr.mxu0 0.0
    %5717 = vmatpush2.msra.mxu0 0.0
    %5718 = vmatprep.subr.mxu0 0.0
    %5719 = vmatpush2.msra.mxu0 0.0
    %5720 = vmatprep.subr.mxu0 0.0
    %5721 = vmatpush2.msra.mxu0 0.0
    %5722 = vmatprep.subr.mxu0 0.0
    %5723 = vmatpush2.msra.mxu0 0.0
    %5724 = vmatprep.subr.mxu0 0.0
    %5725 = vmatpush2.msra.mxu0 0.0
    %5726 = vmatprep.subr.mxu0 0.0
    %5727 = vmatpush2.msra.mxu0 0.0
    %5728 = vmatprep.subr.mxu0 0.0
    %5729 = vmatpush2.msra.mxu0 0.0
    %5730 = vmatprep.subr.mxu0 0.0
    %5731 = vmatpush2.msra.mxu0 0.0
    %5732 = vmatprep.subr.mxu0 0.0
    %5733 = vmatpush2.msra.mxu0 0.0
    %5734 = vmatprep.subr.mxu0 0.0
    %5735 = vmatpush2.msra.mxu0 0.0
    %5736 = vmatprep.subr.mxu0 0.0
    %5737 = vmatpush2.msra.mxu0 0.0
    %5738 = vmatprep.subr.mxu0 0.0
    %5739 = vmatpush2.msra.mxu0 0.0
    %5740 = vmatprep.subr.mxu0 0.0
    %5741 = vmatpush2.msra.mxu0 0.0
    %5742 = vmatprep.subr.mxu0 0.0
    %5743 = vmatpush2.msra.mxu0 0.0
    %5744 = vmatprep.mubr.f32.mxu0 0.0
    %5745 = vmatmul.mubr.f32.gmra.mxu0 %v5678
    %v5746 = vpop.f32.mrf.mxu0
    %v5747 = vadd.f32 0.0, %v5746
    %v5748 = vpop.f32.mrf.mxu0
    %5749 = vdwg.mxu0
    %v5751 = vsel %vm403, %v5747, 0
    %5753 = vmatprep.subr.mxu0 0.0
    %5754 = vmatpush1.msra.mxu0 0.0
    %5755 = vmatprep.subr.mxu0 0.0
    %5756 = vmatpush1.msra.mxu0 0.0
    %5757 = vmatprep.subr.mxu0 0.0
    %5758 = vmatpush1.msra.mxu0 0.0
    %5759 = vmatprep.subr.mxu0 0.0
    %5760 = vmatpush1.msra.mxu0 0.0
    %5761 = vmatprep.subr.mxu0 0.0
    %5762 = vmatpush1.msra.mxu0 0.0
    %5763 = vmatprep.subr.mxu0 0.0
    %5764 = vmatpush1.msra.mxu0 0.0
    %5765 = vmatprep.subr.mxu0 0.0
    %5766 = vmatpush1.msra.mxu0 0.0
    %5767 = vmatprep.subr.mxu0 0.0
    %5768 = vmatpush1.msra.mxu0 0.0
    %5769 = vmatprep.subr.mxu0 0.0
    %5770 = vmatpush1.msra.mxu0 0.0
    %5771 = vmatprep.subr.mxu0 0.0
    %5772 = vmatpush1.msra.mxu0 0.0
    %5773 = vmatprep.subr.mxu0 0.0
    %5774 = vmatpush1.msra.mxu0 0.0
    %5775 = vmatprep.subr.mxu0 0.0
    %5776 = vmatpush1.msra.mxu0 0.0
    %5777 = vmatprep.subr.mxu0 0.0
    %5778 = vmatpush1.msra.mxu0 0.0
    %5779 = vmatprep.subr.mxu0 0.0
    %5780 = vmatpush1.msra.mxu0 0.0
    %5781 = vmatprep.subr.mxu0 0.0
    %5782 = vmatpush1.msra.mxu0 0.0
    %5783 = vmatprep.subr.mxu0 0.0
    %5784 = vmatpush1.msra.mxu0 %v5458
    %5785 = vmatprep.subr.mxu0 0.0
    %5786 = vmatpush2.msra.mxu0 0.0
    %5787 = vmatprep.subr.mxu0 0.0
    %5788 = vmatpush2.msra.mxu0 0.0
    %5789 = vmatprep.subr.mxu0 0.0
    %5790 = vmatpush2.msra.mxu0 0.0
    %5791 = vmatprep.subr.mxu0 0.0
    %5792 = vmatpush2.msra.mxu0 0.0
    %5793 = vmatprep.subr.mxu0 0.0
    %5794 = vmatpush2.msra.mxu0 0.0
    %5795 = vmatprep.subr.mxu0 0.0
    %5796 = vmatpush2.msra.mxu0 0.0
    %5797 = vmatprep.subr.mxu0 0.0
    %5798 = vmatpush2.msra.mxu0 0.0
    %5799 = vmatprep.subr.mxu0 0.0
    %5800 = vmatpush2.msra.mxu0 0.0
    %5801 = vmatprep.subr.mxu0 0.0
    %5802 = vmatpush2.msra.mxu0 0.0
    %5803 = vmatprep.subr.mxu0 0.0
    %5804 = vmatpush2.msra.mxu0 0.0
    %5805 = vmatprep.subr.mxu0 0.0
    %5806 = vmatpush2.msra.mxu0 0.0
    %5807 = vmatprep.subr.mxu0 0.0
    %5808 = vmatpush2.msra.mxu0 0.0
    %5809 = vmatprep.subr.mxu0 0.0
    %5810 = vmatpush2.msra.mxu0 0.0
    %5811 = vmatprep.subr.mxu0 0.0
    %5812 = vmatpush2.msra.mxu0 0.0
    %5813 = vmatprep.subr.mxu0 0.0
    %5814 = vmatpush2.msra.mxu0 0.0
    %5815 = vmatprep.subr.mxu0 0.0
    %5816 = vmatpush2.msra.mxu0 0.0
    %5817 = vmatprep.mubr.f32.mxu0 0.0
    %5818 = vmatmul.mubr.f32.gmra.mxu0 %v5751
    %v5819 = vpop.f32.mrf.mxu0
    %v5820 = vadd.f32 0.0, %v5819
    %v5821 = vpop.f32.mrf.mxu0
    %5822 = vdwg.mxu0
    %v5824 = vsel %vm403, %v5820, 0
    %5826 = vmatprep.subr.mxu0 0.0
    %5827 = vmatpush1.msra.mxu0 0.0
    %5828 = vmatprep.subr.mxu0 0.0
    %5829 = vmatpush1.msra.mxu0 0.0
    %5830 = vmatprep.subr.mxu0 0.0
    %5831 = vmatpush1.msra.mxu0 0.0
    %5832 = vmatprep.subr.mxu0 0.0
    %5833 = vmatpush1.msra.mxu0 0.0
    %5834 = vmatprep.subr.mxu0 0.0
    %5835 = vmatpush1.msra.mxu0 0.0
    %5836 = vmatprep.subr.mxu0 0.0
    %5837 = vmatpush1.msra.mxu0 0.0
    %5838 = vmatprep.subr.mxu0 0.0
    %5839 = vmatpush1.msra.mxu0 0.0
    %5840 = vmatprep.subr.mxu0 0.0
    %5841 = vmatpush1.msra.mxu0 0.0
    %5842 = vmatprep.subr.mxu0 0.0
    %5843 = vmatpush1.msra.mxu0 0.0
    %5844 = vmatprep.subr.mxu0 0.0
    %5845 = vmatpush1.msra.mxu0 0.0
    %5846 = vmatprep.subr.mxu0 0.0
    %5847 = vmatpush1.msra.mxu0 0.0
    %5848 = vmatprep.subr.mxu0 0.0
    %5849 = vmatpush1.msra.mxu0 0.0
    %5850 = vmatprep.subr.mxu0 0.0
    %5851 = vmatpush1.msra.mxu0 0.0
    %5852 = vmatprep.subr.mxu0 0.0
    %5853 = vmatpush1.msra.mxu0 0.0
    %5854 = vmatprep.subr.mxu0 0.0
    %5855 = vmatpush1.msra.mxu0 0.0
    %5856 = vmatprep.subr.mxu0 0.0
    %5857 = vmatpush1.msra.mxu0 %v5482
    %5858 = vmatprep.subr.mxu0 0.0
    %5859 = vmatpush2.msra.mxu0 0.0
    %5860 = vmatprep.subr.mxu0 0.0
    %5861 = vmatpush2.msra.mxu0 0.0
    %5862 = vmatprep.subr.mxu0 0.0
    %5863 = vmatpush2.msra.mxu0 0.0
    %5864 = vmatprep.subr.mxu0 0.0
    %5865 = vmatpush2.msra.mxu0 0.0
    %5866 = vmatprep.subr.mxu0 0.0
    %5867 = vmatpush2.msra.mxu0 0.0
    %5868 = vmatprep.subr.mxu0 0.0
    %5869 = vmatpush2.msra.mxu0 0.0
    %5870 = vmatprep.subr.mxu0 0.0
    %5871 = vmatpush2.msra.mxu0 0.0
    %5872 = vmatprep.subr.mxu0 0.0
    %5873 = vmatpush2.msra.mxu0 0.0
    %5874 = vmatprep.subr.mxu0 0.0
    %5875 = vmatpush2.msra.mxu0 0.0
    %5876 = vmatprep.subr.mxu0 0.0
    %5877 = vmatpush2.msra.mxu0 0.0
    %5878 = vmatprep.subr.mxu0 0.0
    %5879 = vmatpush2.msra.mxu0 0.0
    %5880 = vmatprep.subr.mxu0 0.0
    %5881 = vmatpush2.msra.mxu0 0.0
    %5882 = vmatprep.subr.mxu0 0.0
    %5883 = vmatpush2.msra.mxu0 0.0
    %5884 = vmatprep.subr.mxu0 0.0
    %5885 = vmatpush2.msra.mxu0 0.0
    %5886 = vmatprep.subr.mxu0 0.0
    %5887 = vmatpush2.msra.mxu0 0.0
    %5888 = vmatprep.subr.mxu0 0.0
    %5889 = vmatpush2.msra.mxu0 0.0
    %5890 = vmatprep.mubr.f32.mxu0 0.0
    %5891 = vmatmul.mubr.f32.gmra.mxu0 %v5824
    %v5892 = vpop.f32.mrf.mxu0
    %v5893 = vadd.f32 0.0, %v5892
    %v5894 = vpop.f32.mrf.mxu0
    %5895 = vdwg.mxu0
    %v5897 = vsel %vm403, %v5893, 0
    %5899 = vmatprep.subr.mxu0 0.0
    %5900 = vmatpush1.msra.mxu0 0.0
    %5901 = vmatprep.subr.mxu0 0.0
    %5902 = vmatpush1.msra.mxu0 0.0
    %5903 = vmatprep.subr.mxu0 0.0
    %5904 = vmatpush1.msra.mxu0 0.0
    %5905 = vmatprep.subr.mxu0 0.0
    %5906 = vmatpush1.msra.mxu0 0.0
    %5907 = vmatprep.subr.mxu0 0.0
    %5908 = vmatpush1.msra.mxu0 0.0
    %5909 = vmatprep.subr.mxu0 0.0
    %5910 = vmatpush1.msra.mxu0 0.0
    %5911 = vmatprep.subr.mxu0 0.0
    %5912 = vmatpush1.msra.mxu0 0.0
    %5913 = vmatprep.subr.mxu0 0.0
    %5914 = vmatpush1.msra.mxu0 0.0
    %5915 = vmatprep.subr.mxu0 0.0
    %5916 = vmatpush1.msra.mxu0 0.0
    %5917 = vmatprep.subr.mxu0 0.0
    %5918 = vmatpush1.msra.mxu0 0.0
    %5919 = vmatprep.subr.mxu0 0.0
    %5920 = vmatpush1.msra.mxu0 0.0
    %5921 = vmatprep.subr.mxu0 0.0
    %5922 = vmatpush1.msra.mxu0 0.0
    %5923 = vmatprep.subr.mxu0 0.0
    %5924 = vmatpush1.msra.mxu0 0.0
    %5925 = vmatprep.subr.mxu0 0.0
    %5926 = vmatpush1.msra.mxu0 0.0
    %5927 = vmatprep.subr.mxu0 0.0
    %5928 = vmatpush1.msra.mxu0 0.0
    %5929 = vmatprep.subr.mxu0 0.0
    %5930 = vmatpush1.msra.mxu0 %v5506
    %5931 = vmatprep.subr.mxu0 0.0
    %5932 = vmatpush2.msra.mxu0 0.0
    %5933 = vmatprep.subr.mxu0 0.0
    %5934 = vmatpush2.msra.mxu0 0.0
    %5935 = vmatprep.subr.mxu0 0.0
    %5936 = vmatpush2.msra.mxu0 0.0
    %5937 = vmatprep.subr.mxu0 0.0
    %5938 = vmatpush2.msra.mxu0 0.0
    %5939 = vmatprep.subr.mxu0 0.0
    %5940 = vmatpush2.msra.mxu0 0.0
    %5941 = vmatprep.subr.mxu0 0.0
    %5942 = vmatpush2.msra.mxu0 0.0
    %5943 = vmatprep.subr.mxu0 0.0
    %5944 = vmatpush2.msra.mxu0 0.0
    %5945 = vmatprep.subr.mxu0 0.0
    %5946 = vmatpush2.msra.mxu0 0.0
    %5947 = vmatprep.subr.mxu0 0.0
    %5948 = vmatpush2.msra.mxu0 0.0
    %5949 = vmatprep.subr.mxu0 0.0
    %5950 = vmatpush2.msra.mxu0 0.0
    %5951 = vmatprep.subr.mxu0 0.0
    %5952 = vmatpush2.msra.mxu0 0.0
    %5953 = vmatprep.subr.mxu0 0.0
    %5954 = vmatpush2.msra.mxu0 0.0
    %5955 = vmatprep.subr.mxu0 0.0
    %5956 = vmatpush2.msra.mxu0 0.0
    %5957 = vmatprep.subr.mxu0 0.0
    %5958 = vmatpush2.msra.mxu0 0.0
    %5959 = vmatprep.subr.mxu0 0.0
    %5960 = vmatpush2.msra.mxu0 0.0
    %5961 = vmatprep.subr.mxu0 0.0
    %5962 = vmatpush2.msra.mxu0 0.0
    %5963 = vmatprep.mubr.f32.mxu0 0.0
    %5964 = vmatmul.mubr.f32.gmra.mxu0 %v5897
    %v5965 = vpop.f32.mrf.mxu0
    %v5966 = vadd.f32 0.0, %v5965
    %v5967 = vpop.f32.mrf.mxu0
    %5968 = vdwg.mxu0
    %v5970 = vsel %vm403, %v5966, 0
    %5972 = vmatprep.subr.mxu0 0.0
    %5973 = vmatpush1.msra.mxu0 0.0
    %5974 = vmatprep.subr.mxu0 0.0
    %5975 = vmatpush1.msra.mxu0 0.0
    %5976 = vmatprep.subr.mxu0 0.0
    %5977 = vmatpush1.msra.mxu0 0.0
    %5978 = vmatprep.subr.mxu0 0.0
    %5979 = vmatpush1.msra.mxu0 0.0
    %5980 = vmatprep.subr.mxu0 0.0
    %5981 = vmatpush1.msra.mxu0 0.0
    %5982 = vmatprep.subr.mxu0 0.0
    %5983 = vmatpush1.msra.mxu0 0.0
    %5984 = vmatprep.subr.mxu0 0.0
    %5985 = vmatpush1.msra.mxu0 0.0
    %5986 = vmatprep.subr.mxu0 0.0
    %5987 = vmatpush1.msra.mxu0 0.0
    %5988 = vmatprep.subr.mxu0 0.0
    %5989 = vmatpush1.msra.mxu0 0.0
    %5990 = vmatprep.subr.mxu0 0.0
    %5991 = vmatpush1.msra.mxu0 0.0
    %5992 = vmatprep.subr.mxu0 0.0
    %5993 = vmatpush1.msra.mxu0 0.0
    %5994 = vmatprep.subr.mxu0 0.0
    %5995 = vmatpush1.msra.mxu0 0.0
    %5996 = vmatprep.subr.mxu0 0.0
    %5997 = vmatpush1.msra.mxu0 0.0
    %5998 = vmatprep.subr.mxu0 0.0
    %5999 = vmatpush1.msra.mxu0 0.0
    %6000 = vmatprep.subr.mxu0 0.0
    %6001 = vmatpush1.msra.mxu0 0.0
    %6002 = vmatprep.subr.mxu0 0.0
    %6003 = vmatpush1.msra.mxu0 %v5530
    %6004 = vmatprep.subr.mxu0 0.0
    %6005 = vmatpush2.msra.mxu0 0.0
    %6006 = vmatprep.subr.mxu0 0.0
    %6007 = vmatpush2.msra.mxu0 0.0
    %6008 = vmatprep.subr.mxu0 0.0
    %6009 = vmatpush2.msra.mxu0 0.0
    %6010 = vmatprep.subr.mxu0 0.0
    %6011 = vmatpush2.msra.mxu0 0.0
    %6012 = vmatprep.subr.mxu0 0.0
    %6013 = vmatpush2.msra.mxu0 0.0
    %6014 = vmatprep.subr.mxu0 0.0
    %6015 = vmatpush2.msra.mxu0 0.0
    %6016 = vmatprep.subr.mxu0 0.0
    %6017 = vmatpush2.msra.mxu0 0.0
    %6018 = vmatprep.subr.mxu0 0.0
    %6019 = vmatpush2.msra.mxu0 0.0
    %6020 = vmatprep.subr.mxu0 0.0
    %6021 = vmatpush2.msra.mxu0 0.0
    %6022 = vmatprep.subr.mxu0 0.0
    %6023 = vmatpush2.msra.mxu0 0.0
    %6024 = vmatprep.subr.mxu0 0.0
    %6025 = vmatpush2.msra.mxu0 0.0
    %6026 = vmatprep.subr.mxu0 0.0
    %6027 = vmatpush2.msra.mxu0 0.0
    %6028 = vmatprep.subr.mxu0 0.0
    %6029 = vmatpush2.msra.mxu0 0.0
    %6030 = vmatprep.subr.mxu0 0.0
    %6031 = vmatpush2.msra.mxu0 0.0
    %6032 = vmatprep.subr.mxu0 0.0
    %6033 = vmatpush2.msra.mxu0 0.0
    %6034 = vmatprep.subr.mxu0 0.0
    %6035 = vmatpush2.msra.mxu0 0.0
    %6036 = vmatprep.mubr.f32.mxu0 0.0
    %6037 = vmatmul.mubr.f32.gmra.mxu0 %v5970
    %v6038 = vpop.f32.mrf.mxu0
    %v6039 = vadd.f32 0.0, %v6038
    %v6040 = vpop.f32.mrf.mxu0
    %6041 = vdwg.mxu0
    %v6043 = vsel %vm403, %v5530, 0
    %6045 = vmatprep.subr.mxu0 0.0
    %6046 = vmatpush1.msra.mxu0 0.0
    %6047 = vmatprep.subr.mxu0 0.0
    %6048 = vmatpush1.msra.mxu0 0.0
    %6049 = vmatprep.subr.mxu0 0.0
    %6050 = vmatpush1.msra.mxu0 0.0
    %6051 = vmatprep.subr.mxu0 0.0
    %6052 = vmatpush1.msra.mxu0 0.0
    %6053 = vmatprep.subr.mxu0 0.0
    %6054 = vmatpush1.msra.mxu0 0.0
    %6055 = vmatprep.subr.mxu0 0.0
    %6056 = vmatpush1.msra.mxu0 0.0
    %6057 = vmatprep.subr.mxu0 0.0
    %6058 = vmatpush1.msra.mxu0 0.0
    %6059 = vmatprep.subr.mxu0 0.0
    %6060 = vmatpush1.msra.mxu0 0.0
    %6061 = vmatprep.subr.mxu0 0.0
    %6062 = vmatpush1.msra.mxu0 0.0
    %6063 = vmatprep.subr.mxu0 0.0
    %6064 = vmatpush1.msra.mxu0 0.0
    %6065 = vmatprep.subr.mxu0 0.0
    %6066 = vmatpush1.msra.mxu0 0.0
    %6067 = vmatprep.subr.mxu0 0.0
    %6068 = vmatpush1.msra.mxu0 0.0
    %6069 = vmatprep.subr.mxu0 0.0
    %6070 = vmatpush1.msra.mxu0 0.0
    %6071 = vmatprep.subr.mxu0 0.0
    %6072 = vmatpush1.msra.mxu0 0.0
    %6073 = vmatprep.subr.mxu0 0.0
    %6074 = vmatpush1.msra.mxu0 0.0
    %6075 = vmatprep.subr.mxu0 0.0
    %6076 = vmatpush1.msra.mxu0 %v5506
    %6077 = vmatprep.subr.mxu0 0.0
    %6078 = vmatpush2.msra.mxu0 0.0
    %6079 = vmatprep.subr.mxu0 0.0
    %6080 = vmatpush2.msra.mxu0 0.0
    %6081 = vmatprep.subr.mxu0 0.0
    %6082 = vmatpush2.msra.mxu0 0.0
    %6083 = vmatprep.subr.mxu0 0.0
    %6084 = vmatpush2.msra.mxu0 0.0
    %6085 = vmatprep.subr.mxu0 0.0
    %6086 = vmatpush2.msra.mxu0 0.0
    %6087 = vmatprep.subr.mxu0 0.0
    %6088 = vmatpush2.msra.mxu0 0.0
    %6089 = vmatprep.subr.mxu0 0.0
    %6090 = vmatpush2.msra.mxu0 0.0
    %6091 = vmatprep.subr.mxu0 0.0
    %6092 = vmatpush2.msra.mxu0 0.0
    %6093 = vmatprep.subr.mxu0 0.0
    %6094 = vmatpush2.msra.mxu0 0.0
    %6095 = vmatprep.subr.mxu0 0.0
    %6096 = vmatpush2.msra.mxu0 0.0
    %6097 = vmatprep.subr.mxu0 0.0
    %6098 = vmatpush2.msra.mxu0 0.0
    %6099 = vmatprep.subr.mxu0 0.0
    %6100 = vmatpush2.msra.mxu0 0.0
    %6101 = vmatprep.subr.mxu0 0.0
    %6102 = vmatpush2.msra.mxu0 0.0
    %6103 = vmatprep.subr.mxu0 0.0
    %6104 = vmatpush2.msra.mxu0 0.0
    %6105 = vmatprep.subr.mxu0 0.0
    %6106 = vmatpush2.msra.mxu0 0.0
    %6107 = vmatprep.subr.mxu0 0.0
    %6108 = vmatpush2.msra.mxu0 0.0
    %6109 = vmatprep.mubr.f32.mxu0 0.0
    %6110 = vmatmul.mubr.f32.gmra.mxu0 %v6043
    %v6111 = vpop.f32.mrf.mxu0
    %v6112 = vadd.f32 0.0, %v6111
    %v6113 = vpop.f32.mrf.mxu0
    %6114 = vdwg.mxu0
    %v6116 = vsel %vm403, %v6112, 0
    %6118 = vmatprep.subr.mxu0 0.0
    %6119 = vmatpush1.msra.mxu0 0.0
    %6120 = vmatprep.subr.mxu0 0.0
    %6121 = vmatpush1.msra.mxu0 0.0
    %6122 = vmatprep.subr.mxu0 0.0
    %6123 = vmatpush1.msra.mxu0 0.0
    %6124 = vmatprep.subr.mxu0 0.0
    %6125 = vmatpush1.msra.mxu0 0.0
    %6126 = vmatprep.subr.mxu0 0.0
    %6127 = vmatpush1.msra.mxu0 0.0
    %6128 = vmatprep.subr.mxu0 0.0
    %6129 = vmatpush1.msra.mxu0 0.0
    %6130 = vmatprep.subr.mxu0 0.0
    %6131 = vmatpush1.msra.mxu0 0.0
    %6132 = vmatprep.subr.mxu0 0.0
    %6133 = vmatpush1.msra.mxu0 0.0
    %6134 = vmatprep.subr.mxu0 0.0
    %6135 = vmatpush1.msra.mxu0 0.0
    %6136 = vmatprep.subr.mxu0 0.0
    %6137 = vmatpush1.msra.mxu0 0.0
    %6138 = vmatprep.subr.mxu0 0.0
    %6139 = vmatpush1.msra.mxu0 0.0
    %6140 = vmatprep.subr.mxu0 0.0
    %6141 = vmatpush1.msra.mxu0 0.0
    %6142 = vmatprep.subr.mxu0 0.0
    %6143 = vmatpush1.msra.mxu0 0.0
    %6144 = vmatprep.subr.mxu0 0.0
    %6145 = vmatpush1.msra.mxu0 0.0
    %6146 = vmatprep.subr.mxu0 0.0
    %6147 = vmatpush1.msra.mxu0 0.0
    %6148 = vmatprep.subr.mxu0 0.0
    %6149 = vmatpush1.msra.mxu0 %v5482
    %6150 = vmatprep.subr.mxu0 0.0
    %6151 = vmatpush2.msra.mxu0 0.0
    %6152 = vmatprep.subr.mxu0 0.0
    %6153 = vmatpush2.msra.mxu0 0.0
    %6154 = vmatprep.subr.mxu0 0.0
    %6155 = vmatpush2.msra.mxu0 0.0
    %6156 = vmatprep.subr.mxu0 0.0
    %6157 = vmatpush2.msra.mxu0 0.0
    %6158 = vmatprep.subr.mxu0 0.0
    %6159 = vmatpush2.msra.mxu0 0.0
    %6160 = vmatprep.subr.mxu0 0.0
    %6161 = vmatpush2.msra.mxu0 0.0
    %6162 = vmatprep.subr.mxu0 0.0
    %6163 = vmatpush2.msra.mxu0 0.0
    %6164 = vmatprep.subr.mxu0 0.0
    %6165 = vmatpush2.msra.mxu0 0.0
    %6166 = vmatprep.subr.mxu0 0.0
    %6167 = vmatpush2.msra.mxu0 0.0
    %6168 = vmatprep.subr.mxu0 0.0
    %6169 = vmatpush2.msra.mxu0 0.0
    %6170 = vmatprep.subr.mxu0 0.0
    %6171 = vmatpush2.msra.mxu0 0.0
    %6172 = vmatprep.subr.mxu0 0.0
    %6173 = vmatpush2.msra.mxu0 0.0
    %6174 = vmatprep.subr.mxu0 0.0
    %6175 = vmatpush2.msra.mxu0 0.0
    %6176 = vmatprep.subr.mxu0 0.0
    %6177 = vmatpush2.msra.mxu0 0.0
    %6178 = vmatprep.subr.mxu0 0.0
    %6179 = vmatpush2.msra.mxu0 0.0
    %6180 = vmatprep.subr.mxu0 0.0
    %6181 = vmatpush2.msra.mxu0 0.0
    %6182 = vmatprep.mubr.f32.mxu0 0.0
    %6183 = vmatmul.mubr.f32.gmra.mxu0 %v6116
    %v6184 = vpop.f32.mrf.mxu0
    %v6185 = vadd.f32 0.0, %v6184
    %v6186 = vpop.f32.mrf.mxu0
    %6187 = vdwg.mxu0
    %v6189 = vsel %vm403, %v6185, 0
    %6191 = vmatprep.subr.mxu0 0.0
    %6192 = vmatpush1.msra.mxu0 0.0
    %6193 = vmatprep.subr.mxu0 0.0
    %6194 = vmatpush1.msra.mxu0 0.0
    %6195 = vmatprep.subr.mxu0 0.0
    %6196 = vmatpush1.msra.mxu0 0.0
    %6197 = vmatprep.subr.mxu0 0.0
    %6198 = vmatpush1.msra.mxu0 0.0
    %6199 = vmatprep.subr.mxu0 0.0
    %6200 = vmatpush1.msra.mxu0 0.0
    %6201 = vmatprep.subr.mxu0 0.0
    %6202 = vmatpush1.msra.mxu0 0.0
    %6203 = vmatprep.subr.mxu0 0.0
    %6204 = vmatpush1.msra.mxu0 0.0
    %6205 = vmatprep.subr.mxu0 0.0
    %6206 = vmatpush1.msra.mxu0 0.0
    %6207 = vmatprep.subr.mxu0 0.0
    %6208 = vmatpush1.msra.mxu0 0.0
    %6209 = vmatprep.subr.mxu0 0.0
    %6210 = vmatpush1.msra.mxu0 0.0
    %6211 = vmatprep.subr.mxu0 0.0
    %6212 = vmatpush1.msra.mxu0 0.0
    %6213 = vmatprep.subr.mxu0 0.0
    %6214 = vmatpush1.msra.mxu0 0.0
    %6215 = vmatprep.subr.mxu0 0.0
    %6216 = vmatpush1.msra.mxu0 0.0
    %6217 = vmatprep.subr.mxu0 0.0
    %6218 = vmatpush1.msra.mxu0 0.0
    %6219 = vmatprep.subr.mxu0 0.0
    %6220 = vmatpush1.msra.mxu0 0.0
    %6221 = vmatprep.subr.mxu0 0.0
    %6222 = vmatpush1.msra.mxu0 %v5458
    %6223 = vmatprep.subr.mxu0 0.0
    %6224 = vmatpush2.msra.mxu0 0.0
    %6225 = vmatprep.subr.mxu0 0.0
    %6226 = vmatpush2.msra.mxu0 0.0
    %6227 = vmatprep.subr.mxu0 0.0
    %6228 = vmatpush2.msra.mxu0 0.0
    %6229 = vmatprep.subr.mxu0 0.0
    %6230 = vmatpush2.msra.mxu0 0.0
    %6231 = vmatprep.subr.mxu0 0.0
    %6232 = vmatpush2.msra.mxu0 0.0
    %6233 = vmatprep.subr.mxu0 0.0
    %6234 = vmatpush2.msra.mxu0 0.0
    %6235 = vmatprep.subr.mxu0 0.0
    %6236 = vmatpush2.msra.mxu0 0.0
    %6237 = vmatprep.subr.mxu0 0.0
    %6238 = vmatpush2.msra.mxu0 0.0
    %6239 = vmatprep.subr.mxu0 0.0
    %6240 = vmatpush2.msra.mxu0 0.0
    %6241 = vmatprep.subr.mxu0 0.0
    %6242 = vmatpush2.msra.mxu0 0.0
    %6243 = vmatprep.subr.mxu0 0.0
    %6244 = vmatpush2.msra.mxu0 0.0
    %6245 = vmatprep.subr.mxu0 0.0
    %6246 = vmatpush2.msra.mxu0 0.0
    %6247 = vmatprep.subr.mxu0 0.0
    %6248 = vmatpush2.msra.mxu0 0.0
    %6249 = vmatprep.subr.mxu0 0.0
    %6250 = vmatpush2.msra.mxu0 0.0
    %6251 = vmatprep.subr.mxu0 0.0
    %6252 = vmatpush2.msra.mxu0 0.0
    %6253 = vmatprep.subr.mxu0 0.0
    %6254 = vmatpush2.msra.mxu0 0.0
    %6255 = vmatprep.mubr.f32.mxu0 0.0
    %6256 = vmatmul.mubr.f32.gmra.mxu0 %v6189
    %v6257 = vpop.f32.mrf.mxu0
    %v6258 = vadd.f32 0.0, %v6257
    %v6259 = vpop.f32.mrf.mxu0
    %6260 = vdwg.mxu0
    %v6262 = vsel %vm403, %v6258, 0
    %6264 = vmatprep.subr.mxu0 0.0
    %6265 = vmatpush1.msra.mxu0 0.0
    %6266 = vmatprep.subr.mxu0 0.0
    %6267 = vmatpush1.msra.mxu0 0.0
    %6268 = vmatprep.subr.mxu0 0.0
    %6269 = vmatpush1.msra.mxu0 0.0
    %6270 = vmatprep.subr.mxu0 0.0
    %6271 = vmatpush1.msra.mxu0 0.0
    %6272 = vmatprep.subr.mxu0 0.0
    %6273 = vmatpush1.msra.mxu0 0.0
    %6274 = vmatprep.subr.mxu0 0.0
    %6275 = vmatpush1.msra.mxu0 0.0
    %6276 = vmatprep.subr.mxu0 0.0
    %6277 = vmatpush1.msra.mxu0 0.0
    %6278 = vmatprep.subr.mxu0 0.0
    %6279 = vmatpush1.msra.mxu0 0.0
    %6280 = vmatprep.subr.mxu0 0.0
    %6281 = vmatpush1.msra.mxu0 0.0
    %6282 = vmatprep.subr.mxu0 0.0
    %6283 = vmatpush1.msra.mxu0 0.0
    %6284 = vmatprep.subr.mxu0 0.0
    %6285 = vmatpush1.msra.mxu0 0.0
    %6286 = vmatprep.subr.mxu0 0.0
    %6287 = vmatpush1.msra.mxu0 0.0
    %6288 = vmatprep.subr.mxu0 0.0
    %6289 = vmatpush1.msra.mxu0 0.0
    %6290 = vmatprep.subr.mxu0 0.0
    %6291 = vmatpush1.msra.mxu0 0.0
    %6292 = vmatprep.subr.mxu0 0.0
    %6293 = vmatpush1.msra.mxu0 0.0
    %6294 = vmatprep.subr.mxu0 0.0
    %6295 = vmatpush1.msra.mxu0 %v5434
    %6296 = vmatprep.subr.mxu0 0.0
    %6297 = vmatpush2.msra.mxu0 0.0
    %6298 = vmatprep.subr.mxu0 0.0
    %6299 = vmatpush2.msra.mxu0 0.0
    %6300 = vmatprep.subr.mxu0 0.0
    %6301 = vmatpush2.msra.mxu0 0.0
    %6302 = vmatprep.subr.mxu0 0.0
    %6303 = vmatpush2.msra.mxu0 0.0
    %6304 = vmatprep.subr.mxu0 0.0
    %6305 = vmatpush2.msra.mxu0 0.0
    %6306 = vmatprep.subr.mxu0 0.0
    %6307 = vmatpush2.msra.mxu0 0.0
    %6308 = vmatprep.subr.mxu0 0.0
    %6309 = vmatpush2.msra.mxu0 0.0
    %6310 = vmatprep.subr.mxu0 0.0
    %6311 = vmatpush2.msra.mxu0 0.0
    %6312 = vmatprep.subr.mxu0 0.0
    %6313 = vmatpush2.msra.mxu0 0.0
    %6314 = vmatprep.subr.mxu0 0.0
    %6315 = vmatpush2.msra.mxu0 0.0
    %6316 = vmatprep.subr.mxu0 0.0
    %6317 = vmatpush2.msra.mxu0 0.0
    %6318 = vmatprep.subr.mxu0 0.0
    %6319 = vmatpush2.msra.mxu0 0.0
    %6320 = vmatprep.subr.mxu0 0.0
    %6321 = vmatpush2.msra.mxu0 0.0
    %6322 = vmatprep.subr.mxu0 0.0
    %6323 = vmatpush2.msra.mxu0 0.0
    %6324 = vmatprep.subr.mxu0 0.0
    %6325 = vmatpush2.msra.mxu0 0.0
    %6326 = vmatprep.subr.mxu0 0.0
    %6327 = vmatpush2.msra.mxu0 0.0
    %6328 = vmatprep.mubr.f32.mxu0 0.0
    %6329 = vmatmul.mubr.f32.gmra.mxu0 %v6262
    %v6330 = vpop.f32.mrf.mxu0
    %v6331 = vadd.f32 0.0, %v6330
    %v6332 = vpop.f32.mrf.mxu0
    %6333 = vdwg.mxu0
    %v6335 = vsel %vm403, %v6331, 0
    %6337 = vmatprep.subr.mxu0 0.0
    %6338 = vmatpush1.msra.mxu0 0.0
    %6339 = vmatprep.subr.mxu0 0.0
    %6340 = vmatpush1.msra.mxu0 0.0
    %6341 = vmatprep.subr.mxu0 0.0
    %6342 = vmatpush1.msra.mxu0 0.0
    %6343 = vmatprep.subr.mxu0 0.0
    %6344 = vmatpush1.msra.mxu0 0.0
    %6345 = vmatprep.subr.mxu0 0.0
    %6346 = vmatpush1.msra.mxu0 0.0
    %6347 = vmatprep.subr.mxu0 0.0
    %6348 = vmatpush1.msra.mxu0 0.0
    %6349 = vmatprep.subr.mxu0 0.0
    %6350 = vmatpush1.msra.mxu0 0.0
    %6351 = vmatprep.subr.mxu0 0.0
    %6352 = vmatpush1.msra.mxu0 0.0
    %6353 = vmatprep.subr.mxu0 0.0
    %6354 = vmatpush1.msra.mxu0 0.0
    %6355 = vmatprep.subr.mxu0 0.0
    %6356 = vmatpush1.msra.mxu0 0.0
    %6357 = vmatprep.subr.mxu0 0.0
    %6358 = vmatpush1.msra.mxu0 0.0
    %6359 = vmatprep.subr.mxu0 0.0
    %6360 = vmatpush1.msra.mxu0 0.0
    %6361 = vmatprep.subr.mxu0 0.0
    %6362 = vmatpush1.msra.mxu0 0.0
    %6363 = vmatprep.subr.mxu0 0.0
    %6364 = vmatpush1.msra.mxu0 0.0
    %6365 = vmatprep.subr.mxu0 0.0
    %6366 = vmatpush1.msra.mxu0 0.0
    %6367 = vmatprep.subr.mxu0 0.0
    %6368 = vmatpush1.msra.mxu0 %v5407
    %6369 = vmatprep.subr.mxu0 0.0
    %6370 = vmatpush2.msra.mxu0 0.0
    %6371 = vmatprep.subr.mxu0 0.0
    %6372 = vmatpush2.msra.mxu0 0.0
    %6373 = vmatprep.subr.mxu0 0.0
    %6374 = vmatpush2.msra.mxu0 0.0
    %6375 = vmatprep.subr.mxu0 0.0
    %6376 = vmatpush2.msra.mxu0 0.0
    %6377 = vmatprep.subr.mxu0 0.0
    %6378 = vmatpush2.msra.mxu0 0.0
    %6379 = vmatprep.subr.mxu0 0.0
    %6380 = vmatpush2.msra.mxu0 0.0
    %6381 = vmatprep.subr.mxu0 0.0
    %6382 = vmatpush2.msra.mxu0 0.0
    %6383 = vmatprep.subr.mxu0 0.0
    %6384 = vmatpush2.msra.mxu0 0.0
    %6385 = vmatprep.subr.mxu0 0.0
    %6386 = vmatpush2.msra.mxu0 0.0
    %6387 = vmatprep.subr.mxu0 0.0
    %6388 = vmatpush2.msra.mxu0 0.0
    %6389 = vmatprep.subr.mxu0 0.0
    %6390 = vmatpush2.msra.mxu0 0.0
    %6391 = vmatprep.subr.mxu0 0.0
    %6392 = vmatpush2.msra.mxu0 0.0
    %6393 = vmatprep.subr.mxu0 0.0
    %6394 = vmatpush2.msra.mxu0 0.0
    %6395 = vmatprep.subr.mxu0 0.0
    %6396 = vmatpush2.msra.mxu0 0.0
    %6397 = vmatprep.subr.mxu0 0.0
    %6398 = vmatpush2.msra.mxu0 0.0
    %6399 = vmatprep.subr.mxu0 0.0
    %6400 = vmatpush2.msra.mxu0 0.0
    %6401 = vmatprep.mubr.f32.mxu0 0.0
    %6402 = vmatmul.mubr.f32.gmra.mxu0 %v6335
    %v6403 = vpop.f32.mrf.mxu0
    %v6404 = vadd.f32 0.0, %v6403
    %v6405 = vpop.f32.mrf.mxu0
    %6406 = vdwg.mxu0
    %v6408 = vsel %vm403, %v6404, 0
    %6410 = vmatprep.subr.mxu0 0.0
    %6411 = vmatpush1.msra.mxu0 0.0
    %6412 = vmatprep.subr.mxu0 0.0
    %6413 = vmatpush1.msra.mxu0 0.0
    %6414 = vmatprep.subr.mxu0 0.0
    %6415 = vmatpush1.msra.mxu0 0.0
    %6416 = vmatprep.subr.mxu0 0.0
    %6417 = vmatpush1.msra.mxu0 0.0
    %6418 = vmatprep.subr.mxu0 0.0
    %6419 = vmatpush1.msra.mxu0 0.0
    %6420 = vmatprep.subr.mxu0 0.0
    %6421 = vmatpush1.msra.mxu0 0.0
    %6422 = vmatprep.subr.mxu0 0.0
    %6423 = vmatpush1.msra.mxu0 0.0
    %6424 = vmatprep.subr.mxu0 0.0
    %6425 = vmatpush1.msra.mxu0 0.0
    %6426 = vmatprep.subr.mxu0 0.0
    %6427 = vmatpush1.msra.mxu0 0.0
    %6428 = vmatprep.subr.mxu0 0.0
    %6429 = vmatpush1.msra.mxu0 0.0
    %6430 = vmatprep.subr.mxu0 0.0
    %6431 = vmatpush1.msra.mxu0 0.0
    %6432 = vmatprep.subr.mxu0 0.0
    %6433 = vmatpush1.msra.mxu0 0.0
    %6434 = vmatprep.subr.mxu0 0.0
    %6435 = vmatpush1.msra.mxu0 0.0
    %6436 = vmatprep.subr.mxu0 0.0
    %6437 = vmatpush1.msra.mxu0 0.0
    %6438 = vmatprep.subr.mxu0 0.0
    %6439 = vmatpush1.msra.mxu0 0.0
    %6440 = vmatprep.subr.mxu0 0.0
    %6441 = vmatpush1.msra.mxu0 %v5380
    %6442 = vmatprep.subr.mxu0 0.0
    %6443 = vmatpush2.msra.mxu0 0.0
    %6444 = vmatprep.subr.mxu0 0.0
    %6445 = vmatpush2.msra.mxu0 0.0
    %6446 = vmatprep.subr.mxu0 0.0
    %6447 = vmatpush2.msra.mxu0 0.0
    %6448 = vmatprep.subr.mxu0 0.0
    %6449 = vmatpush2.msra.mxu0 0.0
    %6450 = vmatprep.subr.mxu0 0.0
    %6451 = vmatpush2.msra.mxu0 0.0
    %6452 = vmatprep.subr.mxu0 0.0
    %6453 = vmatpush2.msra.mxu0 0.0
    %6454 = vmatprep.subr.mxu0 0.0
    %6455 = vmatpush2.msra.mxu0 0.0
    %6456 = vmatprep.subr.mxu0 0.0
    %6457 = vmatpush2.msra.mxu0 0.0
    %6458 = vmatprep.subr.mxu0 0.0
    %6459 = vmatpush2.msra.mxu0 0.0
    %6460 = vmatprep.subr.mxu0 0.0
    %6461 = vmatpush2.msra.mxu0 0.0
    %6462 = vmatprep.subr.mxu0 0.0
    %6463 = vmatpush2.msra.mxu0 0.0
    %6464 = vmatprep.subr.mxu0 0.0
    %6465 = vmatpush2.msra.mxu0 0.0
    %6466 = vmatprep.subr.mxu0 0.0
    %6467 = vmatpush2.msra.mxu0 0.0
    %6468 = vmatprep.subr.mxu0 0.0
    %6469 = vmatpush2.msra.mxu0 0.0
    %6470 = vmatprep.subr.mxu0 0.0
    %6471 = vmatpush2.msra.mxu0 0.0
    %6472 = vmatprep.subr.mxu0 0.0
    %6473 = vmatpush2.msra.mxu0 0.0
    %6474 = vmatprep.mubr.f32.mxu0 0.0
    %6475 = vmatmul.mubr.f32.gmra.mxu0 %v6408
    %v6476 = vpop.f32.mrf.mxu0
    %v6477 = vadd.f32 0.0, %v6476
    %v6478 = vpop.f32.mrf.mxu0
    %6479 = vdwg.mxu0
    %v6481 = vsel %vm403, %v6477, 0
    %6483 = vmatprep.subr.mxu0 0.0
    %6484 = vmatpush1.msra.mxu0 0.0
    %6485 = vmatprep.subr.mxu0 0.0
    %6486 = vmatpush1.msra.mxu0 0.0
    %6487 = vmatprep.subr.mxu0 0.0
    %6488 = vmatpush1.msra.mxu0 0.0
    %6489 = vmatprep.subr.mxu0 0.0
    %6490 = vmatpush1.msra.mxu0 0.0
    %6491 = vmatprep.subr.mxu0 0.0
    %6492 = vmatpush1.msra.mxu0 0.0
    %6493 = vmatprep.subr.mxu0 0.0
    %6494 = vmatpush1.msra.mxu0 0.0
    %6495 = vmatprep.subr.mxu0 0.0
    %6496 = vmatpush1.msra.mxu0 0.0
    %6497 = vmatprep.subr.mxu0 0.0
    %6498 = vmatpush1.msra.mxu0 0.0
    %6499 = vmatprep.subr.mxu0 0.0
    %6500 = vmatpush1.msra.mxu0 0.0
    %6501 = vmatprep.subr.mxu0 0.0
    %6502 = vmatpush1.msra.mxu0 0.0
    %6503 = vmatprep.subr.mxu0 0.0
    %6504 = vmatpush1.msra.mxu0 0.0
    %6505 = vmatprep.subr.mxu0 0.0
    %6506 = vmatpush1.msra.mxu0 0.0
    %6507 = vmatprep.subr.mxu0 0.0
    %6508 = vmatpush1.msra.mxu0 0.0
    %6509 = vmatprep.subr.mxu0 0.0
    %6510 = vmatpush1.msra.mxu0 0.0
    %6511 = vmatprep.subr.mxu0 0.0
    %6512 = vmatpush1.msra.mxu0 0.0
    %6513 = vmatprep.subr.mxu0 0.0
    %6514 = vmatpush1.msra.mxu0 %v5353
    %6515 = vmatprep.subr.mxu0 0.0
    %6516 = vmatpush2.msra.mxu0 0.0
    %6517 = vmatprep.subr.mxu0 0.0
    %6518 = vmatpush2.msra.mxu0 0.0
    %6519 = vmatprep.subr.mxu0 0.0
    %6520 = vmatpush2.msra.mxu0 0.0
    %6521 = vmatprep.subr.mxu0 0.0
    %6522 = vmatpush2.msra.mxu0 0.0
    %6523 = vmatprep.subr.mxu0 0.0
    %6524 = vmatpush2.msra.mxu0 0.0
    %6525 = vmatprep.subr.mxu0 0.0
    %6526 = vmatpush2.msra.mxu0 0.0
    %6527 = vmatprep.subr.mxu0 0.0
    %6528 = vmatpush2.msra.mxu0 0.0
    %6529 = vmatprep.subr.mxu0 0.0
    %6530 = vmatpush2.msra.mxu0 0.0
    %6531 = vmatprep.subr.mxu0 0.0
    %6532 = vmatpush2.msra.mxu0 0.0
    %6533 = vmatprep.subr.mxu0 0.0
    %6534 = vmatpush2.msra.mxu0 0.0
    %6535 = vmatprep.subr.mxu0 0.0
    %6536 = vmatpush2.msra.mxu0 0.0
    %6537 = vmatprep.subr.mxu0 0.0
    %6538 = vmatpush2.msra.mxu0 0.0
    %6539 = vmatprep.subr.mxu0 0.0
    %6540 = vmatpush2.msra.mxu0 0.0
    %6541 = vmatprep.subr.mxu0 0.0
    %6542 = vmatpush2.msra.mxu0 0.0
    %6543 = vmatprep.subr.mxu0 0.0
    %6544 = vmatpush2.msra.mxu0 0.0
    %6545 = vmatprep.subr.mxu0 0.0
    %6546 = vmatpush2.msra.mxu0 0.0
    %6547 = vmatprep.mubr.f32.mxu0 0.0
    %6548 = vmatmul.mubr.f32.gmra.mxu0 %v6481
    %v6549 = vpop.f32.mrf.mxu0
    %v6550 = vadd.f32 0.0, %v6549
    %v6551 = vpop.f32.mrf.mxu0
    %6552 = vdwg.mxu0
    %v6553 = vadd.f32 %v4930, %v4981
    %v6554 = vadd.f32 %v6553, %v4987
    %v6555 = vmul.f32 %v1699, %v516
    %6557 = vrot.lane.b32.xlu0 %v6555, 80
    %v6558 = vpop.permute.xlu0 %6557
    %v6560 = vadd.f32 %v4977, %v6558
    %v6561 = vmul.f32 %v1709, %v516
    %6563 = vrot.lane.b32.xlu0 %v6561, 72
    %v6564 = vpop.permute.xlu0 %6563
    %v6566 = vadd.f32 %v6560, %v6564
    %6568 = vrot.lane.b32.xlu0 %v6554, 48
    %v6569 = vpop.permute.xlu0 %6568
    %v6571 = vmul.f32 %v377, %v6569
    %6572 = vrot.lane.b32.xlu0 %v4998, 88
    %v6573 = vpop.permute.xlu0 %6572
    %v6575 = vmul.f32 %v374, %v6573
    %v6576 = vadd.f32 %v6571, %v6575
    %6578 = vrot.lane.b32.xlu0 %v6566, 48
    %v6579 = vpop.permute.xlu0 %6578
    %v6581 = vmul.f32 %v377, %v6579
    %6582 = vrot.lane.b32.xlu0 %v4998, 104
    %v6583 = vpop.permute.xlu0 %6582
    %v6585 = vmul.f32 %v374, %v6583
    %v6586 = vadd.f32 %v6581, %v6585
    %v6588 = vsel %vm403, %v5310, 0
    %6590 = vmatprep.subr.mxu0 0.0
    %6591 = vmatpush1.msra.mxu0 0.0
    %6592 = vmatprep.subr.mxu0 0.0
    %6593 = vmatpush1.msra.mxu0 0.0
    %6594 = vmatprep.subr.mxu0 0.0
    %6595 = vmatpush1.msra.mxu0 0.0
    %6596 = vmatprep.subr.mxu0 0.0
    %6597 = vmatpush1.msra.mxu0 0.0
    %6598 = vmatprep.subr.mxu0 0.0
    %6599 = vmatpush1.msra.mxu0 0.0
    %6600 = vmatprep.subr.mxu0 0.0
    %6601 = vmatpush1.msra.mxu0 0.0
    %6602 = vmatprep.subr.mxu0 0.0
    %6603 = vmatpush1.msra.mxu0 0.0
    %6604 = vmatprep.subr.mxu0 0.0
    %6605 = vmatpush1.msra.mxu0 0.0
    %6606 = vmatprep.subr.mxu0 0.0
    %6607 = vmatpush1.msra.mxu0 0.0
    %6608 = vmatprep.subr.mxu0 0.0
    %6609 = vmatpush1.msra.mxu0 0.0
    %6610 = vmatprep.subr.mxu0 0.0
    %6611 = vmatpush1.msra.mxu0 0.0
    %6612 = vmatprep.subr.mxu0 0.0
    %6613 = vmatpush1.msra.mxu0 0.0
    %6614 = vmatprep.subr.mxu0 0.0
    %6615 = vmatpush1.msra.mxu0 0.0
    %6616 = vmatprep.subr.mxu0 0.0
    %6617 = vmatpush1.msra.mxu0 0.0
    %6618 = vmatprep.subr.mxu0 0.0
    %6619 = vmatpush1.msra.mxu0 0.0
    %6620 = vmatprep.subr.mxu0 0.0
    %6621 = vmatpush1.msra.mxu0 %v6039
    %6622 = vmatprep.subr.mxu0 0.0
    %6623 = vmatpush2.msra.mxu0 0.0
    %6624 = vmatprep.subr.mxu0 0.0
    %6625 = vmatpush2.msra.mxu0 0.0
    %6626 = vmatprep.subr.mxu0 0.0
    %6627 = vmatpush2.msra.mxu0 0.0
    %6628 = vmatprep.subr.mxu0 0.0
    %6629 = vmatpush2.msra.mxu0 0.0
    %6630 = vmatprep.subr.mxu0 0.0
    %6631 = vmatpush2.msra.mxu0 0.0
    %6632 = vmatprep.subr.mxu0 0.0
    %6633 = vmatpush2.msra.mxu0 0.0
    %6634 = vmatprep.subr.mxu0 0.0
    %6635 = vmatpush2.msra.mxu0 0.0
    %6636 = vmatprep.subr.mxu0 0.0
    %6637 = vmatpush2.msra.mxu0 0.0
    %6638 = vmatprep.subr.mxu0 0.0
    %6639 = vmatpush2.msra.mxu0 0.0
    %6640 = vmatprep.subr.mxu0 0.0
    %6641 = vmatpush2.msra.mxu0 0.0
    %6642 = vmatprep.subr.mxu0 0.0
    %6643 = vmatpush2.msra.mxu0 0.0
    %6644 = vmatprep.subr.mxu0 0.0
    %6645 = vmatpush2.msra.mxu0 0.0
    %6646 = vmatprep.subr.mxu0 0.0
    %6647 = vmatpush2.msra.mxu0 0.0
    %6648 = vmatprep.subr.mxu0 0.0
    %6649 = vmatpush2.msra.mxu0 0.0
    %6650 = vmatprep.subr.mxu0 0.0
    %6651 = vmatpush2.msra.mxu0 0.0
    %6652 = vmatprep.subr.mxu0 0.0
    %6653 = vmatpush2.msra.mxu0 0.0
    %6654 = vmatprep.mubr.f32.mxu0 0.0
    %6655 = vmatmul.mubr.f32.gmra.mxu0 %v6588
    %v6656 = vpop.f32.mrf.mxu0
    %v6657 = vadd.f32 0.0, %v6656
    %v6658 = vpop.f32.mrf.mxu0
    %6659 = vdwg.mxu0
    %6660 = vrot.lane.b32.xlu0 %v5088, 72
    %v6661 = vpop.permute.xlu0 %6660
    %v6664 = vsel %vm403, %v6657, 0
    %6666 = vmatprep.subr.mxu0 0.0
    %6667 = vmatpush1.msra.mxu0 0.0
    %6668 = vmatprep.subr.mxu0 0.0
    %6669 = vmatpush1.msra.mxu0 0.0
    %6670 = vmatprep.subr.mxu0 0.0
    %6671 = vmatpush1.msra.mxu0 0.0
    %6672 = vmatprep.subr.mxu0 0.0
    %6673 = vmatpush1.msra.mxu0 0.0
    %6674 = vmatprep.subr.mxu0 0.0
    %6675 = vmatpush1.msra.mxu0 0.0
    %6676 = vmatprep.subr.mxu0 0.0
    %6677 = vmatpush1.msra.mxu0 0.0
    %6678 = vmatprep.subr.mxu0 0.0
    %6679 = vmatpush1.msra.mxu0 0.0
    %6680 = vmatprep.subr.mxu0 0.0
    %6681 = vmatpush1.msra.mxu0 0.0
    %6682 = vmatprep.subr.mxu0 0.0
    %6683 = vmatpush1.msra.mxu0 0.0
    %6684 = vmatprep.subr.mxu0 0.0
    %6685 = vmatpush1.msra.mxu0 0.0
    %6686 = vmatprep.subr.mxu0 0.0
    %6687 = vmatpush1.msra.mxu0 0.0
    %6688 = vmatprep.subr.mxu0 0.0
    %6689 = vmatpush1.msra.mxu0 0.0
    %6690 = vmatprep.subr.mxu0 0.0
    %6691 = vmatpush1.msra.mxu0 0.0
    %6692 = vmatprep.subr.mxu0 0.0
    %6693 = vmatpush1.msra.mxu0 0.0
    %6694 = vmatprep.subr.mxu0 0.0
    %6695 = vmatpush1.msra.mxu0 0.0
    %6696 = vmatprep.subr.mxu0 0.0
    %6697 = vmatpush1.msra.mxu0 %v6576
    %6698 = vmatprep.subr.mxu0 0.0
    %6699 = vmatpush2.msra.mxu0 0.0
    %6700 = vmatprep.subr.mxu0 0.0
    %6701 = vmatpush2.msra.mxu0 0.0
    %6702 = vmatprep.subr.mxu0 0.0
    %6703 = vmatpush2.msra.mxu0 0.0
    %6704 = vmatprep.subr.mxu0 0.0
    %6705 = vmatpush2.msra.mxu0 0.0
    %6706 = vmatprep.subr.mxu0 0.0
    %6707 = vmatpush2.msra.mxu0 0.0
    %6708 = vmatprep.subr.mxu0 0.0
    %6709 = vmatpush2.msra.mxu0 0.0
    %6710 = vmatprep.subr.mxu0 0.0
    %6711 = vmatpush2.msra.mxu0 0.0
    %6712 = vmatprep.subr.mxu0 0.0
    %6713 = vmatpush2.msra.mxu0 0.0
    %6714 = vmatprep.subr.mxu0 0.0
    %6715 = vmatpush2.msra.mxu0 0.0
    %6716 = vmatprep.subr.mxu0 0.0
    %6717 = vmatpush2.msra.mxu0 0.0
    %6718 = vmatprep.subr.mxu0 0.0
    %6719 = vmatpush2.msra.mxu0 0.0
    %6720 = vmatprep.subr.mxu0 0.0
    %6721 = vmatpush2.msra.mxu0 0.0
    %6722 = vmatprep.subr.mxu0 0.0
    %6723 = vmatpush2.msra.mxu0 0.0
    %6724 = vmatprep.subr.mxu0 0.0
    %6725 = vmatpush2.msra.mxu0 0.0
    %6726 = vmatprep.subr.mxu0 0.0
    %6727 = vmatpush2.msra.mxu0 0.0
    %6728 = vmatprep.subr.mxu0 0.0
    %6729 = vmatpush2.msra.mxu0 0.0
    %6730 = vmatprep.mubr.f32.mxu0 0.0
    %6731 = vmatmul.mubr.f32.gmra.mxu0 %v6664
    %v6732 = vpop.f32.mrf.mxu0
    %v6733 = vadd.f32 %v6661, %v6732
    %v6734 = vpop.f32.mrf.mxu0
    %6735 = vdwg.mxu0
    %v6736 = vtanh.pop %v6733
    %v6738 = vsel %vm403, %v6736, 0
    %6740 = vmatprep.subr.mxu0 0.0
    %6741 = vmatpush1.msra.mxu0 0.0
    %6742 = vmatprep.subr.mxu0 0.0
    %6743 = vmatpush1.msra.mxu0 0.0
    %6744 = vmatprep.subr.mxu0 0.0
    %6745 = vmatpush1.msra.mxu0 0.0
    %6746 = vmatprep.subr.mxu0 0.0
    %6747 = vmatpush1.msra.mxu0 0.0
    %6748 = vmatprep.subr.mxu0 0.0
    %6749 = vmatpush1.msra.mxu0 0.0
    %6750 = vmatprep.subr.mxu0 0.0
    %6751 = vmatpush1.msra.mxu0 0.0
    %6752 = vmatprep.subr.mxu0 0.0
    %6753 = vmatpush1.msra.mxu0 0.0
    %6754 = vmatprep.subr.mxu0 0.0
    %6755 = vmatpush1.msra.mxu0 0.0
    %6756 = vmatprep.subr.mxu0 0.0
    %6757 = vmatpush1.msra.mxu0 0.0
    %6758 = vmatprep.subr.mxu0 0.0
    %6759 = vmatpush1.msra.mxu0 0.0
    %6760 = vmatprep.subr.mxu0 0.0
    %6761 = vmatpush1.msra.mxu0 0.0
    %6762 = vmatprep.subr.mxu0 0.0
    %6763 = vmatpush1.msra.mxu0 0.0
    %6764 = vmatprep.subr.mxu0 0.0
    %6765 = vmatpush1.msra.mxu0 0.0
    %6766 = vmatprep.subr.mxu0 0.0
    %6767 = vmatpush1.msra.mxu0 0.0
    %6768 = vmatprep.subr.mxu0 0.0
    %6769 = vmatpush1.msra.mxu0 0.0
    %6770 = vmatprep.subr.mxu0 0.0
    %6771 = vmatpush1.msra.mxu0 %v6586
    %6772 = vmatprep.subr.mxu0 0.0
    %6773 = vmatpush2.msra.mxu0 0.0
    %6774 = vmatprep.subr.mxu0 0.0
    %6775 = vmatpush2.msra.mxu0 0.0
    %6776 = vmatprep.subr.mxu0 0.0
    %6777 = vmatpush2.msra.mxu0 0.0
    %6778 = vmatprep.subr.mxu0 0.0
    %6779 = vmatpush2.msra.mxu0 0.0
    %6780 = vmatprep.subr.mxu0 0.0
    %6781 = vmatpush2.msra.mxu0 0.0
    %6782 = vmatprep.subr.mxu0 0.0
    %6783 = vmatpush2.msra.mxu0 0.0
    %6784 = vmatprep.subr.mxu0 0.0
    %6785 = vmatpush2.msra.mxu0 0.0
    %6786 = vmatprep.subr.mxu0 0.0
    %6787 = vmatpush2.msra.mxu0 0.0
    %6788 = vmatprep.subr.mxu0 0.0
    %6789 = vmatpush2.msra.mxu0 0.0
    %6790 = vmatprep.subr.mxu0 0.0
    %6791 = vmatpush2.msra.mxu0 0.0
    %6792 = vmatprep.subr.mxu0 0.0
    %6793 = vmatpush2.msra.mxu0 0.0
    %6794 = vmatprep.subr.mxu0 0.0
    %6795 = vmatpush2.msra.mxu0 0.0
    %6796 = vmatprep.subr.mxu0 0.0
    %6797 = vmatpush2.msra.mxu0 0.0
    %6798 = vmatprep.subr.mxu0 0.0
    %6799 = vmatpush2.msra.mxu0 0.0
    %6800 = vmatprep.subr.mxu0 0.0
    %6801 = vmatpush2.msra.mxu0 0.0
    %6802 = vmatprep.subr.mxu0 0.0
    %6803 = vmatpush2.msra.mxu0 0.0
    %6804 = vmatprep.mubr.f32.mxu0 0.0
    %6805 = vmatmul.mubr.f32.gmra.mxu0 %v6738
    %v6806 = vpop.f32.mrf.mxu0
    %v6807 = vadd.f32 0.0, %v6806
    %v6808 = vpop.f32.mrf.mxu0
    %6809 = vdwg.mxu0
    %v6811 = vsel %vm403, %v6807, 0
    %6813 = vmatprep.subr.mxu0 0.0
    %6814 = vmatpush1.msra.mxu0 0.0
    %6815 = vmatprep.subr.mxu0 0.0
    %6816 = vmatpush1.msra.mxu0 0.0
    %6817 = vmatprep.subr.mxu0 0.0
    %6818 = vmatpush1.msra.mxu0 0.0
    %6819 = vmatprep.subr.mxu0 0.0
    %6820 = vmatpush1.msra.mxu0 0.0
    %6821 = vmatprep.subr.mxu0 0.0
    %6822 = vmatpush1.msra.mxu0 0.0
    %6823 = vmatprep.subr.mxu0 0.0
    %6824 = vmatpush1.msra.mxu0 0.0
    %6825 = vmatprep.subr.mxu0 0.0
    %6826 = vmatpush1.msra.mxu0 0.0
    %6827 = vmatprep.subr.mxu0 0.0
    %6828 = vmatpush1.msra.mxu0 0.0
    %6829 = vmatprep.subr.mxu0 0.0
    %6830 = vmatpush1.msra.mxu0 0.0
    %6831 = vmatprep.subr.mxu0 0.0
    %6832 = vmatpush1.msra.mxu0 0.0
    %6833 = vmatprep.subr.mxu0 0.0
    %6834 = vmatpush1.msra.mxu0 0.0
    %6835 = vmatprep.subr.mxu0 0.0
    %6836 = vmatpush1.msra.mxu0 0.0
    %6837 = vmatprep.subr.mxu0 0.0
    %6838 = vmatpush1.msra.mxu0 0.0
    %6839 = vmatprep.subr.mxu0 0.0
    %6840 = vmatpush1.msra.mxu0 0.0
    %6841 = vmatprep.subr.mxu0 0.0
    %6842 = vmatpush1.msra.mxu0 0.0
    %6843 = vmatprep.subr.mxu0 0.0
    %6844 = vmatpush1.msra.mxu0 %v6550
    %6845 = vmatprep.subr.mxu0 0.0
    %6846 = vmatpush2.msra.mxu0 0.0
    %6847 = vmatprep.subr.mxu0 0.0
    %6848 = vmatpush2.msra.mxu0 0.0
    %6849 = vmatprep.subr.mxu0 0.0
    %6850 = vmatpush2.msra.mxu0 0.0
    %6851 = vmatprep.subr.mxu0 0.0
    %6852 = vmatpush2.msra.mxu0 0.0
    %6853 = vmatprep.subr.mxu0 0.0
    %6854 = vmatpush2.msra.mxu0 0.0
    %6855 = vmatprep.subr.mxu0 0.0
    %6856 = vmatpush2.msra.mxu0 0.0
    %6857 = vmatprep.subr.mxu0 0.0
    %6858 = vmatpush2.msra.mxu0 0.0
    %6859 = vmatprep.subr.mxu0 0.0
    %6860 = vmatpush2.msra.mxu0 0.0
    %6861 = vmatprep.subr.mxu0 0.0
    %6862 = vmatpush2.msra.mxu0 0.0
    %6863 = vmatprep.subr.mxu0 0.0
    %6864 = vmatpush2.msra.mxu0 0.0
    %6865 = vmatprep.subr.mxu0 0.0
    %6866 = vmatpush2.msra.mxu0 0.0
    %6867 = vmatprep.subr.mxu0 0.0
    %6868 = vmatpush2.msra.mxu0 0.0
    %6869 = vmatprep.subr.mxu0 0.0
    %6870 = vmatpush2.msra.mxu0 0.0
    %6871 = vmatprep.subr.mxu0 0.0
    %6872 = vmatpush2.msra.mxu0 0.0
    %6873 = vmatprep.subr.mxu0 0.0
    %6874 = vmatpush2.msra.mxu0 0.0
    %6875 = vmatprep.subr.mxu0 0.0
    %6876 = vmatpush2.msra.mxu0 0.0
    %6877 = vmatprep.mubr.f32.mxu0 0.0
    %6878 = vmatmul.mubr.f32.gmra.mxu0 %v6811
    %v6879 = vpop.f32.mrf.mxu0
    %v6880 = vadd.f32 %v5310, %v6879
    %v6881 = vpop.f32.mrf.mxu0
    %6882 = vdwg.mxu0
    %v6883 = vmul.f32 %v6736, %v6736
    %v6884 = vsub.f32 1.0, %v6883
    %6885 = vrot.lane.b32.xlu0 %v5315, 104
    %v6886 = vpop.permute.xlu0 %6885
    %v6888 = vmul.f32 %v6884, %v6886
    %v6889 = vadd.f32 %v6888, 1.0
    %v6890 = vlog2.pop %v6889
    %v6891 = vmul.f32 %v6890, 0.6931472
    %v6892 = vsel %vm389, %v6891, 0.0
    %6893 = vadd.xlane.f32.xlu0 %v6892
    %v6894 = vpop.xlane.xlu0 %6893
    %v6895 = vadd.f32 %v5326, %v6894
    %v6896 = vlaneseq
    %v6897 = vshrl.u32 %v6896, 7
    %v6898 = vsub.s32 0, %v6897
    %v6899 = vrot.slane %v6880, %v6898
    %v6900 = vmul.f32 %v383, %v6899
    %v6901 = vadd.f32 %v3663, %v6900
    %v6902 = vlaneseq
    %v6903 = vshrl.u32 %v6902, 7
    %v6904 = vsub.s32 0, %v6903
    %v6905 = vrot.slane %v6895, %v6904
    %v6906 = vmul.f32 %v383, %v6905
    %v6907 = vadd.f32 %v3669, %v6906
    %6908 = vst.msk [vmem:[#allocation11] sm:$0x3] %vm342, %v6901
    %vm6909 = vcmask 1024
    %6910 = vst.msk [vmem:[%s13] sm:$0x3] %vm6909, %v6907
    %v6911 = vld [vmem:[%s6] sm:$0xff]
    %v6912 = vld [vmem:[%s7] sm:$0x1]
    %v6914 = vlaneseq
    %v6915 = vshrl.u32 %v6914, 7
    %v6916 = vsub.s32 0, %v6915
    %v6917 = vrot.slane %v6912, %v6916
    %v6920 = vsel %vm403, %v6901, 0
    %6922 = vmatprep.subr.mxu0 0.0
    %6923 = vmatpush1.msra.mxu0 0.0
    %6924 = vmatprep.subr.mxu0 0.0
    %6925 = vmatpush1.msra.mxu0 0.0
    %6926 = vmatprep.subr.mxu0 0.0
    %6927 = vmatpush1.msra.mxu0 0.0
    %6928 = vmatprep.subr.mxu0 0.0
    %6929 = vmatpush1.msra.mxu0 0.0
    %6930 = vmatprep.subr.mxu0 0.0
    %6931 = vmatpush1.msra.mxu0 0.0
    %6932 = vmatprep.subr.mxu0 0.0
    %6933 = vmatpush1.msra.mxu0 0.0
    %6934 = vmatprep.subr.mxu0 0.0
    %6935 = vmatpush1.msra.mxu0 0.0
    %6936 = vmatprep.subr.mxu0 0.0
    %6937 = vmatpush1.msra.mxu0 0.0
    %6938 = vmatprep.subr.mxu0 0.0
    %6939 = vmatpush1.msra.mxu0 0.0
    %6940 = vmatprep.subr.mxu0 0.0
    %6941 = vmatpush1.msra.mxu0 0.0
    %6942 = vmatprep.subr.mxu0 0.0
    %6943 = vmatpush1.msra.mxu0 0.0
    %6944 = vmatprep.subr.mxu0 0.0
    %6945 = vmatpush1.msra.mxu0 0.0
    %6946 = vmatprep.subr.mxu0 0.0
    %6947 = vmatpush1.msra.mxu0 0.0
    %6948 = vmatprep.subr.mxu0 0.0
    %6949 = vmatpush1.msra.mxu0 0.0
    %6950 = vmatprep.subr.mxu0 0.0
    %6951 = vmatpush1.msra.mxu0 0.0
    %6952 = vmatprep.subr.mxu0 0.0
    %6953 = vmatpush1.msra.mxu0 %v6911
    %6954 = vmatprep.subr.mxu0 0.0
    %6955 = vmatpush2.msra.mxu0 0.0
    %6956 = vmatprep.subr.mxu0 0.0
    %6957 = vmatpush2.msra.mxu0 0.0
    %6958 = vmatprep.subr.mxu0 0.0
    %6959 = vmatpush2.msra.mxu0 0.0
    %6960 = vmatprep.subr.mxu0 0.0
    %6961 = vmatpush2.msra.mxu0 0.0
    %6962 = vmatprep.subr.mxu0 0.0
    %6963 = vmatpush2.msra.mxu0 0.0
    %6964 = vmatprep.subr.mxu0 0.0
    %6965 = vmatpush2.msra.mxu0 0.0
    %6966 = vmatprep.subr.mxu0 0.0
    %6967 = vmatpush2.msra.mxu0 0.0
    %6968 = vmatprep.subr.mxu0 0.0
    %6969 = vmatpush2.msra.mxu0 0.0
    %6970 = vmatprep.subr.mxu0 0.0
    %6971 = vmatpush2.msra.mxu0 0.0
    %6972 = vmatprep.subr.mxu0 0.0
    %6973 = vmatpush2.msra.mxu0 0.0
    %6974 = vmatprep.subr.mxu0 0.0
    %6975 = vmatpush2.msra.mxu0 0.0
    %6976 = vmatprep.subr.mxu0 0.0
    %6977 = vmatpush2.msra.mxu0 0.0
    %6978 = vmatprep.subr.mxu0 0.0
    %6979 = vmatpush2.msra.mxu0 0.0
    %6980 = vmatprep.subr.mxu0 0.0
    %6981 = vmatpush2.msra.mxu0 0.0
    %6982 = vmatprep.subr.mxu0 0.0
    %6983 = vmatpush2.msra.mxu0 0.0
    %6984 = vmatprep.subr.mxu0 0.0
    %6985 = vmatpush2.msra.mxu0 0.0
    %6986 = vmatprep.mubr.f32.mxu0 0.0
    %6987 = vmatmul.mubr.f32.gmra.mxu0 %v6920
    %v6988 = vpop.f32.mrf.mxu0
    %v6989 = vadd.f32 %v6917, %v6988
    %v6990 = vpop.f32.mrf.mxu0
    %6991 = vdwg.mxu0
    %v6992 = vtanh.pop %v6989
    %v6993 = vld [vmem:[%s8] sm:$0xff]
    %v6994 = vld [vmem:[%s8 + $0x8] sm:$0xff]
    %v6995 = vld [vmem:[%s8 + $0x10] sm:$0xff]
    %v6996 = vld [vmem:[%s8 + $0x18] sm:$0xff]
    %v6997 = vld [vmem:[%s9] sm:$0x1]
    %v6999 = vlaneseq
    %v7000 = vshrl.u32 %v6999, 7
    %v7001 = vsub.s32 0, %v7000
    %v7002 = vrot.slane %v6997, %v7001
    %v7005 = vsel %vm187, %v6992, 0
    %7007 = vmatprep.subr.mxu0 0.0
    %7008 = vmatpush1.msra.mxu0 0.0
    %7009 = vmatprep.subr.mxu0 0.0
    %7010 = vmatpush1.msra.mxu0 0.0
    %7011 = vmatprep.subr.mxu0 0.0
    %7012 = vmatpush1.msra.mxu0 0.0
    %7013 = vmatprep.subr.mxu0 0.0
    %7014 = vmatpush1.msra.mxu0 0.0
    %7015 = vmatprep.subr.mxu0 0.0
    %7016 = vmatpush1.msra.mxu0 0.0
    %7017 = vmatprep.subr.mxu0 0.0
    %7018 = vmatpush1.msra.mxu0 0.0
    %7019 = vmatprep.subr.mxu0 0.0
    %7020 = vmatpush1.msra.mxu0 0.0
    %7021 = vmatprep.subr.mxu0 0.0
    %7022 = vmatpush1.msra.mxu0 0.0
    %7023 = vmatprep.subr.mxu0 0.0
    %7024 = vmatpush1.msra.mxu0 0.0
    %7025 = vmatprep.subr.mxu0 0.0
    %7026 = vmatpush1.msra.mxu0 0.0
    %7027 = vmatprep.subr.mxu0 0.0
    %7028 = vmatpush1.msra.mxu0 0.0
    %7029 = vmatprep.subr.mxu0 0.0
    %7030 = vmatpush1.msra.mxu0 0.0
    %7031 = vmatprep.subr.mxu0 0.0
    %7032 = vmatpush1.msra.mxu0 %v6996
    %7033 = vmatprep.subr.mxu0 0.0
    %7034 = vmatpush1.msra.mxu0 %v6995
    %7035 = vmatprep.subr.mxu0 0.0
    %7036 = vmatpush1.msra.mxu0 %v6994
    %7037 = vmatprep.subr.mxu0 0.0
    %7038 = vmatpush1.msra.mxu0 %v6993
    %7039 = vmatprep.subr.mxu0 0.0
    %7040 = vmatpush2.msra.mxu0 0.0
    %7041 = vmatprep.subr.mxu0 0.0
    %7042 = vmatpush2.msra.mxu0 0.0
    %7043 = vmatprep.subr.mxu0 0.0
    %7044 = vmatpush2.msra.mxu0 0.0
    %7045 = vmatprep.subr.mxu0 0.0
    %7046 = vmatpush2.msra.mxu0 0.0
    %7047 = vmatprep.subr.mxu0 0.0
    %7048 = vmatpush2.msra.mxu0 0.0
    %7049 = vmatprep.subr.mxu0 0.0
    %7050 = vmatpush2.msra.mxu0 0.0
    %7051 = vmatprep.subr.mxu0 0.0
    %7052 = vmatpush2.msra.mxu0 0.0
    %7053 = vmatprep.subr.mxu0 0.0
    %7054 = vmatpush2.msra.mxu0 0.0
    %7055 = vmatprep.subr.mxu0 0.0
    %7056 = vmatpush2.msra.mxu0 0.0
    %7057 = vmatprep.subr.mxu0 0.0
    %7058 = vmatpush2.msra.mxu0 0.0
    %7059 = vmatprep.subr.mxu0 0.0
    %7060 = vmatpush2.msra.mxu0 0.0
    %7061 = vmatprep.subr.mxu0 0.0
    %7062 = vmatpush2.msra.mxu0 0.0
    %7063 = vmatprep.subr.mxu0 0.0
    %7064 = vmatpush2.msra.mxu0 0.0
    %7065 = vmatprep.subr.mxu0 0.0
    %7066 = vmatpush2.msra.mxu0 0.0
    %7067 = vmatprep.subr.mxu0 0.0
    %7068 = vmatpush2.msra.mxu0 0.0
    %7069 = vmatprep.subr.mxu0 0.0
    %7070 = vmatpush2.msra.mxu0 0.0
    %7071 = vmatprep.mubr.f32.mxu0 0.0
    %7072 = vmatmul.mubr.f32.gmra.mxu0 %v7005
    %v7073 = vpop.f32.mrf.mxu0
    %v7074 = vadd.f32 %v7002, %v7073
    %v7075 = vpop.f32.mrf.mxu0
    %7076 = vdwg.mxu0
    %vm7077 = vcmask 517120
    %7078 = vst.msk [vmem:[#allocation5] sm:$0x3] %vm7077, %v7074
    // Predicated region
    $region46: #{hs_vae_forward.1} parent=1 // pred_check
      _
    $region47: #{hs_vae_forward.1} parent=1 // pred_check_branch
      %7080 = sbr.rel (0) target = $region49
    $region48: #{hs_vae_forward.1} parent=1 // pred_region
      %s7082 = ssub.s32 32, 32
      %7083 = vsyncadd [#allocation4], %s7082
      %s7085 = sshll.u32 [#allocation5], 4
      %s7086 = int_to_ptr.vmem [resolvable:$true] %s7085
      %7088 = dma.vmem_to_hbm [thread:$0]  %s7086, 32, %s10, [#allocation4]
    $region49: #{hs_vae_forward.1} parent=1 // pred_fallthru
      _
    // Predicated region
    $region50: #{hs_vae_forward.1} parent=1 // pred_check
      _
    $region51: #{hs_vae_forward.1} parent=1 // pred_check_branch
      %7090 = sbr.rel (0) target = $region53
    $region52: #{hs_vae_forward.1} parent=1 // pred_region
      %s7092 = ssub.s32 32, 32
      %7093 = vsyncadd [#allocation7], %s7092
      %s7095 = sshll.u32 [#allocation6], 4
      %s7096 = int_to_ptr.vmem [resolvable:$true] %s7095
      %7098 = dma.vmem_to_hbm [thread:$0]  %s7096, 32, %s11, [#allocation7]
    $region53: #{hs_vae_forward.1} parent=1 // pred_fallthru
      _
    // Predicated region
    $region54: #{hs_vae_forward.1} parent=1 // pred_check
      _
    $region55: #{hs_vae_forward.1} parent=1 // pred_check_branch
      %7100 = sbr.rel (0) target = $region57
    $region56: #{hs_vae_forward.1} parent=1 // pred_region
      %s7102 = ssub.s32 32, 32
      %7103 = vsyncadd [#allocation7], %s7102
      %s7105 = sshll.u32 [#allocation8], 4
      %s7106 = int_to_ptr.vmem [resolvable:$true] %s7105
      %7108 = dma.vmem_to_hbm [thread:$0]  %s7106, 32, %s12, [#allocation7]
    $region57: #{hs_vae_forward.1} parent=1 // pred_fallthru
      _
    // Predicated region
    $region58: #{hs_vae_forward.1} parent=1 // pred_check
      _
    $region59: #{hs_vae_forward.1} parent=1 // pred_check_branch
      %7110 = sbr.rel (0) target = $region61
    $region60: #{hs_vae_forward.1} parent=1 // pred_region
      _
    $region61: #{hs_vae_forward.1} parent=1 // pred_fallthru
      _
    // Predicated region
    $region62: #{hs_vae_forward.1} parent=1 // pred_check
      _
    $region63: #{hs_vae_forward.1} parent=1 // pred_check_branch
      %7112 = sbr.rel (0) target = $region65
    $region64: #{hs_vae_forward.1} parent=1 // pred_region
      %s7114 = ssub.s32 32, 32
      %7115 = vsyncadd [#allocation10], %s7114
      %s7117 = sshll.u32 [#allocation9], 4
      %s7118 = int_to_ptr.vmem [resolvable:$true] %s7117
      %7120 = dma.vmem_to_hbm [thread:$0]  %s7118, 32, %s14, [#allocation10]
    $region65: #{hs_vae_forward.1} parent=1 // pred_fallthru
      _
    // Predicated region
    $region66: #{hs_vae_forward.1} parent=1 // pred_check
      _
    $region67: #{hs_vae_forward.1} parent=1 // pred_check_branch
      %7122 = sbr.rel (0) target = $region69
    $region68: #{hs_vae_forward.1} parent=1 // pred_region
      %s7124 = ssub.s32 32, 32
      %7125 = vsyncadd [#allocation10], %s7124
      %s7127 = sshll.u32 [#allocation11], 4
      %s7128 = int_to_ptr.vmem [resolvable:$true] %s7127
      %7130 = dma.vmem_to_hbm [thread:$0]  %s7128, 32, %s15, [#allocation10]
    $region69: #{hs_vae_forward.1} parent=1 // pred_fallthru
      _
    // Predicated region
    $region70: #{hs_vae_forward.1} parent=1 // pred_check
      _
    $region71: #{hs_vae_forward.1} parent=1 // pred_check_branch
      %7132 = sbr.rel (0) target = $region73
    $region72: #{hs_vae_forward.1} parent=1 // pred_region
      %7133 = dma.done [#allocation4], 32
    $region73: #{hs_vae_forward.1} parent=1 // pred_fallthru
      _
    // Predicated region
    $region74: #{hs_vae_forward.1} parent=1 // pred_check
      _
    $region75: #{hs_vae_forward.1} parent=1 // pred_check_branch
      %7135 = sbr.rel (0) target = $region77
    $region76: #{hs_vae_forward.1} parent=1 // pred_region
      %7136 = dma.done [#allocation7], 32
    $region77: #{hs_vae_forward.1} parent=1 // pred_fallthru
      _
    // Predicated region
    $region78: #{hs_vae_forward.1} parent=1 // pred_check
      _
    $region79: #{hs_vae_forward.1} parent=1 // pred_check_branch
      %7138 = sbr.rel (0) target = $region81
    $region80: #{hs_vae_forward.1} parent=1 // pred_region
      %7139 = dma.done [#allocation7], 32
    $region81: #{hs_vae_forward.1} parent=1 // pred_fallthru
      _
    // Predicated region
    $region82: #{hs_vae_forward.1} parent=1 // pred_check
      _
    $region83: #{hs_vae_forward.1} parent=1 // pred_check_branch
      %7141 = sbr.rel (0) target = $region85
    $region84: #{hs_vae_forward.1} parent=1 // pred_region
      _
    $region85: #{hs_vae_forward.1} parent=1 // pred_fallthru
      _
    // Predicated region
    $region86: #{hs_vae_forward.1} parent=1 // pred_check
      _
    $region87: #{hs_vae_forward.1} parent=1 // pred_check_branch
      %7143 = sbr.rel (0) target = $region89
    $region88: #{hs_vae_forward.1} parent=1 // pred_region
      %7144 = dma.done [#allocation10], 32
    $region89: #{hs_vae_forward.1} parent=1 // pred_fallthru
      _
    // Predicated region
    $region90: #{hs_vae_forward.1} parent=1 // pred_check
      _
    $region91: #{hs_vae_forward.1} parent=1 // pred_check_branch
      %7146 = sbr.rel (0) target = $region93
    $region92: #{hs_vae_forward.1} parent=1 // pred_region
      %7147 = dma.done [#allocation10], 32
    $region93: #{hs_vae_forward.1} parent=1 // pred_fallthru
      _
    %7148 = vsyncpa [#allocation3], 1
    %7149 = vsyncpa [#allocation4], 1
    %7150 = vsyncpa [#allocation7], 1
    %7151 = vsyncpa [#allocation10], 1

</llo_original>
